<compile_context>
chip_gen: v6e
topology: v6e:2x2x1
jax: 0.10.0
libtpu: 0.0.40
codegen_flags: <defaults>
</compile_context>

<pallas_src>
import functools

import jax
import jax.numpy as jnp
from jax import lax
from jax.experimental import pallas as pl
from jax.experimental.pallas import tpu as pltpu


# -----------------------------------------------------------------------------
# Pallas kernel: all three heads, one H-strip (all batch elements) per step.
# -----------------------------------------------------------------------------
def _fused_head_kernel(x_ref, w3_ref, b3_ref, w1_ref, b1_ref, o_ref, *,
                       SH, W, num_classes):
    """x_ref : (N, SH+2, W+2, Cin) bf16 pre-padded strip (1-px halo all around)
       w3_ref: (9, Cin, Cmid)      bf16 fused 3x3 weights (BN folded, heads concat)
       b3_ref: (1, Cmid)           f32  fused folded-BN bias
       w1_ref: (Cmid, Ctot)        bf16 block-diagonal 1x1 weights
       b1_ref: (1, Ctot)           f32  fused 1x1 bias
       o_ref : (N, Ctot, SH*W)     f32  lane-dense output (already NCHW layout)
    """
    N = x_ref.shape[0]
    Cin = x_ref.shape[-1]
    MW = SH * W
    M = N * MW

    x = x_ref[...]                                        # (N, SH+2, W+2, Cin)

    # 3x3 conv (BN folded, all heads concatenated along Cout) as nine per-tap
    # (M, Cin) x (Cin, Cmid) MXU matmuls accumulated in f32: no im2col temp,
    # no half-lane concat, no padded-scratch memset.
    acc = None
    for k in range(9):
        dy, dx = divmod(k, 3)
        tap = x[:, dy:dy + SH, dx:dx + W, :].reshape(M, Cin)
        d = jnp.dot(tap, w3_ref[k], preferred_element_type=jnp.float32)
        acc = d if acc is None else acc + d
    acc = jnp.maximum(acc + b3_ref[...], 0.0)             # bias + ReLU, f32

    # Block-diagonal 1x1 conv for all three heads (bf16 operands, f32 acc).
    out = jnp.dot(acc.astype(w1_ref.dtype), w1_ref[...],
                  preferred_element_type=jnp.float32) + b1_ref[...]   # (M, Ctot)

    # Lane-dense NCHW-layout stores.  Sigmoid only on the class channels via
    # two static, sublane-aligned writes (no iota/where, no EUP work on wh/reg).
    for n in range(N):                                    # N is a Python int
        o_n = jnp.transpose(out[n * MW:(n + 1) * MW, :])  # (Ctot, SH*W)
        o_ref[n, :num_classes, :] = jax.nn.sigmoid(
            o_n[:num_classes, :]).astype(o_ref.dtype)
        o_ref[n, num_classes:, :] = o_n[num_classes:, :].astype(o_ref.dtype)


def run_fused_heads(x_strips, w3, b3, w1, b1, *, num_classes):
    """x_strips: (N, n_strips, SH+2, W+2, Cin) bf16 pre-padded halo'd strips.
       w3: (9, Cin, Cmid) bf16.  w1: (Cmid, Ctot) bf16 block-diagonal."""
    N, n_strips, SHp2, Wp2, Cin = x_strips.shape
    SH, W = SHp2 - 2, Wp2 - 2
    Cmid = w3.shape[-1]
    Ctot = w1.shape[-1]
    HW = n_strips * SH * W                     # strips are consecutive row blocks

    b3_2d = b3.reshape(1, Cmid).astype(jnp.float32)
    b1_2d = b1.reshape(1, Ctot).astype(jnp.float32)

    kernel = functools.partial(_fused_head_kernel, SH=SH, W=W,
                               num_classes=num_classes)

    flops = 2 * N * HW * (9 * Cin * Cmid + Cmid * Ctot)
    bytes_accessed = (x_strips.size * 2 + w3.size * 2 + w1.size * 2
                      + b3_2d.size * 4 + b1_2d.size * 4 + N * Ctot * HW * 4)

    return pl.pallas_call(
        kernel,
        out_shape=jax.ShapeDtypeStruct((N, Ctot, HW), jnp.float32),
        grid_spec=pltpu.PrefetchScalarGridSpec(
            num_scalar_prefetch=0,
            grid=(n_strips,),
            in_specs=[
                # one halo'd strip, all batch elements (strip dim squeezed)
                pl.BlockSpec((N, None, SHp2, Wp2, Cin),
                             lambda s: (0, s, 0, 0, 0)),
                pl.BlockSpec((9, Cin, Cmid), lambda s: (0, 0, 0)),
                pl.BlockSpec((1, Cmid), lambda s: (0, 0)),
                pl.BlockSpec((Cmid, Ctot), lambda s: (0, 0)),
                pl.BlockSpec((1, Ctot), lambda s: (0, 0)),
            ],
            out_specs=pl.BlockSpec((N, Ctot, SH * W), lambda s: (0, 0, s)),
        ),
        compiler_params=pltpu.CompilerParams(
            dimension_semantics=("parallel",),
            vmem_limit_bytes=64 * 1024 * 1024),
        cost_estimate=pl.CostEstimate(
            flops=flops,
            transcendentals=N * HW * num_classes,
            bytes_accessed=bytes_accessed),
    )(x_strips, w3, b3_2d, w1, b1_2d)


# -----------------------------------------------------------------------------
# Parameter setup (deterministic) + BN folding + head fusion (plain-JAX glue).
# -----------------------------------------------------------------------------
def make_head_params(key, cin, cmid, cout, eps=1e-5):
    ks = jax.random.split(key, 8)
    # conv3x3: OIHW (cmid, cin, 3, 3)
    w3 = jax.random.normal(ks[0], (cmid, cin, 3, 3), jnp.float32) * 0.05
    b3 = jax.random.normal(ks[1], (cmid,), jnp.float32) * 0.05
    # BatchNorm2d(64) params + running stats (inference mode)
    gamma = 1.0 + 0.1 * jax.random.normal(ks[2], (cmid,), jnp.float32)
    beta = 0.1 * jax.random.normal(ks[3], (cmid,), jnp.float32)
    run_mean = 0.1 * jax.random.normal(ks[4], (cmid,), jnp.float32)
    run_var = 1.0 + 0.1 * jax.random.uniform(ks[5], (cmid,), jnp.float32)
    # conv1x1: OIHW (cout, cmid, 1, 1)
    w1 = jax.random.normal(ks[6], (cout, cmid, 1, 1), jnp.float32) * 0.05
    b1 = jax.random.normal(ks[7], (cout,), jnp.float32) * 0.05

    # Fold BN (eval mode) into the 3x3 conv: y = scale*(conv(x)+b3 - mean)+beta
    scale = gamma / jnp.sqrt(run_var + eps)
    w3_f = w3 * scale[:, None, None, None]
    b3_f = (b3 - run_mean) * scale + beta

    # Re-layout: OIHW -> (kh, kw, I, O) -> (9, I, O);  1x1: OIHW -> (I, O)
    w3_k = jnp.transpose(w3_f, (2, 3, 1, 0)).reshape(9, cin, cmid)
    w1_k = jnp.transpose(w1[:, :, 0, 0], (1, 0))
    return dict(w3=w3_k, b3=b3_f, w1=w1_k, b1=b1)


def fuse_head_params(p_cls, p_wh, p_reg):
    """Fuse three heads: 3x3 concat along Cout, 1x1 block-diagonal. Cast bf16."""
    nine, cin, cmid = p_cls["w3"].shape
    w3 = jnp.concatenate([p_cls["w3"], p_wh["w3"], p_reg["w3"]], axis=-1)
    # shape: (9, Cin, 3*Cmid) -- per-tap slabs, indexed w3_ref[k] in the kernel.
    b3 = jnp.concatenate([p_cls["b3"], p_wh["b3"], p_reg["b3"]])

    couts = [p["w1"].shape[-1] for p in (p_cls, p_wh, p_reg)]
    ctot = sum(couts)
    w1 = jnp.zeros((3 * cmid, ctot), jnp.float32)
    r0, c0 = 0, 0
    for p, co in zip((p_cls, p_wh, p_reg), couts):
        w1 = w1.at[r0:r0 + cmid, c0:c0 + co].set(p["w1"])
        r0 += cmid
        c0 += co
    b1 = jnp.concatenate([p_cls["b1"], p_wh["b1"], p_reg["b1"]])

    return dict(w3=w3.astype(jnp.bfloat16), b3=b3.astype(jnp.float32),
                w1=w1.astype(jnp.bfloat16), b1=b1.astype(jnp.float32))


def _pick_strip_rows(H, max_rows=32):
    if H <= max_rows:
        return H
    for s in range(max_rows, 0, -1):
        if H % s == 0:
            return s
    return H


def resnet_head_forward(x_nchw, fused, *, num_classes, max_strip_rows=32):
    """Matches the PyTorch NCHW interface; runs NHWC + H-strips internally."""
    N, _, H, W = x_nchw.shape
    SH = _pick_strip_rows(H, max_strip_rows)
    n_strips = H // SH

    # One wrapper pass (XLA fuses transpose + cast + pad + strip gather):
    # NCHW -> NHWC bf16, zero-pad by 1, extract H-strips with a 2-row halo so the
    # kernel's BlockSpec blocks stay non-overlapping.
    x = jnp.transpose(x_nchw, (0, 2, 3, 1)).astype(jnp.bfloat16)
    xp = jnp.pad(x, ((0, 0), (1, 1), (1, 1), (0, 0)))
    if n_strips == 1:
        x_strips = xp[:, None]
    else:
        x_strips = jnp.stack(
            [lax.slice_in_dim(xp, s * SH, s * SH + SH + 2, axis=1)
             for s in range(n_strips)], axis=1)

    out = run_fused_heads(x_strips, fused["w3"], fused["b3"], fused["w1"],
                          fused["b1"], num_classes=num_classes)  # (N,Ctot,H*W)
    hm = out[:, :num_classes].reshape(N, num_classes, H, W)
    wh = out[:, num_classes:num_classes + 2].reshape(N, 2, H, W)
    off = out[:, num_classes + 2:num_classes + 4].reshape(N, 2, H, W)
    return hm, wh, off


# -----------------------------------------------------------------------------
# Pure-JAX reference (matches kernel precision: bf16 operands, f32 accumulate).
# -----------------------------------------------------------------------------
def head_ref(x_bf16, p, *, apply_sigmoid):
    cin, cmid = p["w3"].shape[1], p["w3"].shape[2]
    w3_hwio = p["w3"].astype(jnp.bfloat16).reshape(3, 3, cin, cmid)
    y = lax.conv_general_dilated(
        x_bf16, w3_hwio, window_strides=(1, 1), padding=((1, 1), (1, 1)),
        dimension_numbers=("NHWC", "HWIO", "NHWC"),
        preferred_element_type=jnp.float32)
    y = jnp.maximum(y + p["b3"], 0.0).astype(jnp.bfloat16)
    out = jnp.einsum("nhwc,cd->nhwd", y, p["w1"].astype(jnp.bfloat16),
                     preferred_element_type=jnp.float32) + p["b1"]
    return jax.nn.sigmoid(out) if apply_sigmoid else out


if __name__ == "__main__":
    # Small config consistent with the module: in_channels=64 (fixed by the
    # module), channel=64 (must match BatchNorm2d(64)), num_classes=8,
    # batch=2, spatial=16x16.
    N, Cin, H, W = 2, 64, 16, 16
    CHANNEL = 64
    NUM_CLASSES = 8

    key = jax.random.PRNGKey(0)
    kx, kc, kw, kr = jax.random.split(key, 4)
    x_nchw = jax.random.normal(kx, (N, Cin, H, W), jnp.float32)

    params = {
        "cls": make_head_params(kc, Cin, CHANNEL, NUM_CLASSES),
        "wh": make_head_params(kw, Cin, CHANNEL, 2),
        "reg": make_head_params(kr, Cin, CHANNEL, 2),
    }
    fused = fuse_head_params(params["cls"], params["wh"], params["reg"])

    hm, wh, off = resnet_head_forward(x_nchw, fused, num_classes=NUM_CLASSES)
    jax.block_until_ready((hm, wh, off))

    # Correctness check against a pure-JAX reference (same bf16/f32 precision).
    x_nhwc = jnp.transpose(x_nchw, (0, 2, 3, 1)).astype(jnp.bfloat16)
    to_nchw = lambda t: jnp.transpose(t, (0, 3, 1, 2))
    hm_r = to_nchw(head_ref(x_nhwc, params["cls"], apply_sigmoid=True))
    wh_r = to_nchw(head_ref(x_nhwc, params["wh"], apply_sigmoid=False))
    off_r = to_nchw(head_ref(x_nhwc, params["reg"], apply_sigmoid=False))

    assert hm.shape == (N, NUM_CLASSES, H, W)
    assert wh.shape == (N, 2, H, W)
    assert off.shape == (N, 2, H, W)
    assert jnp.allclose(hm, hm_r, atol=2e-3, rtol=2e-3)
    assert jnp.allclose(wh, wh_r, atol=2e-3, rtol=2e-3)
    assert jnp.allclose(off, off_r, atol=2e-3, rtol=2e-3)

    print("KERNEL_OK")
</pallas_src>

<mosaic_0001>
module attributes {stable_mosaic.version = 11 : i64} {
  func.func @_fused_head_kernel(%arg0: i32, %arg1: memref<2x1x18x18x64xbf16, #tpu.memory_space<vmem>>, %arg2: memref<9x64x192xbf16, #tpu.memory_space<vmem>>, %arg3: memref<1x192xf32, #tpu.memory_space<vmem>>, %arg4: memref<192x12xbf16, #tpu.memory_space<vmem>>, %arg5: memref<1x12xf32, #tpu.memory_space<vmem>>, %arg6: memref<2x12x256xf32, #tpu.memory_space<vmem>>) attributes {dimension_semantics = [#tpu.dimension_semantics<parallel>], iteration_bounds = array<i64: 1>, scalar_prefetch = 0 : i64, scratch_operands = 0 : i64, tpu.core_type = #tpu.core_type<tc>, window_params = [{transform_indices = @transform_0, window_bounds = array<i64: 2, 1, 18, 18, 64>}, {pipeline_mode = #tpu.pipeline_mode<synchronous>, transform_indices = @transform_1, window_bounds = array<i64: 9, 64, 192>}, {pipeline_mode = #tpu.pipeline_mode<synchronous>, transform_indices = @transform_2, window_bounds = array<i64: 1, 192>}, {pipeline_mode = #tpu.pipeline_mode<synchronous>, transform_indices = @transform_3, window_bounds = array<i64: 192, 12>}, {pipeline_mode = #tpu.pipeline_mode<synchronous>, transform_indices = @transform_4, window_bounds = array<i64: 1, 12>}, {transform_indices = @transform_5, window_bounds = array<i64: 2, 12, 256>}]} {
    %c0 = arith.constant 0 : index
    %c0_0 = arith.constant 0 : index
    %c0_1 = arith.constant 0 : index
    %c0_2 = arith.constant 0 : index
    %c0_3 = arith.constant 0 : index
    %0 = vector.load %arg1[%c0, %c0_0, %c0_1, %c0_2, %c0_3] : memref<2x1x18x18x64xbf16, #tpu.memory_space<vmem>>, vector<2x1x18x18x64xbf16>
    %1 = vector.shape_cast %0 : vector<2x1x18x18x64xbf16> to vector<2x18x18x64xbf16>
    %2 = vector.extract_strided_slice %1 {offsets = [0, 0, 0, 0], sizes = [2, 16, 16, 64], strides = [1, 1, 1, 1]} : vector<2x18x18x64xbf16> to vector<2x16x16x64xbf16>
    %3 = vector.shape_cast %2 : vector<2x16x16x64xbf16> to vector<512x64xbf16>
    %c0_4 = arith.constant 0 : index
    %c0_5 = arith.constant 0 : index
    %c0_6 = arith.constant 0 : index
    %4 = vector.load %arg2[%c0_4, %c0_5, %c0_6] : memref<9x64x192xbf16, #tpu.memory_space<vmem>>, vector<1x64x192xbf16>
    %5 = vector.shape_cast %4 : vector<1x64x192xbf16> to vector<64x192xbf16>
    %cst = arith.constant dense<0.000000e+00> : vector<512x192xf32>
    %6 = tpu.matmul %3, %5, %cst {dimension_numbers = #tpu.dot_dimension_numbers<[1], [0], [0], [1], [0, 0, 1, 1], [], []>} : vector<512x64xbf16>, vector<64x192xbf16>, vector<512x192xf32> -> vector<512x192xf32>
    %7 = vector.extract_strided_slice %1 {offsets = [0, 0, 1, 0], sizes = [2, 16, 16, 64], strides = [1, 1, 1, 1]} : vector<2x18x18x64xbf16> to vector<2x16x16x64xbf16>
    %8 = vector.shape_cast %7 : vector<2x16x16x64xbf16> to vector<512x64xbf16>
    %c1 = arith.constant 1 : index
    %c0_7 = arith.constant 0 : index
    %c0_8 = arith.constant 0 : index
    %9 = vector.load %arg2[%c1, %c0_7, %c0_8] : memref<9x64x192xbf16, #tpu.memory_space<vmem>>, vector<1x64x192xbf16>
    %10 = vector.shape_cast %9 : vector<1x64x192xbf16> to vector<64x192xbf16>
    %cst_9 = arith.constant dense<0.000000e+00> : vector<512x192xf32>
    %11 = tpu.matmul %8, %10, %cst_9 {dimension_numbers = #tpu.dot_dimension_numbers<[1], [0], [0], [1], [0, 0, 1, 1], [], []>} : vector<512x64xbf16>, vector<64x192xbf16>, vector<512x192xf32> -> vector<512x192xf32>
    %12 = arith.addf %6, %11 : vector<512x192xf32>
    %13 = vector.extract_strided_slice %1 {offsets = [0, 0, 2, 0], sizes = [2, 16, 16, 64], strides = [1, 1, 1, 1]} : vector<2x18x18x64xbf16> to vector<2x16x16x64xbf16>
    %14 = vector.shape_cast %13 : vector<2x16x16x64xbf16> to vector<512x64xbf16>
    %c2 = arith.constant 2 : index
    %c0_10 = arith.constant 0 : index
    %c0_11 = arith.constant 0 : index
    %15 = vector.load %arg2[%c2, %c0_10, %c0_11] : memref<9x64x192xbf16, #tpu.memory_space<vmem>>, vector<1x64x192xbf16>
    %16 = vector.shape_cast %15 : vector<1x64x192xbf16> to vector<64x192xbf16>
    %cst_12 = arith.constant dense<0.000000e+00> : vector<512x192xf32>
    %17 = tpu.matmul %14, %16, %cst_12 {dimension_numbers = #tpu.dot_dimension_numbers<[1], [0], [0], [1], [0, 0, 1, 1], [], []>} : vector<512x64xbf16>, vector<64x192xbf16>, vector<512x192xf32> -> vector<512x192xf32>
    %18 = arith.addf %12, %17 : vector<512x192xf32>
    %19 = vector.extract_strided_slice %1 {offsets = [0, 1, 0, 0], sizes = [2, 16, 16, 64], strides = [1, 1, 1, 1]} : vector<2x18x18x64xbf16> to vector<2x16x16x64xbf16>
    %20 = vector.shape_cast %19 : vector<2x16x16x64xbf16> to vector<512x64xbf16>
    %c3 = arith.constant 3 : index
    %c0_13 = arith.constant 0 : index
    %c0_14 = arith.constant 0 : index
    %21 = vector.load %arg2[%c3, %c0_13, %c0_14] : memref<9x64x192xbf16, #tpu.memory_space<vmem>>, vector<1x64x192xbf16>
    %22 = vector.shape_cast %21 : vector<1x64x192xbf16> to vector<64x192xbf16>
    %cst_15 = arith.constant dense<0.000000e+00> : vector<512x192xf32>
    %23 = tpu.matmul %20, %22, %cst_15 {dimension_numbers = #tpu.dot_dimension_numbers<[1], [0], [0], [1], [0, 0, 1, 1], [], []>} : vector<512x64xbf16>, vector<64x192xbf16>, vector<512x192xf32> -> vector<512x192xf32>
    %24 = arith.addf %18, %23 : vector<512x192xf32>
    %25 = vector.extract_strided_slice %1 {offsets = [0, 1, 1, 0], sizes = [2, 16, 16, 64], strides = [1, 1, 1, 1]} : vector<2x18x18x64xbf16> to vector<2x16x16x64xbf16>
    %26 = vector.shape_cast %25 : vector<2x16x16x64xbf16> to vector<512x64xbf16>
    %c4 = arith.constant 4 : index
    %c0_16 = arith.constant 0 : index
    %c0_17 = arith.constant 0 : index
    %27 = vector.load %arg2[%c4, %c0_16, %c0_17] : memref<9x64x192xbf16, #tpu.memory_space<vmem>>, vector<1x64x192xbf16>
    %28 = vector.shape_cast %27 : vector<1x64x192xbf16> to vector<64x192xbf16>
    %cst_18 = arith.constant dense<0.000000e+00> : vector<512x192xf32>
    %29 = tpu.matmul %26, %28, %cst_18 {dimension_numbers = #tpu.dot_dimension_numbers<[1], [0], [0], [1], [0, 0, 1, 1], [], []>} : vector<512x64xbf16>, vector<64x192xbf16>, vector<512x192xf32> -> vector<512x192xf32>
    %30 = arith.addf %24, %29 : vector<512x192xf32>
    %31 = vector.extract_strided_slice %1 {offsets = [0, 1, 2, 0], sizes = [2, 16, 16, 64], strides = [1, 1, 1, 1]} : vector<2x18x18x64xbf16> to vector<2x16x16x64xbf16>
    %32 = vector.shape_cast %31 : vector<2x16x16x64xbf16> to vector<512x64xbf16>
    %c5 = arith.constant 5 : index
    %c0_19 = arith.constant 0 : index
    %c0_20 = arith.constant 0 : index
    %33 = vector.load %arg2[%c5, %c0_19, %c0_20] : memref<9x64x192xbf16, #tpu.memory_space<vmem>>, vector<1x64x192xbf16>
    %34 = vector.shape_cast %33 : vector<1x64x192xbf16> to vector<64x192xbf16>
    %cst_21 = arith.constant dense<0.000000e+00> : vector<512x192xf32>
    %35 = tpu.matmul %32, %34, %cst_21 {dimension_numbers = #tpu.dot_dimension_numbers<[1], [0], [0], [1], [0, 0, 1, 1], [], []>} : vector<512x64xbf16>, vector<64x192xbf16>, vector<512x192xf32> -> vector<512x192xf32>
    %36 = arith.addf %30, %35 : vector<512x192xf32>
    %37 = vector.extract_strided_slice %1 {offsets = [0, 2, 0, 0], sizes = [2, 16, 16, 64], strides = [1, 1, 1, 1]} : vector<2x18x18x64xbf16> to vector<2x16x16x64xbf16>
    %38 = vector.shape_cast %37 : vector<2x16x16x64xbf16> to vector<512x64xbf16>
    %c6 = arith.constant 6 : index
    %c0_22 = arith.constant 0 : index
    %c0_23 = arith.constant 0 : index
    %39 = vector.load %arg2[%c6, %c0_22, %c0_23] : memref<9x64x192xbf16, #tpu.memory_space<vmem>>, vector<1x64x192xbf16>
    %40 = vector.shape_cast %39 : vector<1x64x192xbf16> to vector<64x192xbf16>
    %cst_24 = arith.constant dense<0.000000e+00> : vector<512x192xf32>
    %41 = tpu.matmul %38, %40, %cst_24 {dimension_numbers = #tpu.dot_dimension_numbers<[1], [0], [0], [1], [0, 0, 1, 1], [], []>} : vector<512x64xbf16>, vector<64x192xbf16>, vector<512x192xf32> -> vector<512x192xf32>
    %42 = arith.addf %36, %41 : vector<512x192xf32>
    %43 = vector.extract_strided_slice %1 {offsets = [0, 2, 1, 0], sizes = [2, 16, 16, 64], strides = [1, 1, 1, 1]} : vector<2x18x18x64xbf16> to vector<2x16x16x64xbf16>
    %44 = vector.shape_cast %43 : vector<2x16x16x64xbf16> to vector<512x64xbf16>
    %c7 = arith.constant 7 : index
    %c0_25 = arith.constant 0 : index
    %c0_26 = arith.constant 0 : index
    %45 = vector.load %arg2[%c7, %c0_25, %c0_26] : memref<9x64x192xbf16, #tpu.memory_space<vmem>>, vector<1x64x192xbf16>
    %46 = vector.shape_cast %45 : vector<1x64x192xbf16> to vector<64x192xbf16>
    %cst_27 = arith.constant dense<0.000000e+00> : vector<512x192xf32>
    %47 = tpu.matmul %44, %46, %cst_27 {dimension_numbers = #tpu.dot_dimension_numbers<[1], [0], [0], [1], [0, 0, 1, 1], [], []>} : vector<512x64xbf16>, vector<64x192xbf16>, vector<512x192xf32> -> vector<512x192xf32>
    %48 = arith.addf %42, %47 : vector<512x192xf32>
    %49 = vector.extract_strided_slice %1 {offsets = [0, 2, 2, 0], sizes = [2, 16, 16, 64], strides = [1, 1, 1, 1]} : vector<2x18x18x64xbf16> to vector<2x16x16x64xbf16>
    %50 = vector.shape_cast %49 : vector<2x16x16x64xbf16> to vector<512x64xbf16>
    %c8 = arith.constant 8 : index
    %c0_28 = arith.constant 0 : index
    %c0_29 = arith.constant 0 : index
    %51 = vector.load %arg2[%c8, %c0_28, %c0_29] : memref<9x64x192xbf16, #tpu.memory_space<vmem>>, vector<1x64x192xbf16>
    %52 = vector.shape_cast %51 : vector<1x64x192xbf16> to vector<64x192xbf16>
    %cst_30 = arith.constant dense<0.000000e+00> : vector<512x192xf32>
    %53 = tpu.matmul %50, %52, %cst_30 {dimension_numbers = #tpu.dot_dimension_numbers<[1], [0], [0], [1], [0, 0, 1, 1], [], []>} : vector<512x64xbf16>, vector<64x192xbf16>, vector<512x192xf32> -> vector<512x192xf32>
    %54 = arith.addf %48, %53 : vector<512x192xf32>
    %c0_31 = arith.constant 0 : index
    %c0_32 = arith.constant 0 : index
    %55 = vector.load %arg3[%c0_31, %c0_32] : memref<1x192xf32, #tpu.memory_space<vmem>>, vector<1x192xf32>
    %56 = vector.broadcast %55 : vector<1x192xf32> to vector<512x192xf32>
    %57 = arith.addf %54, %56 : vector<512x192xf32>
    %cst_33 = arith.constant 0.000000e+00 : f32
    %58 = vector.broadcast %cst_33 : f32 to vector<512x192xf32>
    %59 = arith.maximumf %57, %58 : vector<512x192xf32>
    %60 = arith.truncf %59 : vector<512x192xf32> to vector<512x192xbf16>
    %c0_34 = arith.constant 0 : index
    %c0_35 = arith.constant 0 : index
    %61 = vector.load %arg4[%c0_34, %c0_35] : memref<192x12xbf16, #tpu.memory_space<vmem>>, vector<192x12xbf16>
    %cst_36 = arith.constant dense<0.000000e+00> : vector<512x12xf32>
    %62 = tpu.matmul %60, %61, %cst_36 {dimension_numbers = #tpu.dot_dimension_numbers<[1], [0], [0], [1], [0, 0, 1, 1], [], []>} : vector<512x192xbf16>, vector<192x12xbf16>, vector<512x12xf32> -> vector<512x12xf32>
    %c0_37 = arith.constant 0 : index
    %c0_38 = arith.constant 0 : index
    %63 = vector.load %arg5[%c0_37, %c0_38] : memref<1x12xf32, #tpu.memory_space<vmem>>, vector<1x12xf32>
    %64 = vector.broadcast %63 : vector<1x12xf32> to vector<512x12xf32>
    %65 = arith.addf %62, %64 : vector<512x12xf32>
    %66 = vector.extract_strided_slice %65 {offsets = [0, 0], sizes = [256, 12], strides = [1, 1]} : vector<512x12xf32> to vector<256x12xf32>
    %67 = tpu.transpose %66, [1, 0] : vector<256x12xf32> -> vector<12x256xf32>
    %68 = vector.extract_strided_slice %67 {offsets = [0, 0], sizes = [8, 256], strides = [1, 1]} : vector<12x256xf32> to vector<8x256xf32>
    %69 = arith.negf %68 : vector<8x256xf32>
    %70 = math.exp %69 : vector<8x256xf32>
    %cst_39 = arith.constant 1.000000e+00 : f32
    %71 = vector.broadcast %cst_39 : f32 to vector<8x256xf32>
    %72 = arith.addf %71, %70 : vector<8x256xf32>
    %73 = arith.divf %71, %72 : vector<8x256xf32>
    %c0_40 = arith.constant 0 : index
    %c0_41 = arith.constant 0 : index
    %c0_42 = arith.constant 0 : index
    %74 = vector.load %arg6[%c0_40, %c0_41, %c0_42] : memref<2x12x256xf32, #tpu.memory_space<vmem>>, vector<1x8x256xf32>
    %75 = vector.shape_cast %74 : vector<1x8x256xf32> to vector<8x256xf32>
    %76 = vector.shape_cast %73 : vector<8x256xf32> to vector<1x8x256xf32>
    tpu.vector_store %arg6[%c0_40, %c0_41, %c0_42], %76 {strides = array<i32>} : memref<2x12x256xf32, #tpu.memory_space<vmem>>, vector<1x8x256xf32>,
    %77 = vector.extract_strided_slice %67 {offsets = [8, 0], sizes = [4, 256], strides = [1, 1]} : vector<12x256xf32> to vector<4x256xf32>
    %c0_43 = arith.constant 0 : index
    %c8_44 = arith.constant 8 : index
    %c0_45 = arith.constant 0 : index
    %78 = vector.load %arg6[%c0_43, %c8_44, %c0_45] : memref<2x12x256xf32, #tpu.memory_space<vmem>>, vector<1x4x256xf32>
    %79 = vector.shape_cast %78 : vector<1x4x256xf32> to vector<4x256xf32>
    %80 = vector.shape_cast %77 : vector<4x256xf32> to vector<1x4x256xf32>
    tpu.vector_store %arg6[%c0_43, %c8_44, %c0_45], %80 {strides = array<i32>} : memref<2x12x256xf32, #tpu.memory_space<vmem>>, vector<1x4x256xf32>,
    %81 = vector.extract_strided_slice %65 {offsets = [256, 0], sizes = [256, 12], strides = [1, 1]} : vector<512x12xf32> to vector<256x12xf32>
    %82 = tpu.transpose %81, [1, 0] : vector<256x12xf32> -> vector<12x256xf32>
    %83 = vector.extract_strided_slice %82 {offsets = [0, 0], sizes = [8, 256], strides = [1, 1]} : vector<12x256xf32> to vector<8x256xf32>
    %84 = arith.negf %83 : vector<8x256xf32>
    %85 = math.exp %84 : vector<8x256xf32>
    %cst_46 = arith.constant 1.000000e+00 : f32
    %86 = vector.broadcast %cst_46 : f32 to vector<8x256xf32>
    %87 = arith.addf %86, %85 : vector<8x256xf32>
    %88 = arith.divf %86, %87 : vector<8x256xf32>
    %c1_47 = arith.constant 1 : index
    %c0_48 = arith.constant 0 : index
    %c0_49 = arith.constant 0 : index
    %89 = vector.load %arg6[%c1_47, %c0_48, %c0_49] : memref<2x12x256xf32, #tpu.memory_space<vmem>>, vector<1x8x256xf32>
    %90 = vector.shape_cast %89 : vector<1x8x256xf32> to vector<8x256xf32>
    %91 = vector.shape_cast %88 : vector<8x256xf32> to vector<1x8x256xf32>
    tpu.vector_store %arg6[%c1_47, %c0_48, %c0_49], %91 {strides = array<i32>} : memref<2x12x256xf32, #tpu.memory_space<vmem>>, vector<1x8x256xf32>,
    %92 = vector.extract_strided_slice %82 {offsets = [8, 0], sizes = [4, 256], strides = [1, 1]} : vector<12x256xf32> to vector<4x256xf32>
    %c1_50 = arith.constant 1 : index
    %c8_51 = arith.constant 8 : index
    %c0_52 = arith.constant 0 : index
    %93 = vector.load %arg6[%c1_50, %c8_51, %c0_52] : memref<2x12x256xf32, #tpu.memory_space<vmem>>, vector<1x4x256xf32>
    %94 = vector.shape_cast %93 : vector<1x4x256xf32> to vector<4x256xf32>
    %95 = vector.shape_cast %92 : vector<4x256xf32> to vector<1x4x256xf32>
    tpu.vector_store %arg6[%c1_50, %c8_51, %c0_52], %95 {strides = array<i32>} : memref<2x12x256xf32, #tpu.memory_space<vmem>>, vector<1x4x256xf32>,
    return
  }
  func.func @transform_0(%arg0: i32) -> (i32, i32, i32, i32, i32) {
    %c0_i32 = arith.constant 0 : i32
    %c0_i32_0 = arith.constant 0 : i32
    %c0_i32_1 = arith.constant 0 : i32
    %c0_i32_2 = arith.constant 0 : i32
    %c0_i32_3 = arith.constant 0 : i32
    return %c0_i32, %arg0, %c0_i32_0, %c0_i32_1, %c0_i32_2 : i32, i32, i32, i32, i32
  }
  func.func @transform_1(%arg0: i32) -> (i32, i32, i32) {
    %c0_i32 = arith.constant 0 : i32
    %c0_i32_0 = arith.constant 0 : i32
    %c0_i32_1 = arith.constant 0 : i32
    %c0_i32_2 = arith.constant 0 : i32
    return %c0_i32, %c0_i32_0, %c0_i32_1 : i32, i32, i32
  }
  func.func @transform_2(%arg0: i32) -> (i32, i32) {
    %c0_i32 = arith.constant 0 : i32
    %c0_i32_0 = arith.constant 0 : i32
    %c0_i32_1 = arith.constant 0 : i32
    return %c0_i32, %c0_i32_0 : i32, i32
  }
  func.func @transform_3(%arg0: i32) -> (i32, i32) {
    %c0_i32 = arith.constant 0 : i32
    %c0_i32_0 = arith.constant 0 : i32
    %c0_i32_1 = arith.constant 0 : i32
    return %c0_i32, %c0_i32_0 : i32, i32
  }
  func.func @transform_4(%arg0: i32) -> (i32, i32) {
    %c0_i32 = arith.constant 0 : i32
    %c0_i32_0 = arith.constant 0 : i32
    %c0_i32_1 = arith.constant 0 : i32
    return %c0_i32, %c0_i32_0 : i32, i32
  }
  func.func @transform_5(%arg0: i32) -> (i32, i32, i32) {
    %c0_i32 = arith.constant 0 : i32
    %c0_i32_0 = arith.constant 0 : i32
    %c0_i32_1 = arith.constant 0 : i32
    return %c0_i32, %c0_i32_0, %arg0 : i32, i32, i32
  }
}

</mosaic_0001>

<llo_original>
// kernel: tpu_custom_call.1
$region0: #{tpu_custom_call.1}
  #allocation0 [shape = 'u32[]', space=smem, size = 0x4, offset = 0x4, fixed_abs, tag = 'smem constant byte address 0x4 - core index']
  #allocation1 [shape = 'u32[144,128]{1,0:T(1,128)}', space=vmem, size = 0x12000, scoped, tag = 'internal scratch']
  %s0 = inlined_call_operand.vmem [shape: bf16[2,1,18,18,64], index: 0, kind: input, shape index: {}]
  %s1 = inlined_call_operand.vmem [shape: bf16[9,64,192], index: 1, kind: input, shape index: {}]
  %s2 = inlined_call_operand.vmem [shape: f32[1,192], index: 2, kind: input, shape index: {}]
  %s3 = inlined_call_operand.vmem [shape: bf16[192,12], index: 3, kind: input, shape index: {}]
  %s4 = inlined_call_operand.vmem [shape: f32[1,12], index: 4, kind: input, shape index: {}]
  %s5 = inlined_call_operand.vmem [shape: f32[2,12,256], index: 5, kind: output, shape index: {}]
  %s6 = sld [smem:[#allocation0]]
  $region30: #{tpu_custom_call.1} parent=0
    _
  %s8 = ssub.s32 1, %s6
  %s9 = scalar_select 0, %s8, %s6
  // Predicated region
  $region2: #{tpu_custom_call.1} parent=0 // pred_check
    _
  $region3: #{tpu_custom_call.1} parent=0 // pred_check_branch
    %11 = sbr.rel (0) target = $region5
  $region4: #{tpu_custom_call.1} parent=0 // pred_region
    _
  $region5: #{tpu_custom_call.1} parent=0 // pred_fallthru
    _
  // Predicated region
  $region6: #{tpu_custom_call.1} parent=0 // pred_check
    _
  $region7: #{tpu_custom_call.1} parent=0 // pred_check_branch
    %13 = sbr.rel (0) target = $region9
  $region8: #{tpu_custom_call.1} parent=0 // pred_region
    _
  $region9: #{tpu_custom_call.1} parent=0 // pred_fallthru
    _
  // Predicated region
  $region10: #{tpu_custom_call.1} parent=0 // pred_check
    _
  $region11: #{tpu_custom_call.1} parent=0 // pred_check_branch
    %15 = sbr.rel (0) target = $region13
  $region12: #{tpu_custom_call.1} parent=0 // pred_region
    _
  $region13: #{tpu_custom_call.1} parent=0 // pred_fallthru
    _
  // Predicated region
  $region14: #{tpu_custom_call.1} parent=0 // pred_check
    _
  $region15: #{tpu_custom_call.1} parent=0 // pred_check_branch
    %17 = sbr.rel (0) target = $region17
  $region16: #{tpu_custom_call.1} parent=0 // pred_region
    _
  $region17: #{tpu_custom_call.1} parent=0 // pred_fallthru
    _
  // Predicated region
  $region18: #{tpu_custom_call.1} parent=0 // pred_check
    _
  $region19: #{tpu_custom_call.1} parent=0 // pred_check_branch
    %19 = sbr.rel (0) target = $region21
  $region20: #{tpu_custom_call.1} parent=0 // pred_region
    _
  $region21: #{tpu_custom_call.1} parent=0 // pred_fallthru
    _
  %v21 = vld [vmem:[%s0] sm:$0xf]
  %v22 = vld [vmem:[%s0 + $0x4] sm:$0xf]
  %v23 = vld [vmem:[%s0 + $0x8] sm:$0x1]
  %v24 = vld [vmem:[%s0 + $0xc] sm:$0xf]
  %v25 = vld [vmem:[%s0 + $0x10] sm:$0xf]
  %v26 = vld [vmem:[%s0 + $0x14] sm:$0x1]
  %v27 = vld [vmem:[%s0 + $0x18] sm:$0xf]
  %v28 = vld [vmem:[%s0 + $0x1c] sm:$0xf]
  %v29 = vld [vmem:[%s0 + $0x20] sm:$0x1]
  %v30 = vld [vmem:[%s0 + $0x24] sm:$0xf]
  %v31 = vld [vmem:[%s0 + $0x28] sm:$0xf]
  %v32 = vld [vmem:[%s0 + $0x2c] sm:$0x1]
  %v33 = vld [vmem:[%s0 + $0x30] sm:$0xf]
  %v34 = vld [vmem:[%s0 + $0x34] sm:$0xf]
  %v35 = vld [vmem:[%s0 + $0x38] sm:$0x1]
  %v36 = vld [vmem:[%s0 + $0x3c] sm:$0xf]
  %v37 = vld [vmem:[%s0 + $0x40] sm:$0xf]
  %v38 = vld [vmem:[%s0 + $0x44] sm:$0x1]
  %v39 = vld [vmem:[%s0 + $0x48] sm:$0xf]
  %v40 = vld [vmem:[%s0 + $0x4c] sm:$0xf]
  %v41 = vld [vmem:[%s0 + $0x50] sm:$0x1]
  %v42 = vld [vmem:[%s0 + $0x54] sm:$0xf]
  %v43 = vld [vmem:[%s0 + $0x58] sm:$0xf]
  %v44 = vld [vmem:[%s0 + $0x5c] sm:$0x1]
  %v45 = vld [vmem:[%s0 + $0x60] sm:$0xf]
  %v46 = vld [vmem:[%s0 + $0x64] sm:$0xf]
  %v47 = vld [vmem:[%s0 + $0x68] sm:$0x1]
  %v48 = vld [vmem:[%s0 + $0x6c] sm:$0xf]
  %v49 = vld [vmem:[%s0 + $0x70] sm:$0xf]
  %v50 = vld [vmem:[%s0 + $0x74] sm:$0x1]
  %v51 = vld [vmem:[%s0 + $0x78] sm:$0xf]
  %v52 = vld [vmem:[%s0 + $0x7c] sm:$0xf]
  %v53 = vld [vmem:[%s0 + $0x80] sm:$0x1]
  %v54 = vld [vmem:[%s0 + $0x84] sm:$0xf]
  %v55 = vld [vmem:[%s0 + $0x88] sm:$0xf]
  %v56 = vld [vmem:[%s0 + $0x8c] sm:$0x1]
  %v57 = vld [vmem:[%s0 + $0x90] sm:$0xf]
  %v58 = vld [vmem:[%s0 + $0x94] sm:$0xf]
  %v59 = vld [vmem:[%s0 + $0x98] sm:$0x1]
  %v60 = vld [vmem:[%s0 + $0x9c] sm:$0xf]
  %v61 = vld [vmem:[%s0 + $0xa0] sm:$0xf]
  %v62 = vld [vmem:[%s0 + $0xa4] sm:$0x1]
  %v63 = vld [vmem:[%s0 + $0xa8] sm:$0xf]
  %v64 = vld [vmem:[%s0 + $0xac] sm:$0xf]
  %v65 = vld [vmem:[%s0 + $0xb0] sm:$0x1]
  %v66 = vld [vmem:[%s0 + $0xb4] sm:$0xf]
  %v67 = vld [vmem:[%s0 + $0xb8] sm:$0xf]
  %v68 = vld [vmem:[%s0 + $0xbc] sm:$0x1]
  %v69 = vld [vmem:[%s0 + $0xc0] sm:$0xf]
  %v70 = vld [vmem:[%s0 + $0xc4] sm:$0xf]
  %v71 = vld [vmem:[%s0 + $0xc8] sm:$0x1]
  %v72 = vld [vmem:[%s0 + $0xcc] sm:$0xf]
  %v73 = vld [vmem:[%s0 + $0xd0] sm:$0xf]
  %v74 = vld [vmem:[%s0 + $0xd4] sm:$0x1]
  %v75 = vld [vmem:[%s0 + $0xd8] sm:$0xf]
  %v76 = vld [vmem:[%s0 + $0xdc] sm:$0xf]
  %v77 = vld [vmem:[%s0 + $0xe0] sm:$0x1]
  %v78 = vld [vmem:[%s0 + $0xe4] sm:$0xf]
  %v79 = vld [vmem:[%s0 + $0xe8] sm:$0xf]
  %v80 = vld [vmem:[%s0 + $0xec] sm:$0x1]
  %v81 = vld [vmem:[%s0 + $0xf0] sm:$0xf]
  %v82 = vld [vmem:[%s0 + $0xf4] sm:$0xf]
  %v83 = vld [vmem:[%s0 + $0xf8] sm:$0x1]
  %v84 = vld [vmem:[%s0 + $0xfc] sm:$0xf]
  %v85 = vld [vmem:[%s0 + $0x100] sm:$0xf]
  %v86 = vld [vmem:[%s0 + $0x104] sm:$0x1]
  %v87 = vld [vmem:[%s0 + $0x108] sm:$0xf]
  %v88 = vld [vmem:[%s0 + $0x10c] sm:$0xf]
  %v89 = vld [vmem:[%s0 + $0x110] sm:$0x1]
  %v90 = vld [vmem:[%s0 + $0x114] sm:$0xf]
  %v91 = vld [vmem:[%s0 + $0x118] sm:$0xf]
  %v92 = vld [vmem:[%s0 + $0x11c] sm:$0x1]
  %v93 = vld [vmem:[%s0 + $0x120] sm:$0xf]
  %v94 = vld [vmem:[%s0 + $0x124] sm:$0xf]
  %v95 = vld [vmem:[%s0 + $0x128] sm:$0x1]
  %v96 = vld [vmem:[%s0 + $0x12c] sm:$0xf]
  %v97 = vld [vmem:[%s0 + $0x130] sm:$0xf]
  %v98 = vld [vmem:[%s0 + $0x134] sm:$0x1]
  %v99 = vld [vmem:[%s0 + $0x138] sm:$0xf]
  %v100 = vld [vmem:[%s0 + $0x13c] sm:$0xf]
  %v101 = vld [vmem:[%s0 + $0x140] sm:$0x1]
  %v102 = vld [vmem:[%s0 + $0x144] sm:$0xf]
  %v103 = vld [vmem:[%s0 + $0x148] sm:$0xf]
  %v104 = vld [vmem:[%s0 + $0x14c] sm:$0x1]
  %v105 = vld [vmem:[%s0 + $0x150] sm:$0xf]
  %v106 = vld [vmem:[%s0 + $0x154] sm:$0xf]
  %v107 = vld [vmem:[%s0 + $0x158] sm:$0x1]
  %v108 = vld [vmem:[%s0 + $0x15c] sm:$0xf]
  %v109 = vld [vmem:[%s0 + $0x160] sm:$0xf]
  %v110 = vld [vmem:[%s0 + $0x164] sm:$0x1]
  %v111 = vld [vmem:[%s0 + $0x168] sm:$0xf]
  %v112 = vld [vmem:[%s0 + $0x16c] sm:$0xf]
  %v113 = vld [vmem:[%s0 + $0x170] sm:$0x1]
  %v114 = vld [vmem:[%s0 + $0x174] sm:$0xf]
  %v115 = vld [vmem:[%s0 + $0x178] sm:$0xf]
  %v116 = vld [vmem:[%s0 + $0x17c] sm:$0x1]
  %v117 = vld [vmem:[%s0 + $0x180] sm:$0xf]
  %v118 = vld [vmem:[%s0 + $0x184] sm:$0xf]
  %v119 = vld [vmem:[%s0 + $0x188] sm:$0x1]
  %v120 = vld [vmem:[%s0 + $0x18c] sm:$0xf]
  %v121 = vld [vmem:[%s0 + $0x190] sm:$0xf]
  %v122 = vld [vmem:[%s0 + $0x194] sm:$0x1]
  %v123 = vld [vmem:[%s0 + $0x198] sm:$0xf]
  %v124 = vld [vmem:[%s0 + $0x19c] sm:$0xf]
  %v125 = vld [vmem:[%s0 + $0x1a0] sm:$0x1]
  %v126 = vld [vmem:[%s0 + $0x1a4] sm:$0xf]
  %v127 = vld [vmem:[%s0 + $0x1a8] sm:$0xf]
  %v128 = vld [vmem:[%s0 + $0x1ac] sm:$0x1]
  %v129 = vld [vmem:[%s1] sm:$0xff]
  %v130 = vld [vmem:[%s1 + $0x8] sm:$0xff]
  %v131 = vld [vmem:[%s1 + $0x10] sm:$0xff]
  %v132 = vld [vmem:[%s1 + $0x18] sm:$0xff]
  %v133 = vld [vmem:[%s1 + $0x20] sm:$0xff]
  %v134 = vld [vmem:[%s1 + $0x28] sm:$0xff]
  %v135 = vld [vmem:[%s1 + $0x30] sm:$0xff]
  %v136 = vld [vmem:[%s1 + $0x38] sm:$0xff]
  %vm137 = vsmask.f32 3328
  %vm138 = vsmask.f32 7440
  %vm139 = vmor %vm137, %vm138
  %v141 = vshrl.u32 %v21, 16
  %v143 = vrot.slane %v141, 4
  %v144 = vshll.u32 %v21, 16
  %v146 = vrot.slane %v144, 5
  %v147 = vor.u32 %v143, %v146
  %v148 = vrot.slane %v147, 4
  %v150 = vshll.u32 %v22, 16
  %v152 = vrot.slane %v150, 5
  %v153 = vsel %vm139, %v148, %v152
  %v154 = vshrl.u32 %v22, 16
  %v156 = vrot.slane %v154, 4
  %v157 = vor.u32 %v156, %v152
  %v158 = vrot.slane %v157, 4
  %v160 = vshll.u32 %v23, 16
  %v162 = vrot.slane %v160, 5
  %v163 = vsel %vm139, %v158, %v162
  %v165 = vshrl.u32 %v24, 16
  %v167 = vrot.slane %v165, 4
  %v168 = vshll.u32 %v24, 16
  %v170 = vrot.slane %v168, 5
  %v171 = vor.u32 %v167, %v170
  %v172 = vrot.slane %v171, 4
  %v174 = vshll.u32 %v25, 16
  %v176 = vrot.slane %v174, 5
  %v177 = vsel %vm139, %v172, %v176
  %v178 = vshrl.u32 %v25, 16
  %v180 = vrot.slane %v178, 4
  %v181 = vor.u32 %v180, %v176
  %v182 = vrot.slane %v181, 4
  %v184 = vshll.u32 %v26, 16
  %v186 = vrot.slane %v184, 5
  %v187 = vsel %vm139, %v182, %v186
  %v189 = vshrl.u32 %v27, 16
  %v191 = vrot.slane %v189, 4
  %v192 = vshll.u32 %v27, 16
  %v194 = vrot.slane %v192, 5
  %v195 = vor.u32 %v191, %v194
  %v196 = vrot.slane %v195, 4
  %v198 = vshll.u32 %v28, 16
  %v200 = vrot.slane %v198, 5
  %v201 = vsel %vm139, %v196, %v200
  %v202 = vshrl.u32 %v28, 16
  %v204 = vrot.slane %v202, 4
  %v205 = vor.u32 %v204, %v200
  %v206 = vrot.slane %v205, 4
  %v208 = vshll.u32 %v29, 16
  %v210 = vrot.slane %v208, 5
  %v211 = vsel %vm139, %v206, %v210
  %v213 = vshrl.u32 %v30, 16
  %v215 = vrot.slane %v213, 4
  %v216 = vshll.u32 %v30, 16
  %v218 = vrot.slane %v216, 5
  %v219 = vor.u32 %v215, %v218
  %v220 = vrot.slane %v219, 4
  %v222 = vshll.u32 %v31, 16
  %v224 = vrot.slane %v222, 5
  %v225 = vsel %vm139, %v220, %v224
  %v226 = vshrl.u32 %v31, 16
  %v228 = vrot.slane %v226, 4
  %v229 = vor.u32 %v228, %v224
  %v230 = vrot.slane %v229, 4
  %v232 = vshll.u32 %v32, 16
  %v234 = vrot.slane %v232, 5
  %v235 = vsel %vm139, %v230, %v234
  %v237 = vshrl.u32 %v33, 16
  %v239 = vrot.slane %v237, 4
  %v240 = vshll.u32 %v33, 16
  %v242 = vrot.slane %v240, 5
  %v243 = vor.u32 %v239, %v242
  %v244 = vrot.slane %v243, 4
  %v246 = vshll.u32 %v34, 16
  %v248 = vrot.slane %v246, 5
  %v249 = vsel %vm139, %v244, %v248
  %v250 = vshrl.u32 %v34, 16
  %v252 = vrot.slane %v250, 4
  %v253 = vor.u32 %v252, %v248
  %v254 = vrot.slane %v253, 4
  %v256 = vshll.u32 %v35, 16
  %v258 = vrot.slane %v256, 5
  %v259 = vsel %vm139, %v254, %v258
  %v261 = vshrl.u32 %v36, 16
  %v263 = vrot.slane %v261, 4
  %v264 = vshll.u32 %v36, 16
  %v266 = vrot.slane %v264, 5
  %v267 = vor.u32 %v263, %v266
  %v268 = vrot.slane %v267, 4
  %v270 = vshll.u32 %v37, 16
  %v272 = vrot.slane %v270, 5
  %v273 = vsel %vm139, %v268, %v272
  %v274 = vshrl.u32 %v37, 16
  %v276 = vrot.slane %v274, 4
  %v277 = vor.u32 %v276, %v272
  %v278 = vrot.slane %v277, 4
  %v280 = vshll.u32 %v38, 16
  %v282 = vrot.slane %v280, 5
  %v283 = vsel %vm139, %v278, %v282
  %v285 = vshrl.u32 %v39, 16
  %v287 = vrot.slane %v285, 4
  %v288 = vshll.u32 %v39, 16
  %v290 = vrot.slane %v288, 5
  %v291 = vor.u32 %v287, %v290
  %v292 = vrot.slane %v291, 4
  %v294 = vshll.u32 %v40, 16
  %v296 = vrot.slane %v294, 5
  %v297 = vsel %vm139, %v292, %v296
  %v298 = vshrl.u32 %v40, 16
  %v300 = vrot.slane %v298, 4
  %v301 = vor.u32 %v300, %v296
  %v302 = vrot.slane %v301, 4
  %v304 = vshll.u32 %v41, 16
  %v306 = vrot.slane %v304, 5
  %v307 = vsel %vm139, %v302, %v306
  %v309 = vshrl.u32 %v42, 16
  %v311 = vrot.slane %v309, 4
  %v312 = vshll.u32 %v42, 16
  %v314 = vrot.slane %v312, 5
  %v315 = vor.u32 %v311, %v314
  %v316 = vrot.slane %v315, 4
  %v318 = vshll.u32 %v43, 16
  %v320 = vrot.slane %v318, 5
  %v321 = vsel %vm139, %v316, %v320
  %v322 = vshrl.u32 %v43, 16
  %v324 = vrot.slane %v322, 4
  %v325 = vor.u32 %v324, %v320
  %v326 = vrot.slane %v325, 4
  %v328 = vshll.u32 %v44, 16
  %v330 = vrot.slane %v328, 5
  %v331 = vsel %vm139, %v326, %v330
  %v333 = vshrl.u32 %v45, 16
  %v335 = vrot.slane %v333, 4
  %v336 = vshll.u32 %v45, 16
  %v338 = vrot.slane %v336, 5
  %v339 = vor.u32 %v335, %v338
  %v340 = vrot.slane %v339, 4
  %v342 = vshll.u32 %v46, 16
  %v344 = vrot.slane %v342, 5
  %v345 = vsel %vm139, %v340, %v344
  %v346 = vshrl.u32 %v46, 16
  %v348 = vrot.slane %v346, 4
  %v349 = vor.u32 %v348, %v344
  %v350 = vrot.slane %v349, 4
  %v352 = vshll.u32 %v47, 16
  %v354 = vrot.slane %v352, 5
  %v355 = vsel %vm139, %v350, %v354
  %v357 = vshrl.u32 %v48, 16
  %v359 = vrot.slane %v357, 4
  %v360 = vshll.u32 %v48, 16
  %v362 = vrot.slane %v360, 5
  %v363 = vor.u32 %v359, %v362
  %v364 = vrot.slane %v363, 4
  %v366 = vshll.u32 %v49, 16
  %v368 = vrot.slane %v366, 5
  %v369 = vsel %vm139, %v364, %v368
  %v370 = vshrl.u32 %v49, 16
  %v372 = vrot.slane %v370, 4
  %v373 = vor.u32 %v372, %v368
  %v374 = vrot.slane %v373, 4
  %v376 = vshll.u32 %v50, 16
  %v378 = vrot.slane %v376, 5
  %v379 = vsel %vm139, %v374, %v378
  %v381 = vshrl.u32 %v51, 16
  %v383 = vrot.slane %v381, 4
  %v384 = vshll.u32 %v51, 16
  %v386 = vrot.slane %v384, 5
  %v387 = vor.u32 %v383, %v386
  %v388 = vrot.slane %v387, 4
  %v390 = vshll.u32 %v52, 16
  %v392 = vrot.slane %v390, 5
  %v393 = vsel %vm139, %v388, %v392
  %v394 = vshrl.u32 %v52, 16
  %v396 = vrot.slane %v394, 4
  %v397 = vor.u32 %v396, %v392
  %v398 = vrot.slane %v397, 4
  %v400 = vshll.u32 %v53, 16
  %v402 = vrot.slane %v400, 5
  %v403 = vsel %vm139, %v398, %v402
  %v405 = vshrl.u32 %v54, 16
  %v407 = vrot.slane %v405, 4
  %v408 = vshll.u32 %v54, 16
  %v410 = vrot.slane %v408, 5
  %v411 = vor.u32 %v407, %v410
  %v412 = vrot.slane %v411, 4
  %v414 = vshll.u32 %v55, 16
  %v416 = vrot.slane %v414, 5
  %v417 = vsel %vm139, %v412, %v416
  %v418 = vshrl.u32 %v55, 16
  %v420 = vrot.slane %v418, 4
  %v421 = vor.u32 %v420, %v416
  %v422 = vrot.slane %v421, 4
  %v424 = vshll.u32 %v56, 16
  %v426 = vrot.slane %v424, 5
  %v427 = vsel %vm139, %v422, %v426
  %v429 = vshrl.u32 %v57, 16
  %v431 = vrot.slane %v429, 4
  %v432 = vshll.u32 %v57, 16
  %v434 = vrot.slane %v432, 5
  %v435 = vor.u32 %v431, %v434
  %v436 = vrot.slane %v435, 4
  %v438 = vshll.u32 %v58, 16
  %v440 = vrot.slane %v438, 5
  %v441 = vsel %vm139, %v436, %v440
  %v442 = vshrl.u32 %v58, 16
  %v444 = vrot.slane %v442, 4
  %v445 = vor.u32 %v444, %v440
  %v446 = vrot.slane %v445, 4
  %v448 = vshll.u32 %v59, 16
  %v450 = vrot.slane %v448, 5
  %v451 = vsel %vm139, %v446, %v450
  %v453 = vshrl.u32 %v60, 16
  %v455 = vrot.slane %v453, 4
  %v456 = vshll.u32 %v60, 16
  %v458 = vrot.slane %v456, 5
  %v459 = vor.u32 %v455, %v458
  %v460 = vrot.slane %v459, 4
  %v462 = vshll.u32 %v61, 16
  %v464 = vrot.slane %v462, 5
  %v465 = vsel %vm139, %v460, %v464
  %v466 = vshrl.u32 %v61, 16
  %v468 = vrot.slane %v466, 4
  %v469 = vor.u32 %v468, %v464
  %v470 = vrot.slane %v469, 4
  %v472 = vshll.u32 %v62, 16
  %v474 = vrot.slane %v472, 5
  %v475 = vsel %vm139, %v470, %v474
  %v477 = vshrl.u32 %v63, 16
  %v479 = vrot.slane %v477, 4
  %v480 = vshll.u32 %v63, 16
  %v482 = vrot.slane %v480, 5
  %v483 = vor.u32 %v479, %v482
  %v484 = vrot.slane %v483, 4
  %v486 = vshll.u32 %v64, 16
  %v488 = vrot.slane %v486, 5
  %v489 = vsel %vm139, %v484, %v488
  %v490 = vshrl.u32 %v64, 16
  %v492 = vrot.slane %v490, 4
  %v493 = vor.u32 %v492, %v488
  %v494 = vrot.slane %v493, 4
  %v496 = vshll.u32 %v65, 16
  %v498 = vrot.slane %v496, 5
  %v499 = vsel %vm139, %v494, %v498
  %v501 = vshrl.u32 %v66, 16
  %v503 = vrot.slane %v501, 4
  %v504 = vshll.u32 %v66, 16
  %v506 = vrot.slane %v504, 5
  %v507 = vor.u32 %v503, %v506
  %v508 = vrot.slane %v507, 4
  %v510 = vshll.u32 %v67, 16
  %v512 = vrot.slane %v510, 5
  %v513 = vsel %vm139, %v508, %v512
  %v514 = vshrl.u32 %v67, 16
  %v516 = vrot.slane %v514, 4
  %v517 = vor.u32 %v516, %v512
  %v518 = vrot.slane %v517, 4
  %v520 = vshll.u32 %v68, 16
  %v522 = vrot.slane %v520, 5
  %v523 = vsel %vm139, %v518, %v522
  %v525 = vshrl.u32 %v75, 16
  %v527 = vrot.slane %v525, 4
  %v528 = vshll.u32 %v75, 16
  %v530 = vrot.slane %v528, 5
  %v531 = vor.u32 %v527, %v530
  %v532 = vrot.slane %v531, 4
  %v534 = vshll.u32 %v76, 16
  %v536 = vrot.slane %v534, 5
  %v537 = vsel %vm139, %v532, %v536
  %v538 = vshrl.u32 %v76, 16
  %v540 = vrot.slane %v538, 4
  %v541 = vor.u32 %v540, %v536
  %v542 = vrot.slane %v541, 4
  %v544 = vshll.u32 %v77, 16
  %v546 = vrot.slane %v544, 5
  %v547 = vsel %vm139, %v542, %v546
  %v549 = vshrl.u32 %v78, 16
  %v551 = vrot.slane %v549, 4
  %v552 = vshll.u32 %v78, 16
  %v554 = vrot.slane %v552, 5
  %v555 = vor.u32 %v551, %v554
  %v556 = vrot.slane %v555, 4
  %v558 = vshll.u32 %v79, 16
  %v560 = vrot.slane %v558, 5
  %v561 = vsel %vm139, %v556, %v560
  %v562 = vshrl.u32 %v79, 16
  %v564 = vrot.slane %v562, 4
  %v565 = vor.u32 %v564, %v560
  %v566 = vrot.slane %v565, 4
  %v568 = vshll.u32 %v80, 16
  %v570 = vrot.slane %v568, 5
  %v571 = vsel %vm139, %v566, %v570
  %v573 = vshrl.u32 %v81, 16
  %v575 = vrot.slane %v573, 4
  %v576 = vshll.u32 %v81, 16
  %v578 = vrot.slane %v576, 5
  %v579 = vor.u32 %v575, %v578
  %v580 = vrot.slane %v579, 4
  %v582 = vshll.u32 %v82, 16
  %v584 = vrot.slane %v582, 5
  %v585 = vsel %vm139, %v580, %v584
  %v586 = vshrl.u32 %v82, 16
  %v588 = vrot.slane %v586, 4
  %v589 = vor.u32 %v588, %v584
  %v590 = vrot.slane %v589, 4
  %v592 = vshll.u32 %v83, 16
  %v594 = vrot.slane %v592, 5
  %v595 = vsel %vm139, %v590, %v594
  %v597 = vshrl.u32 %v84, 16
  %v599 = vrot.slane %v597, 4
  %v600 = vshll.u32 %v84, 16
  %v602 = vrot.slane %v600, 5
  %v603 = vor.u32 %v599, %v602
  %v604 = vrot.slane %v603, 4
  %v606 = vshll.u32 %v85, 16
  %v608 = vrot.slane %v606, 5
  %v609 = vsel %vm139, %v604, %v608
  %v610 = vshrl.u32 %v85, 16
  %v612 = vrot.slane %v610, 4
  %v613 = vor.u32 %v612, %v608
  %v614 = vrot.slane %v613, 4
  %v616 = vshll.u32 %v86, 16
  %v618 = vrot.slane %v616, 5
  %v619 = vsel %vm139, %v614, %v618
  %v621 = vshrl.u32 %v87, 16
  %v623 = vrot.slane %v621, 4
  %v624 = vshll.u32 %v87, 16
  %v626 = vrot.slane %v624, 5
  %v627 = vor.u32 %v623, %v626
  %v628 = vrot.slane %v627, 4
  %v630 = vshll.u32 %v88, 16
  %v632 = vrot.slane %v630, 5
  %v633 = vsel %vm139, %v628, %v632
  %v634 = vshrl.u32 %v88, 16
  %v636 = vrot.slane %v634, 4
  %v637 = vor.u32 %v636, %v632
  %v638 = vrot.slane %v637, 4
  %v640 = vshll.u32 %v89, 16
  %v642 = vrot.slane %v640, 5
  %v643 = vsel %vm139, %v638, %v642
  %v645 = vshrl.u32 %v90, 16
  %v647 = vrot.slane %v645, 4
  %v648 = vshll.u32 %v90, 16
  %v650 = vrot.slane %v648, 5
  %v651 = vor.u32 %v647, %v650
  %v652 = vrot.slane %v651, 4
  %v654 = vshll.u32 %v91, 16
  %v656 = vrot.slane %v654, 5
  %v657 = vsel %vm139, %v652, %v656
  %v658 = vshrl.u32 %v91, 16
  %v660 = vrot.slane %v658, 4
  %v661 = vor.u32 %v660, %v656
  %v662 = vrot.slane %v661, 4
  %v664 = vshll.u32 %v92, 16
  %v666 = vrot.slane %v664, 5
  %v667 = vsel %vm139, %v662, %v666
  %v669 = vshrl.u32 %v93, 16
  %v671 = vrot.slane %v669, 4
  %v672 = vshll.u32 %v93, 16
  %v674 = vrot.slane %v672, 5
  %v675 = vor.u32 %v671, %v674
  %v676 = vrot.slane %v675, 4
  %v678 = vshll.u32 %v94, 16
  %v680 = vrot.slane %v678, 5
  %v681 = vsel %vm139, %v676, %v680
  %v682 = vshrl.u32 %v94, 16
  %v684 = vrot.slane %v682, 4
  %v685 = vor.u32 %v684, %v680
  %v686 = vrot.slane %v685, 4
  %v688 = vshll.u32 %v95, 16
  %v690 = vrot.slane %v688, 5
  %v691 = vsel %vm139, %v686, %v690
  %v693 = vshrl.u32 %v96, 16
  %v695 = vrot.slane %v693, 4
  %v696 = vshll.u32 %v96, 16
  %v698 = vrot.slane %v696, 5
  %v699 = vor.u32 %v695, %v698
  %v700 = vrot.slane %v699, 4
  %v702 = vshll.u32 %v97, 16
  %v704 = vrot.slane %v702, 5
  %v705 = vsel %vm139, %v700, %v704
  %v706 = vshrl.u32 %v97, 16
  %v708 = vrot.slane %v706, 4
  %v709 = vor.u32 %v708, %v704
  %v710 = vrot.slane %v709, 4
  %v712 = vshll.u32 %v98, 16
  %v714 = vrot.slane %v712, 5
  %v715 = vsel %vm139, %v710, %v714
  %v717 = vshrl.u32 %v99, 16
  %v719 = vrot.slane %v717, 4
  %v720 = vshll.u32 %v99, 16
  %v722 = vrot.slane %v720, 5
  %v723 = vor.u32 %v719, %v722
  %v724 = vrot.slane %v723, 4
  %v726 = vshll.u32 %v100, 16
  %v728 = vrot.slane %v726, 5
  %v729 = vsel %vm139, %v724, %v728
  %v730 = vshrl.u32 %v100, 16
  %v732 = vrot.slane %v730, 4
  %v733 = vor.u32 %v732, %v728
  %v734 = vrot.slane %v733, 4
  %v736 = vshll.u32 %v101, 16
  %v738 = vrot.slane %v736, 5
  %v739 = vsel %vm139, %v734, %v738
  %v741 = vshrl.u32 %v102, 16
  %v743 = vrot.slane %v741, 4
  %v744 = vshll.u32 %v102, 16
  %v746 = vrot.slane %v744, 5
  %v747 = vor.u32 %v743, %v746
  %v748 = vrot.slane %v747, 4
  %v750 = vshll.u32 %v103, 16
  %v752 = vrot.slane %v750, 5
  %v753 = vsel %vm139, %v748, %v752
  %v754 = vshrl.u32 %v103, 16
  %v756 = vrot.slane %v754, 4
  %v757 = vor.u32 %v756, %v752
  %v758 = vrot.slane %v757, 4
  %v760 = vshll.u32 %v104, 16
  %v762 = vrot.slane %v760, 5
  %v763 = vsel %vm139, %v758, %v762
  %v765 = vshrl.u32 %v105, 16
  %v767 = vrot.slane %v765, 4
  %v768 = vshll.u32 %v105, 16
  %v770 = vrot.slane %v768, 5
  %v771 = vor.u32 %v767, %v770
  %v772 = vrot.slane %v771, 4
  %v774 = vshll.u32 %v106, 16
  %v776 = vrot.slane %v774, 5
  %v777 = vsel %vm139, %v772, %v776
  %v778 = vshrl.u32 %v106, 16
  %v780 = vrot.slane %v778, 4
  %v781 = vor.u32 %v780, %v776
  %v782 = vrot.slane %v781, 4
  %v784 = vshll.u32 %v107, 16
  %v786 = vrot.slane %v784, 5
  %v787 = vsel %vm139, %v782, %v786
  %v789 = vshrl.u32 %v108, 16
  %v791 = vrot.slane %v789, 4
  %v792 = vshll.u32 %v108, 16
  %v794 = vrot.slane %v792, 5
  %v795 = vor.u32 %v791, %v794
  %v796 = vrot.slane %v795, 4
  %v798 = vshll.u32 %v109, 16
  %v800 = vrot.slane %v798, 5
  %v801 = vsel %vm139, %v796, %v800
  %v802 = vshrl.u32 %v109, 16
  %v804 = vrot.slane %v802, 4
  %v805 = vor.u32 %v804, %v800
  %v806 = vrot.slane %v805, 4
  %v808 = vshll.u32 %v110, 16
  %v810 = vrot.slane %v808, 5
  %v811 = vsel %vm139, %v806, %v810
  %v813 = vshrl.u32 %v111, 16
  %v815 = vrot.slane %v813, 4
  %v816 = vshll.u32 %v111, 16
  %v818 = vrot.slane %v816, 5
  %v819 = vor.u32 %v815, %v818
  %v820 = vrot.slane %v819, 4
  %v822 = vshll.u32 %v112, 16
  %v824 = vrot.slane %v822, 5
  %v825 = vsel %vm139, %v820, %v824
  %v826 = vshrl.u32 %v112, 16
  %v828 = vrot.slane %v826, 4
  %v829 = vor.u32 %v828, %v824
  %v830 = vrot.slane %v829, 4
  %v832 = vshll.u32 %v113, 16
  %v834 = vrot.slane %v832, 5
  %v835 = vsel %vm139, %v830, %v834
  %v837 = vshrl.u32 %v114, 16
  %v839 = vrot.slane %v837, 4
  %v840 = vshll.u32 %v114, 16
  %v842 = vrot.slane %v840, 5
  %v843 = vor.u32 %v839, %v842
  %v844 = vrot.slane %v843, 4
  %v846 = vshll.u32 %v115, 16
  %v848 = vrot.slane %v846, 5
  %v849 = vsel %vm139, %v844, %v848
  %v850 = vshrl.u32 %v115, 16
  %v852 = vrot.slane %v850, 4
  %v853 = vor.u32 %v852, %v848
  %v854 = vrot.slane %v853, 4
  %v856 = vshll.u32 %v116, 16
  %v858 = vrot.slane %v856, 5
  %v859 = vsel %vm139, %v854, %v858
  %v861 = vshrl.u32 %v117, 16
  %v863 = vrot.slane %v861, 4
  %v864 = vshll.u32 %v117, 16
  %v866 = vrot.slane %v864, 5
  %v867 = vor.u32 %v863, %v866
  %v868 = vrot.slane %v867, 4
  %v870 = vshll.u32 %v118, 16
  %v872 = vrot.slane %v870, 5
  %v873 = vsel %vm139, %v868, %v872
  %v874 = vshrl.u32 %v118, 16
  %v876 = vrot.slane %v874, 4
  %v877 = vor.u32 %v876, %v872
  %v878 = vrot.slane %v877, 4
  %v880 = vshll.u32 %v119, 16
  %v882 = vrot.slane %v880, 5
  %v883 = vsel %vm139, %v878, %v882
  %v885 = vshrl.u32 %v120, 16
  %v887 = vrot.slane %v885, 4
  %v888 = vshll.u32 %v120, 16
  %v890 = vrot.slane %v888, 5
  %v891 = vor.u32 %v887, %v890
  %v892 = vrot.slane %v891, 4
  %v894 = vshll.u32 %v121, 16
  %v896 = vrot.slane %v894, 5
  %v897 = vsel %vm139, %v892, %v896
  %v898 = vshrl.u32 %v121, 16
  %v900 = vrot.slane %v898, 4
  %v901 = vor.u32 %v900, %v896
  %v902 = vrot.slane %v901, 4
  %v904 = vshll.u32 %v122, 16
  %v906 = vrot.slane %v904, 5
  %v907 = vsel %vm139, %v902, %v906
  %s908 = scalar_lea.vmem %s1, 64
  %v909 = vld [vmem:[%s908] sm:$0xff]
  %v910 = vld [vmem:[%s908 + $0x8] sm:$0xff]
  %v911 = vld [vmem:[%s908 + $0x10] sm:$0xff]
  %v912 = vld [vmem:[%s908 + $0x18] sm:$0xff]
  %v913 = vld [vmem:[%s908 + $0x20] sm:$0xff]
  %v914 = vld [vmem:[%s908 + $0x28] sm:$0xff]
  %v915 = vld [vmem:[%s908 + $0x30] sm:$0xff]
  %v916 = vld [vmem:[%s908 + $0x38] sm:$0xff]
  %v917 = vunpack.c.l.b16 %v153
  %v918 = vunpack.c.l.b16 %v163
  %v919 = vunpack.c.l.b16 %v177
  %v920 = vunpack.c.l.b16 %v187
  %v921 = vunpack.c.l.b16 %v201
  %v922 = vunpack.c.l.b16 %v211
  %v923 = vunpack.c.l.b16 %v225
  %v924 = vunpack.c.l.b16 %v235
  %v925 = vunpack.c.l.b16 %v249
  %v926 = vunpack.c.l.b16 %v259
  %v927 = vunpack.c.l.b16 %v273
  %v928 = vunpack.c.l.b16 %v283
  %v929 = vunpack.c.l.b16 %v297
  %v930 = vunpack.c.l.b16 %v307
  %v931 = vunpack.c.l.b16 %v321
  %v932 = vunpack.c.l.b16 %v331
  %v933 = vunpack.c.l.b16 %v345
  %v934 = vunpack.c.l.b16 %v355
  %v935 = vunpack.c.l.b16 %v369
  %v936 = vunpack.c.l.b16 %v379
  %v937 = vunpack.c.l.b16 %v393
  %v938 = vunpack.c.l.b16 %v403
  %v939 = vunpack.c.l.b16 %v417
  %v940 = vunpack.c.l.b16 %v427
  %v941 = vunpack.c.l.b16 %v441
  %v942 = vunpack.c.l.b16 %v451
  %v943 = vunpack.c.l.b16 %v465
  %v944 = vunpack.c.l.b16 %v475
  %v945 = vunpack.c.l.b16 %v489
  %v946 = vunpack.c.l.b16 %v499
  %v947 = vunpack.c.l.b16 %v513
  %v948 = vunpack.c.l.b16 %v523
  %v949 = vunpack.c.l.b16 %v537
  %v950 = vunpack.c.l.b16 %v547
  %v951 = vunpack.c.l.b16 %v561
  %v952 = vunpack.c.l.b16 %v571
  %v953 = vunpack.c.l.b16 %v585
  %v954 = vunpack.c.l.b16 %v595
  %v955 = vunpack.c.l.b16 %v609
  %v956 = vunpack.c.l.b16 %v619
  %v957 = vunpack.c.l.b16 %v633
  %v958 = vunpack.c.l.b16 %v643
  %v959 = vunpack.c.l.b16 %v657
  %v960 = vunpack.c.l.b16 %v667
  %v961 = vunpack.c.l.b16 %v681
  %v962 = vunpack.c.l.b16 %v691
  %v963 = vunpack.c.l.b16 %v705
  %v964 = vunpack.c.l.b16 %v715
  %v965 = vunpack.c.l.b16 %v729
  %v966 = vunpack.c.l.b16 %v739
  %v967 = vunpack.c.l.b16 %v753
  %v968 = vunpack.c.l.b16 %v763
  %v969 = vunpack.c.l.b16 %v777
  %v970 = vunpack.c.l.b16 %v787
  %v971 = vunpack.c.l.b16 %v801
  %v972 = vunpack.c.l.b16 %v811
  %v973 = vunpack.c.l.b16 %v825
  %v974 = vunpack.c.l.b16 %v835
  %v975 = vunpack.c.l.b16 %v849
  %v976 = vunpack.c.l.b16 %v859
  %v977 = vunpack.c.l.b16 %v873
  %v978 = vunpack.c.l.b16 %v883
  %v979 = vunpack.c.l.b16 %v897
  %v980 = vunpack.c.l.b16 %v907
  %v981 = vpack.c.b16 %v918, %v917
  %v982 = vpack.c.b16 %v920, %v919
  %v983 = vpack.c.b16 %v922, %v921
  %v984 = vpack.c.b16 %v924, %v923
  %v985 = vpack.c.b16 %v926, %v925
  %v986 = vpack.c.b16 %v928, %v927
  %v987 = vpack.c.b16 %v930, %v929
  %v988 = vpack.c.b16 %v932, %v931
  %v989 = vpack.c.b16 %v934, %v933
  %v990 = vpack.c.b16 %v936, %v935
  %v991 = vpack.c.b16 %v938, %v937
  %v992 = vpack.c.b16 %v940, %v939
  %v993 = vpack.c.b16 %v942, %v941
  %v994 = vpack.c.b16 %v944, %v943
  %v995 = vpack.c.b16 %v946, %v945
  %v996 = vpack.c.b16 %v948, %v947
  %v997 = vpack.c.b16 %v950, %v949
  %v998 = vpack.c.b16 %v952, %v951
  %v999 = vpack.c.b16 %v954, %v953
  %v1000 = vpack.c.b16 %v956, %v955
  %v1001 = vpack.c.b16 %v958, %v957
  %v1002 = vpack.c.b16 %v960, %v959
  %v1003 = vpack.c.b16 %v962, %v961
  %v1004 = vpack.c.b16 %v964, %v963
  %v1005 = vpack.c.b16 %v966, %v965
  %v1006 = vpack.c.b16 %v968, %v967
  %v1007 = vpack.c.b16 %v970, %v969
  %v1008 = vpack.c.b16 %v972, %v971
  %v1009 = vpack.c.b16 %v974, %v973
  %v1010 = vpack.c.b16 %v976, %v975
  %v1011 = vpack.c.b16 %v978, %v977
  %v1012 = vpack.c.b16 %v980, %v979
  %v1021 = vunpack.c.l.b16 %v909
  %v1022 = vunpack.c.h.b16 %v909
  %v1023 = vunpack.c.l.b16 %v910
  %v1024 = vunpack.c.h.b16 %v910
  %v1025 = vunpack.c.l.b16 %v911
  %v1026 = vunpack.c.h.b16 %v911
  %v1027 = vunpack.c.l.b16 %v912
  %v1028 = vunpack.c.h.b16 %v912
  %v1029 = vunpack.c.l.b16 %v913
  %v1030 = vunpack.c.h.b16 %v913
  %v1031 = vunpack.c.l.b16 %v914
  %v1032 = vunpack.c.h.b16 %v914
  %v1033 = vunpack.c.l.b16 %v915
  %v1034 = vunpack.c.h.b16 %v915
  %v1035 = vunpack.c.l.b16 %v916
  %v1036 = vunpack.c.h.b16 %v916
  %v1037 = vpack.c.b16 %v1023, %v1021
  %v1038 = vpack.c.b16 %v1024, %v1022
  %v1039 = vpack.c.b16 %v1027, %v1025
  %v1040 = vpack.c.b16 %v1028, %v1026
  %v1041 = vpack.c.b16 %v1031, %v1029
  %v1042 = vpack.c.b16 %v1032, %v1030
  %v1043 = vpack.c.b16 %v1035, %v1033
  %v1044 = vpack.c.b16 %v1036, %v1034
  %vm1053 = vcmask 523264
  %v1055 = vsel %vm1053, %v981, 0
  %v1058 = vsel %vm1053, %v982, 0
  %v1061 = vsel %vm1053, %v983, 0
  %v1064 = vsel %vm1053, %v984, 0
  %v1067 = vsel %vm1053, %v985, 0
  %v1070 = vsel %vm1053, %v986, 0
  %v1073 = vsel %vm1053, %v987, 0
  %v1076 = vsel %vm1053, %v988, 0
  %v1079 = vsel %vm1053, %v989, 0
  %v1082 = vsel %vm1053, %v990, 0
  %v1085 = vsel %vm1053, %v991, 0
  %v1088 = vsel %vm1053, %v992, 0
  %v1091 = vsel %vm1053, %v993, 0
  %v1094 = vsel %vm1053, %v994, 0
  %v1097 = vsel %vm1053, %v995, 0
  %v1100 = vsel %vm1053, %v996, 0
  %v1103 = vsel %vm1053, %v997, 0
  %v1106 = vsel %vm1053, %v998, 0
  %v1109 = vsel %vm1053, %v999, 0
  %v1112 = vsel %vm1053, %v1000, 0
  %v1115 = vsel %vm1053, %v1001, 0
  %v1118 = vsel %vm1053, %v1002, 0
  %v1121 = vsel %vm1053, %v1003, 0
  %v1124 = vsel %vm1053, %v1004, 0
  %v1127 = vsel %vm1053, %v1005, 0
  %v1130 = vsel %vm1053, %v1006, 0
  %v1133 = vsel %vm1053, %v1007, 0
  %v1136 = vsel %vm1053, %v1008, 0
  %v1139 = vsel %vm1053, %v1009, 0
  %v1142 = vsel %vm1053, %v1010, 0
  %v1145 = vsel %vm1053, %v1011, 0
  %v1148 = vsel %vm1053, %v1012, 0
  %1150 = vmatprep.subr.bf16.mxu0 0
  %1151 = vmatpush1.bf16.msra.mxu0 0
  %1152 = vmatprep.subr.bf16.mxu0 0
  %1153 = vmatpush1.bf16.msra.mxu0 0
  %1154 = vmatprep.subr.bf16.mxu0 0
  %1155 = vmatpush1.bf16.msra.mxu0 0
  %1156 = vmatprep.subr.bf16.mxu0 0
  %1157 = vmatpush1.bf16.msra.mxu0 0
  %1158 = vmatprep.subr.bf16.mxu0 %v1044
  %1159 = vmatpush1.bf16.msra.mxu0 %v1043
  %1160 = vmatprep.subr.bf16.mxu0 %v1042
  %1161 = vmatpush1.bf16.msra.mxu0 %v1041
  %1162 = vmatprep.subr.bf16.mxu0 %v1040
  %1163 = vmatpush1.bf16.msra.mxu0 %v1039
  %1164 = vmatprep.subr.bf16.mxu0 %v1038
  %1165 = vmatpush1.bf16.msra.mxu0 %v1037
  %1166 = vmatprep.subr.bf16.mxu0 0
  %1167 = vmatpush2.bf16.msra.mxu0 0
  %1168 = vmatprep.subr.bf16.mxu0 0
  %1169 = vmatpush2.bf16.msra.mxu0 0
  %1170 = vmatprep.subr.bf16.mxu0 0
  %1171 = vmatpush2.bf16.msra.mxu0 0
  %1172 = vmatprep.subr.bf16.mxu0 0
  %1173 = vmatpush2.bf16.msra.mxu0 0
  %1174 = vmatprep.subr.bf16.mxu0 0
  %1175 = vmatpush2.bf16.msra.mxu0 0
  %1176 = vmatprep.subr.bf16.mxu0 0
  %1177 = vmatpush2.bf16.msra.mxu0 0
  %1178 = vmatprep.subr.bf16.mxu0 0
  %1179 = vmatpush2.bf16.msra.mxu0 0
  %1180 = vmatprep.subr.bf16.mxu0 0
  %1181 = vmatpush2.bf16.msra.mxu0 0
  %1182 = vmatprep.mubr.bf16.mxu0 0
  %1183 = vmatmul.mubr.bf16.gmra.mxu0 %v1055
  %v1184 = vpop.f32.mrf.mxu0
  %v1185 = vadd.f32 0.0, %v1184
  %v1186 = vpop.f32.mrf.mxu0
  %v1187 = vadd.f32 0.0, %v1186
  %v1188 = vpop.f32.mrf.mxu0
  %v1189 = vadd.f32 0.0, %v1188
  %v1190 = vpop.f32.mrf.mxu0
  %v1191 = vadd.f32 0.0, %v1190
  %1192 = vmatprep.mubr.bf16.mxu0 0
  %1193 = vmatmul.mubr.bf16.gmra.mxu0 %v1058
  %v1194 = vpop.f32.mrf.mxu0
  %v1195 = vadd.f32 0.0, %v1194
  %v1196 = vpop.f32.mrf.mxu0
  %v1197 = vadd.f32 0.0, %v1196
  %v1198 = vpop.f32.mrf.mxu0
  %v1199 = vadd.f32 0.0, %v1198
  %v1200 = vpop.f32.mrf.mxu0
  %v1201 = vadd.f32 0.0, %v1200
  %1202 = vmatprep.mubr.bf16.mxu0 0
  %1203 = vmatmul.mubr.bf16.gmra.mxu0 %v1061
  %v1204 = vpop.f32.mrf.mxu0
  %v1205 = vadd.f32 0.0, %v1204
  %v1206 = vpop.f32.mrf.mxu0
  %v1207 = vadd.f32 0.0, %v1206
  %v1208 = vpop.f32.mrf.mxu0
  %v1209 = vadd.f32 0.0, %v1208
  %v1210 = vpop.f32.mrf.mxu0
  %v1211 = vadd.f32 0.0, %v1210
  %1212 = vmatprep.mubr.bf16.mxu0 0
  %1213 = vmatmul.mubr.bf16.gmra.mxu0 %v1064
  %v1214 = vpop.f32.mrf.mxu0
  %v1215 = vadd.f32 0.0, %v1214
  %v1216 = vpop.f32.mrf.mxu0
  %v1217 = vadd.f32 0.0, %v1216
  %v1218 = vpop.f32.mrf.mxu0
  %v1219 = vadd.f32 0.0, %v1218
  %v1220 = vpop.f32.mrf.mxu0
  %v1221 = vadd.f32 0.0, %v1220
  %1222 = vmatprep.mubr.bf16.mxu0 0
  %1223 = vmatmul.mubr.bf16.gmra.mxu0 %v1067
  %v1224 = vpop.f32.mrf.mxu0
  %v1225 = vadd.f32 0.0, %v1224
  %v1226 = vpop.f32.mrf.mxu0
  %v1227 = vadd.f32 0.0, %v1226
  %v1228 = vpop.f32.mrf.mxu0
  %v1229 = vadd.f32 0.0, %v1228
  %v1230 = vpop.f32.mrf.mxu0
  %v1231 = vadd.f32 0.0, %v1230
  %1232 = vmatprep.mubr.bf16.mxu0 0
  %1233 = vmatmul.mubr.bf16.gmra.mxu0 %v1070
  %v1234 = vpop.f32.mrf.mxu0
  %v1235 = vadd.f32 0.0, %v1234
  %v1236 = vpop.f32.mrf.mxu0
  %v1237 = vadd.f32 0.0, %v1236
  %v1238 = vpop.f32.mrf.mxu0
  %v1239 = vadd.f32 0.0, %v1238
  %v1240 = vpop.f32.mrf.mxu0
  %v1241 = vadd.f32 0.0, %v1240
  %1242 = vmatprep.mubr.bf16.mxu0 0
  %1243 = vmatmul.mubr.bf16.gmra.mxu0 %v1073
  %v1244 = vpop.f32.mrf.mxu0
  %v1245 = vadd.f32 0.0, %v1244
  %v1246 = vpop.f32.mrf.mxu0
  %v1247 = vadd.f32 0.0, %v1246
  %v1248 = vpop.f32.mrf.mxu0
  %v1249 = vadd.f32 0.0, %v1248
  %v1250 = vpop.f32.mrf.mxu0
  %v1251 = vadd.f32 0.0, %v1250
  %1252 = vmatprep.mubr.bf16.mxu0 0
  %1253 = vmatmul.mubr.bf16.gmra.mxu0 %v1076
  %v1254 = vpop.f32.mrf.mxu0
  %v1255 = vadd.f32 0.0, %v1254
  %v1256 = vpop.f32.mrf.mxu0
  %v1257 = vadd.f32 0.0, %v1256
  %v1258 = vpop.f32.mrf.mxu0
  %v1259 = vadd.f32 0.0, %v1258
  %v1260 = vpop.f32.mrf.mxu0
  %v1261 = vadd.f32 0.0, %v1260
  %1262 = vmatprep.mubr.bf16.mxu0 0
  %1263 = vmatmul.mubr.bf16.gmra.mxu0 %v1079
  %v1264 = vpop.f32.mrf.mxu0
  %v1265 = vadd.f32 0.0, %v1264
  %v1266 = vpop.f32.mrf.mxu0
  %v1267 = vadd.f32 0.0, %v1266
  %v1268 = vpop.f32.mrf.mxu0
  %v1269 = vadd.f32 0.0, %v1268
  %v1270 = vpop.f32.mrf.mxu0
  %v1271 = vadd.f32 0.0, %v1270
  %1272 = vmatprep.mubr.bf16.mxu0 0
  %1273 = vmatmul.mubr.bf16.gmra.mxu0 %v1082
  %v1274 = vpop.f32.mrf.mxu0
  %v1275 = vadd.f32 0.0, %v1274
  %v1276 = vpop.f32.mrf.mxu0
  %v1277 = vadd.f32 0.0, %v1276
  %v1278 = vpop.f32.mrf.mxu0
  %v1279 = vadd.f32 0.0, %v1278
  %v1280 = vpop.f32.mrf.mxu0
  %v1281 = vadd.f32 0.0, %v1280
  %1282 = vmatprep.mubr.bf16.mxu0 0
  %1283 = vmatmul.mubr.bf16.gmra.mxu0 %v1085
  %v1284 = vpop.f32.mrf.mxu0
  %v1285 = vadd.f32 0.0, %v1284
  %v1286 = vpop.f32.mrf.mxu0
  %v1287 = vadd.f32 0.0, %v1286
  %v1288 = vpop.f32.mrf.mxu0
  %v1289 = vadd.f32 0.0, %v1288
  %v1290 = vpop.f32.mrf.mxu0
  %v1291 = vadd.f32 0.0, %v1290
  %1292 = vmatprep.mubr.bf16.mxu0 0
  %1293 = vmatmul.mubr.bf16.gmra.mxu0 %v1088
  %v1294 = vpop.f32.mrf.mxu0
  %v1295 = vadd.f32 0.0, %v1294
  %v1296 = vpop.f32.mrf.mxu0
  %v1297 = vadd.f32 0.0, %v1296
  %v1298 = vpop.f32.mrf.mxu0
  %v1299 = vadd.f32 0.0, %v1298
  %v1300 = vpop.f32.mrf.mxu0
  %v1301 = vadd.f32 0.0, %v1300
  %1302 = vmatprep.mubr.bf16.mxu0 0
  %1303 = vmatmul.mubr.bf16.gmra.mxu0 %v1091
  %v1304 = vpop.f32.mrf.mxu0
  %v1305 = vadd.f32 0.0, %v1304
  %v1306 = vpop.f32.mrf.mxu0
  %v1307 = vadd.f32 0.0, %v1306
  %v1308 = vpop.f32.mrf.mxu0
  %v1309 = vadd.f32 0.0, %v1308
  %v1310 = vpop.f32.mrf.mxu0
  %v1311 = vadd.f32 0.0, %v1310
  %1312 = vmatprep.mubr.bf16.mxu0 0
  %1313 = vmatmul.mubr.bf16.gmra.mxu0 %v1094
  %v1314 = vpop.f32.mrf.mxu0
  %v1315 = vadd.f32 0.0, %v1314
  %v1316 = vpop.f32.mrf.mxu0
  %v1317 = vadd.f32 0.0, %v1316
  %v1318 = vpop.f32.mrf.mxu0
  %v1319 = vadd.f32 0.0, %v1318
  %v1320 = vpop.f32.mrf.mxu0
  %v1321 = vadd.f32 0.0, %v1320
  %1322 = vmatprep.mubr.bf16.mxu0 0
  %1323 = vmatmul.mubr.bf16.gmra.mxu0 %v1097
  %v1324 = vpop.f32.mrf.mxu0
  %v1325 = vadd.f32 0.0, %v1324
  %v1326 = vpop.f32.mrf.mxu0
  %v1327 = vadd.f32 0.0, %v1326
  %v1328 = vpop.f32.mrf.mxu0
  %v1329 = vadd.f32 0.0, %v1328
  %v1330 = vpop.f32.mrf.mxu0
  %v1331 = vadd.f32 0.0, %v1330
  %1332 = vmatprep.mubr.bf16.mxu0 0
  %1333 = vmatmul.mubr.bf16.gmra.mxu0 %v1100
  %v1334 = vpop.f32.mrf.mxu0
  %v1335 = vadd.f32 0.0, %v1334
  %v1336 = vpop.f32.mrf.mxu0
  %v1337 = vadd.f32 0.0, %v1336
  %v1338 = vpop.f32.mrf.mxu0
  %v1339 = vadd.f32 0.0, %v1338
  %v1340 = vpop.f32.mrf.mxu0
  %v1341 = vadd.f32 0.0, %v1340
  %1342 = vmatprep.mubr.bf16.mxu0 0
  %1343 = vmatmul.mubr.bf16.gmra.mxu0 %v1103
  %v1344 = vpop.f32.mrf.mxu0
  %v1345 = vadd.f32 0.0, %v1344
  %v1346 = vpop.f32.mrf.mxu0
  %v1347 = vadd.f32 0.0, %v1346
  %v1348 = vpop.f32.mrf.mxu0
  %v1349 = vadd.f32 0.0, %v1348
  %v1350 = vpop.f32.mrf.mxu0
  %v1351 = vadd.f32 0.0, %v1350
  %1352 = vmatprep.mubr.bf16.mxu0 0
  %1353 = vmatmul.mubr.bf16.gmra.mxu0 %v1106
  %v1354 = vpop.f32.mrf.mxu0
  %v1355 = vadd.f32 0.0, %v1354
  %v1356 = vpop.f32.mrf.mxu0
  %v1357 = vadd.f32 0.0, %v1356
  %v1358 = vpop.f32.mrf.mxu0
  %v1359 = vadd.f32 0.0, %v1358
  %v1360 = vpop.f32.mrf.mxu0
  %v1361 = vadd.f32 0.0, %v1360
  %1362 = vmatprep.mubr.bf16.mxu0 0
  %1363 = vmatmul.mubr.bf16.gmra.mxu0 %v1109
  %v1364 = vpop.f32.mrf.mxu0
  %v1365 = vadd.f32 0.0, %v1364
  %v1366 = vpop.f32.mrf.mxu0
  %v1367 = vadd.f32 0.0, %v1366
  %v1368 = vpop.f32.mrf.mxu0
  %v1369 = vadd.f32 0.0, %v1368
  %v1370 = vpop.f32.mrf.mxu0
  %v1371 = vadd.f32 0.0, %v1370
  %1372 = vmatprep.mubr.bf16.mxu0 0
  %1373 = vmatmul.mubr.bf16.gmra.mxu0 %v1112
  %v1374 = vpop.f32.mrf.mxu0
  %v1375 = vadd.f32 0.0, %v1374
  %v1376 = vpop.f32.mrf.mxu0
  %v1377 = vadd.f32 0.0, %v1376
  %v1378 = vpop.f32.mrf.mxu0
  %v1379 = vadd.f32 0.0, %v1378
  %v1380 = vpop.f32.mrf.mxu0
  %v1381 = vadd.f32 0.0, %v1380
  %1382 = vmatprep.mubr.bf16.mxu0 0
  %1383 = vmatmul.mubr.bf16.gmra.mxu0 %v1115
  %v1384 = vpop.f32.mrf.mxu0
  %v1385 = vadd.f32 0.0, %v1384
  %v1386 = vpop.f32.mrf.mxu0
  %v1387 = vadd.f32 0.0, %v1386
  %v1388 = vpop.f32.mrf.mxu0
  %v1389 = vadd.f32 0.0, %v1388
  %v1390 = vpop.f32.mrf.mxu0
  %v1391 = vadd.f32 0.0, %v1390
  %1392 = vmatprep.mubr.bf16.mxu0 0
  %1393 = vmatmul.mubr.bf16.gmra.mxu0 %v1118
  %v1394 = vpop.f32.mrf.mxu0
  %v1395 = vadd.f32 0.0, %v1394
  %v1396 = vpop.f32.mrf.mxu0
  %v1397 = vadd.f32 0.0, %v1396
  %v1398 = vpop.f32.mrf.mxu0
  %v1399 = vadd.f32 0.0, %v1398
  %v1400 = vpop.f32.mrf.mxu0
  %v1401 = vadd.f32 0.0, %v1400
  %1402 = vmatprep.mubr.bf16.mxu0 0
  %1403 = vmatmul.mubr.bf16.gmra.mxu0 %v1121
  %v1404 = vpop.f32.mrf.mxu0
  %v1405 = vadd.f32 0.0, %v1404
  %v1406 = vpop.f32.mrf.mxu0
  %v1407 = vadd.f32 0.0, %v1406
  %v1408 = vpop.f32.mrf.mxu0
  %v1409 = vadd.f32 0.0, %v1408
  %v1410 = vpop.f32.mrf.mxu0
  %v1411 = vadd.f32 0.0, %v1410
  %1412 = vmatprep.mubr.bf16.mxu0 0
  %1413 = vmatmul.mubr.bf16.gmra.mxu0 %v1124
  %v1414 = vpop.f32.mrf.mxu0
  %v1415 = vadd.f32 0.0, %v1414
  %v1416 = vpop.f32.mrf.mxu0
  %v1417 = vadd.f32 0.0, %v1416
  %v1418 = vpop.f32.mrf.mxu0
  %v1419 = vadd.f32 0.0, %v1418
  %v1420 = vpop.f32.mrf.mxu0
  %v1421 = vadd.f32 0.0, %v1420
  %1422 = vmatprep.mubr.bf16.mxu0 0
  %1423 = vmatmul.mubr.bf16.gmra.mxu0 %v1127
  %v1424 = vpop.f32.mrf.mxu0
  %v1425 = vadd.f32 0.0, %v1424
  %v1426 = vpop.f32.mrf.mxu0
  %v1427 = vadd.f32 0.0, %v1426
  %v1428 = vpop.f32.mrf.mxu0
  %v1429 = vadd.f32 0.0, %v1428
  %v1430 = vpop.f32.mrf.mxu0
  %v1431 = vadd.f32 0.0, %v1430
  %1432 = vmatprep.mubr.bf16.mxu0 0
  %1433 = vmatmul.mubr.bf16.gmra.mxu0 %v1130
  %v1434 = vpop.f32.mrf.mxu0
  %v1435 = vadd.f32 0.0, %v1434
  %v1436 = vpop.f32.mrf.mxu0
  %v1437 = vadd.f32 0.0, %v1436
  %v1438 = vpop.f32.mrf.mxu0
  %v1439 = vadd.f32 0.0, %v1438
  %v1440 = vpop.f32.mrf.mxu0
  %v1441 = vadd.f32 0.0, %v1440
  %1442 = vmatprep.mubr.bf16.mxu0 0
  %1443 = vmatmul.mubr.bf16.gmra.mxu0 %v1133
  %v1444 = vpop.f32.mrf.mxu0
  %v1445 = vadd.f32 0.0, %v1444
  %v1446 = vpop.f32.mrf.mxu0
  %v1447 = vadd.f32 0.0, %v1446
  %v1448 = vpop.f32.mrf.mxu0
  %v1449 = vadd.f32 0.0, %v1448
  %v1450 = vpop.f32.mrf.mxu0
  %v1451 = vadd.f32 0.0, %v1450
  %1452 = vmatprep.mubr.bf16.mxu0 0
  %1453 = vmatmul.mubr.bf16.gmra.mxu0 %v1136
  %v1454 = vpop.f32.mrf.mxu0
  %v1455 = vadd.f32 0.0, %v1454
  %v1456 = vpop.f32.mrf.mxu0
  %v1457 = vadd.f32 0.0, %v1456
  %v1458 = vpop.f32.mrf.mxu0
  %v1459 = vadd.f32 0.0, %v1458
  %v1460 = vpop.f32.mrf.mxu0
  %v1461 = vadd.f32 0.0, %v1460
  %1462 = vmatprep.mubr.bf16.mxu0 0
  %1463 = vmatmul.mubr.bf16.gmra.mxu0 %v1139
  %v1464 = vpop.f32.mrf.mxu0
  %v1465 = vadd.f32 0.0, %v1464
  %v1466 = vpop.f32.mrf.mxu0
  %v1467 = vadd.f32 0.0, %v1466
  %v1468 = vpop.f32.mrf.mxu0
  %v1469 = vadd.f32 0.0, %v1468
  %v1470 = vpop.f32.mrf.mxu0
  %v1471 = vadd.f32 0.0, %v1470
  %1472 = vmatprep.mubr.bf16.mxu0 0
  %1473 = vmatmul.mubr.bf16.gmra.mxu0 %v1142
  %v1474 = vpop.f32.mrf.mxu0
  %v1475 = vadd.f32 0.0, %v1474
  %v1476 = vpop.f32.mrf.mxu0
  %v1477 = vadd.f32 0.0, %v1476
  %v1478 = vpop.f32.mrf.mxu0
  %v1479 = vadd.f32 0.0, %v1478
  %v1480 = vpop.f32.mrf.mxu0
  %v1481 = vadd.f32 0.0, %v1480
  %1482 = vmatprep.mubr.bf16.mxu0 0
  %1483 = vmatmul.mubr.bf16.gmra.mxu0 %v1145
  %v1484 = vpop.f32.mrf.mxu0
  %v1485 = vadd.f32 0.0, %v1484
  %v1486 = vpop.f32.mrf.mxu0
  %v1487 = vadd.f32 0.0, %v1486
  %v1488 = vpop.f32.mrf.mxu0
  %v1489 = vadd.f32 0.0, %v1488
  %v1490 = vpop.f32.mrf.mxu0
  %v1491 = vadd.f32 0.0, %v1490
  %1492 = vmatprep.mubr.bf16.mxu0 0
  %1493 = vmatmul.mubr.bf16.gmra.mxu0 %v1148
  %v1494 = vpop.f32.mrf.mxu0
  %v1495 = vadd.f32 0.0, %v1494
  %v1496 = vpop.f32.mrf.mxu0
  %v1497 = vadd.f32 0.0, %v1496
  %v1498 = vpop.f32.mrf.mxu0
  %v1499 = vadd.f32 0.0, %v1498
  %v1500 = vpop.f32.mrf.mxu0
  %v1501 = vadd.f32 0.0, %v1500
  %1502 = vdwg.mxu0
  %v1567 = vunpack.c.l.b16 %v21
  %v1568 = vunpack.c.l.b16 %v22
  %v1569 = vunpack.c.l.b16 %v24
  %v1570 = vunpack.c.l.b16 %v25
  %v1571 = vunpack.c.l.b16 %v27
  %v1572 = vunpack.c.l.b16 %v28
  %v1573 = vunpack.c.l.b16 %v30
  %v1574 = vunpack.c.l.b16 %v31
  %v1575 = vunpack.c.l.b16 %v33
  %v1576 = vunpack.c.l.b16 %v34
  %v1577 = vunpack.c.l.b16 %v36
  %v1578 = vunpack.c.l.b16 %v37
  %v1579 = vunpack.c.l.b16 %v39
  %v1580 = vunpack.c.l.b16 %v40
  %v1581 = vunpack.c.l.b16 %v42
  %v1582 = vunpack.c.l.b16 %v43
  %v1583 = vunpack.c.l.b16 %v45
  %v1584 = vunpack.c.l.b16 %v46
  %v1585 = vunpack.c.l.b16 %v48
  %v1586 = vunpack.c.l.b16 %v49
  %v1587 = vunpack.c.l.b16 %v51
  %v1588 = vunpack.c.l.b16 %v52
  %v1589 = vunpack.c.l.b16 %v54
  %v1590 = vunpack.c.l.b16 %v55
  %v1591 = vunpack.c.l.b16 %v57
  %v1592 = vunpack.c.l.b16 %v58
  %v1593 = vunpack.c.l.b16 %v60
  %v1594 = vunpack.c.l.b16 %v61
  %v1595 = vunpack.c.l.b16 %v63
  %v1596 = vunpack.c.l.b16 %v64
  %v1597 = vunpack.c.l.b16 %v66
  %v1598 = vunpack.c.l.b16 %v67
  %v1599 = vunpack.c.l.b16 %v75
  %v1600 = vunpack.c.l.b16 %v76
  %v1601 = vunpack.c.l.b16 %v78
  %v1602 = vunpack.c.l.b16 %v79
  %v1603 = vunpack.c.l.b16 %v81
  %v1604 = vunpack.c.l.b16 %v82
  %v1605 = vunpack.c.l.b16 %v84
  %v1606 = vunpack.c.l.b16 %v85
  %v1607 = vunpack.c.l.b16 %v87
  %v1608 = vunpack.c.l.b16 %v88
  %v1609 = vunpack.c.l.b16 %v90
  %v1610 = vunpack.c.l.b16 %v91
  %v1611 = vunpack.c.l.b16 %v93
  %v1612 = vunpack.c.l.b16 %v94
  %v1613 = vunpack.c.l.b16 %v96
  %v1614 = vunpack.c.l.b16 %v97
  %v1615 = vunpack.c.l.b16 %v99
  %v1616 = vunpack.c.l.b16 %v100
  %v1617 = vunpack.c.l.b16 %v102
  %v1618 = vunpack.c.l.b16 %v103
  %v1619 = vunpack.c.l.b16 %v105
  %v1620 = vunpack.c.l.b16 %v106
  %v1621 = vunpack.c.l.b16 %v108
  %v1622 = vunpack.c.l.b16 %v109
  %v1623 = vunpack.c.l.b16 %v111
  %v1624 = vunpack.c.l.b16 %v112
  %v1625 = vunpack.c.l.b16 %v114
  %v1626 = vunpack.c.l.b16 %v115
  %v1627 = vunpack.c.l.b16 %v117
  %v1628 = vunpack.c.l.b16 %v118
  %v1629 = vunpack.c.l.b16 %v120
  %v1630 = vunpack.c.l.b16 %v121
  %v1631 = vpack.c.b16 %v1568, %v1567
  %v1632 = vpack.c.b16 %v1570, %v1569
  %v1633 = vpack.c.b16 %v1572, %v1571
  %v1634 = vpack.c.b16 %v1574, %v1573
  %v1635 = vpack.c.b16 %v1576, %v1575
  %v1636 = vpack.c.b16 %v1578, %v1577
  %v1637 = vpack.c.b16 %v1580, %v1579
  %v1638 = vpack.c.b16 %v1582, %v1581
  %v1639 = vpack.c.b16 %v1584, %v1583
  %v1640 = vpack.c.b16 %v1586, %v1585
  %v1641 = vpack.c.b16 %v1588, %v1587
  %v1642 = vpack.c.b16 %v1590, %v1589
  %v1643 = vpack.c.b16 %v1592, %v1591
  %v1644 = vpack.c.b16 %v1594, %v1593
  %v1645 = vpack.c.b16 %v1596, %v1595
  %v1646 = vpack.c.b16 %v1598, %v1597
  %v1647 = vpack.c.b16 %v1600, %v1599
  %v1648 = vpack.c.b16 %v1602, %v1601
  %v1649 = vpack.c.b16 %v1604, %v1603
  %v1650 = vpack.c.b16 %v1606, %v1605
  %v1651 = vpack.c.b16 %v1608, %v1607
  %v1652 = vpack.c.b16 %v1610, %v1609
  %v1653 = vpack.c.b16 %v1612, %v1611
  %v1654 = vpack.c.b16 %v1614, %v1613
  %v1655 = vpack.c.b16 %v1616, %v1615
  %v1656 = vpack.c.b16 %v1618, %v1617
  %v1657 = vpack.c.b16 %v1620, %v1619
  %v1658 = vpack.c.b16 %v1622, %v1621
  %v1659 = vpack.c.b16 %v1624, %v1623
  %v1660 = vpack.c.b16 %v1626, %v1625
  %v1661 = vpack.c.b16 %v1628, %v1627
  %v1662 = vpack.c.b16 %v1630, %v1629
  %v1671 = vunpack.c.l.b16 %v129
  %v1672 = vunpack.c.h.b16 %v129
  %v1673 = vunpack.c.l.b16 %v130
  %v1674 = vunpack.c.h.b16 %v130
  %v1675 = vunpack.c.l.b16 %v131
  %v1676 = vunpack.c.h.b16 %v131
  %v1677 = vunpack.c.l.b16 %v132
  %v1678 = vunpack.c.h.b16 %v132
  %v1679 = vunpack.c.l.b16 %v133
  %v1680 = vunpack.c.h.b16 %v133
  %v1681 = vunpack.c.l.b16 %v134
  %v1682 = vunpack.c.h.b16 %v134
  %v1683 = vunpack.c.l.b16 %v135
  %v1684 = vunpack.c.h.b16 %v135
  %v1685 = vunpack.c.l.b16 %v136
  %v1686 = vunpack.c.h.b16 %v136
  %v1687 = vpack.c.b16 %v1673, %v1671
  %v1688 = vpack.c.b16 %v1674, %v1672
  %v1689 = vpack.c.b16 %v1677, %v1675
  %v1690 = vpack.c.b16 %v1678, %v1676
  %v1691 = vpack.c.b16 %v1681, %v1679
  %v1692 = vpack.c.b16 %v1682, %v1680
  %v1693 = vpack.c.b16 %v1685, %v1683
  %v1694 = vpack.c.b16 %v1686, %v1684
  %v1704 = vsel %vm1053, %v1631, 0
  %v1707 = vsel %vm1053, %v1632, 0
  %v1710 = vsel %vm1053, %v1633, 0
  %v1713 = vsel %vm1053, %v1634, 0
  %v1716 = vsel %vm1053, %v1635, 0
  %v1719 = vsel %vm1053, %v1636, 0
  %v1722 = vsel %vm1053, %v1637, 0
  %v1725 = vsel %vm1053, %v1638, 0
  %v1728 = vsel %vm1053, %v1639, 0
  %v1731 = vsel %vm1053, %v1640, 0
  %v1734 = vsel %vm1053, %v1641, 0
  %v1737 = vsel %vm1053, %v1642, 0
  %v1740 = vsel %vm1053, %v1643, 0
  %v1743 = vsel %vm1053, %v1644, 0
  %v1746 = vsel %vm1053, %v1645, 0
  %v1749 = vsel %vm1053, %v1646, 0
  %v1752 = vsel %vm1053, %v1647, 0
  %v1755 = vsel %vm1053, %v1648, 0
  %v1758 = vsel %vm1053, %v1649, 0
  %v1761 = vsel %vm1053, %v1650, 0
  %v1764 = vsel %vm1053, %v1651, 0
  %v1767 = vsel %vm1053, %v1652, 0
  %v1770 = vsel %vm1053, %v1653, 0
  %v1773 = vsel %vm1053, %v1654, 0
  %v1776 = vsel %vm1053, %v1655, 0
  %v1779 = vsel %vm1053, %v1656, 0
  %v1782 = vsel %vm1053, %v1657, 0
  %v1785 = vsel %vm1053, %v1658, 0
  %v1788 = vsel %vm1053, %v1659, 0
  %v1791 = vsel %vm1053, %v1660, 0
  %v1794 = vsel %vm1053, %v1661, 0
  %v1797 = vsel %vm1053, %v1662, 0
  %1799 = vmatprep.subr.bf16.mxu0 0
  %1800 = vmatpush1.bf16.msra.mxu0 0
  %1801 = vmatprep.subr.bf16.mxu0 0
  %1802 = vmatpush1.bf16.msra.mxu0 0
  %1803 = vmatprep.subr.bf16.mxu0 0
  %1804 = vmatpush1.bf16.msra.mxu0 0
  %1805 = vmatprep.subr.bf16.mxu0 0
  %1806 = vmatpush1.bf16.msra.mxu0 0
  %1807 = vmatprep.subr.bf16.mxu0 %v1694
  %1808 = vmatpush1.bf16.msra.mxu0 %v1693
  %1809 = vmatprep.subr.bf16.mxu0 %v1692
  %1810 = vmatpush1.bf16.msra.mxu0 %v1691
  %1811 = vmatprep.subr.bf16.mxu0 %v1690
  %1812 = vmatpush1.bf16.msra.mxu0 %v1689
  %1813 = vmatprep.subr.bf16.mxu0 %v1688
  %1814 = vmatpush1.bf16.msra.mxu0 %v1687
  %1815 = vmatprep.subr.bf16.mxu0 0
  %1816 = vmatpush2.bf16.msra.mxu0 0
  %1817 = vmatprep.subr.bf16.mxu0 0
  %1818 = vmatpush2.bf16.msra.mxu0 0
  %1819 = vmatprep.subr.bf16.mxu0 0
  %1820 = vmatpush2.bf16.msra.mxu0 0
  %1821 = vmatprep.subr.bf16.mxu0 0
  %1822 = vmatpush2.bf16.msra.mxu0 0
  %1823 = vmatprep.subr.bf16.mxu0 0
  %1824 = vmatpush2.bf16.msra.mxu0 0
  %1825 = vmatprep.subr.bf16.mxu0 0
  %1826 = vmatpush2.bf16.msra.mxu0 0
  %1827 = vmatprep.subr.bf16.mxu0 0
  %1828 = vmatpush2.bf16.msra.mxu0 0
  %1829 = vmatprep.subr.bf16.mxu0 0
  %1830 = vmatpush2.bf16.msra.mxu0 0
  %1831 = vmatprep.mubr.bf16.mxu0 0
  %1832 = vmatmul.mubr.bf16.gmra.mxu0 %v1704
  %v1833 = vpop.f32.mrf.mxu0
  %v1834 = vadd.f32 %v1185, %v1833
  %v1835 = vpop.f32.mrf.mxu0
  %v1836 = vadd.f32 %v1187, %v1835
  %v1837 = vpop.f32.mrf.mxu0
  %v1838 = vadd.f32 %v1189, %v1837
  %v1839 = vpop.f32.mrf.mxu0
  %v1840 = vadd.f32 %v1191, %v1839
  %1841 = vmatprep.mubr.bf16.mxu0 0
  %1842 = vmatmul.mubr.bf16.gmra.mxu0 %v1707
  %v1843 = vpop.f32.mrf.mxu0
  %v1844 = vadd.f32 %v1195, %v1843
  %v1845 = vpop.f32.mrf.mxu0
  %v1846 = vadd.f32 %v1197, %v1845
  %v1847 = vpop.f32.mrf.mxu0
  %v1848 = vadd.f32 %v1199, %v1847
  %v1849 = vpop.f32.mrf.mxu0
  %v1850 = vadd.f32 %v1201, %v1849
  %1851 = vmatprep.mubr.bf16.mxu0 0
  %1852 = vmatmul.mubr.bf16.gmra.mxu0 %v1710
  %v1853 = vpop.f32.mrf.mxu0
  %v1854 = vadd.f32 %v1205, %v1853
  %v1855 = vpop.f32.mrf.mxu0
  %v1856 = vadd.f32 %v1207, %v1855
  %v1857 = vpop.f32.mrf.mxu0
  %v1858 = vadd.f32 %v1209, %v1857
  %v1859 = vpop.f32.mrf.mxu0
  %v1860 = vadd.f32 %v1211, %v1859
  %1861 = vmatprep.mubr.bf16.mxu0 0
  %1862 = vmatmul.mubr.bf16.gmra.mxu0 %v1713
  %v1863 = vpop.f32.mrf.mxu0
  %v1864 = vadd.f32 %v1215, %v1863
  %v1865 = vpop.f32.mrf.mxu0
  %v1866 = vadd.f32 %v1217, %v1865
  %v1867 = vpop.f32.mrf.mxu0
  %v1868 = vadd.f32 %v1219, %v1867
  %v1869 = vpop.f32.mrf.mxu0
  %v1870 = vadd.f32 %v1221, %v1869
  %1871 = vmatprep.mubr.bf16.mxu0 0
  %1872 = vmatmul.mubr.bf16.gmra.mxu0 %v1716
  %v1873 = vpop.f32.mrf.mxu0
  %v1874 = vadd.f32 %v1225, %v1873
  %v1875 = vpop.f32.mrf.mxu0
  %v1876 = vadd.f32 %v1227, %v1875
  %v1877 = vpop.f32.mrf.mxu0
  %v1878 = vadd.f32 %v1229, %v1877
  %v1879 = vpop.f32.mrf.mxu0
  %v1880 = vadd.f32 %v1231, %v1879
  %1881 = vmatprep.mubr.bf16.mxu0 0
  %1882 = vmatmul.mubr.bf16.gmra.mxu0 %v1719
  %v1883 = vpop.f32.mrf.mxu0
  %v1884 = vadd.f32 %v1235, %v1883
  %v1885 = vpop.f32.mrf.mxu0
  %v1886 = vadd.f32 %v1237, %v1885
  %v1887 = vpop.f32.mrf.mxu0
  %v1888 = vadd.f32 %v1239, %v1887
  %v1889 = vpop.f32.mrf.mxu0
  %v1890 = vadd.f32 %v1241, %v1889
  %1891 = vmatprep.mubr.bf16.mxu0 0
  %1892 = vmatmul.mubr.bf16.gmra.mxu0 %v1722
  %v1893 = vpop.f32.mrf.mxu0
  %v1894 = vadd.f32 %v1245, %v1893
  %v1895 = vpop.f32.mrf.mxu0
  %v1896 = vadd.f32 %v1247, %v1895
  %v1897 = vpop.f32.mrf.mxu0
  %v1898 = vadd.f32 %v1249, %v1897
  %v1899 = vpop.f32.mrf.mxu0
  %v1900 = vadd.f32 %v1251, %v1899
  %1901 = vmatprep.mubr.bf16.mxu0 0
  %1902 = vmatmul.mubr.bf16.gmra.mxu0 %v1725
  %v1903 = vpop.f32.mrf.mxu0
  %v1904 = vadd.f32 %v1255, %v1903
  %v1905 = vpop.f32.mrf.mxu0
  %v1906 = vadd.f32 %v1257, %v1905
  %v1907 = vpop.f32.mrf.mxu0
  %v1908 = vadd.f32 %v1259, %v1907
  %v1909 = vpop.f32.mrf.mxu0
  %v1910 = vadd.f32 %v1261, %v1909
  %1911 = vmatprep.mubr.bf16.mxu0 0
  %1912 = vmatmul.mubr.bf16.gmra.mxu0 %v1728
  %v1913 = vpop.f32.mrf.mxu0
  %v1914 = vadd.f32 %v1265, %v1913
  %v1915 = vpop.f32.mrf.mxu0
  %v1916 = vadd.f32 %v1267, %v1915
  %v1917 = vpop.f32.mrf.mxu0
  %v1918 = vadd.f32 %v1269, %v1917
  %v1919 = vpop.f32.mrf.mxu0
  %v1920 = vadd.f32 %v1271, %v1919
  %1921 = vmatprep.mubr.bf16.mxu0 0
  %1922 = vmatmul.mubr.bf16.gmra.mxu0 %v1731
  %v1923 = vpop.f32.mrf.mxu0
  %v1924 = vadd.f32 %v1275, %v1923
  %v1925 = vpop.f32.mrf.mxu0
  %v1926 = vadd.f32 %v1277, %v1925
  %v1927 = vpop.f32.mrf.mxu0
  %v1928 = vadd.f32 %v1279, %v1927
  %v1929 = vpop.f32.mrf.mxu0
  %v1930 = vadd.f32 %v1281, %v1929
  %1931 = vmatprep.mubr.bf16.mxu0 0
  %1932 = vmatmul.mubr.bf16.gmra.mxu0 %v1734
  %v1933 = vpop.f32.mrf.mxu0
  %v1934 = vadd.f32 %v1285, %v1933
  %v1935 = vpop.f32.mrf.mxu0
  %v1936 = vadd.f32 %v1287, %v1935
  %v1937 = vpop.f32.mrf.mxu0
  %v1938 = vadd.f32 %v1289, %v1937
  %v1939 = vpop.f32.mrf.mxu0
  %v1940 = vadd.f32 %v1291, %v1939
  %1941 = vmatprep.mubr.bf16.mxu0 0
  %1942 = vmatmul.mubr.bf16.gmra.mxu0 %v1737
  %v1943 = vpop.f32.mrf.mxu0
  %v1944 = vadd.f32 %v1295, %v1943
  %v1945 = vpop.f32.mrf.mxu0
  %v1946 = vadd.f32 %v1297, %v1945
  %v1947 = vpop.f32.mrf.mxu0
  %v1948 = vadd.f32 %v1299, %v1947
  %v1949 = vpop.f32.mrf.mxu0
  %v1950 = vadd.f32 %v1301, %v1949
  %1951 = vmatprep.mubr.bf16.mxu0 0
  %1952 = vmatmul.mubr.bf16.gmra.mxu0 %v1740
  %v1953 = vpop.f32.mrf.mxu0
  %v1954 = vadd.f32 %v1305, %v1953
  %v1955 = vpop.f32.mrf.mxu0
  %v1956 = vadd.f32 %v1307, %v1955
  %v1957 = vpop.f32.mrf.mxu0
  %v1958 = vadd.f32 %v1309, %v1957
  %v1959 = vpop.f32.mrf.mxu0
  %v1960 = vadd.f32 %v1311, %v1959
  %1961 = vmatprep.mubr.bf16.mxu0 0
  %1962 = vmatmul.mubr.bf16.gmra.mxu0 %v1743
  %v1963 = vpop.f32.mrf.mxu0
  %v1964 = vadd.f32 %v1315, %v1963
  %v1965 = vpop.f32.mrf.mxu0
  %v1966 = vadd.f32 %v1317, %v1965
  %v1967 = vpop.f32.mrf.mxu0
  %v1968 = vadd.f32 %v1319, %v1967
  %v1969 = vpop.f32.mrf.mxu0
  %v1970 = vadd.f32 %v1321, %v1969
  %1971 = vmatprep.mubr.bf16.mxu0 0
  %1972 = vmatmul.mubr.bf16.gmra.mxu0 %v1746
  %v1973 = vpop.f32.mrf.mxu0
  %v1974 = vadd.f32 %v1325, %v1973
  %v1975 = vpop.f32.mrf.mxu0
  %v1976 = vadd.f32 %v1327, %v1975
  %v1977 = vpop.f32.mrf.mxu0
  %v1978 = vadd.f32 %v1329, %v1977
  %v1979 = vpop.f32.mrf.mxu0
  %v1980 = vadd.f32 %v1331, %v1979
  %1981 = vmatprep.mubr.bf16.mxu0 0
  %1982 = vmatmul.mubr.bf16.gmra.mxu0 %v1749
  %v1983 = vpop.f32.mrf.mxu0
  %v1984 = vadd.f32 %v1335, %v1983
  %v1985 = vpop.f32.mrf.mxu0
  %v1986 = vadd.f32 %v1337, %v1985
  %v1987 = vpop.f32.mrf.mxu0
  %v1988 = vadd.f32 %v1339, %v1987
  %v1989 = vpop.f32.mrf.mxu0
  %v1990 = vadd.f32 %v1341, %v1989
  %1991 = vmatprep.mubr.bf16.mxu0 0
  %1992 = vmatmul.mubr.bf16.gmra.mxu0 %v1752
  %v1993 = vpop.f32.mrf.mxu0
  %v1994 = vadd.f32 %v1345, %v1993
  %v1995 = vpop.f32.mrf.mxu0
  %v1996 = vadd.f32 %v1347, %v1995
  %v1997 = vpop.f32.mrf.mxu0
  %v1998 = vadd.f32 %v1349, %v1997
  %v1999 = vpop.f32.mrf.mxu0
  %v2000 = vadd.f32 %v1351, %v1999
  %2001 = vmatprep.mubr.bf16.mxu0 0
  %2002 = vmatmul.mubr.bf16.gmra.mxu0 %v1755
  %v2003 = vpop.f32.mrf.mxu0
  %v2004 = vadd.f32 %v1355, %v2003
  %v2005 = vpop.f32.mrf.mxu0
  %v2006 = vadd.f32 %v1357, %v2005
  %v2007 = vpop.f32.mrf.mxu0
  %v2008 = vadd.f32 %v1359, %v2007
  %v2009 = vpop.f32.mrf.mxu0
  %v2010 = vadd.f32 %v1361, %v2009
  %2011 = vmatprep.mubr.bf16.mxu0 0
  %2012 = vmatmul.mubr.bf16.gmra.mxu0 %v1758
  %v2013 = vpop.f32.mrf.mxu0
  %v2014 = vadd.f32 %v1365, %v2013
  %v2015 = vpop.f32.mrf.mxu0
  %v2016 = vadd.f32 %v1367, %v2015
  %v2017 = vpop.f32.mrf.mxu0
  %v2018 = vadd.f32 %v1369, %v2017
  %v2019 = vpop.f32.mrf.mxu0
  %v2020 = vadd.f32 %v1371, %v2019
  %2021 = vmatprep.mubr.bf16.mxu0 0
  %2022 = vmatmul.mubr.bf16.gmra.mxu0 %v1761
  %v2023 = vpop.f32.mrf.mxu0
  %v2024 = vadd.f32 %v1375, %v2023
  %v2025 = vpop.f32.mrf.mxu0
  %v2026 = vadd.f32 %v1377, %v2025
  %v2027 = vpop.f32.mrf.mxu0
  %v2028 = vadd.f32 %v1379, %v2027
  %v2029 = vpop.f32.mrf.mxu0
  %v2030 = vadd.f32 %v1381, %v2029
  %2031 = vmatprep.mubr.bf16.mxu0 0
  %2032 = vmatmul.mubr.bf16.gmra.mxu0 %v1764
  %v2033 = vpop.f32.mrf.mxu0
  %v2034 = vadd.f32 %v1385, %v2033
  %v2035 = vpop.f32.mrf.mxu0
  %v2036 = vadd.f32 %v1387, %v2035
  %v2037 = vpop.f32.mrf.mxu0
  %v2038 = vadd.f32 %v1389, %v2037
  %v2039 = vpop.f32.mrf.mxu0
  %v2040 = vadd.f32 %v1391, %v2039
  %2041 = vmatprep.mubr.bf16.mxu0 0
  %2042 = vmatmul.mubr.bf16.gmra.mxu0 %v1767
  %v2043 = vpop.f32.mrf.mxu0
  %v2044 = vadd.f32 %v1395, %v2043
  %v2045 = vpop.f32.mrf.mxu0
  %v2046 = vadd.f32 %v1397, %v2045
  %v2047 = vpop.f32.mrf.mxu0
  %v2048 = vadd.f32 %v1399, %v2047
  %v2049 = vpop.f32.mrf.mxu0
  %v2050 = vadd.f32 %v1401, %v2049
  %2051 = vmatprep.mubr.bf16.mxu0 0
  %2052 = vmatmul.mubr.bf16.gmra.mxu0 %v1770
  %v2053 = vpop.f32.mrf.mxu0
  %v2054 = vadd.f32 %v1405, %v2053
  %v2055 = vpop.f32.mrf.mxu0
  %v2056 = vadd.f32 %v1407, %v2055
  %v2057 = vpop.f32.mrf.mxu0
  %v2058 = vadd.f32 %v1409, %v2057
  %v2059 = vpop.f32.mrf.mxu0
  %v2060 = vadd.f32 %v1411, %v2059
  %2061 = vmatprep.mubr.bf16.mxu0 0
  %2062 = vmatmul.mubr.bf16.gmra.mxu0 %v1773
  %v2063 = vpop.f32.mrf.mxu0
  %v2064 = vadd.f32 %v1415, %v2063
  %v2065 = vpop.f32.mrf.mxu0
  %v2066 = vadd.f32 %v1417, %v2065
  %v2067 = vpop.f32.mrf.mxu0
  %v2068 = vadd.f32 %v1419, %v2067
  %v2069 = vpop.f32.mrf.mxu0
  %v2070 = vadd.f32 %v1421, %v2069
  %2071 = vmatprep.mubr.bf16.mxu0 0
  %2072 = vmatmul.mubr.bf16.gmra.mxu0 %v1776
  %v2073 = vpop.f32.mrf.mxu0
  %v2074 = vadd.f32 %v1425, %v2073
  %v2075 = vpop.f32.mrf.mxu0
  %v2076 = vadd.f32 %v1427, %v2075
  %v2077 = vpop.f32.mrf.mxu0
  %v2078 = vadd.f32 %v1429, %v2077
  %v2079 = vpop.f32.mrf.mxu0
  %v2080 = vadd.f32 %v1431, %v2079
  %2081 = vmatprep.mubr.bf16.mxu0 0
  %2082 = vmatmul.mubr.bf16.gmra.mxu0 %v1779
  %v2083 = vpop.f32.mrf.mxu0
  %v2084 = vadd.f32 %v1435, %v2083
  %v2085 = vpop.f32.mrf.mxu0
  %v2086 = vadd.f32 %v1437, %v2085
  %v2087 = vpop.f32.mrf.mxu0
  %v2088 = vadd.f32 %v1439, %v2087
  %v2089 = vpop.f32.mrf.mxu0
  %v2090 = vadd.f32 %v1441, %v2089
  %2091 = vmatprep.mubr.bf16.mxu0 0
  %2092 = vmatmul.mubr.bf16.gmra.mxu0 %v1782
  %v2093 = vpop.f32.mrf.mxu0
  %v2094 = vadd.f32 %v1445, %v2093
  %v2095 = vpop.f32.mrf.mxu0
  %v2096 = vadd.f32 %v1447, %v2095
  %v2097 = vpop.f32.mrf.mxu0
  %v2098 = vadd.f32 %v1449, %v2097
  %v2099 = vpop.f32.mrf.mxu0
  %v2100 = vadd.f32 %v1451, %v2099
  %2101 = vmatprep.mubr.bf16.mxu0 0
  %2102 = vmatmul.mubr.bf16.gmra.mxu0 %v1785
  %v2103 = vpop.f32.mrf.mxu0
  %v2104 = vadd.f32 %v1455, %v2103
  %v2105 = vpop.f32.mrf.mxu0
  %v2106 = vadd.f32 %v1457, %v2105
  %v2107 = vpop.f32.mrf.mxu0
  %v2108 = vadd.f32 %v1459, %v2107
  %v2109 = vpop.f32.mrf.mxu0
  %v2110 = vadd.f32 %v1461, %v2109
  %2111 = vmatprep.mubr.bf16.mxu0 0
  %2112 = vmatmul.mubr.bf16.gmra.mxu0 %v1788
  %v2113 = vpop.f32.mrf.mxu0
  %v2114 = vadd.f32 %v1465, %v2113
  %v2115 = vpop.f32.mrf.mxu0
  %v2116 = vadd.f32 %v1467, %v2115
  %v2117 = vpop.f32.mrf.mxu0
  %v2118 = vadd.f32 %v1469, %v2117
  %v2119 = vpop.f32.mrf.mxu0
  %v2120 = vadd.f32 %v1471, %v2119
  %2121 = vmatprep.mubr.bf16.mxu0 0
  %2122 = vmatmul.mubr.bf16.gmra.mxu0 %v1791
  %v2123 = vpop.f32.mrf.mxu0
  %v2124 = vadd.f32 %v1475, %v2123
  %v2125 = vpop.f32.mrf.mxu0
  %v2126 = vadd.f32 %v1477, %v2125
  %v2127 = vpop.f32.mrf.mxu0
  %v2128 = vadd.f32 %v1479, %v2127
  %v2129 = vpop.f32.mrf.mxu0
  %v2130 = vadd.f32 %v1481, %v2129
  %2131 = vmatprep.mubr.bf16.mxu0 0
  %2132 = vmatmul.mubr.bf16.gmra.mxu0 %v1794
  %v2133 = vpop.f32.mrf.mxu0
  %v2134 = vadd.f32 %v1485, %v2133
  %v2135 = vpop.f32.mrf.mxu0
  %v2136 = vadd.f32 %v1487, %v2135
  %v2137 = vpop.f32.mrf.mxu0
  %v2138 = vadd.f32 %v1489, %v2137
  %v2139 = vpop.f32.mrf.mxu0
  %v2140 = vadd.f32 %v1491, %v2139
  %2141 = vmatprep.mubr.bf16.mxu0 0
  %2142 = vmatmul.mubr.bf16.gmra.mxu0 %v1797
  %v2143 = vpop.f32.mrf.mxu0
  %v2144 = vadd.f32 %v1495, %v2143
  %v2145 = vpop.f32.mrf.mxu0
  %v2146 = vadd.f32 %v1497, %v2145
  %v2147 = vpop.f32.mrf.mxu0
  %v2148 = vadd.f32 %v1499, %v2147
  %v2149 = vpop.f32.mrf.mxu0
  %v2150 = vadd.f32 %v1501, %v2149
  %2151 = vdwg.mxu0
  %vm2184 = vcmask 1042432
  %vm2185 = vcmask 1046532
  %vm2186 = vmor %vm2184, %vm2185
  %v2187 = vrot.slane %v21, 5
  %v2188 = vrot.slane %v2187, 4
  %v2189 = vrot.slane %v22, 5
  %v2190 = vsel %vm2186, %v2188, %v2189
  %v2191 = vrot.slane %v2189, 4
  %v2192 = vrot.slane %v23, 5
  %v2193 = vsel %vm2186, %v2191, %v2192
  %v2194 = vrot.slane %v24, 5
  %v2195 = vrot.slane %v2194, 4
  %v2196 = vrot.slane %v25, 5
  %v2197 = vsel %vm2186, %v2195, %v2196
  %v2198 = vrot.slane %v2196, 4
  %v2199 = vrot.slane %v26, 5
  %v2200 = vsel %vm2186, %v2198, %v2199
  %v2201 = vrot.slane %v27, 5
  %v2202 = vrot.slane %v2201, 4
  %v2203 = vrot.slane %v28, 5
  %v2204 = vsel %vm2186, %v2202, %v2203
  %v2205 = vrot.slane %v2203, 4
  %v2206 = vrot.slane %v29, 5
  %v2207 = vsel %vm2186, %v2205, %v2206
  %v2208 = vrot.slane %v30, 5
  %v2209 = vrot.slane %v2208, 4
  %v2210 = vrot.slane %v31, 5
  %v2211 = vsel %vm2186, %v2209, %v2210
  %v2212 = vrot.slane %v2210, 4
  %v2213 = vrot.slane %v32, 5
  %v2214 = vsel %vm2186, %v2212, %v2213
  %v2215 = vrot.slane %v33, 5
  %v2216 = vrot.slane %v2215, 4
  %v2217 = vrot.slane %v34, 5
  %v2218 = vsel %vm2186, %v2216, %v2217
  %v2219 = vrot.slane %v2217, 4
  %v2220 = vrot.slane %v35, 5
  %v2221 = vsel %vm2186, %v2219, %v2220
  %v2222 = vrot.slane %v36, 5
  %v2223 = vrot.slane %v2222, 4
  %v2224 = vrot.slane %v37, 5
  %v2225 = vsel %vm2186, %v2223, %v2224
  %v2226 = vrot.slane %v2224, 4
  %v2227 = vrot.slane %v38, 5
  %v2228 = vsel %vm2186, %v2226, %v2227
  %v2229 = vrot.slane %v39, 5
  %v2230 = vrot.slane %v2229, 4
  %v2231 = vrot.slane %v40, 5
  %v2232 = vsel %vm2186, %v2230, %v2231
  %v2233 = vrot.slane %v2231, 4
  %v2234 = vrot.slane %v41, 5
  %v2235 = vsel %vm2186, %v2233, %v2234
  %v2236 = vrot.slane %v42, 5
  %v2237 = vrot.slane %v2236, 4
  %v2238 = vrot.slane %v43, 5
  %v2239 = vsel %vm2186, %v2237, %v2238
  %v2240 = vrot.slane %v2238, 4
  %v2241 = vrot.slane %v44, 5
  %v2242 = vsel %vm2186, %v2240, %v2241
  %v2243 = vrot.slane %v45, 5
  %v2244 = vrot.slane %v2243, 4
  %v2245 = vrot.slane %v46, 5
  %v2246 = vsel %vm2186, %v2244, %v2245
  %v2247 = vrot.slane %v2245, 4
  %v2248 = vrot.slane %v47, 5
  %v2249 = vsel %vm2186, %v2247, %v2248
  %v2250 = vrot.slane %v48, 5
  %v2251 = vrot.slane %v2250, 4
  %v2252 = vrot.slane %v49, 5
  %v2253 = vsel %vm2186, %v2251, %v2252
  %v2254 = vrot.slane %v2252, 4
  %v2255 = vrot.slane %v50, 5
  %v2256 = vsel %vm2186, %v2254, %v2255
  %v2257 = vrot.slane %v51, 5
  %v2258 = vrot.slane %v2257, 4
  %v2259 = vrot.slane %v52, 5
  %v2260 = vsel %vm2186, %v2258, %v2259
  %v2261 = vrot.slane %v2259, 4
  %v2262 = vrot.slane %v53, 5
  %v2263 = vsel %vm2186, %v2261, %v2262
  %v2264 = vrot.slane %v54, 5
  %v2265 = vrot.slane %v2264, 4
  %v2266 = vrot.slane %v55, 5
  %v2267 = vsel %vm2186, %v2265, %v2266
  %v2268 = vrot.slane %v2266, 4
  %v2269 = vrot.slane %v56, 5
  %v2270 = vsel %vm2186, %v2268, %v2269
  %v2271 = vrot.slane %v57, 5
  %v2272 = vrot.slane %v2271, 4
  %v2273 = vrot.slane %v58, 5
  %v2274 = vsel %vm2186, %v2272, %v2273
  %v2275 = vrot.slane %v2273, 4
  %v2276 = vrot.slane %v59, 5
  %v2277 = vsel %vm2186, %v2275, %v2276
  %v2278 = vrot.slane %v60, 5
  %v2279 = vrot.slane %v2278, 4
  %v2280 = vrot.slane %v61, 5
  %v2281 = vsel %vm2186, %v2279, %v2280
  %v2282 = vrot.slane %v2280, 4
  %v2283 = vrot.slane %v62, 5
  %v2284 = vsel %vm2186, %v2282, %v2283
  %v2285 = vrot.slane %v63, 5
  %v2286 = vrot.slane %v2285, 4
  %v2287 = vrot.slane %v64, 5
  %v2288 = vsel %vm2186, %v2286, %v2287
  %v2289 = vrot.slane %v2287, 4
  %v2290 = vrot.slane %v65, 5
  %v2291 = vsel %vm2186, %v2289, %v2290
  %v2292 = vrot.slane %v66, 5
  %v2293 = vrot.slane %v2292, 4
  %v2294 = vrot.slane %v67, 5
  %v2295 = vsel %vm2186, %v2293, %v2294
  %v2296 = vrot.slane %v2294, 4
  %v2297 = vrot.slane %v68, 5
  %v2298 = vsel %vm2186, %v2296, %v2297
  %v2299 = vrot.slane %v75, 5
  %v2300 = vrot.slane %v2299, 4
  %v2301 = vrot.slane %v76, 5
  %v2302 = vsel %vm2186, %v2300, %v2301
  %v2303 = vrot.slane %v2301, 4
  %v2304 = vrot.slane %v77, 5
  %v2305 = vsel %vm2186, %v2303, %v2304
  %v2306 = vrot.slane %v78, 5
  %v2307 = vrot.slane %v2306, 4
  %v2308 = vrot.slane %v79, 5
  %v2309 = vsel %vm2186, %v2307, %v2308
  %v2310 = vrot.slane %v2308, 4
  %v2311 = vrot.slane %v80, 5
  %v2312 = vsel %vm2186, %v2310, %v2311
  %v2313 = vrot.slane %v81, 5
  %v2314 = vrot.slane %v2313, 4
  %v2315 = vrot.slane %v82, 5
  %v2316 = vsel %vm2186, %v2314, %v2315
  %v2317 = vrot.slane %v2315, 4
  %v2318 = vrot.slane %v83, 5
  %v2319 = vsel %vm2186, %v2317, %v2318
  %v2320 = vrot.slane %v84, 5
  %v2321 = vrot.slane %v2320, 4
  %v2322 = vrot.slane %v85, 5
  %v2323 = vsel %vm2186, %v2321, %v2322
  %v2324 = vrot.slane %v2322, 4
  %v2325 = vrot.slane %v86, 5
  %v2326 = vsel %vm2186, %v2324, %v2325
  %v2327 = vrot.slane %v87, 5
  %v2328 = vrot.slane %v2327, 4
  %v2329 = vrot.slane %v88, 5
  %v2330 = vsel %vm2186, %v2328, %v2329
  %v2331 = vrot.slane %v2329, 4
  %v2332 = vrot.slane %v89, 5
  %v2333 = vsel %vm2186, %v2331, %v2332
  %v2334 = vrot.slane %v90, 5
  %v2335 = vrot.slane %v2334, 4
  %v2336 = vrot.slane %v91, 5
  %v2337 = vsel %vm2186, %v2335, %v2336
  %v2338 = vrot.slane %v2336, 4
  %v2339 = vrot.slane %v92, 5
  %v2340 = vsel %vm2186, %v2338, %v2339
  %v2341 = vrot.slane %v93, 5
  %v2342 = vrot.slane %v2341, 4
  %v2343 = vrot.slane %v94, 5
  %v2344 = vsel %vm2186, %v2342, %v2343
  %v2345 = vrot.slane %v2343, 4
  %v2346 = vrot.slane %v95, 5
  %v2347 = vsel %vm2186, %v2345, %v2346
  %v2348 = vrot.slane %v96, 5
  %v2349 = vrot.slane %v2348, 4
  %v2350 = vrot.slane %v97, 5
  %v2351 = vsel %vm2186, %v2349, %v2350
  %v2352 = vrot.slane %v2350, 4
  %v2353 = vrot.slane %v98, 5
  %v2354 = vsel %vm2186, %v2352, %v2353
  %v2355 = vrot.slane %v99, 5
  %v2356 = vrot.slane %v2355, 4
  %v2357 = vrot.slane %v100, 5
  %v2358 = vsel %vm2186, %v2356, %v2357
  %v2359 = vrot.slane %v2357, 4
  %v2360 = vrot.slane %v101, 5
  %v2361 = vsel %vm2186, %v2359, %v2360
  %v2362 = vrot.slane %v102, 5
  %v2363 = vrot.slane %v2362, 4
  %v2364 = vrot.slane %v103, 5
  %v2365 = vsel %vm2186, %v2363, %v2364
  %v2366 = vrot.slane %v2364, 4
  %v2367 = vrot.slane %v104, 5
  %v2368 = vsel %vm2186, %v2366, %v2367
  %v2369 = vrot.slane %v105, 5
  %v2370 = vrot.slane %v2369, 4
  %v2371 = vrot.slane %v106, 5
  %v2372 = vsel %vm2186, %v2370, %v2371
  %v2373 = vrot.slane %v2371, 4
  %v2374 = vrot.slane %v107, 5
  %v2375 = vsel %vm2186, %v2373, %v2374
  %v2376 = vrot.slane %v108, 5
  %v2377 = vrot.slane %v2376, 4
  %v2378 = vrot.slane %v109, 5
  %v2379 = vsel %vm2186, %v2377, %v2378
  %v2380 = vrot.slane %v2378, 4
  %v2381 = vrot.slane %v110, 5
  %v2382 = vsel %vm2186, %v2380, %v2381
  %v2383 = vrot.slane %v111, 5
  %v2384 = vrot.slane %v2383, 4
  %v2385 = vrot.slane %v112, 5
  %v2386 = vsel %vm2186, %v2384, %v2385
  %v2387 = vrot.slane %v2385, 4
  %v2388 = vrot.slane %v113, 5
  %v2389 = vsel %vm2186, %v2387, %v2388
  %v2390 = vrot.slane %v114, 5
  %v2391 = vrot.slane %v2390, 4
  %v2392 = vrot.slane %v115, 5
  %v2393 = vsel %vm2186, %v2391, %v2392
  %v2394 = vrot.slane %v2392, 4
  %v2395 = vrot.slane %v116, 5
  %v2396 = vsel %vm2186, %v2394, %v2395
  %v2397 = vrot.slane %v117, 5
  %v2398 = vrot.slane %v2397, 4
  %v2399 = vrot.slane %v118, 5
  %v2400 = vsel %vm2186, %v2398, %v2399
  %v2401 = vrot.slane %v2399, 4
  %v2402 = vrot.slane %v119, 5
  %v2403 = vsel %vm2186, %v2401, %v2402
  %v2404 = vrot.slane %v120, 5
  %v2405 = vrot.slane %v2404, 4
  %v2406 = vrot.slane %v121, 5
  %v2407 = vsel %vm2186, %v2405, %v2406
  %v2408 = vrot.slane %v2406, 4
  %v2409 = vrot.slane %v122, 5
  %v2410 = vsel %vm2186, %v2408, %v2409
  %s2411 = scalar_lea.vmem %s1, 128
  %v2412 = vld [vmem:[%s2411] sm:$0xff]
  %v2413 = vld [vmem:[%s2411 + $0x8] sm:$0xff]
  %v2414 = vld [vmem:[%s2411 + $0x10] sm:$0xff]
  %v2415 = vld [vmem:[%s2411 + $0x18] sm:$0xff]
  %v2416 = vld [vmem:[%s2411 + $0x20] sm:$0xff]
  %v2417 = vld [vmem:[%s2411 + $0x28] sm:$0xff]
  %v2418 = vld [vmem:[%s2411 + $0x30] sm:$0xff]
  %v2419 = vld [vmem:[%s2411 + $0x38] sm:$0xff]
  %v2420 = vunpack.c.l.b16 %v2190
  %v2421 = vunpack.c.l.b16 %v2193
  %v2422 = vunpack.c.l.b16 %v2197
  %v2423 = vunpack.c.l.b16 %v2200
  %v2424 = vunpack.c.l.b16 %v2204
  %v2425 = vunpack.c.l.b16 %v2207
  %v2426 = vunpack.c.l.b16 %v2211
  %v2427 = vunpack.c.l.b16 %v2214
  %v2428 = vunpack.c.l.b16 %v2218
  %v2429 = vunpack.c.l.b16 %v2221
  %v2430 = vunpack.c.l.b16 %v2225
  %v2431 = vunpack.c.l.b16 %v2228
  %v2432 = vunpack.c.l.b16 %v2232
  %v2433 = vunpack.c.l.b16 %v2235
  %v2434 = vunpack.c.l.b16 %v2239
  %v2435 = vunpack.c.l.b16 %v2242
  %v2436 = vunpack.c.l.b16 %v2246
  %v2437 = vunpack.c.l.b16 %v2249
  %v2438 = vunpack.c.l.b16 %v2253
  %v2439 = vunpack.c.l.b16 %v2256
  %v2440 = vunpack.c.l.b16 %v2260
  %v2441 = vunpack.c.l.b16 %v2263
  %v2442 = vunpack.c.l.b16 %v2267
  %v2443 = vunpack.c.l.b16 %v2270
  %v2444 = vunpack.c.l.b16 %v2274
  %v2445 = vunpack.c.l.b16 %v2277
  %v2446 = vunpack.c.l.b16 %v2281
  %v2447 = vunpack.c.l.b16 %v2284
  %v2448 = vunpack.c.l.b16 %v2288
  %v2449 = vunpack.c.l.b16 %v2291
  %v2450 = vunpack.c.l.b16 %v2295
  %v2451 = vunpack.c.l.b16 %v2298
  %v2452 = vunpack.c.l.b16 %v2302
  %v2453 = vunpack.c.l.b16 %v2305
  %v2454 = vunpack.c.l.b16 %v2309
  %v2455 = vunpack.c.l.b16 %v2312
  %v2456 = vunpack.c.l.b16 %v2316
  %v2457 = vunpack.c.l.b16 %v2319
  %v2458 = vunpack.c.l.b16 %v2323
  %v2459 = vunpack.c.l.b16 %v2326
  %v2460 = vunpack.c.l.b16 %v2330
  %v2461 = vunpack.c.l.b16 %v2333
  %v2462 = vunpack.c.l.b16 %v2337
  %v2463 = vunpack.c.l.b16 %v2340
  %v2464 = vunpack.c.l.b16 %v2344
  %v2465 = vunpack.c.l.b16 %v2347
  %v2466 = vunpack.c.l.b16 %v2351
  %v2467 = vunpack.c.l.b16 %v2354
  %v2468 = vunpack.c.l.b16 %v2358
  %v2469 = vunpack.c.l.b16 %v2361
  %v2470 = vunpack.c.l.b16 %v2365
  %v2471 = vunpack.c.l.b16 %v2368
  %v2472 = vunpack.c.l.b16 %v2372
  %v2473 = vunpack.c.l.b16 %v2375
  %v2474 = vunpack.c.l.b16 %v2379
  %v2475 = vunpack.c.l.b16 %v2382
  %v2476 = vunpack.c.l.b16 %v2386
  %v2477 = vunpack.c.l.b16 %v2389
  %v2478 = vunpack.c.l.b16 %v2393
  %v2479 = vunpack.c.l.b16 %v2396
  %v2480 = vunpack.c.l.b16 %v2400
  %v2481 = vunpack.c.l.b16 %v2403
  %v2482 = vunpack.c.l.b16 %v2407
  %v2483 = vunpack.c.l.b16 %v2410
  %v2484 = vpack.c.b16 %v2421, %v2420
  %v2485 = vpack.c.b16 %v2423, %v2422
  %v2486 = vpack.c.b16 %v2425, %v2424
  %v2487 = vpack.c.b16 %v2427, %v2426
  %v2488 = vpack.c.b16 %v2429, %v2428
  %v2489 = vpack.c.b16 %v2431, %v2430
  %v2490 = vpack.c.b16 %v2433, %v2432
  %v2491 = vpack.c.b16 %v2435, %v2434
  %v2492 = vpack.c.b16 %v2437, %v2436
  %v2493 = vpack.c.b16 %v2439, %v2438
  %v2494 = vpack.c.b16 %v2441, %v2440
  %v2495 = vpack.c.b16 %v2443, %v2442
  %v2496 = vpack.c.b16 %v2445, %v2444
  %v2497 = vpack.c.b16 %v2447, %v2446
  %v2498 = vpack.c.b16 %v2449, %v2448
  %v2499 = vpack.c.b16 %v2451, %v2450
  %v2500 = vpack.c.b16 %v2453, %v2452
  %v2501 = vpack.c.b16 %v2455, %v2454
  %v2502 = vpack.c.b16 %v2457, %v2456
  %v2503 = vpack.c.b16 %v2459, %v2458
  %v2504 = vpack.c.b16 %v2461, %v2460
  %v2505 = vpack.c.b16 %v2463, %v2462
  %v2506 = vpack.c.b16 %v2465, %v2464
  %v2507 = vpack.c.b16 %v2467, %v2466
  %v2508 = vpack.c.b16 %v2469, %v2468
  %v2509 = vpack.c.b16 %v2471, %v2470
  %v2510 = vpack.c.b16 %v2473, %v2472
  %v2511 = vpack.c.b16 %v2475, %v2474
  %v2512 = vpack.c.b16 %v2477, %v2476
  %v2513 = vpack.c.b16 %v2479, %v2478
  %v2514 = vpack.c.b16 %v2481, %v2480
  %v2515 = vpack.c.b16 %v2483, %v2482
  %v2524 = vunpack.c.l.b16 %v2412
  %v2525 = vunpack.c.h.b16 %v2412
  %v2526 = vunpack.c.l.b16 %v2413
  %v2527 = vunpack.c.h.b16 %v2413
  %v2528 = vunpack.c.l.b16 %v2414
  %v2529 = vunpack.c.h.b16 %v2414
  %v2530 = vunpack.c.l.b16 %v2415
  %v2531 = vunpack.c.h.b16 %v2415
  %v2532 = vunpack.c.l.b16 %v2416
  %v2533 = vunpack.c.h.b16 %v2416
  %v2534 = vunpack.c.l.b16 %v2417
  %v2535 = vunpack.c.h.b16 %v2417
  %v2536 = vunpack.c.l.b16 %v2418
  %v2537 = vunpack.c.h.b16 %v2418
  %v2538 = vunpack.c.l.b16 %v2419
  %v2539 = vunpack.c.h.b16 %v2419
  %v2540 = vpack.c.b16 %v2526, %v2524
  %v2541 = vpack.c.b16 %v2527, %v2525
  %v2542 = vpack.c.b16 %v2530, %v2528
  %v2543 = vpack.c.b16 %v2531, %v2529
  %v2544 = vpack.c.b16 %v2534, %v2532
  %v2545 = vpack.c.b16 %v2535, %v2533
  %v2546 = vpack.c.b16 %v2538, %v2536
  %v2547 = vpack.c.b16 %v2539, %v2537
  %v2557 = vsel %vm1053, %v2484, 0
  %v2560 = vsel %vm1053, %v2485, 0
  %v2563 = vsel %vm1053, %v2486, 0
  %v2566 = vsel %vm1053, %v2487, 0
  %v2569 = vsel %vm1053, %v2488, 0
  %v2572 = vsel %vm1053, %v2489, 0
  %v2575 = vsel %vm1053, %v2490, 0
  %v2578 = vsel %vm1053, %v2491, 0
  %v2581 = vsel %vm1053, %v2492, 0
  %v2584 = vsel %vm1053, %v2493, 0
  %v2587 = vsel %vm1053, %v2494, 0
  %v2590 = vsel %vm1053, %v2495, 0
  %v2593 = vsel %vm1053, %v2496, 0
  %v2596 = vsel %vm1053, %v2497, 0
  %v2599 = vsel %vm1053, %v2498, 0
  %v2602 = vsel %vm1053, %v2499, 0
  %v2605 = vsel %vm1053, %v2500, 0
  %v2608 = vsel %vm1053, %v2501, 0
  %v2611 = vsel %vm1053, %v2502, 0
  %v2614 = vsel %vm1053, %v2503, 0
  %v2617 = vsel %vm1053, %v2504, 0
  %v2620 = vsel %vm1053, %v2505, 0
  %v2623 = vsel %vm1053, %v2506, 0
  %v2626 = vsel %vm1053, %v2507, 0
  %v2629 = vsel %vm1053, %v2508, 0
  %v2632 = vsel %vm1053, %v2509, 0
  %v2635 = vsel %vm1053, %v2510, 0
  %v2638 = vsel %vm1053, %v2511, 0
  %v2641 = vsel %vm1053, %v2512, 0
  %v2644 = vsel %vm1053, %v2513, 0
  %v2647 = vsel %vm1053, %v2514, 0
  %v2650 = vsel %vm1053, %v2515, 0
  %2652 = vmatprep.subr.bf16.mxu0 0
  %2653 = vmatpush1.bf16.msra.mxu0 0
  %2654 = vmatprep.subr.bf16.mxu0 0
  %2655 = vmatpush1.bf16.msra.mxu0 0
  %2656 = vmatprep.subr.bf16.mxu0 0
  %2657 = vmatpush1.bf16.msra.mxu0 0
  %2658 = vmatprep.subr.bf16.mxu0 0
  %2659 = vmatpush1.bf16.msra.mxu0 0
  %2660 = vmatprep.subr.bf16.mxu0 %v2547
  %2661 = vmatpush1.bf16.msra.mxu0 %v2546
  %2662 = vmatprep.subr.bf16.mxu0 %v2545
  %2663 = vmatpush1.bf16.msra.mxu0 %v2544
  %2664 = vmatprep.subr.bf16.mxu0 %v2543
  %2665 = vmatpush1.bf16.msra.mxu0 %v2542
  %2666 = vmatprep.subr.bf16.mxu0 %v2541
  %2667 = vmatpush1.bf16.msra.mxu0 %v2540
  %2668 = vmatprep.subr.bf16.mxu0 0
  %2669 = vmatpush2.bf16.msra.mxu0 0
  %2670 = vmatprep.subr.bf16.mxu0 0
  %2671 = vmatpush2.bf16.msra.mxu0 0
  %2672 = vmatprep.subr.bf16.mxu0 0
  %2673 = vmatpush2.bf16.msra.mxu0 0
  %2674 = vmatprep.subr.bf16.mxu0 0
  %2675 = vmatpush2.bf16.msra.mxu0 0
  %2676 = vmatprep.subr.bf16.mxu0 0
  %2677 = vmatpush2.bf16.msra.mxu0 0
  %2678 = vmatprep.subr.bf16.mxu0 0
  %2679 = vmatpush2.bf16.msra.mxu0 0
  %2680 = vmatprep.subr.bf16.mxu0 0
  %2681 = vmatpush2.bf16.msra.mxu0 0
  %2682 = vmatprep.subr.bf16.mxu0 0
  %2683 = vmatpush2.bf16.msra.mxu0 0
  %2684 = vmatprep.mubr.bf16.mxu0 0
  %2685 = vmatmul.mubr.bf16.gmra.mxu0 %v2557
  %v2686 = vpop.f32.mrf.mxu0
  %v2687 = vadd.f32 0.0, %v2686
  %v2688 = vpop.f32.mrf.mxu0
  %v2689 = vadd.f32 0.0, %v2688
  %v2690 = vpop.f32.mrf.mxu0
  %v2691 = vadd.f32 0.0, %v2690
  %v2692 = vpop.f32.mrf.mxu0
  %v2693 = vadd.f32 0.0, %v2692
  %2694 = vmatprep.mubr.bf16.mxu0 0
  %2695 = vmatmul.mubr.bf16.gmra.mxu0 %v2560
  %v2696 = vpop.f32.mrf.mxu0
  %v2697 = vadd.f32 0.0, %v2696
  %v2698 = vpop.f32.mrf.mxu0
  %v2699 = vadd.f32 0.0, %v2698
  %v2700 = vpop.f32.mrf.mxu0
  %v2701 = vadd.f32 0.0, %v2700
  %v2702 = vpop.f32.mrf.mxu0
  %v2703 = vadd.f32 0.0, %v2702
  %2704 = vmatprep.mubr.bf16.mxu0 0
  %2705 = vmatmul.mubr.bf16.gmra.mxu0 %v2563
  %v2706 = vpop.f32.mrf.mxu0
  %v2707 = vadd.f32 0.0, %v2706
  %v2708 = vpop.f32.mrf.mxu0
  %v2709 = vadd.f32 0.0, %v2708
  %v2710 = vpop.f32.mrf.mxu0
  %v2711 = vadd.f32 0.0, %v2710
  %v2712 = vpop.f32.mrf.mxu0
  %v2713 = vadd.f32 0.0, %v2712
  %2714 = vmatprep.mubr.bf16.mxu0 0
  %2715 = vmatmul.mubr.bf16.gmra.mxu0 %v2566
  %v2716 = vpop.f32.mrf.mxu0
  %v2717 = vadd.f32 0.0, %v2716
  %v2718 = vpop.f32.mrf.mxu0
  %v2719 = vadd.f32 0.0, %v2718
  %v2720 = vpop.f32.mrf.mxu0
  %v2721 = vadd.f32 0.0, %v2720
  %v2722 = vpop.f32.mrf.mxu0
  %v2723 = vadd.f32 0.0, %v2722
  %2724 = vmatprep.mubr.bf16.mxu0 0
  %2725 = vmatmul.mubr.bf16.gmra.mxu0 %v2569
  %v2726 = vpop.f32.mrf.mxu0
  %v2727 = vadd.f32 0.0, %v2726
  %v2728 = vpop.f32.mrf.mxu0
  %v2729 = vadd.f32 0.0, %v2728
  %v2730 = vpop.f32.mrf.mxu0
  %v2731 = vadd.f32 0.0, %v2730
  %v2732 = vpop.f32.mrf.mxu0
  %v2733 = vadd.f32 0.0, %v2732
  %2734 = vmatprep.mubr.bf16.mxu0 0
  %2735 = vmatmul.mubr.bf16.gmra.mxu0 %v2572
  %v2736 = vpop.f32.mrf.mxu0
  %v2737 = vadd.f32 0.0, %v2736
  %v2738 = vpop.f32.mrf.mxu0
  %v2739 = vadd.f32 0.0, %v2738
  %v2740 = vpop.f32.mrf.mxu0
  %v2741 = vadd.f32 0.0, %v2740
  %v2742 = vpop.f32.mrf.mxu0
  %v2743 = vadd.f32 0.0, %v2742
  %2744 = vmatprep.mubr.bf16.mxu0 0
  %2745 = vmatmul.mubr.bf16.gmra.mxu0 %v2575
  %v2746 = vpop.f32.mrf.mxu0
  %v2747 = vadd.f32 0.0, %v2746
  %v2748 = vpop.f32.mrf.mxu0
  %v2749 = vadd.f32 0.0, %v2748
  %v2750 = vpop.f32.mrf.mxu0
  %v2751 = vadd.f32 0.0, %v2750
  %v2752 = vpop.f32.mrf.mxu0
  %v2753 = vadd.f32 0.0, %v2752
  %2754 = vmatprep.mubr.bf16.mxu0 0
  %2755 = vmatmul.mubr.bf16.gmra.mxu0 %v2578
  %v2756 = vpop.f32.mrf.mxu0
  %v2757 = vadd.f32 0.0, %v2756
  %v2758 = vpop.f32.mrf.mxu0
  %v2759 = vadd.f32 0.0, %v2758
  %v2760 = vpop.f32.mrf.mxu0
  %v2761 = vadd.f32 0.0, %v2760
  %v2762 = vpop.f32.mrf.mxu0
  %v2763 = vadd.f32 0.0, %v2762
  %2764 = vmatprep.mubr.bf16.mxu0 0
  %2765 = vmatmul.mubr.bf16.gmra.mxu0 %v2581
  %v2766 = vpop.f32.mrf.mxu0
  %v2767 = vadd.f32 0.0, %v2766
  %v2768 = vpop.f32.mrf.mxu0
  %v2769 = vadd.f32 0.0, %v2768
  %v2770 = vpop.f32.mrf.mxu0
  %v2771 = vadd.f32 0.0, %v2770
  %v2772 = vpop.f32.mrf.mxu0
  %v2773 = vadd.f32 0.0, %v2772
  %2774 = vmatprep.mubr.bf16.mxu0 0
  %2775 = vmatmul.mubr.bf16.gmra.mxu0 %v2584
  %v2776 = vpop.f32.mrf.mxu0
  %v2777 = vadd.f32 0.0, %v2776
  %v2778 = vpop.f32.mrf.mxu0
  %v2779 = vadd.f32 0.0, %v2778
  %v2780 = vpop.f32.mrf.mxu0
  %v2781 = vadd.f32 0.0, %v2780
  %v2782 = vpop.f32.mrf.mxu0
  %v2783 = vadd.f32 0.0, %v2782
  %2784 = vmatprep.mubr.bf16.mxu0 0
  %2785 = vmatmul.mubr.bf16.gmra.mxu0 %v2587
  %v2786 = vpop.f32.mrf.mxu0
  %v2787 = vadd.f32 0.0, %v2786
  %v2788 = vpop.f32.mrf.mxu0
  %v2789 = vadd.f32 0.0, %v2788
  %v2790 = vpop.f32.mrf.mxu0
  %v2791 = vadd.f32 0.0, %v2790
  %v2792 = vpop.f32.mrf.mxu0
  %v2793 = vadd.f32 0.0, %v2792
  %2794 = vmatprep.mubr.bf16.mxu0 0
  %2795 = vmatmul.mubr.bf16.gmra.mxu0 %v2590
  %v2796 = vpop.f32.mrf.mxu0
  %v2797 = vadd.f32 0.0, %v2796
  %v2798 = vpop.f32.mrf.mxu0
  %v2799 = vadd.f32 0.0, %v2798
  %v2800 = vpop.f32.mrf.mxu0
  %v2801 = vadd.f32 0.0, %v2800
  %v2802 = vpop.f32.mrf.mxu0
  %v2803 = vadd.f32 0.0, %v2802
  %2804 = vmatprep.mubr.bf16.mxu0 0
  %2805 = vmatmul.mubr.bf16.gmra.mxu0 %v2593
  %v2806 = vpop.f32.mrf.mxu0
  %v2807 = vadd.f32 0.0, %v2806
  %v2808 = vpop.f32.mrf.mxu0
  %v2809 = vadd.f32 0.0, %v2808
  %v2810 = vpop.f32.mrf.mxu0
  %v2811 = vadd.f32 0.0, %v2810
  %v2812 = vpop.f32.mrf.mxu0
  %v2813 = vadd.f32 0.0, %v2812
  %2814 = vmatprep.mubr.bf16.mxu0 0
  %2815 = vmatmul.mubr.bf16.gmra.mxu0 %v2596
  %v2816 = vpop.f32.mrf.mxu0
  %v2817 = vadd.f32 0.0, %v2816
  %v2818 = vpop.f32.mrf.mxu0
  %v2819 = vadd.f32 0.0, %v2818
  %v2820 = vpop.f32.mrf.mxu0
  %v2821 = vadd.f32 0.0, %v2820
  %v2822 = vpop.f32.mrf.mxu0
  %v2823 = vadd.f32 0.0, %v2822
  %2824 = vmatprep.mubr.bf16.mxu0 0
  %2825 = vmatmul.mubr.bf16.gmra.mxu0 %v2599
  %v2826 = vpop.f32.mrf.mxu0
  %v2827 = vadd.f32 0.0, %v2826
  %v2828 = vpop.f32.mrf.mxu0
  %v2829 = vadd.f32 0.0, %v2828
  %v2830 = vpop.f32.mrf.mxu0
  %v2831 = vadd.f32 0.0, %v2830
  %v2832 = vpop.f32.mrf.mxu0
  %v2833 = vadd.f32 0.0, %v2832
  %2834 = vmatprep.mubr.bf16.mxu0 0
  %2835 = vmatmul.mubr.bf16.gmra.mxu0 %v2602
  %v2836 = vpop.f32.mrf.mxu0
  %v2837 = vadd.f32 0.0, %v2836
  %v2838 = vpop.f32.mrf.mxu0
  %v2839 = vadd.f32 0.0, %v2838
  %v2840 = vpop.f32.mrf.mxu0
  %v2841 = vadd.f32 0.0, %v2840
  %v2842 = vpop.f32.mrf.mxu0
  %v2843 = vadd.f32 0.0, %v2842
  %2844 = vmatprep.mubr.bf16.mxu0 0
  %2845 = vmatmul.mubr.bf16.gmra.mxu0 %v2605
  %v2846 = vpop.f32.mrf.mxu0
  %v2847 = vadd.f32 0.0, %v2846
  %v2848 = vpop.f32.mrf.mxu0
  %v2849 = vadd.f32 0.0, %v2848
  %v2850 = vpop.f32.mrf.mxu0
  %v2851 = vadd.f32 0.0, %v2850
  %v2852 = vpop.f32.mrf.mxu0
  %v2853 = vadd.f32 0.0, %v2852
  %2854 = vmatprep.mubr.bf16.mxu0 0
  %2855 = vmatmul.mubr.bf16.gmra.mxu0 %v2608
  %v2856 = vpop.f32.mrf.mxu0
  %v2857 = vadd.f32 0.0, %v2856
  %v2858 = vpop.f32.mrf.mxu0
  %v2859 = vadd.f32 0.0, %v2858
  %v2860 = vpop.f32.mrf.mxu0
  %v2861 = vadd.f32 0.0, %v2860
  %v2862 = vpop.f32.mrf.mxu0
  %v2863 = vadd.f32 0.0, %v2862
  %2864 = vmatprep.mubr.bf16.mxu0 0
  %2865 = vmatmul.mubr.bf16.gmra.mxu0 %v2611
  %v2866 = vpop.f32.mrf.mxu0
  %v2867 = vadd.f32 0.0, %v2866
  %v2868 = vpop.f32.mrf.mxu0
  %v2869 = vadd.f32 0.0, %v2868
  %v2870 = vpop.f32.mrf.mxu0
  %v2871 = vadd.f32 0.0, %v2870
  %v2872 = vpop.f32.mrf.mxu0
  %v2873 = vadd.f32 0.0, %v2872
  %2874 = vmatprep.mubr.bf16.mxu0 0
  %2875 = vmatmul.mubr.bf16.gmra.mxu0 %v2614
  %v2876 = vpop.f32.mrf.mxu0
  %v2877 = vadd.f32 0.0, %v2876
  %v2878 = vpop.f32.mrf.mxu0
  %v2879 = vadd.f32 0.0, %v2878
  %v2880 = vpop.f32.mrf.mxu0
  %v2881 = vadd.f32 0.0, %v2880
  %v2882 = vpop.f32.mrf.mxu0
  %v2883 = vadd.f32 0.0, %v2882
  %2884 = vmatprep.mubr.bf16.mxu0 0
  %2885 = vmatmul.mubr.bf16.gmra.mxu0 %v2617
  %v2886 = vpop.f32.mrf.mxu0
  %v2887 = vadd.f32 0.0, %v2886
  %v2888 = vpop.f32.mrf.mxu0
  %v2889 = vadd.f32 0.0, %v2888
  %v2890 = vpop.f32.mrf.mxu0
  %v2891 = vadd.f32 0.0, %v2890
  %v2892 = vpop.f32.mrf.mxu0
  %v2893 = vadd.f32 0.0, %v2892
  %2894 = vmatprep.mubr.bf16.mxu0 0
  %2895 = vmatmul.mubr.bf16.gmra.mxu0 %v2620
  %v2896 = vpop.f32.mrf.mxu0
  %v2897 = vadd.f32 0.0, %v2896
  %v2898 = vpop.f32.mrf.mxu0
  %v2899 = vadd.f32 0.0, %v2898
  %v2900 = vpop.f32.mrf.mxu0
  %v2901 = vadd.f32 0.0, %v2900
  %v2902 = vpop.f32.mrf.mxu0
  %v2903 = vadd.f32 0.0, %v2902
  %2904 = vmatprep.mubr.bf16.mxu0 0
  %2905 = vmatmul.mubr.bf16.gmra.mxu0 %v2623
  %v2906 = vpop.f32.mrf.mxu0
  %v2907 = vadd.f32 0.0, %v2906
  %v2908 = vpop.f32.mrf.mxu0
  %v2909 = vadd.f32 0.0, %v2908
  %v2910 = vpop.f32.mrf.mxu0
  %v2911 = vadd.f32 0.0, %v2910
  %v2912 = vpop.f32.mrf.mxu0
  %v2913 = vadd.f32 0.0, %v2912
  %2914 = vmatprep.mubr.bf16.mxu0 0
  %2915 = vmatmul.mubr.bf16.gmra.mxu0 %v2626
  %v2916 = vpop.f32.mrf.mxu0
  %v2917 = vadd.f32 0.0, %v2916
  %v2918 = vpop.f32.mrf.mxu0
  %v2919 = vadd.f32 0.0, %v2918
  %v2920 = vpop.f32.mrf.mxu0
  %v2921 = vadd.f32 0.0, %v2920
  %v2922 = vpop.f32.mrf.mxu0
  %v2923 = vadd.f32 0.0, %v2922
  %2924 = vmatprep.mubr.bf16.mxu0 0
  %2925 = vmatmul.mubr.bf16.gmra.mxu0 %v2629
  %v2926 = vpop.f32.mrf.mxu0
  %v2927 = vadd.f32 0.0, %v2926
  %v2928 = vpop.f32.mrf.mxu0
  %v2929 = vadd.f32 0.0, %v2928
  %v2930 = vpop.f32.mrf.mxu0
  %v2931 = vadd.f32 0.0, %v2930
  %v2932 = vpop.f32.mrf.mxu0
  %v2933 = vadd.f32 0.0, %v2932
  %2934 = vmatprep.mubr.bf16.mxu0 0
  %2935 = vmatmul.mubr.bf16.gmra.mxu0 %v2632
  %v2936 = vpop.f32.mrf.mxu0
  %v2937 = vadd.f32 0.0, %v2936
  %v2938 = vpop.f32.mrf.mxu0
  %v2939 = vadd.f32 0.0, %v2938
  %v2940 = vpop.f32.mrf.mxu0
  %v2941 = vadd.f32 0.0, %v2940
  %v2942 = vpop.f32.mrf.mxu0
  %v2943 = vadd.f32 0.0, %v2942
  %2944 = vmatprep.mubr.bf16.mxu0 0
  %2945 = vmatmul.mubr.bf16.gmra.mxu0 %v2635
  %v2946 = vpop.f32.mrf.mxu0
  %v2947 = vadd.f32 0.0, %v2946
  %v2948 = vpop.f32.mrf.mxu0
  %v2949 = vadd.f32 0.0, %v2948
  %v2950 = vpop.f32.mrf.mxu0
  %v2951 = vadd.f32 0.0, %v2950
  %v2952 = vpop.f32.mrf.mxu0
  %v2953 = vadd.f32 0.0, %v2952
  %2954 = vmatprep.mubr.bf16.mxu0 0
  %2955 = vmatmul.mubr.bf16.gmra.mxu0 %v2638
  %v2956 = vpop.f32.mrf.mxu0
  %v2957 = vadd.f32 0.0, %v2956
  %v2958 = vpop.f32.mrf.mxu0
  %v2959 = vadd.f32 0.0, %v2958
  %v2960 = vpop.f32.mrf.mxu0
  %v2961 = vadd.f32 0.0, %v2960
  %v2962 = vpop.f32.mrf.mxu0
  %v2963 = vadd.f32 0.0, %v2962
  %2964 = vmatprep.mubr.bf16.mxu0 0
  %2965 = vmatmul.mubr.bf16.gmra.mxu0 %v2641
  %v2966 = vpop.f32.mrf.mxu0
  %v2967 = vadd.f32 0.0, %v2966
  %v2968 = vpop.f32.mrf.mxu0
  %v2969 = vadd.f32 0.0, %v2968
  %v2970 = vpop.f32.mrf.mxu0
  %v2971 = vadd.f32 0.0, %v2970
  %v2972 = vpop.f32.mrf.mxu0
  %v2973 = vadd.f32 0.0, %v2972
  %2974 = vmatprep.mubr.bf16.mxu0 0
  %2975 = vmatmul.mubr.bf16.gmra.mxu0 %v2644
  %v2976 = vpop.f32.mrf.mxu0
  %v2977 = vadd.f32 0.0, %v2976
  %v2978 = vpop.f32.mrf.mxu0
  %v2979 = vadd.f32 0.0, %v2978
  %v2980 = vpop.f32.mrf.mxu0
  %v2981 = vadd.f32 0.0, %v2980
  %v2982 = vpop.f32.mrf.mxu0
  %v2983 = vadd.f32 0.0, %v2982
  %2984 = vmatprep.mubr.bf16.mxu0 0
  %2985 = vmatmul.mubr.bf16.gmra.mxu0 %v2647
  %v2986 = vpop.f32.mrf.mxu0
  %v2987 = vadd.f32 0.0, %v2986
  %v2988 = vpop.f32.mrf.mxu0
  %v2989 = vadd.f32 0.0, %v2988
  %v2990 = vpop.f32.mrf.mxu0
  %v2991 = vadd.f32 0.0, %v2990
  %v2992 = vpop.f32.mrf.mxu0
  %v2993 = vadd.f32 0.0, %v2992
  %2994 = vmatprep.mubr.bf16.mxu0 0
  %2995 = vmatmul.mubr.bf16.gmra.mxu0 %v2650
  %v2996 = vpop.f32.mrf.mxu0
  %v2997 = vadd.f32 0.0, %v2996
  %v2998 = vpop.f32.mrf.mxu0
  %v2999 = vadd.f32 0.0, %v2998
  %v3000 = vpop.f32.mrf.mxu0
  %v3001 = vadd.f32 0.0, %v3000
  %v3002 = vpop.f32.mrf.mxu0
  %v3003 = vadd.f32 0.0, %v3002
  %3004 = vdwg.mxu0
  %v3005 = vadd.f32 %v1834, %v2687
  %v3006 = vadd.f32 %v1836, %v2689
  %v3007 = vadd.f32 %v1838, %v2691
  %v3008 = vadd.f32 %v1840, %v2693
  %v3009 = vadd.f32 %v1844, %v2697
  %v3010 = vadd.f32 %v1846, %v2699
  %v3011 = vadd.f32 %v1848, %v2701
  %v3012 = vadd.f32 %v1850, %v2703
  %v3013 = vadd.f32 %v1854, %v2707
  %v3014 = vadd.f32 %v1856, %v2709
  %v3015 = vadd.f32 %v1858, %v2711
  %v3016 = vadd.f32 %v1860, %v2713
  %v3017 = vadd.f32 %v1864, %v2717
  %v3018 = vadd.f32 %v1866, %v2719
  %v3019 = vadd.f32 %v1868, %v2721
  %v3020 = vadd.f32 %v1870, %v2723
  %v3021 = vadd.f32 %v1874, %v2727
  %v3022 = vadd.f32 %v1876, %v2729
  %v3023 = vadd.f32 %v1878, %v2731
  %v3024 = vadd.f32 %v1880, %v2733
  %v3025 = vadd.f32 %v1884, %v2737
  %v3026 = vadd.f32 %v1886, %v2739
  %v3027 = vadd.f32 %v1888, %v2741
  %v3028 = vadd.f32 %v1890, %v2743
  %v3029 = vadd.f32 %v1894, %v2747
  %v3030 = vadd.f32 %v1896, %v2749
  %v3031 = vadd.f32 %v1898, %v2751
  %v3032 = vadd.f32 %v1900, %v2753
  %v3033 = vadd.f32 %v1904, %v2757
  %v3034 = vadd.f32 %v1906, %v2759
  %v3035 = vadd.f32 %v1908, %v2761
  %v3036 = vadd.f32 %v1910, %v2763
  %v3037 = vadd.f32 %v1914, %v2767
  %v3038 = vadd.f32 %v1916, %v2769
  %v3039 = vadd.f32 %v1918, %v2771
  %v3040 = vadd.f32 %v1920, %v2773
  %v3041 = vadd.f32 %v1924, %v2777
  %v3042 = vadd.f32 %v1926, %v2779
  %v3043 = vadd.f32 %v1928, %v2781
  %v3044 = vadd.f32 %v1930, %v2783
  %v3045 = vadd.f32 %v1934, %v2787
  %v3046 = vadd.f32 %v1936, %v2789
  %v3047 = vadd.f32 %v1938, %v2791
  %v3048 = vadd.f32 %v1940, %v2793
  %v3049 = vadd.f32 %v1944, %v2797
  %v3050 = vadd.f32 %v1946, %v2799
  %v3051 = vadd.f32 %v1948, %v2801
  %v3052 = vadd.f32 %v1950, %v2803
  %v3053 = vadd.f32 %v1954, %v2807
  %v3054 = vadd.f32 %v1956, %v2809
  %v3055 = vadd.f32 %v1958, %v2811
  %v3056 = vadd.f32 %v1960, %v2813
  %v3057 = vadd.f32 %v1964, %v2817
  %v3058 = vadd.f32 %v1966, %v2819
  %v3059 = vadd.f32 %v1968, %v2821
  %v3060 = vadd.f32 %v1970, %v2823
  %v3061 = vadd.f32 %v1974, %v2827
  %v3062 = vadd.f32 %v1976, %v2829
  %v3063 = vadd.f32 %v1978, %v2831
  %v3064 = vadd.f32 %v1980, %v2833
  %v3065 = vadd.f32 %v1984, %v2837
  %v3066 = vadd.f32 %v1986, %v2839
  %v3067 = vadd.f32 %v1988, %v2841
  %v3068 = vadd.f32 %v1990, %v2843
  %v3069 = vadd.f32 %v1994, %v2847
  %v3070 = vadd.f32 %v1996, %v2849
  %v3071 = vadd.f32 %v1998, %v2851
  %v3072 = vadd.f32 %v2000, %v2853
  %v3073 = vadd.f32 %v2004, %v2857
  %v3074 = vadd.f32 %v2006, %v2859
  %v3075 = vadd.f32 %v2008, %v2861
  %v3076 = vadd.f32 %v2010, %v2863
  %v3077 = vadd.f32 %v2014, %v2867
  %v3078 = vadd.f32 %v2016, %v2869
  %v3079 = vadd.f32 %v2018, %v2871
  %v3080 = vadd.f32 %v2020, %v2873
  %v3081 = vadd.f32 %v2024, %v2877
  %v3082 = vadd.f32 %v2026, %v2879
  %v3083 = vadd.f32 %v2028, %v2881
  %v3084 = vadd.f32 %v2030, %v2883
  %v3085 = vadd.f32 %v2034, %v2887
  %v3086 = vadd.f32 %v2036, %v2889
  %v3087 = vadd.f32 %v2038, %v2891
  %v3088 = vadd.f32 %v2040, %v2893
  %v3089 = vadd.f32 %v2044, %v2897
  %v3090 = vadd.f32 %v2046, %v2899
  %v3091 = vadd.f32 %v2048, %v2901
  %v3092 = vadd.f32 %v2050, %v2903
  %v3093 = vadd.f32 %v2054, %v2907
  %v3094 = vadd.f32 %v2056, %v2909
  %v3095 = vadd.f32 %v2058, %v2911
  %v3096 = vadd.f32 %v2060, %v2913
  %v3097 = vadd.f32 %v2064, %v2917
  %v3098 = vadd.f32 %v2066, %v2919
  %v3099 = vadd.f32 %v2068, %v2921
  %v3100 = vadd.f32 %v2070, %v2923
  %v3101 = vadd.f32 %v2074, %v2927
  %v3102 = vadd.f32 %v2076, %v2929
  %v3103 = vadd.f32 %v2078, %v2931
  %v3104 = vadd.f32 %v2080, %v2933
  %v3105 = vadd.f32 %v2084, %v2937
  %v3106 = vadd.f32 %v2086, %v2939
  %v3107 = vadd.f32 %v2088, %v2941
  %v3108 = vadd.f32 %v2090, %v2943
  %v3109 = vadd.f32 %v2094, %v2947
  %v3110 = vadd.f32 %v2096, %v2949
  %v3111 = vadd.f32 %v2098, %v2951
  %v3112 = vadd.f32 %v2100, %v2953
  %v3113 = vadd.f32 %v2104, %v2957
  %v3114 = vadd.f32 %v2106, %v2959
  %v3115 = vadd.f32 %v2108, %v2961
  %v3116 = vadd.f32 %v2110, %v2963
  %v3117 = vadd.f32 %v2114, %v2967
  %v3118 = vadd.f32 %v2116, %v2969
  %v3119 = vadd.f32 %v2118, %v2971
  %v3120 = vadd.f32 %v2120, %v2973
  %v3121 = vadd.f32 %v2124, %v2977
  %v3122 = vadd.f32 %v2126, %v2979
  %v3123 = vadd.f32 %v2128, %v2981
  %v3124 = vadd.f32 %v2130, %v2983
  %v3125 = vadd.f32 %v2134, %v2987
  %v3126 = vadd.f32 %v2136, %v2989
  %v3127 = vadd.f32 %v2138, %v2991
  %v3128 = vadd.f32 %v2140, %v2993
  %v3129 = vadd.f32 %v2144, %v2997
  %v3130 = vadd.f32 %v2146, %v2999
  %v3131 = vadd.f32 %v2148, %v3001
  %v3132 = vadd.f32 %v2150, %v3003
  %s3133 = scalar_lea.vmem %s1, 192
  %v3134 = vld [vmem:[%s3133] sm:$0xff]
  %v3135 = vld [vmem:[%s3133 + $0x8] sm:$0xff]
  %v3136 = vld [vmem:[%s3133 + $0x10] sm:$0xff]
  %v3137 = vld [vmem:[%s3133 + $0x18] sm:$0xff]
  %v3138 = vld [vmem:[%s3133 + $0x20] sm:$0xff]
  %v3139 = vld [vmem:[%s3133 + $0x28] sm:$0xff]
  %v3140 = vld [vmem:[%s3133 + $0x30] sm:$0xff]
  %v3141 = vld [vmem:[%s3133 + $0x38] sm:$0xff]
  %v3146 = vunpack.c.l.b16 %v69
  %v3147 = vunpack.c.l.b16 %v70
  %v3148 = vunpack.c.l.b16 %v123
  %v3149 = vunpack.c.l.b16 %v124
  %v3150 = vpack.c.b16 %v3147, %v3146
  %v3151 = vpack.c.b16 %v3149, %v3148
  %v3160 = vunpack.c.l.b16 %v3134
  %v3161 = vunpack.c.h.b16 %v3134
  %v3162 = vunpack.c.l.b16 %v3135
  %v3163 = vunpack.c.h.b16 %v3135
  %v3164 = vunpack.c.l.b16 %v3136
  %v3165 = vunpack.c.h.b16 %v3136
  %v3166 = vunpack.c.l.b16 %v3137
  %v3167 = vunpack.c.h.b16 %v3137
  %v3168 = vunpack.c.l.b16 %v3138
  %v3169 = vunpack.c.h.b16 %v3138
  %v3170 = vunpack.c.l.b16 %v3139
  %v3171 = vunpack.c.h.b16 %v3139
  %v3172 = vunpack.c.l.b16 %v3140
  %v3173 = vunpack.c.h.b16 %v3140
  %v3174 = vunpack.c.l.b16 %v3141
  %v3175 = vunpack.c.h.b16 %v3141
  %v3176 = vpack.c.b16 %v3162, %v3160
  %v3177 = vpack.c.b16 %v3163, %v3161
  %v3178 = vpack.c.b16 %v3166, %v3164
  %v3179 = vpack.c.b16 %v3167, %v3165
  %v3180 = vpack.c.b16 %v3170, %v3168
  %v3181 = vpack.c.b16 %v3171, %v3169
  %v3182 = vpack.c.b16 %v3174, %v3172
  %v3183 = vpack.c.b16 %v3175, %v3173
  %v3193 = vsel %vm1053, %v3150, 0
  %v3196 = vsel %vm1053, %v3151, 0
  %3198 = vmatprep.subr.bf16.mxu0 0
  %3199 = vmatpush1.bf16.msra.mxu0 0
  %3200 = vmatprep.subr.bf16.mxu0 0
  %3201 = vmatpush1.bf16.msra.mxu0 0
  %3202 = vmatprep.subr.bf16.mxu0 0
  %3203 = vmatpush1.bf16.msra.mxu0 0
  %3204 = vmatprep.subr.bf16.mxu0 0
  %3205 = vmatpush1.bf16.msra.mxu0 0
  %3206 = vmatprep.subr.bf16.mxu0 %v3183
  %3207 = vmatpush1.bf16.msra.mxu0 %v3182
  %3208 = vmatprep.subr.bf16.mxu0 %v3181
  %3209 = vmatpush1.bf16.msra.mxu0 %v3180
  %3210 = vmatprep.subr.bf16.mxu0 %v3179
  %3211 = vmatpush1.bf16.msra.mxu0 %v3178
  %3212 = vmatprep.subr.bf16.mxu0 %v3177
  %3213 = vmatpush1.bf16.msra.mxu0 %v3176
  %3214 = vmatprep.subr.bf16.mxu0 0
  %3215 = vmatpush2.bf16.msra.mxu0 0
  %3216 = vmatprep.subr.bf16.mxu0 0
  %3217 = vmatpush2.bf16.msra.mxu0 0
  %3218 = vmatprep.subr.bf16.mxu0 0
  %3219 = vmatpush2.bf16.msra.mxu0 0
  %3220 = vmatprep.subr.bf16.mxu0 0
  %3221 = vmatpush2.bf16.msra.mxu0 0
  %3222 = vmatprep.subr.bf16.mxu0 0
  %3223 = vmatpush2.bf16.msra.mxu0 0
  %3224 = vmatprep.subr.bf16.mxu0 0
  %3225 = vmatpush2.bf16.msra.mxu0 0
  %3226 = vmatprep.subr.bf16.mxu0 0
  %3227 = vmatpush2.bf16.msra.mxu0 0
  %3228 = vmatprep.subr.bf16.mxu0 0
  %3229 = vmatpush2.bf16.msra.mxu0 0
  %3230 = vmatprep.mubr.bf16.mxu0 0
  %3231 = vmatmul.mubr.bf16.gmra.mxu0 %v1707
  %v3232 = vpop.f32.mrf.mxu0
  %v3233 = vadd.f32 0.0, %v3232
  %v3234 = vpop.f32.mrf.mxu0
  %v3235 = vadd.f32 0.0, %v3234
  %v3236 = vpop.f32.mrf.mxu0
  %v3237 = vadd.f32 0.0, %v3236
  %v3238 = vpop.f32.mrf.mxu0
  %v3239 = vadd.f32 0.0, %v3238
  %3240 = vmatprep.mubr.bf16.mxu0 0
  %3241 = vmatmul.mubr.bf16.gmra.mxu0 %v1710
  %v3242 = vpop.f32.mrf.mxu0
  %v3243 = vadd.f32 0.0, %v3242
  %v3244 = vpop.f32.mrf.mxu0
  %v3245 = vadd.f32 0.0, %v3244
  %v3246 = vpop.f32.mrf.mxu0
  %v3247 = vadd.f32 0.0, %v3246
  %v3248 = vpop.f32.mrf.mxu0
  %v3249 = vadd.f32 0.0, %v3248
  %3250 = vmatprep.mubr.bf16.mxu0 0
  %3251 = vmatmul.mubr.bf16.gmra.mxu0 %v1713
  %v3252 = vpop.f32.mrf.mxu0
  %v3253 = vadd.f32 0.0, %v3252
  %v3254 = vpop.f32.mrf.mxu0
  %v3255 = vadd.f32 0.0, %v3254
  %v3256 = vpop.f32.mrf.mxu0
  %v3257 = vadd.f32 0.0, %v3256
  %v3258 = vpop.f32.mrf.mxu0
  %v3259 = vadd.f32 0.0, %v3258
  %3260 = vmatprep.mubr.bf16.mxu0 0
  %3261 = vmatmul.mubr.bf16.gmra.mxu0 %v1716
  %v3262 = vpop.f32.mrf.mxu0
  %v3263 = vadd.f32 0.0, %v3262
  %v3264 = vpop.f32.mrf.mxu0
  %v3265 = vadd.f32 0.0, %v3264
  %v3266 = vpop.f32.mrf.mxu0
  %v3267 = vadd.f32 0.0, %v3266
  %v3268 = vpop.f32.mrf.mxu0
  %v3269 = vadd.f32 0.0, %v3268
  %3270 = vmatprep.mubr.bf16.mxu0 0
  %3271 = vmatmul.mubr.bf16.gmra.mxu0 %v1719
  %v3272 = vpop.f32.mrf.mxu0
  %v3273 = vadd.f32 0.0, %v3272
  %v3274 = vpop.f32.mrf.mxu0
  %v3275 = vadd.f32 0.0, %v3274
  %v3276 = vpop.f32.mrf.mxu0
  %v3277 = vadd.f32 0.0, %v3276
  %v3278 = vpop.f32.mrf.mxu0
  %v3279 = vadd.f32 0.0, %v3278
  %3280 = vmatprep.mubr.bf16.mxu0 0
  %3281 = vmatmul.mubr.bf16.gmra.mxu0 %v1722
  %v3282 = vpop.f32.mrf.mxu0
  %v3283 = vadd.f32 0.0, %v3282
  %v3284 = vpop.f32.mrf.mxu0
  %v3285 = vadd.f32 0.0, %v3284
  %v3286 = vpop.f32.mrf.mxu0
  %v3287 = vadd.f32 0.0, %v3286
  %v3288 = vpop.f32.mrf.mxu0
  %v3289 = vadd.f32 0.0, %v3288
  %3290 = vmatprep.mubr.bf16.mxu0 0
  %3291 = vmatmul.mubr.bf16.gmra.mxu0 %v1725
  %v3292 = vpop.f32.mrf.mxu0
  %v3293 = vadd.f32 0.0, %v3292
  %v3294 = vpop.f32.mrf.mxu0
  %v3295 = vadd.f32 0.0, %v3294
  %v3296 = vpop.f32.mrf.mxu0
  %v3297 = vadd.f32 0.0, %v3296
  %v3298 = vpop.f32.mrf.mxu0
  %v3299 = vadd.f32 0.0, %v3298
  %3300 = vmatprep.mubr.bf16.mxu0 0
  %3301 = vmatmul.mubr.bf16.gmra.mxu0 %v1728
  %v3302 = vpop.f32.mrf.mxu0
  %v3303 = vadd.f32 0.0, %v3302
  %v3304 = vpop.f32.mrf.mxu0
  %v3305 = vadd.f32 0.0, %v3304
  %v3306 = vpop.f32.mrf.mxu0
  %v3307 = vadd.f32 0.0, %v3306
  %v3308 = vpop.f32.mrf.mxu0
  %v3309 = vadd.f32 0.0, %v3308
  %3310 = vmatprep.mubr.bf16.mxu0 0
  %3311 = vmatmul.mubr.bf16.gmra.mxu0 %v1731
  %v3312 = vpop.f32.mrf.mxu0
  %v3313 = vadd.f32 0.0, %v3312
  %v3314 = vpop.f32.mrf.mxu0
  %v3315 = vadd.f32 0.0, %v3314
  %v3316 = vpop.f32.mrf.mxu0
  %v3317 = vadd.f32 0.0, %v3316
  %v3318 = vpop.f32.mrf.mxu0
  %v3319 = vadd.f32 0.0, %v3318
  %3320 = vmatprep.mubr.bf16.mxu0 0
  %3321 = vmatmul.mubr.bf16.gmra.mxu0 %v1734
  %v3322 = vpop.f32.mrf.mxu0
  %v3323 = vadd.f32 0.0, %v3322
  %v3324 = vpop.f32.mrf.mxu0
  %v3325 = vadd.f32 0.0, %v3324
  %v3326 = vpop.f32.mrf.mxu0
  %v3327 = vadd.f32 0.0, %v3326
  %v3328 = vpop.f32.mrf.mxu0
  %v3329 = vadd.f32 0.0, %v3328
  %3330 = vmatprep.mubr.bf16.mxu0 0
  %3331 = vmatmul.mubr.bf16.gmra.mxu0 %v1737
  %v3332 = vpop.f32.mrf.mxu0
  %v3333 = vadd.f32 0.0, %v3332
  %v3334 = vpop.f32.mrf.mxu0
  %v3335 = vadd.f32 0.0, %v3334
  %v3336 = vpop.f32.mrf.mxu0
  %v3337 = vadd.f32 0.0, %v3336
  %v3338 = vpop.f32.mrf.mxu0
  %v3339 = vadd.f32 0.0, %v3338
  %3340 = vmatprep.mubr.bf16.mxu0 0
  %3341 = vmatmul.mubr.bf16.gmra.mxu0 %v1740
  %v3342 = vpop.f32.mrf.mxu0
  %v3343 = vadd.f32 0.0, %v3342
  %v3344 = vpop.f32.mrf.mxu0
  %v3345 = vadd.f32 0.0, %v3344
  %v3346 = vpop.f32.mrf.mxu0
  %v3347 = vadd.f32 0.0, %v3346
  %v3348 = vpop.f32.mrf.mxu0
  %v3349 = vadd.f32 0.0, %v3348
  %3350 = vmatprep.mubr.bf16.mxu0 0
  %3351 = vmatmul.mubr.bf16.gmra.mxu0 %v1743
  %v3352 = vpop.f32.mrf.mxu0
  %v3353 = vadd.f32 0.0, %v3352
  %v3354 = vpop.f32.mrf.mxu0
  %v3355 = vadd.f32 0.0, %v3354
  %v3356 = vpop.f32.mrf.mxu0
  %v3357 = vadd.f32 0.0, %v3356
  %v3358 = vpop.f32.mrf.mxu0
  %v3359 = vadd.f32 0.0, %v3358
  %3360 = vmatprep.mubr.bf16.mxu0 0
  %3361 = vmatmul.mubr.bf16.gmra.mxu0 %v1746
  %v3362 = vpop.f32.mrf.mxu0
  %v3363 = vadd.f32 0.0, %v3362
  %v3364 = vpop.f32.mrf.mxu0
  %v3365 = vadd.f32 0.0, %v3364
  %v3366 = vpop.f32.mrf.mxu0
  %v3367 = vadd.f32 0.0, %v3366
  %v3368 = vpop.f32.mrf.mxu0
  %v3369 = vadd.f32 0.0, %v3368
  %3370 = vmatprep.mubr.bf16.mxu0 0
  %3371 = vmatmul.mubr.bf16.gmra.mxu0 %v1749
  %v3372 = vpop.f32.mrf.mxu0
  %v3373 = vadd.f32 0.0, %v3372
  %v3374 = vpop.f32.mrf.mxu0
  %v3375 = vadd.f32 0.0, %v3374
  %v3376 = vpop.f32.mrf.mxu0
  %v3377 = vadd.f32 0.0, %v3376
  %v3378 = vpop.f32.mrf.mxu0
  %v3379 = vadd.f32 0.0, %v3378
  %3380 = vmatprep.mubr.bf16.mxu0 0
  %3381 = vmatmul.mubr.bf16.gmra.mxu0 %v3193
  %v3382 = vpop.f32.mrf.mxu0
  %v3383 = vadd.f32 0.0, %v3382
  %v3384 = vpop.f32.mrf.mxu0
  %v3385 = vadd.f32 0.0, %v3384
  %v3386 = vpop.f32.mrf.mxu0
  %v3387 = vadd.f32 0.0, %v3386
  %v3388 = vpop.f32.mrf.mxu0
  %v3389 = vadd.f32 0.0, %v3388
  %3390 = vmatprep.mubr.bf16.mxu0 0
  %3391 = vmatmul.mubr.bf16.gmra.mxu0 %v1755
  %v3392 = vpop.f32.mrf.mxu0
  %v3393 = vadd.f32 0.0, %v3392
  %v3394 = vpop.f32.mrf.mxu0
  %v3395 = vadd.f32 0.0, %v3394
  %v3396 = vpop.f32.mrf.mxu0
  %v3397 = vadd.f32 0.0, %v3396
  %v3398 = vpop.f32.mrf.mxu0
  %v3399 = vadd.f32 0.0, %v3398
  %3400 = vmatprep.mubr.bf16.mxu0 0
  %3401 = vmatmul.mubr.bf16.gmra.mxu0 %v1758
  %v3402 = vpop.f32.mrf.mxu0
  %v3403 = vadd.f32 0.0, %v3402
  %v3404 = vpop.f32.mrf.mxu0
  %v3405 = vadd.f32 0.0, %v3404
  %v3406 = vpop.f32.mrf.mxu0
  %v3407 = vadd.f32 0.0, %v3406
  %v3408 = vpop.f32.mrf.mxu0
  %v3409 = vadd.f32 0.0, %v3408
  %3410 = vmatprep.mubr.bf16.mxu0 0
  %3411 = vmatmul.mubr.bf16.gmra.mxu0 %v1761
  %v3412 = vpop.f32.mrf.mxu0
  %v3413 = vadd.f32 0.0, %v3412
  %v3414 = vpop.f32.mrf.mxu0
  %v3415 = vadd.f32 0.0, %v3414
  %v3416 = vpop.f32.mrf.mxu0
  %v3417 = vadd.f32 0.0, %v3416
  %v3418 = vpop.f32.mrf.mxu0
  %v3419 = vadd.f32 0.0, %v3418
  %3420 = vmatprep.mubr.bf16.mxu0 0
  %3421 = vmatmul.mubr.bf16.gmra.mxu0 %v1764
  %v3422 = vpop.f32.mrf.mxu0
  %v3423 = vadd.f32 0.0, %v3422
  %v3424 = vpop.f32.mrf.mxu0
  %v3425 = vadd.f32 0.0, %v3424
  %v3426 = vpop.f32.mrf.mxu0
  %v3427 = vadd.f32 0.0, %v3426
  %v3428 = vpop.f32.mrf.mxu0
  %v3429 = vadd.f32 0.0, %v3428
  %3430 = vmatprep.mubr.bf16.mxu0 0
  %3431 = vmatmul.mubr.bf16.gmra.mxu0 %v1767
  %v3432 = vpop.f32.mrf.mxu0
  %v3433 = vadd.f32 0.0, %v3432
  %v3434 = vpop.f32.mrf.mxu0
  %v3435 = vadd.f32 0.0, %v3434
  %v3436 = vpop.f32.mrf.mxu0
  %v3437 = vadd.f32 0.0, %v3436
  %v3438 = vpop.f32.mrf.mxu0
  %v3439 = vadd.f32 0.0, %v3438
  %3440 = vmatprep.mubr.bf16.mxu0 0
  %3441 = vmatmul.mubr.bf16.gmra.mxu0 %v1770
  %v3442 = vpop.f32.mrf.mxu0
  %v3443 = vadd.f32 0.0, %v3442
  %v3444 = vpop.f32.mrf.mxu0
  %v3445 = vadd.f32 0.0, %v3444
  %v3446 = vpop.f32.mrf.mxu0
  %v3447 = vadd.f32 0.0, %v3446
  %v3448 = vpop.f32.mrf.mxu0
  %v3449 = vadd.f32 0.0, %v3448
  %3450 = vmatprep.mubr.bf16.mxu0 0
  %3451 = vmatmul.mubr.bf16.gmra.mxu0 %v1773
  %v3452 = vpop.f32.mrf.mxu0
  %v3453 = vadd.f32 0.0, %v3452
  %v3454 = vpop.f32.mrf.mxu0
  %v3455 = vadd.f32 0.0, %v3454
  %v3456 = vpop.f32.mrf.mxu0
  %v3457 = vadd.f32 0.0, %v3456
  %v3458 = vpop.f32.mrf.mxu0
  %v3459 = vadd.f32 0.0, %v3458
  %3460 = vmatprep.mubr.bf16.mxu0 0
  %3461 = vmatmul.mubr.bf16.gmra.mxu0 %v1776
  %v3462 = vpop.f32.mrf.mxu0
  %v3463 = vadd.f32 0.0, %v3462
  %v3464 = vpop.f32.mrf.mxu0
  %v3465 = vadd.f32 0.0, %v3464
  %v3466 = vpop.f32.mrf.mxu0
  %v3467 = vadd.f32 0.0, %v3466
  %v3468 = vpop.f32.mrf.mxu0
  %v3469 = vadd.f32 0.0, %v3468
  %3470 = vmatprep.mubr.bf16.mxu0 0
  %3471 = vmatmul.mubr.bf16.gmra.mxu0 %v1779
  %v3472 = vpop.f32.mrf.mxu0
  %v3473 = vadd.f32 0.0, %v3472
  %v3474 = vpop.f32.mrf.mxu0
  %v3475 = vadd.f32 0.0, %v3474
  %v3476 = vpop.f32.mrf.mxu0
  %v3477 = vadd.f32 0.0, %v3476
  %v3478 = vpop.f32.mrf.mxu0
  %v3479 = vadd.f32 0.0, %v3478
  %3480 = vmatprep.mubr.bf16.mxu0 0
  %3481 = vmatmul.mubr.bf16.gmra.mxu0 %v1782
  %v3482 = vpop.f32.mrf.mxu0
  %v3483 = vadd.f32 0.0, %v3482
  %v3484 = vpop.f32.mrf.mxu0
  %v3485 = vadd.f32 0.0, %v3484
  %v3486 = vpop.f32.mrf.mxu0
  %v3487 = vadd.f32 0.0, %v3486
  %v3488 = vpop.f32.mrf.mxu0
  %v3489 = vadd.f32 0.0, %v3488
  %3490 = vmatprep.mubr.bf16.mxu0 0
  %3491 = vmatmul.mubr.bf16.gmra.mxu0 %v1785
  %v3492 = vpop.f32.mrf.mxu0
  %v3493 = vadd.f32 0.0, %v3492
  %v3494 = vpop.f32.mrf.mxu0
  %v3495 = vadd.f32 0.0, %v3494
  %v3496 = vpop.f32.mrf.mxu0
  %v3497 = vadd.f32 0.0, %v3496
  %v3498 = vpop.f32.mrf.mxu0
  %v3499 = vadd.f32 0.0, %v3498
  %3500 = vmatprep.mubr.bf16.mxu0 0
  %3501 = vmatmul.mubr.bf16.gmra.mxu0 %v1788
  %v3502 = vpop.f32.mrf.mxu0
  %v3503 = vadd.f32 0.0, %v3502
  %v3504 = vpop.f32.mrf.mxu0
  %v3505 = vadd.f32 0.0, %v3504
  %v3506 = vpop.f32.mrf.mxu0
  %v3507 = vadd.f32 0.0, %v3506
  %v3508 = vpop.f32.mrf.mxu0
  %v3509 = vadd.f32 0.0, %v3508
  %3510 = vmatprep.mubr.bf16.mxu0 0
  %3511 = vmatmul.mubr.bf16.gmra.mxu0 %v1791
  %v3512 = vpop.f32.mrf.mxu0
  %v3513 = vadd.f32 0.0, %v3512
  %v3514 = vpop.f32.mrf.mxu0
  %v3515 = vadd.f32 0.0, %v3514
  %v3516 = vpop.f32.mrf.mxu0
  %v3517 = vadd.f32 0.0, %v3516
  %v3518 = vpop.f32.mrf.mxu0
  %v3519 = vadd.f32 0.0, %v3518
  %3520 = vmatprep.mubr.bf16.mxu0 0
  %3521 = vmatmul.mubr.bf16.gmra.mxu0 %v1794
  %v3522 = vpop.f32.mrf.mxu0
  %v3523 = vadd.f32 0.0, %v3522
  %v3524 = vpop.f32.mrf.mxu0
  %v3525 = vadd.f32 0.0, %v3524
  %v3526 = vpop.f32.mrf.mxu0
  %v3527 = vadd.f32 0.0, %v3526
  %v3528 = vpop.f32.mrf.mxu0
  %v3529 = vadd.f32 0.0, %v3528
  %3530 = vmatprep.mubr.bf16.mxu0 0
  %3531 = vmatmul.mubr.bf16.gmra.mxu0 %v1797
  %v3532 = vpop.f32.mrf.mxu0
  %v3533 = vadd.f32 0.0, %v3532
  %v3534 = vpop.f32.mrf.mxu0
  %v3535 = vadd.f32 0.0, %v3534
  %v3536 = vpop.f32.mrf.mxu0
  %v3537 = vadd.f32 0.0, %v3536
  %v3538 = vpop.f32.mrf.mxu0
  %v3539 = vadd.f32 0.0, %v3538
  %3540 = vmatprep.mubr.bf16.mxu0 0
  %3541 = vmatmul.mubr.bf16.gmra.mxu0 %v3196
  %v3542 = vpop.f32.mrf.mxu0
  %v3543 = vadd.f32 0.0, %v3542
  %v3544 = vpop.f32.mrf.mxu0
  %v3545 = vadd.f32 0.0, %v3544
  %v3546 = vpop.f32.mrf.mxu0
  %v3547 = vadd.f32 0.0, %v3546
  %v3548 = vpop.f32.mrf.mxu0
  %v3549 = vadd.f32 0.0, %v3548
  %3550 = vdwg.mxu0
  %v3551 = vadd.f32 %v3005, %v3233
  %v3552 = vadd.f32 %v3006, %v3235
  %v3553 = vadd.f32 %v3007, %v3237
  %v3554 = vadd.f32 %v3008, %v3239
  %v3555 = vadd.f32 %v3009, %v3243
  %v3556 = vadd.f32 %v3010, %v3245
  %v3557 = vadd.f32 %v3011, %v3247
  %v3558 = vadd.f32 %v3012, %v3249
  %v3559 = vadd.f32 %v3013, %v3253
  %v3560 = vadd.f32 %v3014, %v3255
  %v3561 = vadd.f32 %v3015, %v3257
  %v3562 = vadd.f32 %v3016, %v3259
  %v3563 = vadd.f32 %v3017, %v3263
  %v3564 = vadd.f32 %v3018, %v3265
  %v3565 = vadd.f32 %v3019, %v3267
  %v3566 = vadd.f32 %v3020, %v3269
  %v3567 = vadd.f32 %v3021, %v3273
  %v3568 = vadd.f32 %v3022, %v3275
  %v3569 = vadd.f32 %v3023, %v3277
  %v3570 = vadd.f32 %v3024, %v3279
  %v3571 = vadd.f32 %v3025, %v3283
  %v3572 = vadd.f32 %v3026, %v3285
  %v3573 = vadd.f32 %v3027, %v3287
  %v3574 = vadd.f32 %v3028, %v3289
  %v3575 = vadd.f32 %v3029, %v3293
  %v3576 = vadd.f32 %v3030, %v3295
  %v3577 = vadd.f32 %v3031, %v3297
  %v3578 = vadd.f32 %v3032, %v3299
  %v3579 = vadd.f32 %v3033, %v3303
  %v3580 = vadd.f32 %v3034, %v3305
  %v3581 = vadd.f32 %v3035, %v3307
  %v3582 = vadd.f32 %v3036, %v3309
  %v3583 = vadd.f32 %v3037, %v3313
  %v3584 = vadd.f32 %v3038, %v3315
  %v3585 = vadd.f32 %v3039, %v3317
  %v3586 = vadd.f32 %v3040, %v3319
  %v3587 = vadd.f32 %v3041, %v3323
  %v3588 = vadd.f32 %v3042, %v3325
  %v3589 = vadd.f32 %v3043, %v3327
  %v3590 = vadd.f32 %v3044, %v3329
  %v3591 = vadd.f32 %v3045, %v3333
  %v3592 = vadd.f32 %v3046, %v3335
  %v3593 = vadd.f32 %v3047, %v3337
  %v3594 = vadd.f32 %v3048, %v3339
  %v3595 = vadd.f32 %v3049, %v3343
  %v3596 = vadd.f32 %v3050, %v3345
  %v3597 = vadd.f32 %v3051, %v3347
  %v3598 = vadd.f32 %v3052, %v3349
  %v3599 = vadd.f32 %v3053, %v3353
  %v3600 = vadd.f32 %v3054, %v3355
  %v3601 = vadd.f32 %v3055, %v3357
  %v3602 = vadd.f32 %v3056, %v3359
  %v3603 = vadd.f32 %v3057, %v3363
  %v3604 = vadd.f32 %v3058, %v3365
  %v3605 = vadd.f32 %v3059, %v3367
  %v3606 = vadd.f32 %v3060, %v3369
  %v3607 = vadd.f32 %v3061, %v3373
  %v3608 = vadd.f32 %v3062, %v3375
  %v3609 = vadd.f32 %v3063, %v3377
  %v3610 = vadd.f32 %v3064, %v3379
  %v3611 = vadd.f32 %v3065, %v3383
  %v3612 = vadd.f32 %v3066, %v3385
  %v3613 = vadd.f32 %v3067, %v3387
  %v3614 = vadd.f32 %v3068, %v3389
  %v3615 = vadd.f32 %v3069, %v3393
  %v3616 = vadd.f32 %v3070, %v3395
  %v3617 = vadd.f32 %v3071, %v3397
  %v3618 = vadd.f32 %v3072, %v3399
  %v3619 = vadd.f32 %v3073, %v3403
  %v3620 = vadd.f32 %v3074, %v3405
  %v3621 = vadd.f32 %v3075, %v3407
  %v3622 = vadd.f32 %v3076, %v3409
  %v3623 = vadd.f32 %v3077, %v3413
  %v3624 = vadd.f32 %v3078, %v3415
  %v3625 = vadd.f32 %v3079, %v3417
  %v3626 = vadd.f32 %v3080, %v3419
  %v3627 = vadd.f32 %v3081, %v3423
  %v3628 = vadd.f32 %v3082, %v3425
  %v3629 = vadd.f32 %v3083, %v3427
  %v3630 = vadd.f32 %v3084, %v3429
  %v3631 = vadd.f32 %v3085, %v3433
  %v3632 = vadd.f32 %v3086, %v3435
  %v3633 = vadd.f32 %v3087, %v3437
  %v3634 = vadd.f32 %v3088, %v3439
  %v3635 = vadd.f32 %v3089, %v3443
  %v3636 = vadd.f32 %v3090, %v3445
  %v3637 = vadd.f32 %v3091, %v3447
  %v3638 = vadd.f32 %v3092, %v3449
  %v3639 = vadd.f32 %v3093, %v3453
  %v3640 = vadd.f32 %v3094, %v3455
  %v3641 = vadd.f32 %v3095, %v3457
  %v3642 = vadd.f32 %v3096, %v3459
  %v3643 = vadd.f32 %v3097, %v3463
  %v3644 = vadd.f32 %v3098, %v3465
  %v3645 = vadd.f32 %v3099, %v3467
  %v3646 = vadd.f32 %v3100, %v3469
  %v3647 = vadd.f32 %v3101, %v3473
  %v3648 = vadd.f32 %v3102, %v3475
  %v3649 = vadd.f32 %v3103, %v3477
  %v3650 = vadd.f32 %v3104, %v3479
  %v3651 = vadd.f32 %v3105, %v3483
  %v3652 = vadd.f32 %v3106, %v3485
  %v3653 = vadd.f32 %v3107, %v3487
  %v3654 = vadd.f32 %v3108, %v3489
  %v3655 = vadd.f32 %v3109, %v3493
  %v3656 = vadd.f32 %v3110, %v3495
  %v3657 = vadd.f32 %v3111, %v3497
  %v3658 = vadd.f32 %v3112, %v3499
  %v3659 = vadd.f32 %v3113, %v3503
  %v3660 = vadd.f32 %v3114, %v3505
  %v3661 = vadd.f32 %v3115, %v3507
  %v3662 = vadd.f32 %v3116, %v3509
  %v3663 = vadd.f32 %v3117, %v3513
  %v3664 = vadd.f32 %v3118, %v3515
  %v3665 = vadd.f32 %v3119, %v3517
  %v3666 = vadd.f32 %v3120, %v3519
  %v3667 = vadd.f32 %v3121, %v3523
  %v3668 = vadd.f32 %v3122, %v3525
  %v3669 = vadd.f32 %v3123, %v3527
  %v3670 = vadd.f32 %v3124, %v3529
  %v3671 = vadd.f32 %v3125, %v3533
  %v3672 = vadd.f32 %v3126, %v3535
  %v3673 = vadd.f32 %v3127, %v3537
  %v3674 = vadd.f32 %v3128, %v3539
  %v3675 = vadd.f32 %v3129, %v3543
  %v3676 = vadd.f32 %v3130, %v3545
  %v3677 = vadd.f32 %v3131, %v3547
  %v3678 = vadd.f32 %v3132, %v3549
  %v3680 = vshrl.u32 %v69, 16
  %v3682 = vrot.slane %v3680, 4
  %v3683 = vshll.u32 %v69, 16
  %v3685 = vrot.slane %v3683, 5
  %v3686 = vor.u32 %v3682, %v3685
  %v3687 = vrot.slane %v3686, 4
  %v3689 = vshll.u32 %v70, 16
  %v3691 = vrot.slane %v3689, 5
  %v3692 = vsel %vm139, %v3687, %v3691
  %v3693 = vshrl.u32 %v70, 16
  %v3695 = vrot.slane %v3693, 4
  %v3696 = vor.u32 %v3695, %v3691
  %v3697 = vrot.slane %v3696, 4
  %v3699 = vshll.u32 %v71, 16
  %v3701 = vrot.slane %v3699, 5
  %v3702 = vsel %vm139, %v3697, %v3701
  %v3704 = vshrl.u32 %v123, 16
  %v3706 = vrot.slane %v3704, 4
  %v3707 = vshll.u32 %v123, 16
  %v3709 = vrot.slane %v3707, 5
  %v3710 = vor.u32 %v3706, %v3709
  %v3711 = vrot.slane %v3710, 4
  %v3713 = vshll.u32 %v124, 16
  %v3715 = vrot.slane %v3713, 5
  %v3716 = vsel %vm139, %v3711, %v3715
  %v3717 = vshrl.u32 %v124, 16
  %v3719 = vrot.slane %v3717, 4
  %v3720 = vor.u32 %v3719, %v3715
  %v3721 = vrot.slane %v3720, 4
  %v3723 = vshll.u32 %v125, 16
  %v3725 = vrot.slane %v3723, 5
  %v3726 = vsel %vm139, %v3721, %v3725
  %s3727 = scalar_lea.vmem %s1, 256
  %v3728 = vld [vmem:[%s3727] sm:$0xff]
  %v3729 = vld [vmem:[%s3727 + $0x8] sm:$0xff]
  %v3730 = vld [vmem:[%s3727 + $0x10] sm:$0xff]
  %v3731 = vld [vmem:[%s3727 + $0x18] sm:$0xff]
  %v3732 = vld [vmem:[%s3727 + $0x20] sm:$0xff]
  %v3733 = vld [vmem:[%s3727 + $0x28] sm:$0xff]
  %v3734 = vld [vmem:[%s3727 + $0x30] sm:$0xff]
  %v3735 = vld [vmem:[%s3727 + $0x38] sm:$0xff]
  %v3736 = vunpack.c.l.b16 %v3692
  %v3737 = vunpack.c.l.b16 %v3702
  %v3738 = vunpack.c.l.b16 %v3716
  %v3739 = vunpack.c.l.b16 %v3726
  %v3740 = vpack.c.b16 %v3737, %v3736
  %v3741 = vpack.c.b16 %v3739, %v3738
  %v3750 = vunpack.c.l.b16 %v3728
  %v3751 = vunpack.c.h.b16 %v3728
  %v3752 = vunpack.c.l.b16 %v3729
  %v3753 = vunpack.c.h.b16 %v3729
  %v3754 = vunpack.c.l.b16 %v3730
  %v3755 = vunpack.c.h.b16 %v3730
  %v3756 = vunpack.c.l.b16 %v3731
  %v3757 = vunpack.c.h.b16 %v3731
  %v3758 = vunpack.c.l.b16 %v3732
  %v3759 = vunpack.c.h.b16 %v3732
  %v3760 = vunpack.c.l.b16 %v3733
  %v3761 = vunpack.c.h.b16 %v3733
  %v3762 = vunpack.c.l.b16 %v3734
  %v3763 = vunpack.c.h.b16 %v3734
  %v3764 = vunpack.c.l.b16 %v3735
  %v3765 = vunpack.c.h.b16 %v3735
  %v3766 = vpack.c.b16 %v3752, %v3750
  %v3767 = vpack.c.b16 %v3753, %v3751
  %v3768 = vpack.c.b16 %v3756, %v3754
  %v3769 = vpack.c.b16 %v3757, %v3755
  %v3770 = vpack.c.b16 %v3760, %v3758
  %v3771 = vpack.c.b16 %v3761, %v3759
  %v3772 = vpack.c.b16 %v3764, %v3762
  %v3773 = vpack.c.b16 %v3765, %v3763
  %v3783 = vsel %vm1053, %v3740, 0
  %v3786 = vsel %vm1053, %v3741, 0
  %3788 = vmatprep.subr.bf16.mxu0 0
  %3789 = vmatpush1.bf16.msra.mxu0 0
  %3790 = vmatprep.subr.bf16.mxu0 0
  %3791 = vmatpush1.bf16.msra.mxu0 0
  %3792 = vmatprep.subr.bf16.mxu0 0
  %3793 = vmatpush1.bf16.msra.mxu0 0
  %3794 = vmatprep.subr.bf16.mxu0 0
  %3795 = vmatpush1.bf16.msra.mxu0 0
  %3796 = vmatprep.subr.bf16.mxu0 %v3773
  %3797 = vmatpush1.bf16.msra.mxu0 %v3772
  %3798 = vmatprep.subr.bf16.mxu0 %v3771
  %3799 = vmatpush1.bf16.msra.mxu0 %v3770
  %3800 = vmatprep.subr.bf16.mxu0 %v3769
  %3801 = vmatpush1.bf16.msra.mxu0 %v3768
  %3802 = vmatprep.subr.bf16.mxu0 %v3767
  %3803 = vmatpush1.bf16.msra.mxu0 %v3766
  %3804 = vmatprep.subr.bf16.mxu0 0
  %3805 = vmatpush2.bf16.msra.mxu0 0
  %3806 = vmatprep.subr.bf16.mxu0 0
  %3807 = vmatpush2.bf16.msra.mxu0 0
  %3808 = vmatprep.subr.bf16.mxu0 0
  %3809 = vmatpush2.bf16.msra.mxu0 0
  %3810 = vmatprep.subr.bf16.mxu0 0
  %3811 = vmatpush2.bf16.msra.mxu0 0
  %3812 = vmatprep.subr.bf16.mxu0 0
  %3813 = vmatpush2.bf16.msra.mxu0 0
  %3814 = vmatprep.subr.bf16.mxu0 0
  %3815 = vmatpush2.bf16.msra.mxu0 0
  %3816 = vmatprep.subr.bf16.mxu0 0
  %3817 = vmatpush2.bf16.msra.mxu0 0
  %3818 = vmatprep.subr.bf16.mxu0 0
  %3819 = vmatpush2.bf16.msra.mxu0 0
  %3820 = vmatprep.mubr.bf16.mxu0 0
  %3821 = vmatmul.mubr.bf16.gmra.mxu0 %v1058
  %v3822 = vpop.f32.mrf.mxu0
  %v3823 = vadd.f32 0.0, %v3822
  %v3824 = vpop.f32.mrf.mxu0
  %v3825 = vadd.f32 0.0, %v3824
  %v3826 = vpop.f32.mrf.mxu0
  %v3827 = vadd.f32 0.0, %v3826
  %v3828 = vpop.f32.mrf.mxu0
  %v3829 = vadd.f32 0.0, %v3828
  %3830 = vmatprep.mubr.bf16.mxu0 0
  %3831 = vmatmul.mubr.bf16.gmra.mxu0 %v1061
  %v3832 = vpop.f32.mrf.mxu0
  %v3833 = vadd.f32 0.0, %v3832
  %v3834 = vpop.f32.mrf.mxu0
  %v3835 = vadd.f32 0.0, %v3834
  %v3836 = vpop.f32.mrf.mxu0
  %v3837 = vadd.f32 0.0, %v3836
  %v3838 = vpop.f32.mrf.mxu0
  %v3839 = vadd.f32 0.0, %v3838
  %3840 = vmatprep.mubr.bf16.mxu0 0
  %3841 = vmatmul.mubr.bf16.gmra.mxu0 %v1064
  %v3842 = vpop.f32.mrf.mxu0
  %v3843 = vadd.f32 0.0, %v3842
  %v3844 = vpop.f32.mrf.mxu0
  %v3845 = vadd.f32 0.0, %v3844
  %v3846 = vpop.f32.mrf.mxu0
  %v3847 = vadd.f32 0.0, %v3846
  %v3848 = vpop.f32.mrf.mxu0
  %v3849 = vadd.f32 0.0, %v3848
  %3850 = vmatprep.mubr.bf16.mxu0 0
  %3851 = vmatmul.mubr.bf16.gmra.mxu0 %v1067
  %v3852 = vpop.f32.mrf.mxu0
  %v3853 = vadd.f32 0.0, %v3852
  %v3854 = vpop.f32.mrf.mxu0
  %v3855 = vadd.f32 0.0, %v3854
  %v3856 = vpop.f32.mrf.mxu0
  %v3857 = vadd.f32 0.0, %v3856
  %v3858 = vpop.f32.mrf.mxu0
  %v3859 = vadd.f32 0.0, %v3858
  %3860 = vmatprep.mubr.bf16.mxu0 0
  %3861 = vmatmul.mubr.bf16.gmra.mxu0 %v1070
  %v3862 = vpop.f32.mrf.mxu0
  %v3863 = vadd.f32 0.0, %v3862
  %v3864 = vpop.f32.mrf.mxu0
  %v3865 = vadd.f32 0.0, %v3864
  %v3866 = vpop.f32.mrf.mxu0
  %v3867 = vadd.f32 0.0, %v3866
  %v3868 = vpop.f32.mrf.mxu0
  %v3869 = vadd.f32 0.0, %v3868
  %3870 = vmatprep.mubr.bf16.mxu0 0
  %3871 = vmatmul.mubr.bf16.gmra.mxu0 %v1073
  %v3872 = vpop.f32.mrf.mxu0
  %v3873 = vadd.f32 0.0, %v3872
  %v3874 = vpop.f32.mrf.mxu0
  %v3875 = vadd.f32 0.0, %v3874
  %v3876 = vpop.f32.mrf.mxu0
  %v3877 = vadd.f32 0.0, %v3876
  %v3878 = vpop.f32.mrf.mxu0
  %v3879 = vadd.f32 0.0, %v3878
  %3880 = vmatprep.mubr.bf16.mxu0 0
  %3881 = vmatmul.mubr.bf16.gmra.mxu0 %v1076
  %v3882 = vpop.f32.mrf.mxu0
  %v3883 = vadd.f32 0.0, %v3882
  %v3884 = vpop.f32.mrf.mxu0
  %v3885 = vadd.f32 0.0, %v3884
  %v3886 = vpop.f32.mrf.mxu0
  %v3887 = vadd.f32 0.0, %v3886
  %v3888 = vpop.f32.mrf.mxu0
  %v3889 = vadd.f32 0.0, %v3888
  %3890 = vmatprep.mubr.bf16.mxu0 0
  %3891 = vmatmul.mubr.bf16.gmra.mxu0 %v1079
  %v3892 = vpop.f32.mrf.mxu0
  %v3893 = vadd.f32 0.0, %v3892
  %v3894 = vpop.f32.mrf.mxu0
  %v3895 = vadd.f32 0.0, %v3894
  %v3896 = vpop.f32.mrf.mxu0
  %v3897 = vadd.f32 0.0, %v3896
  %v3898 = vpop.f32.mrf.mxu0
  %v3899 = vadd.f32 0.0, %v3898
  %3900 = vmatprep.mubr.bf16.mxu0 0
  %3901 = vmatmul.mubr.bf16.gmra.mxu0 %v1082
  %v3902 = vpop.f32.mrf.mxu0
  %v3903 = vadd.f32 0.0, %v3902
  %v3904 = vpop.f32.mrf.mxu0
  %v3905 = vadd.f32 0.0, %v3904
  %v3906 = vpop.f32.mrf.mxu0
  %v3907 = vadd.f32 0.0, %v3906
  %v3908 = vpop.f32.mrf.mxu0
  %v3909 = vadd.f32 0.0, %v3908
  %3910 = vmatprep.mubr.bf16.mxu0 0
  %3911 = vmatmul.mubr.bf16.gmra.mxu0 %v1085
  %v3912 = vpop.f32.mrf.mxu0
  %v3913 = vadd.f32 0.0, %v3912
  %v3914 = vpop.f32.mrf.mxu0
  %v3915 = vadd.f32 0.0, %v3914
  %v3916 = vpop.f32.mrf.mxu0
  %v3917 = vadd.f32 0.0, %v3916
  %v3918 = vpop.f32.mrf.mxu0
  %v3919 = vadd.f32 0.0, %v3918
  %3920 = vmatprep.mubr.bf16.mxu0 0
  %3921 = vmatmul.mubr.bf16.gmra.mxu0 %v1088
  %v3922 = vpop.f32.mrf.mxu0
  %v3923 = vadd.f32 0.0, %v3922
  %v3924 = vpop.f32.mrf.mxu0
  %v3925 = vadd.f32 0.0, %v3924
  %v3926 = vpop.f32.mrf.mxu0
  %v3927 = vadd.f32 0.0, %v3926
  %v3928 = vpop.f32.mrf.mxu0
  %v3929 = vadd.f32 0.0, %v3928
  %3930 = vmatprep.mubr.bf16.mxu0 0
  %3931 = vmatmul.mubr.bf16.gmra.mxu0 %v1091
  %v3932 = vpop.f32.mrf.mxu0
  %v3933 = vadd.f32 0.0, %v3932
  %v3934 = vpop.f32.mrf.mxu0
  %v3935 = vadd.f32 0.0, %v3934
  %v3936 = vpop.f32.mrf.mxu0
  %v3937 = vadd.f32 0.0, %v3936
  %v3938 = vpop.f32.mrf.mxu0
  %v3939 = vadd.f32 0.0, %v3938
  %3940 = vmatprep.mubr.bf16.mxu0 0
  %3941 = vmatmul.mubr.bf16.gmra.mxu0 %v1094
  %v3942 = vpop.f32.mrf.mxu0
  %v3943 = vadd.f32 0.0, %v3942
  %v3944 = vpop.f32.mrf.mxu0
  %v3945 = vadd.f32 0.0, %v3944
  %v3946 = vpop.f32.mrf.mxu0
  %v3947 = vadd.f32 0.0, %v3946
  %v3948 = vpop.f32.mrf.mxu0
  %v3949 = vadd.f32 0.0, %v3948
  %3950 = vmatprep.mubr.bf16.mxu0 0
  %3951 = vmatmul.mubr.bf16.gmra.mxu0 %v1097
  %v3952 = vpop.f32.mrf.mxu0
  %v3953 = vadd.f32 0.0, %v3952
  %v3954 = vpop.f32.mrf.mxu0
  %v3955 = vadd.f32 0.0, %v3954
  %v3956 = vpop.f32.mrf.mxu0
  %v3957 = vadd.f32 0.0, %v3956
  %v3958 = vpop.f32.mrf.mxu0
  %v3959 = vadd.f32 0.0, %v3958
  %3960 = vmatprep.mubr.bf16.mxu0 0
  %3961 = vmatmul.mubr.bf16.gmra.mxu0 %v1100
  %v3962 = vpop.f32.mrf.mxu0
  %v3963 = vadd.f32 0.0, %v3962
  %v3964 = vpop.f32.mrf.mxu0
  %v3965 = vadd.f32 0.0, %v3964
  %v3966 = vpop.f32.mrf.mxu0
  %v3967 = vadd.f32 0.0, %v3966
  %v3968 = vpop.f32.mrf.mxu0
  %v3969 = vadd.f32 0.0, %v3968
  %3970 = vmatprep.mubr.bf16.mxu0 0
  %3971 = vmatmul.mubr.bf16.gmra.mxu0 %v3783
  %v3972 = vpop.f32.mrf.mxu0
  %v3973 = vadd.f32 0.0, %v3972
  %v3974 = vpop.f32.mrf.mxu0
  %v3975 = vadd.f32 0.0, %v3974
  %v3976 = vpop.f32.mrf.mxu0
  %v3977 = vadd.f32 0.0, %v3976
  %v3978 = vpop.f32.mrf.mxu0
  %v3979 = vadd.f32 0.0, %v3978
  %3980 = vmatprep.mubr.bf16.mxu0 0
  %3981 = vmatmul.mubr.bf16.gmra.mxu0 %v1106
  %v3982 = vpop.f32.mrf.mxu0
  %v3983 = vadd.f32 0.0, %v3982
  %v3984 = vpop.f32.mrf.mxu0
  %v3985 = vadd.f32 0.0, %v3984
  %v3986 = vpop.f32.mrf.mxu0
  %v3987 = vadd.f32 0.0, %v3986
  %v3988 = vpop.f32.mrf.mxu0
  %v3989 = vadd.f32 0.0, %v3988
  %3990 = vmatprep.mubr.bf16.mxu0 0
  %3991 = vmatmul.mubr.bf16.gmra.mxu0 %v1109
  %v3992 = vpop.f32.mrf.mxu0
  %v3993 = vadd.f32 0.0, %v3992
  %v3994 = vpop.f32.mrf.mxu0
  %v3995 = vadd.f32 0.0, %v3994
  %v3996 = vpop.f32.mrf.mxu0
  %v3997 = vadd.f32 0.0, %v3996
  %v3998 = vpop.f32.mrf.mxu0
  %v3999 = vadd.f32 0.0, %v3998
  %4000 = vmatprep.mubr.bf16.mxu0 0
  %4001 = vmatmul.mubr.bf16.gmra.mxu0 %v1112
  %v4002 = vpop.f32.mrf.mxu0
  %v4003 = vadd.f32 0.0, %v4002
  %v4004 = vpop.f32.mrf.mxu0
  %v4005 = vadd.f32 0.0, %v4004
  %v4006 = vpop.f32.mrf.mxu0
  %v4007 = vadd.f32 0.0, %v4006
  %v4008 = vpop.f32.mrf.mxu0
  %v4009 = vadd.f32 0.0, %v4008
  %4010 = vmatprep.mubr.bf16.mxu0 0
  %4011 = vmatmul.mubr.bf16.gmra.mxu0 %v1115
  %v4012 = vpop.f32.mrf.mxu0
  %v4013 = vadd.f32 0.0, %v4012
  %v4014 = vpop.f32.mrf.mxu0
  %v4015 = vadd.f32 0.0, %v4014
  %v4016 = vpop.f32.mrf.mxu0
  %v4017 = vadd.f32 0.0, %v4016
  %v4018 = vpop.f32.mrf.mxu0
  %v4019 = vadd.f32 0.0, %v4018
  %4020 = vmatprep.mubr.bf16.mxu0 0
  %4021 = vmatmul.mubr.bf16.gmra.mxu0 %v1118
  %v4022 = vpop.f32.mrf.mxu0
  %v4023 = vadd.f32 0.0, %v4022
  %v4024 = vpop.f32.mrf.mxu0
  %v4025 = vadd.f32 0.0, %v4024
  %v4026 = vpop.f32.mrf.mxu0
  %v4027 = vadd.f32 0.0, %v4026
  %v4028 = vpop.f32.mrf.mxu0
  %v4029 = vadd.f32 0.0, %v4028
  %4030 = vmatprep.mubr.bf16.mxu0 0
  %4031 = vmatmul.mubr.bf16.gmra.mxu0 %v1121
  %v4032 = vpop.f32.mrf.mxu0
  %v4033 = vadd.f32 0.0, %v4032
  %v4034 = vpop.f32.mrf.mxu0
  %v4035 = vadd.f32 0.0, %v4034
  %v4036 = vpop.f32.mrf.mxu0
  %v4037 = vadd.f32 0.0, %v4036
  %v4038 = vpop.f32.mrf.mxu0
  %v4039 = vadd.f32 0.0, %v4038
  %4040 = vmatprep.mubr.bf16.mxu0 0
  %4041 = vmatmul.mubr.bf16.gmra.mxu0 %v1124
  %v4042 = vpop.f32.mrf.mxu0
  %v4043 = vadd.f32 0.0, %v4042
  %v4044 = vpop.f32.mrf.mxu0
  %v4045 = vadd.f32 0.0, %v4044
  %v4046 = vpop.f32.mrf.mxu0
  %v4047 = vadd.f32 0.0, %v4046
  %v4048 = vpop.f32.mrf.mxu0
  %v4049 = vadd.f32 0.0, %v4048
  %4050 = vmatprep.mubr.bf16.mxu0 0
  %4051 = vmatmul.mubr.bf16.gmra.mxu0 %v1127
  %v4052 = vpop.f32.mrf.mxu0
  %v4053 = vadd.f32 0.0, %v4052
  %v4054 = vpop.f32.mrf.mxu0
  %v4055 = vadd.f32 0.0, %v4054
  %v4056 = vpop.f32.mrf.mxu0
  %v4057 = vadd.f32 0.0, %v4056
  %v4058 = vpop.f32.mrf.mxu0
  %v4059 = vadd.f32 0.0, %v4058
  %4060 = vmatprep.mubr.bf16.mxu0 0
  %4061 = vmatmul.mubr.bf16.gmra.mxu0 %v1130
  %v4062 = vpop.f32.mrf.mxu0
  %v4063 = vadd.f32 0.0, %v4062
  %v4064 = vpop.f32.mrf.mxu0
  %v4065 = vadd.f32 0.0, %v4064
  %v4066 = vpop.f32.mrf.mxu0
  %v4067 = vadd.f32 0.0, %v4066
  %v4068 = vpop.f32.mrf.mxu0
  %v4069 = vadd.f32 0.0, %v4068
  %4070 = vmatprep.mubr.bf16.mxu0 0
  %4071 = vmatmul.mubr.bf16.gmra.mxu0 %v1133
  %v4072 = vpop.f32.mrf.mxu0
  %v4073 = vadd.f32 0.0, %v4072
  %v4074 = vpop.f32.mrf.mxu0
  %v4075 = vadd.f32 0.0, %v4074
  %v4076 = vpop.f32.mrf.mxu0
  %v4077 = vadd.f32 0.0, %v4076
  %v4078 = vpop.f32.mrf.mxu0
  %v4079 = vadd.f32 0.0, %v4078
  %4080 = vmatprep.mubr.bf16.mxu0 0
  %4081 = vmatmul.mubr.bf16.gmra.mxu0 %v1136
  %v4082 = vpop.f32.mrf.mxu0
  %v4083 = vadd.f32 0.0, %v4082
  %v4084 = vpop.f32.mrf.mxu0
  %v4085 = vadd.f32 0.0, %v4084
  %v4086 = vpop.f32.mrf.mxu0
  %v4087 = vadd.f32 0.0, %v4086
  %v4088 = vpop.f32.mrf.mxu0
  %v4089 = vadd.f32 0.0, %v4088
  %4090 = vmatprep.mubr.bf16.mxu0 0
  %4091 = vmatmul.mubr.bf16.gmra.mxu0 %v1139
  %v4092 = vpop.f32.mrf.mxu0
  %v4093 = vadd.f32 0.0, %v4092
  %v4094 = vpop.f32.mrf.mxu0
  %v4095 = vadd.f32 0.0, %v4094
  %v4096 = vpop.f32.mrf.mxu0
  %v4097 = vadd.f32 0.0, %v4096
  %v4098 = vpop.f32.mrf.mxu0
  %v4099 = vadd.f32 0.0, %v4098
  %4100 = vmatprep.mubr.bf16.mxu0 0
  %4101 = vmatmul.mubr.bf16.gmra.mxu0 %v1142
  %v4102 = vpop.f32.mrf.mxu0
  %v4103 = vadd.f32 0.0, %v4102
  %v4104 = vpop.f32.mrf.mxu0
  %v4105 = vadd.f32 0.0, %v4104
  %v4106 = vpop.f32.mrf.mxu0
  %v4107 = vadd.f32 0.0, %v4106
  %v4108 = vpop.f32.mrf.mxu0
  %v4109 = vadd.f32 0.0, %v4108
  %4110 = vmatprep.mubr.bf16.mxu0 0
  %4111 = vmatmul.mubr.bf16.gmra.mxu0 %v1145
  %v4112 = vpop.f32.mrf.mxu0
  %v4113 = vadd.f32 0.0, %v4112
  %v4114 = vpop.f32.mrf.mxu0
  %v4115 = vadd.f32 0.0, %v4114
  %v4116 = vpop.f32.mrf.mxu0
  %v4117 = vadd.f32 0.0, %v4116
  %v4118 = vpop.f32.mrf.mxu0
  %v4119 = vadd.f32 0.0, %v4118
  %4120 = vmatprep.mubr.bf16.mxu0 0
  %4121 = vmatmul.mubr.bf16.gmra.mxu0 %v1148
  %v4122 = vpop.f32.mrf.mxu0
  %v4123 = vadd.f32 0.0, %v4122
  %v4124 = vpop.f32.mrf.mxu0
  %v4125 = vadd.f32 0.0, %v4124
  %v4126 = vpop.f32.mrf.mxu0
  %v4127 = vadd.f32 0.0, %v4126
  %v4128 = vpop.f32.mrf.mxu0
  %v4129 = vadd.f32 0.0, %v4128
  %4130 = vmatprep.mubr.bf16.mxu0 0
  %4131 = vmatmul.mubr.bf16.gmra.mxu0 %v3786
  %v4132 = vpop.f32.mrf.mxu0
  %v4133 = vadd.f32 0.0, %v4132
  %v4134 = vpop.f32.mrf.mxu0
  %v4135 = vadd.f32 0.0, %v4134
  %v4136 = vpop.f32.mrf.mxu0
  %v4137 = vadd.f32 0.0, %v4136
  %v4138 = vpop.f32.mrf.mxu0
  %v4139 = vadd.f32 0.0, %v4138
  %4140 = vdwg.mxu0
  %v4141 = vadd.f32 %v3551, %v3823
  %v4142 = vadd.f32 %v3552, %v3825
  %v4143 = vadd.f32 %v3553, %v3827
  %v4144 = vadd.f32 %v3554, %v3829
  %v4145 = vadd.f32 %v3555, %v3833
  %v4146 = vadd.f32 %v3556, %v3835
  %v4147 = vadd.f32 %v3557, %v3837
  %v4148 = vadd.f32 %v3558, %v3839
  %v4149 = vadd.f32 %v3559, %v3843
  %v4150 = vadd.f32 %v3560, %v3845
  %v4151 = vadd.f32 %v3561, %v3847
  %v4152 = vadd.f32 %v3562, %v3849
  %v4153 = vadd.f32 %v3563, %v3853
  %v4154 = vadd.f32 %v3564, %v3855
  %v4155 = vadd.f32 %v3565, %v3857
  %v4156 = vadd.f32 %v3566, %v3859
  %v4157 = vadd.f32 %v3567, %v3863
  %v4158 = vadd.f32 %v3568, %v3865
  %v4159 = vadd.f32 %v3569, %v3867
  %v4160 = vadd.f32 %v3570, %v3869
  %v4161 = vadd.f32 %v3571, %v3873
  %v4162 = vadd.f32 %v3572, %v3875
  %v4163 = vadd.f32 %v3573, %v3877
  %v4164 = vadd.f32 %v3574, %v3879
  %v4165 = vadd.f32 %v3575, %v3883
  %v4166 = vadd.f32 %v3576, %v3885
  %v4167 = vadd.f32 %v3577, %v3887
  %v4168 = vadd.f32 %v3578, %v3889
  %v4169 = vadd.f32 %v3579, %v3893
  %v4170 = vadd.f32 %v3580, %v3895
  %v4171 = vadd.f32 %v3581, %v3897
  %v4172 = vadd.f32 %v3582, %v3899
  %v4173 = vadd.f32 %v3583, %v3903
  %v4174 = vadd.f32 %v3584, %v3905
  %v4175 = vadd.f32 %v3585, %v3907
  %v4176 = vadd.f32 %v3586, %v3909
  %v4177 = vadd.f32 %v3587, %v3913
  %v4178 = vadd.f32 %v3588, %v3915
  %v4179 = vadd.f32 %v3589, %v3917
  %v4180 = vadd.f32 %v3590, %v3919
  %v4181 = vadd.f32 %v3591, %v3923
  %v4182 = vadd.f32 %v3592, %v3925
  %v4183 = vadd.f32 %v3593, %v3927
  %v4184 = vadd.f32 %v3594, %v3929
  %v4185 = vadd.f32 %v3595, %v3933
  %v4186 = vadd.f32 %v3596, %v3935
  %v4187 = vadd.f32 %v3597, %v3937
  %v4188 = vadd.f32 %v3598, %v3939
  %v4189 = vadd.f32 %v3599, %v3943
  %v4190 = vadd.f32 %v3600, %v3945
  %v4191 = vadd.f32 %v3601, %v3947
  %v4192 = vadd.f32 %v3602, %v3949
  %v4193 = vadd.f32 %v3603, %v3953
  %v4194 = vadd.f32 %v3604, %v3955
  %v4195 = vadd.f32 %v3605, %v3957
  %v4196 = vadd.f32 %v3606, %v3959
  %v4197 = vadd.f32 %v3607, %v3963
  %v4198 = vadd.f32 %v3608, %v3965
  %v4199 = vadd.f32 %v3609, %v3967
  %v4200 = vadd.f32 %v3610, %v3969
  %v4201 = vadd.f32 %v3611, %v3973
  %v4202 = vadd.f32 %v3612, %v3975
  %v4203 = vadd.f32 %v3613, %v3977
  %v4204 = vadd.f32 %v3614, %v3979
  %v4205 = vadd.f32 %v3615, %v3983
  %v4206 = vadd.f32 %v3616, %v3985
  %v4207 = vadd.f32 %v3617, %v3987
  %v4208 = vadd.f32 %v3618, %v3989
  %v4209 = vadd.f32 %v3619, %v3993
  %v4210 = vadd.f32 %v3620, %v3995
  %v4211 = vadd.f32 %v3621, %v3997
  %v4212 = vadd.f32 %v3622, %v3999
  %v4213 = vadd.f32 %v3623, %v4003
  %v4214 = vadd.f32 %v3624, %v4005
  %v4215 = vadd.f32 %v3625, %v4007
  %v4216 = vadd.f32 %v3626, %v4009
  %v4217 = vadd.f32 %v3627, %v4013
  %v4218 = vadd.f32 %v3628, %v4015
  %v4219 = vadd.f32 %v3629, %v4017
  %v4220 = vadd.f32 %v3630, %v4019
  %v4221 = vadd.f32 %v3631, %v4023
  %v4222 = vadd.f32 %v3632, %v4025
  %v4223 = vadd.f32 %v3633, %v4027
  %v4224 = vadd.f32 %v3634, %v4029
  %v4225 = vadd.f32 %v3635, %v4033
  %v4226 = vadd.f32 %v3636, %v4035
  %v4227 = vadd.f32 %v3637, %v4037
  %v4228 = vadd.f32 %v3638, %v4039
  %v4229 = vadd.f32 %v3639, %v4043
  %v4230 = vadd.f32 %v3640, %v4045
  %v4231 = vadd.f32 %v3641, %v4047
  %v4232 = vadd.f32 %v3642, %v4049
  %v4233 = vadd.f32 %v3643, %v4053
  %v4234 = vadd.f32 %v3644, %v4055
  %v4235 = vadd.f32 %v3645, %v4057
  %v4236 = vadd.f32 %v3646, %v4059
  %v4237 = vadd.f32 %v3647, %v4063
  %v4238 = vadd.f32 %v3648, %v4065
  %v4239 = vadd.f32 %v3649, %v4067
  %v4240 = vadd.f32 %v3650, %v4069
  %v4241 = vadd.f32 %v3651, %v4073
  %v4242 = vadd.f32 %v3652, %v4075
  %v4243 = vadd.f32 %v3653, %v4077
  %v4244 = vadd.f32 %v3654, %v4079
  %v4245 = vadd.f32 %v3655, %v4083
  %v4246 = vadd.f32 %v3656, %v4085
  %v4247 = vadd.f32 %v3657, %v4087
  %v4248 = vadd.f32 %v3658, %v4089
  %v4249 = vadd.f32 %v3659, %v4093
  %v4250 = vadd.f32 %v3660, %v4095
  %v4251 = vadd.f32 %v3661, %v4097
  %v4252 = vadd.f32 %v3662, %v4099
  %v4253 = vadd.f32 %v3663, %v4103
  %v4254 = vadd.f32 %v3664, %v4105
  %v4255 = vadd.f32 %v3665, %v4107
  %v4256 = vadd.f32 %v3666, %v4109
  %v4257 = vadd.f32 %v3667, %v4113
  %v4258 = vadd.f32 %v3668, %v4115
  %v4259 = vadd.f32 %v3669, %v4117
  %v4260 = vadd.f32 %v3670, %v4119
  %v4261 = vadd.f32 %v3671, %v4123
  %v4262 = vadd.f32 %v3672, %v4125
  %v4263 = vadd.f32 %v3673, %v4127
  %v4264 = vadd.f32 %v3674, %v4129
  %v4265 = vadd.f32 %v3675, %v4133
  %v4266 = vadd.f32 %v3676, %v4135
  %v4267 = vadd.f32 %v3677, %v4137
  %v4268 = vadd.f32 %v3678, %v4139
  %v4271 = vrot.slane %v69, 5
  %v4272 = vrot.slane %v4271, 4
  %v4273 = vrot.slane %v70, 5
  %v4274 = vsel %vm2186, %v4272, %v4273
  %v4275 = vrot.slane %v4273, 4
  %v4276 = vrot.slane %v71, 5
  %v4277 = vsel %vm2186, %v4275, %v4276
  %v4278 = vrot.slane %v123, 5
  %v4279 = vrot.slane %v4278, 4
  %v4280 = vrot.slane %v124, 5
  %v4281 = vsel %vm2186, %v4279, %v4280
  %v4282 = vrot.slane %v4280, 4
  %v4283 = vrot.slane %v125, 5
  %v4284 = vsel %vm2186, %v4282, %v4283
  %s4285 = scalar_lea.vmem %s1, 320
  %v4286 = vld [vmem:[%s4285] sm:$0xff]
  %v4287 = vld [vmem:[%s4285 + $0x8] sm:$0xff]
  %v4288 = vld [vmem:[%s4285 + $0x10] sm:$0xff]
  %v4289 = vld [vmem:[%s4285 + $0x18] sm:$0xff]
  %v4290 = vld [vmem:[%s4285 + $0x20] sm:$0xff]
  %v4291 = vld [vmem:[%s4285 + $0x28] sm:$0xff]
  %v4292 = vld [vmem:[%s4285 + $0x30] sm:$0xff]
  %v4293 = vld [vmem:[%s4285 + $0x38] sm:$0xff]
  %v4294 = vunpack.c.l.b16 %v4274
  %v4295 = vunpack.c.l.b16 %v4277
  %v4296 = vunpack.c.l.b16 %v4281
  %v4297 = vunpack.c.l.b16 %v4284
  %v4298 = vpack.c.b16 %v4295, %v4294
  %v4299 = vpack.c.b16 %v4297, %v4296
  %v4308 = vunpack.c.l.b16 %v4286
  %v4309 = vunpack.c.h.b16 %v4286
  %v4310 = vunpack.c.l.b16 %v4287
  %v4311 = vunpack.c.h.b16 %v4287
  %v4312 = vunpack.c.l.b16 %v4288
  %v4313 = vunpack.c.h.b16 %v4288
  %v4314 = vunpack.c.l.b16 %v4289
  %v4315 = vunpack.c.h.b16 %v4289
  %v4316 = vunpack.c.l.b16 %v4290
  %v4317 = vunpack.c.h.b16 %v4290
  %v4318 = vunpack.c.l.b16 %v4291
  %v4319 = vunpack.c.h.b16 %v4291
  %v4320 = vunpack.c.l.b16 %v4292
  %v4321 = vunpack.c.h.b16 %v4292
  %v4322 = vunpack.c.l.b16 %v4293
  %v4323 = vunpack.c.h.b16 %v4293
  %v4324 = vpack.c.b16 %v4310, %v4308
  %v4325 = vpack.c.b16 %v4311, %v4309
  %v4326 = vpack.c.b16 %v4314, %v4312
  %v4327 = vpack.c.b16 %v4315, %v4313
  %v4328 = vpack.c.b16 %v4318, %v4316
  %v4329 = vpack.c.b16 %v4319, %v4317
  %v4330 = vpack.c.b16 %v4322, %v4320
  %v4331 = vpack.c.b16 %v4323, %v4321
  %v4341 = vsel %vm1053, %v4298, 0
  %v4344 = vsel %vm1053, %v4299, 0
  %4346 = vmatprep.subr.bf16.mxu0 0
  %4347 = vmatpush1.bf16.msra.mxu0 0
  %4348 = vmatprep.subr.bf16.mxu0 0
  %4349 = vmatpush1.bf16.msra.mxu0 0
  %4350 = vmatprep.subr.bf16.mxu0 0
  %4351 = vmatpush1.bf16.msra.mxu0 0
  %4352 = vmatprep.subr.bf16.mxu0 0
  %4353 = vmatpush1.bf16.msra.mxu0 0
  %4354 = vmatprep.subr.bf16.mxu0 %v4331
  %4355 = vmatpush1.bf16.msra.mxu0 %v4330
  %4356 = vmatprep.subr.bf16.mxu0 %v4329
  %4357 = vmatpush1.bf16.msra.mxu0 %v4328
  %4358 = vmatprep.subr.bf16.mxu0 %v4327
  %4359 = vmatpush1.bf16.msra.mxu0 %v4326
  %4360 = vmatprep.subr.bf16.mxu0 %v4325
  %4361 = vmatpush1.bf16.msra.mxu0 %v4324
  %4362 = vmatprep.subr.bf16.mxu0 0
  %4363 = vmatpush2.bf16.msra.mxu0 0
  %4364 = vmatprep.subr.bf16.mxu0 0
  %4365 = vmatpush2.bf16.msra.mxu0 0
  %4366 = vmatprep.subr.bf16.mxu0 0
  %4367 = vmatpush2.bf16.msra.mxu0 0
  %4368 = vmatprep.subr.bf16.mxu0 0
  %4369 = vmatpush2.bf16.msra.mxu0 0
  %4370 = vmatprep.subr.bf16.mxu0 0
  %4371 = vmatpush2.bf16.msra.mxu0 0
  %4372 = vmatprep.subr.bf16.mxu0 0
  %4373 = vmatpush2.bf16.msra.mxu0 0
  %4374 = vmatprep.subr.bf16.mxu0 0
  %4375 = vmatpush2.bf16.msra.mxu0 0
  %4376 = vmatprep.subr.bf16.mxu0 0
  %4377 = vmatpush2.bf16.msra.mxu0 0
  %4378 = vmatprep.mubr.bf16.mxu0 0
  %4379 = vmatmul.mubr.bf16.gmra.mxu0 %v2560
  %v4380 = vpop.f32.mrf.mxu0
  %v4381 = vadd.f32 0.0, %v4380
  %v4382 = vpop.f32.mrf.mxu0
  %v4383 = vadd.f32 0.0, %v4382
  %v4384 = vpop.f32.mrf.mxu0
  %v4385 = vadd.f32 0.0, %v4384
  %v4386 = vpop.f32.mrf.mxu0
  %v4387 = vadd.f32 0.0, %v4386
  %4388 = vmatprep.mubr.bf16.mxu0 0
  %4389 = vmatmul.mubr.bf16.gmra.mxu0 %v2563
  %v4390 = vpop.f32.mrf.mxu0
  %v4391 = vadd.f32 0.0, %v4390
  %v4392 = vpop.f32.mrf.mxu0
  %v4393 = vadd.f32 0.0, %v4392
  %v4394 = vpop.f32.mrf.mxu0
  %v4395 = vadd.f32 0.0, %v4394
  %v4396 = vpop.f32.mrf.mxu0
  %v4397 = vadd.f32 0.0, %v4396
  %4398 = vmatprep.mubr.bf16.mxu0 0
  %4399 = vmatmul.mubr.bf16.gmra.mxu0 %v2566
  %v4400 = vpop.f32.mrf.mxu0
  %v4401 = vadd.f32 0.0, %v4400
  %v4402 = vpop.f32.mrf.mxu0
  %v4403 = vadd.f32 0.0, %v4402
  %v4404 = vpop.f32.mrf.mxu0
  %v4405 = vadd.f32 0.0, %v4404
  %v4406 = vpop.f32.mrf.mxu0
  %v4407 = vadd.f32 0.0, %v4406
  %4408 = vmatprep.mubr.bf16.mxu0 0
  %4409 = vmatmul.mubr.bf16.gmra.mxu0 %v2569
  %v4410 = vpop.f32.mrf.mxu0
  %v4411 = vadd.f32 0.0, %v4410
  %v4412 = vpop.f32.mrf.mxu0
  %v4413 = vadd.f32 0.0, %v4412
  %v4414 = vpop.f32.mrf.mxu0
  %v4415 = vadd.f32 0.0, %v4414
  %v4416 = vpop.f32.mrf.mxu0
  %v4417 = vadd.f32 0.0, %v4416
  %4418 = vmatprep.mubr.bf16.mxu0 0
  %4419 = vmatmul.mubr.bf16.gmra.mxu0 %v2572
  %v4420 = vpop.f32.mrf.mxu0
  %v4421 = vadd.f32 0.0, %v4420
  %v4422 = vpop.f32.mrf.mxu0
  %v4423 = vadd.f32 0.0, %v4422
  %v4424 = vpop.f32.mrf.mxu0
  %v4425 = vadd.f32 0.0, %v4424
  %v4426 = vpop.f32.mrf.mxu0
  %v4427 = vadd.f32 0.0, %v4426
  %4428 = vmatprep.mubr.bf16.mxu0 0
  %4429 = vmatmul.mubr.bf16.gmra.mxu0 %v2575
  %v4430 = vpop.f32.mrf.mxu0
  %v4431 = vadd.f32 0.0, %v4430
  %v4432 = vpop.f32.mrf.mxu0
  %v4433 = vadd.f32 0.0, %v4432
  %v4434 = vpop.f32.mrf.mxu0
  %v4435 = vadd.f32 0.0, %v4434
  %v4436 = vpop.f32.mrf.mxu0
  %v4437 = vadd.f32 0.0, %v4436
  %4438 = vmatprep.mubr.bf16.mxu0 0
  %4439 = vmatmul.mubr.bf16.gmra.mxu0 %v2578
  %v4440 = vpop.f32.mrf.mxu0
  %v4441 = vadd.f32 0.0, %v4440
  %v4442 = vpop.f32.mrf.mxu0
  %v4443 = vadd.f32 0.0, %v4442
  %v4444 = vpop.f32.mrf.mxu0
  %v4445 = vadd.f32 0.0, %v4444
  %v4446 = vpop.f32.mrf.mxu0
  %v4447 = vadd.f32 0.0, %v4446
  %4448 = vmatprep.mubr.bf16.mxu0 0
  %4449 = vmatmul.mubr.bf16.gmra.mxu0 %v2581
  %v4450 = vpop.f32.mrf.mxu0
  %v4451 = vadd.f32 0.0, %v4450
  %v4452 = vpop.f32.mrf.mxu0
  %v4453 = vadd.f32 0.0, %v4452
  %v4454 = vpop.f32.mrf.mxu0
  %v4455 = vadd.f32 0.0, %v4454
  %v4456 = vpop.f32.mrf.mxu0
  %v4457 = vadd.f32 0.0, %v4456
  %4458 = vmatprep.mubr.bf16.mxu0 0
  %4459 = vmatmul.mubr.bf16.gmra.mxu0 %v2584
  %v4460 = vpop.f32.mrf.mxu0
  %v4461 = vadd.f32 0.0, %v4460
  %v4462 = vpop.f32.mrf.mxu0
  %v4463 = vadd.f32 0.0, %v4462
  %v4464 = vpop.f32.mrf.mxu0
  %v4465 = vadd.f32 0.0, %v4464
  %v4466 = vpop.f32.mrf.mxu0
  %v4467 = vadd.f32 0.0, %v4466
  %4468 = vmatprep.mubr.bf16.mxu0 0
  %4469 = vmatmul.mubr.bf16.gmra.mxu0 %v2587
  %v4470 = vpop.f32.mrf.mxu0
  %v4471 = vadd.f32 0.0, %v4470
  %v4472 = vpop.f32.mrf.mxu0
  %v4473 = vadd.f32 0.0, %v4472
  %v4474 = vpop.f32.mrf.mxu0
  %v4475 = vadd.f32 0.0, %v4474
  %v4476 = vpop.f32.mrf.mxu0
  %v4477 = vadd.f32 0.0, %v4476
  %4478 = vmatprep.mubr.bf16.mxu0 0
  %4479 = vmatmul.mubr.bf16.gmra.mxu0 %v2590
  %v4480 = vpop.f32.mrf.mxu0
  %v4481 = vadd.f32 0.0, %v4480
  %v4482 = vpop.f32.mrf.mxu0
  %v4483 = vadd.f32 0.0, %v4482
  %v4484 = vpop.f32.mrf.mxu0
  %v4485 = vadd.f32 0.0, %v4484
  %v4486 = vpop.f32.mrf.mxu0
  %v4487 = vadd.f32 0.0, %v4486
  %4488 = vmatprep.mubr.bf16.mxu0 0
  %4489 = vmatmul.mubr.bf16.gmra.mxu0 %v2593
  %v4490 = vpop.f32.mrf.mxu0
  %v4491 = vadd.f32 0.0, %v4490
  %v4492 = vpop.f32.mrf.mxu0
  %v4493 = vadd.f32 0.0, %v4492
  %v4494 = vpop.f32.mrf.mxu0
  %v4495 = vadd.f32 0.0, %v4494
  %v4496 = vpop.f32.mrf.mxu0
  %v4497 = vadd.f32 0.0, %v4496
  %4498 = vmatprep.mubr.bf16.mxu0 0
  %4499 = vmatmul.mubr.bf16.gmra.mxu0 %v2596
  %v4500 = vpop.f32.mrf.mxu0
  %v4501 = vadd.f32 0.0, %v4500
  %v4502 = vpop.f32.mrf.mxu0
  %v4503 = vadd.f32 0.0, %v4502
  %v4504 = vpop.f32.mrf.mxu0
  %v4505 = vadd.f32 0.0, %v4504
  %v4506 = vpop.f32.mrf.mxu0
  %v4507 = vadd.f32 0.0, %v4506
  %4508 = vmatprep.mubr.bf16.mxu0 0
  %4509 = vmatmul.mubr.bf16.gmra.mxu0 %v2599
  %v4510 = vpop.f32.mrf.mxu0
  %v4511 = vadd.f32 0.0, %v4510
  %v4512 = vpop.f32.mrf.mxu0
  %v4513 = vadd.f32 0.0, %v4512
  %v4514 = vpop.f32.mrf.mxu0
  %v4515 = vadd.f32 0.0, %v4514
  %v4516 = vpop.f32.mrf.mxu0
  %v4517 = vadd.f32 0.0, %v4516
  %4518 = vmatprep.mubr.bf16.mxu0 0
  %4519 = vmatmul.mubr.bf16.gmra.mxu0 %v2602
  %v4520 = vpop.f32.mrf.mxu0
  %v4521 = vadd.f32 0.0, %v4520
  %v4522 = vpop.f32.mrf.mxu0
  %v4523 = vadd.f32 0.0, %v4522
  %v4524 = vpop.f32.mrf.mxu0
  %v4525 = vadd.f32 0.0, %v4524
  %v4526 = vpop.f32.mrf.mxu0
  %v4527 = vadd.f32 0.0, %v4526
  %4528 = vmatprep.mubr.bf16.mxu0 0
  %4529 = vmatmul.mubr.bf16.gmra.mxu0 %v4341
  %v4530 = vpop.f32.mrf.mxu0
  %v4531 = vadd.f32 0.0, %v4530
  %v4532 = vpop.f32.mrf.mxu0
  %v4533 = vadd.f32 0.0, %v4532
  %v4534 = vpop.f32.mrf.mxu0
  %v4535 = vadd.f32 0.0, %v4534
  %v4536 = vpop.f32.mrf.mxu0
  %v4537 = vadd.f32 0.0, %v4536
  %4538 = vmatprep.mubr.bf16.mxu0 0
  %4539 = vmatmul.mubr.bf16.gmra.mxu0 %v2608
  %v4540 = vpop.f32.mrf.mxu0
  %v4541 = vadd.f32 0.0, %v4540
  %v4542 = vpop.f32.mrf.mxu0
  %v4543 = vadd.f32 0.0, %v4542
  %v4544 = vpop.f32.mrf.mxu0
  %v4545 = vadd.f32 0.0, %v4544
  %v4546 = vpop.f32.mrf.mxu0
  %v4547 = vadd.f32 0.0, %v4546
  %4548 = vmatprep.mubr.bf16.mxu0 0
  %4549 = vmatmul.mubr.bf16.gmra.mxu0 %v2611
  %v4550 = vpop.f32.mrf.mxu0
  %v4551 = vadd.f32 0.0, %v4550
  %v4552 = vpop.f32.mrf.mxu0
  %v4553 = vadd.f32 0.0, %v4552
  %v4554 = vpop.f32.mrf.mxu0
  %v4555 = vadd.f32 0.0, %v4554
  %v4556 = vpop.f32.mrf.mxu0
  %v4557 = vadd.f32 0.0, %v4556
  %4558 = vmatprep.mubr.bf16.mxu0 0
  %4559 = vmatmul.mubr.bf16.gmra.mxu0 %v2614
  %v4560 = vpop.f32.mrf.mxu0
  %v4561 = vadd.f32 0.0, %v4560
  %v4562 = vpop.f32.mrf.mxu0
  %v4563 = vadd.f32 0.0, %v4562
  %v4564 = vpop.f32.mrf.mxu0
  %v4565 = vadd.f32 0.0, %v4564
  %v4566 = vpop.f32.mrf.mxu0
  %v4567 = vadd.f32 0.0, %v4566
  %4568 = vmatprep.mubr.bf16.mxu0 0
  %4569 = vmatmul.mubr.bf16.gmra.mxu0 %v2617
  %v4570 = vpop.f32.mrf.mxu0
  %v4571 = vadd.f32 0.0, %v4570
  %v4572 = vpop.f32.mrf.mxu0
  %v4573 = vadd.f32 0.0, %v4572
  %v4574 = vpop.f32.mrf.mxu0
  %v4575 = vadd.f32 0.0, %v4574
  %v4576 = vpop.f32.mrf.mxu0
  %v4577 = vadd.f32 0.0, %v4576
  %4578 = vmatprep.mubr.bf16.mxu0 0
  %4579 = vmatmul.mubr.bf16.gmra.mxu0 %v2620
  %v4580 = vpop.f32.mrf.mxu0
  %v4581 = vadd.f32 0.0, %v4580
  %v4582 = vpop.f32.mrf.mxu0
  %v4583 = vadd.f32 0.0, %v4582
  %v4584 = vpop.f32.mrf.mxu0
  %v4585 = vadd.f32 0.0, %v4584
  %v4586 = vpop.f32.mrf.mxu0
  %v4587 = vadd.f32 0.0, %v4586
  %4588 = vmatprep.mubr.bf16.mxu0 0
  %4589 = vmatmul.mubr.bf16.gmra.mxu0 %v2623
  %v4590 = vpop.f32.mrf.mxu0
  %v4591 = vadd.f32 0.0, %v4590
  %v4592 = vpop.f32.mrf.mxu0
  %v4593 = vadd.f32 0.0, %v4592
  %v4594 = vpop.f32.mrf.mxu0
  %v4595 = vadd.f32 0.0, %v4594
  %v4596 = vpop.f32.mrf.mxu0
  %v4597 = vadd.f32 0.0, %v4596
  %4598 = vmatprep.mubr.bf16.mxu0 0
  %4599 = vmatmul.mubr.bf16.gmra.mxu0 %v2626
  %v4600 = vpop.f32.mrf.mxu0
  %v4601 = vadd.f32 0.0, %v4600
  %v4602 = vpop.f32.mrf.mxu0
  %v4603 = vadd.f32 0.0, %v4602
  %v4604 = vpop.f32.mrf.mxu0
  %v4605 = vadd.f32 0.0, %v4604
  %v4606 = vpop.f32.mrf.mxu0
  %v4607 = vadd.f32 0.0, %v4606
  %4608 = vmatprep.mubr.bf16.mxu0 0
  %4609 = vmatmul.mubr.bf16.gmra.mxu0 %v2629
  %v4610 = vpop.f32.mrf.mxu0
  %v4611 = vadd.f32 0.0, %v4610
  %v4612 = vpop.f32.mrf.mxu0
  %v4613 = vadd.f32 0.0, %v4612
  %v4614 = vpop.f32.mrf.mxu0
  %v4615 = vadd.f32 0.0, %v4614
  %v4616 = vpop.f32.mrf.mxu0
  %v4617 = vadd.f32 0.0, %v4616
  %4618 = vmatprep.mubr.bf16.mxu0 0
  %4619 = vmatmul.mubr.bf16.gmra.mxu0 %v2632
  %v4620 = vpop.f32.mrf.mxu0
  %v4621 = vadd.f32 0.0, %v4620
  %v4622 = vpop.f32.mrf.mxu0
  %v4623 = vadd.f32 0.0, %v4622
  %v4624 = vpop.f32.mrf.mxu0
  %v4625 = vadd.f32 0.0, %v4624
  %v4626 = vpop.f32.mrf.mxu0
  %v4627 = vadd.f32 0.0, %v4626
  %4628 = vmatprep.mubr.bf16.mxu0 0
  %4629 = vmatmul.mubr.bf16.gmra.mxu0 %v2635
  %v4630 = vpop.f32.mrf.mxu0
  %v4631 = vadd.f32 0.0, %v4630
  %v4632 = vpop.f32.mrf.mxu0
  %v4633 = vadd.f32 0.0, %v4632
  %v4634 = vpop.f32.mrf.mxu0
  %v4635 = vadd.f32 0.0, %v4634
  %v4636 = vpop.f32.mrf.mxu0
  %v4637 = vadd.f32 0.0, %v4636
  %4638 = vmatprep.mubr.bf16.mxu0 0
  %4639 = vmatmul.mubr.bf16.gmra.mxu0 %v2638
  %v4640 = vpop.f32.mrf.mxu0
  %v4641 = vadd.f32 0.0, %v4640
  %v4642 = vpop.f32.mrf.mxu0
  %v4643 = vadd.f32 0.0, %v4642
  %v4644 = vpop.f32.mrf.mxu0
  %v4645 = vadd.f32 0.0, %v4644
  %v4646 = vpop.f32.mrf.mxu0
  %v4647 = vadd.f32 0.0, %v4646
  %4648 = vmatprep.mubr.bf16.mxu0 0
  %4649 = vmatmul.mubr.bf16.gmra.mxu0 %v2641
  %v4650 = vpop.f32.mrf.mxu0
  %v4651 = vadd.f32 0.0, %v4650
  %v4652 = vpop.f32.mrf.mxu0
  %v4653 = vadd.f32 0.0, %v4652
  %v4654 = vpop.f32.mrf.mxu0
  %v4655 = vadd.f32 0.0, %v4654
  %v4656 = vpop.f32.mrf.mxu0
  %v4657 = vadd.f32 0.0, %v4656
  %4658 = vmatprep.mubr.bf16.mxu0 0
  %4659 = vmatmul.mubr.bf16.gmra.mxu0 %v2644
  %v4660 = vpop.f32.mrf.mxu0
  %v4661 = vadd.f32 0.0, %v4660
  %v4662 = vpop.f32.mrf.mxu0
  %v4663 = vadd.f32 0.0, %v4662
  %v4664 = vpop.f32.mrf.mxu0
  %v4665 = vadd.f32 0.0, %v4664
  %v4666 = vpop.f32.mrf.mxu0
  %v4667 = vadd.f32 0.0, %v4666
  %4668 = vmatprep.mubr.bf16.mxu0 0
  %4669 = vmatmul.mubr.bf16.gmra.mxu0 %v2647
  %v4670 = vpop.f32.mrf.mxu0
  %v4671 = vadd.f32 0.0, %v4670
  %v4672 = vpop.f32.mrf.mxu0
  %v4673 = vadd.f32 0.0, %v4672
  %v4674 = vpop.f32.mrf.mxu0
  %v4675 = vadd.f32 0.0, %v4674
  %v4676 = vpop.f32.mrf.mxu0
  %v4677 = vadd.f32 0.0, %v4676
  %4678 = vmatprep.mubr.bf16.mxu0 0
  %4679 = vmatmul.mubr.bf16.gmra.mxu0 %v2650
  %v4680 = vpop.f32.mrf.mxu0
  %v4681 = vadd.f32 0.0, %v4680
  %v4682 = vpop.f32.mrf.mxu0
  %v4683 = vadd.f32 0.0, %v4682
  %v4684 = vpop.f32.mrf.mxu0
  %v4685 = vadd.f32 0.0, %v4684
  %v4686 = vpop.f32.mrf.mxu0
  %v4687 = vadd.f32 0.0, %v4686
  %4688 = vmatprep.mubr.bf16.mxu0 0
  %4689 = vmatmul.mubr.bf16.gmra.mxu0 %v4344
  %v4690 = vpop.f32.mrf.mxu0
  %v4691 = vadd.f32 0.0, %v4690
  %v4692 = vpop.f32.mrf.mxu0
  %v4693 = vadd.f32 0.0, %v4692
  %v4694 = vpop.f32.mrf.mxu0
  %v4695 = vadd.f32 0.0, %v4694
  %v4696 = vpop.f32.mrf.mxu0
  %v4697 = vadd.f32 0.0, %v4696
  %4698 = vdwg.mxu0
  %v4699 = vadd.f32 %v4141, %v4381
  %v4700 = vadd.f32 %v4142, %v4383
  %v4701 = vadd.f32 %v4143, %v4385
  %v4702 = vadd.f32 %v4144, %v4387
  %v4703 = vadd.f32 %v4145, %v4391
  %v4704 = vadd.f32 %v4146, %v4393
  %v4705 = vadd.f32 %v4147, %v4395
  %v4706 = vadd.f32 %v4148, %v4397
  %v4707 = vadd.f32 %v4149, %v4401
  %v4708 = vadd.f32 %v4150, %v4403
  %v4709 = vadd.f32 %v4151, %v4405
  %v4710 = vadd.f32 %v4152, %v4407
  %v4711 = vadd.f32 %v4153, %v4411
  %v4712 = vadd.f32 %v4154, %v4413
  %v4713 = vadd.f32 %v4155, %v4415
  %v4714 = vadd.f32 %v4156, %v4417
  %v4715 = vadd.f32 %v4157, %v4421
  %v4716 = vadd.f32 %v4158, %v4423
  %v4717 = vadd.f32 %v4159, %v4425
  %v4718 = vadd.f32 %v4160, %v4427
  %v4719 = vadd.f32 %v4161, %v4431
  %v4720 = vadd.f32 %v4162, %v4433
  %v4721 = vadd.f32 %v4163, %v4435
  %v4722 = vadd.f32 %v4164, %v4437
  %v4723 = vadd.f32 %v4165, %v4441
  %v4724 = vadd.f32 %v4166, %v4443
  %v4725 = vadd.f32 %v4167, %v4445
  %v4726 = vadd.f32 %v4168, %v4447
  %v4727 = vadd.f32 %v4169, %v4451
  %v4728 = vadd.f32 %v4170, %v4453
  %v4729 = vadd.f32 %v4171, %v4455
  %v4730 = vadd.f32 %v4172, %v4457
  %v4731 = vadd.f32 %v4173, %v4461
  %v4732 = vadd.f32 %v4174, %v4463
  %v4733 = vadd.f32 %v4175, %v4465
  %v4734 = vadd.f32 %v4176, %v4467
  %v4735 = vadd.f32 %v4177, %v4471
  %v4736 = vadd.f32 %v4178, %v4473
  %v4737 = vadd.f32 %v4179, %v4475
  %v4738 = vadd.f32 %v4180, %v4477
  %v4739 = vadd.f32 %v4181, %v4481
  %v4740 = vadd.f32 %v4182, %v4483
  %v4741 = vadd.f32 %v4183, %v4485
  %v4742 = vadd.f32 %v4184, %v4487
  %v4743 = vadd.f32 %v4185, %v4491
  %v4744 = vadd.f32 %v4186, %v4493
  %v4745 = vadd.f32 %v4187, %v4495
  %v4746 = vadd.f32 %v4188, %v4497
  %v4747 = vadd.f32 %v4189, %v4501
  %v4748 = vadd.f32 %v4190, %v4503
  %v4749 = vadd.f32 %v4191, %v4505
  %v4750 = vadd.f32 %v4192, %v4507
  %v4751 = vadd.f32 %v4193, %v4511
  %v4752 = vadd.f32 %v4194, %v4513
  %v4753 = vadd.f32 %v4195, %v4515
  %v4754 = vadd.f32 %v4196, %v4517
  %v4755 = vadd.f32 %v4197, %v4521
  %v4756 = vadd.f32 %v4198, %v4523
  %v4757 = vadd.f32 %v4199, %v4525
  %v4758 = vadd.f32 %v4200, %v4527
  %v4759 = vadd.f32 %v4201, %v4531
  %v4760 = vadd.f32 %v4202, %v4533
  %v4761 = vadd.f32 %v4203, %v4535
  %v4762 = vadd.f32 %v4204, %v4537
  %v4763 = vadd.f32 %v4205, %v4541
  %v4764 = vadd.f32 %v4206, %v4543
  %v4765 = vadd.f32 %v4207, %v4545
  %v4766 = vadd.f32 %v4208, %v4547
  %v4767 = vadd.f32 %v4209, %v4551
  %v4768 = vadd.f32 %v4210, %v4553
  %v4769 = vadd.f32 %v4211, %v4555
  %v4770 = vadd.f32 %v4212, %v4557
  %v4771 = vadd.f32 %v4213, %v4561
  %v4772 = vadd.f32 %v4214, %v4563
  %v4773 = vadd.f32 %v4215, %v4565
  %v4774 = vadd.f32 %v4216, %v4567
  %v4775 = vadd.f32 %v4217, %v4571
  %v4776 = vadd.f32 %v4218, %v4573
  %v4777 = vadd.f32 %v4219, %v4575
  %v4778 = vadd.f32 %v4220, %v4577
  %v4779 = vadd.f32 %v4221, %v4581
  %v4780 = vadd.f32 %v4222, %v4583
  %v4781 = vadd.f32 %v4223, %v4585
  %v4782 = vadd.f32 %v4224, %v4587
  %v4783 = vadd.f32 %v4225, %v4591
  %v4784 = vadd.f32 %v4226, %v4593
  %v4785 = vadd.f32 %v4227, %v4595
  %v4786 = vadd.f32 %v4228, %v4597
  %v4787 = vadd.f32 %v4229, %v4601
  %v4788 = vadd.f32 %v4230, %v4603
  %v4789 = vadd.f32 %v4231, %v4605
  %v4790 = vadd.f32 %v4232, %v4607
  %v4791 = vadd.f32 %v4233, %v4611
  %v4792 = vadd.f32 %v4234, %v4613
  %v4793 = vadd.f32 %v4235, %v4615
  %v4794 = vadd.f32 %v4236, %v4617
  %v4795 = vadd.f32 %v4237, %v4621
  %v4796 = vadd.f32 %v4238, %v4623
  %v4797 = vadd.f32 %v4239, %v4625
  %v4798 = vadd.f32 %v4240, %v4627
  %v4799 = vadd.f32 %v4241, %v4631
  %v4800 = vadd.f32 %v4242, %v4633
  %v4801 = vadd.f32 %v4243, %v4635
  %v4802 = vadd.f32 %v4244, %v4637
  %v4803 = vadd.f32 %v4245, %v4641
  %v4804 = vadd.f32 %v4246, %v4643
  %v4805 = vadd.f32 %v4247, %v4645
  %v4806 = vadd.f32 %v4248, %v4647
  %v4807 = vadd.f32 %v4249, %v4651
  %v4808 = vadd.f32 %v4250, %v4653
  %v4809 = vadd.f32 %v4251, %v4655
  %v4810 = vadd.f32 %v4252, %v4657
  %v4811 = vadd.f32 %v4253, %v4661
  %v4812 = vadd.f32 %v4254, %v4663
  %v4813 = vadd.f32 %v4255, %v4665
  %v4814 = vadd.f32 %v4256, %v4667
  %v4815 = vadd.f32 %v4257, %v4671
  %v4816 = vadd.f32 %v4258, %v4673
  %v4817 = vadd.f32 %v4259, %v4675
  %v4818 = vadd.f32 %v4260, %v4677
  %v4819 = vadd.f32 %v4261, %v4681
  %v4820 = vadd.f32 %v4262, %v4683
  %v4821 = vadd.f32 %v4263, %v4685
  %v4822 = vadd.f32 %v4264, %v4687
  %v4823 = vadd.f32 %v4265, %v4691
  %v4824 = vadd.f32 %v4266, %v4693
  %v4825 = vadd.f32 %v4267, %v4695
  %v4826 = vadd.f32 %v4268, %v4697
  %s4827 = scalar_lea.vmem %s1, 384
  %v4828 = vld [vmem:[%s4827] sm:$0xff]
  %v4829 = vld [vmem:[%s4827 + $0x8] sm:$0xff]
  %v4830 = vld [vmem:[%s4827 + $0x10] sm:$0xff]
  %v4831 = vld [vmem:[%s4827 + $0x18] sm:$0xff]
  %v4832 = vld [vmem:[%s4827 + $0x20] sm:$0xff]
  %v4833 = vld [vmem:[%s4827 + $0x28] sm:$0xff]
  %v4834 = vld [vmem:[%s4827 + $0x30] sm:$0xff]
  %v4835 = vld [vmem:[%s4827 + $0x38] sm:$0xff]
  %v4840 = vunpack.c.l.b16 %v72
  %v4841 = vunpack.c.l.b16 %v73
  %v4842 = vunpack.c.l.b16 %v126
  %v4843 = vunpack.c.l.b16 %v127
  %v4844 = vpack.c.b16 %v4841, %v4840
  %v4845 = vpack.c.b16 %v4843, %v4842
  %v4854 = vunpack.c.l.b16 %v4828
  %v4855 = vunpack.c.h.b16 %v4828
  %v4856 = vunpack.c.l.b16 %v4829
  %v4857 = vunpack.c.h.b16 %v4829
  %v4858 = vunpack.c.l.b16 %v4830
  %v4859 = vunpack.c.h.b16 %v4830
  %v4860 = vunpack.c.l.b16 %v4831
  %v4861 = vunpack.c.h.b16 %v4831
  %v4862 = vunpack.c.l.b16 %v4832
  %v4863 = vunpack.c.h.b16 %v4832
  %v4864 = vunpack.c.l.b16 %v4833
  %v4865 = vunpack.c.h.b16 %v4833
  %v4866 = vunpack.c.l.b16 %v4834
  %v4867 = vunpack.c.h.b16 %v4834
  %v4868 = vunpack.c.l.b16 %v4835
  %v4869 = vunpack.c.h.b16 %v4835
  %v4870 = vpack.c.b16 %v4856, %v4854
  %v4871 = vpack.c.b16 %v4857, %v4855
  %v4872 = vpack.c.b16 %v4860, %v4858
  %v4873 = vpack.c.b16 %v4861, %v4859
  %v4874 = vpack.c.b16 %v4864, %v4862
  %v4875 = vpack.c.b16 %v4865, %v4863
  %v4876 = vpack.c.b16 %v4868, %v4866
  %v4877 = vpack.c.b16 %v4869, %v4867
  %v4887 = vsel %vm1053, %v4844, 0
  %v4890 = vsel %vm1053, %v4845, 0
  %4892 = vmatprep.subr.bf16.mxu0 0
  %4893 = vmatpush1.bf16.msra.mxu0 0
  %4894 = vmatprep.subr.bf16.mxu0 0
  %4895 = vmatpush1.bf16.msra.mxu0 0
  %4896 = vmatprep.subr.bf16.mxu0 0
  %4897 = vmatpush1.bf16.msra.mxu0 0
  %4898 = vmatprep.subr.bf16.mxu0 0
  %4899 = vmatpush1.bf16.msra.mxu0 0
  %4900 = vmatprep.subr.bf16.mxu0 %v4877
  %4901 = vmatpush1.bf16.msra.mxu0 %v4876
  %4902 = vmatprep.subr.bf16.mxu0 %v4875
  %4903 = vmatpush1.bf16.msra.mxu0 %v4874
  %4904 = vmatprep.subr.bf16.mxu0 %v4873
  %4905 = vmatpush1.bf16.msra.mxu0 %v4872
  %4906 = vmatprep.subr.bf16.mxu0 %v4871
  %4907 = vmatpush1.bf16.msra.mxu0 %v4870
  %4908 = vmatprep.subr.bf16.mxu0 0
  %4909 = vmatpush2.bf16.msra.mxu0 0
  %4910 = vmatprep.subr.bf16.mxu0 0
  %4911 = vmatpush2.bf16.msra.mxu0 0
  %4912 = vmatprep.subr.bf16.mxu0 0
  %4913 = vmatpush2.bf16.msra.mxu0 0
  %4914 = vmatprep.subr.bf16.mxu0 0
  %4915 = vmatpush2.bf16.msra.mxu0 0
  %4916 = vmatprep.subr.bf16.mxu0 0
  %4917 = vmatpush2.bf16.msra.mxu0 0
  %4918 = vmatprep.subr.bf16.mxu0 0
  %4919 = vmatpush2.bf16.msra.mxu0 0
  %4920 = vmatprep.subr.bf16.mxu0 0
  %4921 = vmatpush2.bf16.msra.mxu0 0
  %4922 = vmatprep.subr.bf16.mxu0 0
  %4923 = vmatpush2.bf16.msra.mxu0 0
  %4924 = vmatprep.mubr.bf16.mxu0 0
  %4925 = vmatmul.mubr.bf16.gmra.mxu0 %v1710
  %v4926 = vpop.f32.mrf.mxu0
  %v4927 = vadd.f32 0.0, %v4926
  %v4928 = vpop.f32.mrf.mxu0
  %v4929 = vadd.f32 0.0, %v4928
  %v4930 = vpop.f32.mrf.mxu0
  %v4931 = vadd.f32 0.0, %v4930
  %v4932 = vpop.f32.mrf.mxu0
  %v4933 = vadd.f32 0.0, %v4932
  %4934 = vmatprep.mubr.bf16.mxu0 0
  %4935 = vmatmul.mubr.bf16.gmra.mxu0 %v1713
  %v4936 = vpop.f32.mrf.mxu0
  %v4937 = vadd.f32 0.0, %v4936
  %v4938 = vpop.f32.mrf.mxu0
  %v4939 = vadd.f32 0.0, %v4938
  %v4940 = vpop.f32.mrf.mxu0
  %v4941 = vadd.f32 0.0, %v4940
  %v4942 = vpop.f32.mrf.mxu0
  %v4943 = vadd.f32 0.0, %v4942
  %4944 = vmatprep.mubr.bf16.mxu0 0
  %4945 = vmatmul.mubr.bf16.gmra.mxu0 %v1716
  %v4946 = vpop.f32.mrf.mxu0
  %v4947 = vadd.f32 0.0, %v4946
  %v4948 = vpop.f32.mrf.mxu0
  %v4949 = vadd.f32 0.0, %v4948
  %v4950 = vpop.f32.mrf.mxu0
  %v4951 = vadd.f32 0.0, %v4950
  %v4952 = vpop.f32.mrf.mxu0
  %v4953 = vadd.f32 0.0, %v4952
  %4954 = vmatprep.mubr.bf16.mxu0 0
  %4955 = vmatmul.mubr.bf16.gmra.mxu0 %v1719
  %v4956 = vpop.f32.mrf.mxu0
  %v4957 = vadd.f32 0.0, %v4956
  %v4958 = vpop.f32.mrf.mxu0
  %v4959 = vadd.f32 0.0, %v4958
  %v4960 = vpop.f32.mrf.mxu0
  %v4961 = vadd.f32 0.0, %v4960
  %v4962 = vpop.f32.mrf.mxu0
  %v4963 = vadd.f32 0.0, %v4962
  %4964 = vmatprep.mubr.bf16.mxu0 0
  %4965 = vmatmul.mubr.bf16.gmra.mxu0 %v1722
  %v4966 = vpop.f32.mrf.mxu0
  %v4967 = vadd.f32 0.0, %v4966
  %v4968 = vpop.f32.mrf.mxu0
  %v4969 = vadd.f32 0.0, %v4968
  %v4970 = vpop.f32.mrf.mxu0
  %v4971 = vadd.f32 0.0, %v4970
  %v4972 = vpop.f32.mrf.mxu0
  %v4973 = vadd.f32 0.0, %v4972
  %4974 = vmatprep.mubr.bf16.mxu0 0
  %4975 = vmatmul.mubr.bf16.gmra.mxu0 %v1725
  %v4976 = vpop.f32.mrf.mxu0
  %v4977 = vadd.f32 0.0, %v4976
  %v4978 = vpop.f32.mrf.mxu0
  %v4979 = vadd.f32 0.0, %v4978
  %v4980 = vpop.f32.mrf.mxu0
  %v4981 = vadd.f32 0.0, %v4980
  %v4982 = vpop.f32.mrf.mxu0
  %v4983 = vadd.f32 0.0, %v4982
  %4984 = vmatprep.mubr.bf16.mxu0 0
  %4985 = vmatmul.mubr.bf16.gmra.mxu0 %v1728
  %v4986 = vpop.f32.mrf.mxu0
  %v4987 = vadd.f32 0.0, %v4986
  %v4988 = vpop.f32.mrf.mxu0
  %v4989 = vadd.f32 0.0, %v4988
  %v4990 = vpop.f32.mrf.mxu0
  %v4991 = vadd.f32 0.0, %v4990
  %v4992 = vpop.f32.mrf.mxu0
  %v4993 = vadd.f32 0.0, %v4992
  %4994 = vmatprep.mubr.bf16.mxu0 0
  %4995 = vmatmul.mubr.bf16.gmra.mxu0 %v1731
  %v4996 = vpop.f32.mrf.mxu0
  %v4997 = vadd.f32 0.0, %v4996
  %v4998 = vpop.f32.mrf.mxu0
  %v4999 = vadd.f32 0.0, %v4998
  %v5000 = vpop.f32.mrf.mxu0
  %v5001 = vadd.f32 0.0, %v5000
  %v5002 = vpop.f32.mrf.mxu0
  %v5003 = vadd.f32 0.0, %v5002
  %5004 = vmatprep.mubr.bf16.mxu0 0
  %5005 = vmatmul.mubr.bf16.gmra.mxu0 %v1734
  %v5006 = vpop.f32.mrf.mxu0
  %v5007 = vadd.f32 0.0, %v5006
  %v5008 = vpop.f32.mrf.mxu0
  %v5009 = vadd.f32 0.0, %v5008
  %v5010 = vpop.f32.mrf.mxu0
  %v5011 = vadd.f32 0.0, %v5010
  %v5012 = vpop.f32.mrf.mxu0
  %v5013 = vadd.f32 0.0, %v5012
  %5014 = vmatprep.mubr.bf16.mxu0 0
  %5015 = vmatmul.mubr.bf16.gmra.mxu0 %v1737
  %v5016 = vpop.f32.mrf.mxu0
  %v5017 = vadd.f32 0.0, %v5016
  %v5018 = vpop.f32.mrf.mxu0
  %v5019 = vadd.f32 0.0, %v5018
  %v5020 = vpop.f32.mrf.mxu0
  %v5021 = vadd.f32 0.0, %v5020
  %v5022 = vpop.f32.mrf.mxu0
  %v5023 = vadd.f32 0.0, %v5022
  %5024 = vmatprep.mubr.bf16.mxu0 0
  %5025 = vmatmul.mubr.bf16.gmra.mxu0 %v1740
  %v5026 = vpop.f32.mrf.mxu0
  %v5027 = vadd.f32 0.0, %v5026
  %v5028 = vpop.f32.mrf.mxu0
  %v5029 = vadd.f32 0.0, %v5028
  %v5030 = vpop.f32.mrf.mxu0
  %v5031 = vadd.f32 0.0, %v5030
  %v5032 = vpop.f32.mrf.mxu0
  %v5033 = vadd.f32 0.0, %v5032
  %5034 = vmatprep.mubr.bf16.mxu0 0
  %5035 = vmatmul.mubr.bf16.gmra.mxu0 %v1743
  %v5036 = vpop.f32.mrf.mxu0
  %v5037 = vadd.f32 0.0, %v5036
  %v5038 = vpop.f32.mrf.mxu0
  %v5039 = vadd.f32 0.0, %v5038
  %v5040 = vpop.f32.mrf.mxu0
  %v5041 = vadd.f32 0.0, %v5040
  %v5042 = vpop.f32.mrf.mxu0
  %v5043 = vadd.f32 0.0, %v5042
  %5044 = vmatprep.mubr.bf16.mxu0 0
  %5045 = vmatmul.mubr.bf16.gmra.mxu0 %v1746
  %v5046 = vpop.f32.mrf.mxu0
  %v5047 = vadd.f32 0.0, %v5046
  %v5048 = vpop.f32.mrf.mxu0
  %v5049 = vadd.f32 0.0, %v5048
  %v5050 = vpop.f32.mrf.mxu0
  %v5051 = vadd.f32 0.0, %v5050
  %v5052 = vpop.f32.mrf.mxu0
  %v5053 = vadd.f32 0.0, %v5052
  %5054 = vmatprep.mubr.bf16.mxu0 0
  %5055 = vmatmul.mubr.bf16.gmra.mxu0 %v1749
  %v5056 = vpop.f32.mrf.mxu0
  %v5057 = vadd.f32 0.0, %v5056
  %v5058 = vpop.f32.mrf.mxu0
  %v5059 = vadd.f32 0.0, %v5058
  %v5060 = vpop.f32.mrf.mxu0
  %v5061 = vadd.f32 0.0, %v5060
  %v5062 = vpop.f32.mrf.mxu0
  %v5063 = vadd.f32 0.0, %v5062
  %5064 = vmatprep.mubr.bf16.mxu0 0
  %5065 = vmatmul.mubr.bf16.gmra.mxu0 %v3193
  %v5066 = vpop.f32.mrf.mxu0
  %v5067 = vadd.f32 0.0, %v5066
  %v5068 = vpop.f32.mrf.mxu0
  %v5069 = vadd.f32 0.0, %v5068
  %v5070 = vpop.f32.mrf.mxu0
  %v5071 = vadd.f32 0.0, %v5070
  %v5072 = vpop.f32.mrf.mxu0
  %v5073 = vadd.f32 0.0, %v5072
  %5074 = vmatprep.mubr.bf16.mxu0 0
  %5075 = vmatmul.mubr.bf16.gmra.mxu0 %v4887
  %v5076 = vpop.f32.mrf.mxu0
  %v5077 = vadd.f32 0.0, %v5076
  %v5078 = vpop.f32.mrf.mxu0
  %v5079 = vadd.f32 0.0, %v5078
  %v5080 = vpop.f32.mrf.mxu0
  %v5081 = vadd.f32 0.0, %v5080
  %v5082 = vpop.f32.mrf.mxu0
  %v5083 = vadd.f32 0.0, %v5082
  %5084 = vmatprep.mubr.bf16.mxu0 0
  %5085 = vmatmul.mubr.bf16.gmra.mxu0 %v1758
  %v5086 = vpop.f32.mrf.mxu0
  %v5087 = vadd.f32 0.0, %v5086
  %v5088 = vpop.f32.mrf.mxu0
  %v5089 = vadd.f32 0.0, %v5088
  %v5090 = vpop.f32.mrf.mxu0
  %v5091 = vadd.f32 0.0, %v5090
  %v5092 = vpop.f32.mrf.mxu0
  %v5093 = vadd.f32 0.0, %v5092
  %5094 = vmatprep.mubr.bf16.mxu0 0
  %5095 = vmatmul.mubr.bf16.gmra.mxu0 %v1761
  %v5096 = vpop.f32.mrf.mxu0
  %v5097 = vadd.f32 0.0, %v5096
  %v5098 = vpop.f32.mrf.mxu0
  %v5099 = vadd.f32 0.0, %v5098
  %v5100 = vpop.f32.mrf.mxu0
  %v5101 = vadd.f32 0.0, %v5100
  %v5102 = vpop.f32.mrf.mxu0
  %v5103 = vadd.f32 0.0, %v5102
  %5104 = vmatprep.mubr.bf16.mxu0 0
  %5105 = vmatmul.mubr.bf16.gmra.mxu0 %v1764
  %v5106 = vpop.f32.mrf.mxu0
  %v5107 = vadd.f32 0.0, %v5106
  %v5108 = vpop.f32.mrf.mxu0
  %v5109 = vadd.f32 0.0, %v5108
  %v5110 = vpop.f32.mrf.mxu0
  %v5111 = vadd.f32 0.0, %v5110
  %v5112 = vpop.f32.mrf.mxu0
  %v5113 = vadd.f32 0.0, %v5112
  %5114 = vmatprep.mubr.bf16.mxu0 0
  %5115 = vmatmul.mubr.bf16.gmra.mxu0 %v1767
  %v5116 = vpop.f32.mrf.mxu0
  %v5117 = vadd.f32 0.0, %v5116
  %v5118 = vpop.f32.mrf.mxu0
  %v5119 = vadd.f32 0.0, %v5118
  %v5120 = vpop.f32.mrf.mxu0
  %v5121 = vadd.f32 0.0, %v5120
  %v5122 = vpop.f32.mrf.mxu0
  %v5123 = vadd.f32 0.0, %v5122
  %5124 = vmatprep.mubr.bf16.mxu0 0
  %5125 = vmatmul.mubr.bf16.gmra.mxu0 %v1770
  %v5126 = vpop.f32.mrf.mxu0
  %v5127 = vadd.f32 0.0, %v5126
  %v5128 = vpop.f32.mrf.mxu0
  %v5129 = vadd.f32 0.0, %v5128
  %v5130 = vpop.f32.mrf.mxu0
  %v5131 = vadd.f32 0.0, %v5130
  %v5132 = vpop.f32.mrf.mxu0
  %v5133 = vadd.f32 0.0, %v5132
  %5134 = vmatprep.mubr.bf16.mxu0 0
  %5135 = vmatmul.mubr.bf16.gmra.mxu0 %v1773
  %v5136 = vpop.f32.mrf.mxu0
  %v5137 = vadd.f32 0.0, %v5136
  %v5138 = vpop.f32.mrf.mxu0
  %v5139 = vadd.f32 0.0, %v5138
  %v5140 = vpop.f32.mrf.mxu0
  %v5141 = vadd.f32 0.0, %v5140
  %v5142 = vpop.f32.mrf.mxu0
  %v5143 = vadd.f32 0.0, %v5142
  %5144 = vmatprep.mubr.bf16.mxu0 0
  %5145 = vmatmul.mubr.bf16.gmra.mxu0 %v1776
  %v5146 = vpop.f32.mrf.mxu0
  %v5147 = vadd.f32 0.0, %v5146
  %v5148 = vpop.f32.mrf.mxu0
  %v5149 = vadd.f32 0.0, %v5148
  %v5150 = vpop.f32.mrf.mxu0
  %v5151 = vadd.f32 0.0, %v5150
  %v5152 = vpop.f32.mrf.mxu0
  %v5153 = vadd.f32 0.0, %v5152
  %5154 = vmatprep.mubr.bf16.mxu0 0
  %5155 = vmatmul.mubr.bf16.gmra.mxu0 %v1779
  %v5156 = vpop.f32.mrf.mxu0
  %v5157 = vadd.f32 0.0, %v5156
  %v5158 = vpop.f32.mrf.mxu0
  %v5159 = vadd.f32 0.0, %v5158
  %v5160 = vpop.f32.mrf.mxu0
  %v5161 = vadd.f32 0.0, %v5160
  %v5162 = vpop.f32.mrf.mxu0
  %v5163 = vadd.f32 0.0, %v5162
  %5164 = vmatprep.mubr.bf16.mxu0 0
  %5165 = vmatmul.mubr.bf16.gmra.mxu0 %v1782
  %v5166 = vpop.f32.mrf.mxu0
  %v5167 = vadd.f32 0.0, %v5166
  %v5168 = vpop.f32.mrf.mxu0
  %v5169 = vadd.f32 0.0, %v5168
  %v5170 = vpop.f32.mrf.mxu0
  %v5171 = vadd.f32 0.0, %v5170
  %v5172 = vpop.f32.mrf.mxu0
  %v5173 = vadd.f32 0.0, %v5172
  %5174 = vmatprep.mubr.bf16.mxu0 0
  %5175 = vmatmul.mubr.bf16.gmra.mxu0 %v1785
  %v5176 = vpop.f32.mrf.mxu0
  %v5177 = vadd.f32 0.0, %v5176
  %v5178 = vpop.f32.mrf.mxu0
  %v5179 = vadd.f32 0.0, %v5178
  %v5180 = vpop.f32.mrf.mxu0
  %v5181 = vadd.f32 0.0, %v5180
  %v5182 = vpop.f32.mrf.mxu0
  %v5183 = vadd.f32 0.0, %v5182
  %5184 = vmatprep.mubr.bf16.mxu0 0
  %5185 = vmatmul.mubr.bf16.gmra.mxu0 %v1788
  %v5186 = vpop.f32.mrf.mxu0
  %v5187 = vadd.f32 0.0, %v5186
  %v5188 = vpop.f32.mrf.mxu0
  %v5189 = vadd.f32 0.0, %v5188
  %v5190 = vpop.f32.mrf.mxu0
  %v5191 = vadd.f32 0.0, %v5190
  %v5192 = vpop.f32.mrf.mxu0
  %v5193 = vadd.f32 0.0, %v5192
  %5194 = vmatprep.mubr.bf16.mxu0 0
  %5195 = vmatmul.mubr.bf16.gmra.mxu0 %v1791
  %v5196 = vpop.f32.mrf.mxu0
  %v5197 = vadd.f32 0.0, %v5196
  %v5198 = vpop.f32.mrf.mxu0
  %v5199 = vadd.f32 0.0, %v5198
  %v5200 = vpop.f32.mrf.mxu0
  %v5201 = vadd.f32 0.0, %v5200
  %v5202 = vpop.f32.mrf.mxu0
  %v5203 = vadd.f32 0.0, %v5202
  %5204 = vmatprep.mubr.bf16.mxu0 0
  %5205 = vmatmul.mubr.bf16.gmra.mxu0 %v1794
  %v5206 = vpop.f32.mrf.mxu0
  %v5207 = vadd.f32 0.0, %v5206
  %v5208 = vpop.f32.mrf.mxu0
  %v5209 = vadd.f32 0.0, %v5208
  %v5210 = vpop.f32.mrf.mxu0
  %v5211 = vadd.f32 0.0, %v5210
  %v5212 = vpop.f32.mrf.mxu0
  %v5213 = vadd.f32 0.0, %v5212
  %5214 = vmatprep.mubr.bf16.mxu0 0
  %5215 = vmatmul.mubr.bf16.gmra.mxu0 %v1797
  %v5216 = vpop.f32.mrf.mxu0
  %v5217 = vadd.f32 0.0, %v5216
  %v5218 = vpop.f32.mrf.mxu0
  %v5219 = vadd.f32 0.0, %v5218
  %v5220 = vpop.f32.mrf.mxu0
  %v5221 = vadd.f32 0.0, %v5220
  %v5222 = vpop.f32.mrf.mxu0
  %v5223 = vadd.f32 0.0, %v5222
  %5224 = vmatprep.mubr.bf16.mxu0 0
  %5225 = vmatmul.mubr.bf16.gmra.mxu0 %v3196
  %v5226 = vpop.f32.mrf.mxu0
  %v5227 = vadd.f32 0.0, %v5226
  %v5228 = vpop.f32.mrf.mxu0
  %v5229 = vadd.f32 0.0, %v5228
  %v5230 = vpop.f32.mrf.mxu0
  %v5231 = vadd.f32 0.0, %v5230
  %v5232 = vpop.f32.mrf.mxu0
  %v5233 = vadd.f32 0.0, %v5232
  %5234 = vmatprep.mubr.bf16.mxu0 0
  %5235 = vmatmul.mubr.bf16.gmra.mxu0 %v4890
  %v5236 = vpop.f32.mrf.mxu0
  %v5237 = vadd.f32 0.0, %v5236
  %v5238 = vpop.f32.mrf.mxu0
  %v5239 = vadd.f32 0.0, %v5238
  %v5240 = vpop.f32.mrf.mxu0
  %v5241 = vadd.f32 0.0, %v5240
  %v5242 = vpop.f32.mrf.mxu0
  %v5243 = vadd.f32 0.0, %v5242
  %5244 = vdwg.mxu0
  %v5245 = vadd.f32 %v4699, %v4927
  %v5246 = vadd.f32 %v4700, %v4929
  %v5247 = vadd.f32 %v4701, %v4931
  %v5248 = vadd.f32 %v4702, %v4933
  %v5249 = vadd.f32 %v4703, %v4937
  %v5250 = vadd.f32 %v4704, %v4939
  %v5251 = vadd.f32 %v4705, %v4941
  %v5252 = vadd.f32 %v4706, %v4943
  %v5253 = vadd.f32 %v4707, %v4947
  %v5254 = vadd.f32 %v4708, %v4949
  %v5255 = vadd.f32 %v4709, %v4951
  %v5256 = vadd.f32 %v4710, %v4953
  %v5257 = vadd.f32 %v4711, %v4957
  %v5258 = vadd.f32 %v4712, %v4959
  %v5259 = vadd.f32 %v4713, %v4961
  %v5260 = vadd.f32 %v4714, %v4963
  %v5261 = vadd.f32 %v4715, %v4967
  %v5262 = vadd.f32 %v4716, %v4969
  %v5263 = vadd.f32 %v4717, %v4971
  %v5264 = vadd.f32 %v4718, %v4973
  %v5265 = vadd.f32 %v4719, %v4977
  %v5266 = vadd.f32 %v4720, %v4979
  %v5267 = vadd.f32 %v4721, %v4981
  %v5268 = vadd.f32 %v4722, %v4983
  %v5269 = vadd.f32 %v4723, %v4987
  %v5270 = vadd.f32 %v4724, %v4989
  %v5271 = vadd.f32 %v4725, %v4991
  %v5272 = vadd.f32 %v4726, %v4993
  %v5273 = vadd.f32 %v4727, %v4997
  %v5274 = vadd.f32 %v4728, %v4999
  %v5275 = vadd.f32 %v4729, %v5001
  %v5276 = vadd.f32 %v4730, %v5003
  %v5277 = vadd.f32 %v4731, %v5007
  %v5278 = vadd.f32 %v4732, %v5009
  %v5279 = vadd.f32 %v4733, %v5011
  %v5280 = vadd.f32 %v4734, %v5013
  %v5281 = vadd.f32 %v4735, %v5017
  %v5282 = vadd.f32 %v4736, %v5019
  %v5283 = vadd.f32 %v4737, %v5021
  %v5284 = vadd.f32 %v4738, %v5023
  %v5285 = vadd.f32 %v4739, %v5027
  %v5286 = vadd.f32 %v4740, %v5029
  %v5287 = vadd.f32 %v4741, %v5031
  %v5288 = vadd.f32 %v4742, %v5033
  %v5289 = vadd.f32 %v4743, %v5037
  %v5290 = vadd.f32 %v4744, %v5039
  %v5291 = vadd.f32 %v4745, %v5041
  %v5292 = vadd.f32 %v4746, %v5043
  %v5293 = vadd.f32 %v4747, %v5047
  %v5294 = vadd.f32 %v4748, %v5049
  %v5295 = vadd.f32 %v4749, %v5051
  %v5296 = vadd.f32 %v4750, %v5053
  %v5297 = vadd.f32 %v4751, %v5057
  %v5298 = vadd.f32 %v4752, %v5059
  %v5299 = vadd.f32 %v4753, %v5061
  %v5300 = vadd.f32 %v4754, %v5063
  %v5301 = vadd.f32 %v4755, %v5067
  %v5302 = vadd.f32 %v4756, %v5069
  %v5303 = vadd.f32 %v4757, %v5071
  %v5304 = vadd.f32 %v4758, %v5073
  %v5305 = vadd.f32 %v4759, %v5077
  %v5306 = vadd.f32 %v4760, %v5079
  %v5307 = vadd.f32 %v4761, %v5081
  %v5308 = vadd.f32 %v4762, %v5083
  %v5309 = vadd.f32 %v4763, %v5087
  %v5310 = vadd.f32 %v4764, %v5089
  %v5311 = vadd.f32 %v4765, %v5091
  %v5312 = vadd.f32 %v4766, %v5093
  %v5313 = vadd.f32 %v4767, %v5097
  %v5314 = vadd.f32 %v4768, %v5099
  %v5315 = vadd.f32 %v4769, %v5101
  %v5316 = vadd.f32 %v4770, %v5103
  %v5317 = vadd.f32 %v4771, %v5107
  %v5318 = vadd.f32 %v4772, %v5109
  %v5319 = vadd.f32 %v4773, %v5111
  %v5320 = vadd.f32 %v4774, %v5113
  %v5321 = vadd.f32 %v4775, %v5117
  %v5322 = vadd.f32 %v4776, %v5119
  %v5323 = vadd.f32 %v4777, %v5121
  %v5324 = vadd.f32 %v4778, %v5123
  %v5325 = vadd.f32 %v4779, %v5127
  %v5326 = vadd.f32 %v4780, %v5129
  %v5327 = vadd.f32 %v4781, %v5131
  %v5328 = vadd.f32 %v4782, %v5133
  %v5329 = vadd.f32 %v4783, %v5137
  %v5330 = vadd.f32 %v4784, %v5139
  %v5331 = vadd.f32 %v4785, %v5141
  %v5332 = vadd.f32 %v4786, %v5143
  %v5333 = vadd.f32 %v4787, %v5147
  %v5334 = vadd.f32 %v4788, %v5149
  %v5335 = vadd.f32 %v4789, %v5151
  %v5336 = vadd.f32 %v4790, %v5153
  %v5337 = vadd.f32 %v4791, %v5157
  %v5338 = vadd.f32 %v4792, %v5159
  %v5339 = vadd.f32 %v4793, %v5161
  %v5340 = vadd.f32 %v4794, %v5163
  %v5341 = vadd.f32 %v4795, %v5167
  %v5342 = vadd.f32 %v4796, %v5169
  %v5343 = vadd.f32 %v4797, %v5171
  %v5344 = vadd.f32 %v4798, %v5173
  %v5345 = vadd.f32 %v4799, %v5177
  %v5346 = vadd.f32 %v4800, %v5179
  %v5347 = vadd.f32 %v4801, %v5181
  %v5348 = vadd.f32 %v4802, %v5183
  %v5349 = vadd.f32 %v4803, %v5187
  %v5350 = vadd.f32 %v4804, %v5189
  %v5351 = vadd.f32 %v4805, %v5191
  %v5352 = vadd.f32 %v4806, %v5193
  %v5353 = vadd.f32 %v4807, %v5197
  %v5354 = vadd.f32 %v4808, %v5199
  %v5355 = vadd.f32 %v4809, %v5201
  %v5356 = vadd.f32 %v4810, %v5203
  %v5357 = vadd.f32 %v4811, %v5207
  %v5358 = vadd.f32 %v4812, %v5209
  %v5359 = vadd.f32 %v4813, %v5211
  %v5360 = vadd.f32 %v4814, %v5213
  %v5361 = vadd.f32 %v4815, %v5217
  %v5362 = vadd.f32 %v4816, %v5219
  %v5363 = vadd.f32 %v4817, %v5221
  %v5364 = vadd.f32 %v4818, %v5223
  %v5365 = vadd.f32 %v4819, %v5227
  %v5366 = vadd.f32 %v4820, %v5229
  %v5367 = vadd.f32 %v4821, %v5231
  %v5368 = vadd.f32 %v4822, %v5233
  %v5369 = vadd.f32 %v4823, %v5237
  %v5370 = vadd.f32 %v4824, %v5239
  %v5371 = vadd.f32 %v4825, %v5241
  %v5372 = vadd.f32 %v4826, %v5243
  %v5374 = vshrl.u32 %v72, 16
  %v5376 = vrot.slane %v5374, 4
  %v5377 = vshll.u32 %v72, 16
  %v5379 = vrot.slane %v5377, 5
  %v5380 = vor.u32 %v5376, %v5379
  %v5381 = vrot.slane %v5380, 4
  %v5383 = vshll.u32 %v73, 16
  %v5385 = vrot.slane %v5383, 5
  %v5386 = vsel %vm139, %v5381, %v5385
  %v5387 = vshrl.u32 %v73, 16
  %v5389 = vrot.slane %v5387, 4
  %v5390 = vor.u32 %v5389, %v5385
  %v5391 = vrot.slane %v5390, 4
  %v5393 = vshll.u32 %v74, 16
  %v5395 = vrot.slane %v5393, 5
  %v5396 = vsel %vm139, %v5391, %v5395
  %v5398 = vshrl.u32 %v126, 16
  %v5400 = vrot.slane %v5398, 4
  %v5401 = vshll.u32 %v126, 16
  %v5403 = vrot.slane %v5401, 5
  %v5404 = vor.u32 %v5400, %v5403
  %v5405 = vrot.slane %v5404, 4
  %v5407 = vshll.u32 %v127, 16
  %v5409 = vrot.slane %v5407, 5
  %v5410 = vsel %vm139, %v5405, %v5409
  %v5411 = vshrl.u32 %v127, 16
  %v5413 = vrot.slane %v5411, 4
  %v5414 = vor.u32 %v5413, %v5409
  %v5415 = vrot.slane %v5414, 4
  %v5417 = vshll.u32 %v128, 16
  %v5419 = vrot.slane %v5417, 5
  %v5420 = vsel %vm139, %v5415, %v5419
  %s5421 = scalar_lea.vmem %s1, 448
  %v5422 = vld [vmem:[%s5421] sm:$0xff]
  %v5423 = vld [vmem:[%s5421 + $0x8] sm:$0xff]
  %v5424 = vld [vmem:[%s5421 + $0x10] sm:$0xff]
  %v5425 = vld [vmem:[%s5421 + $0x18] sm:$0xff]
  %v5426 = vld [vmem:[%s5421 + $0x20] sm:$0xff]
  %v5427 = vld [vmem:[%s5421 + $0x28] sm:$0xff]
  %v5428 = vld [vmem:[%s5421 + $0x30] sm:$0xff]
  %v5429 = vld [vmem:[%s5421 + $0x38] sm:$0xff]
  %v5430 = vunpack.c.l.b16 %v5386
  %v5431 = vunpack.c.l.b16 %v5396
  %v5432 = vunpack.c.l.b16 %v5410
  %v5433 = vunpack.c.l.b16 %v5420
  %v5434 = vpack.c.b16 %v5431, %v5430
  %v5435 = vpack.c.b16 %v5433, %v5432
  %v5444 = vunpack.c.l.b16 %v5422
  %v5445 = vunpack.c.h.b16 %v5422
  %v5446 = vunpack.c.l.b16 %v5423
  %v5447 = vunpack.c.h.b16 %v5423
  %v5448 = vunpack.c.l.b16 %v5424
  %v5449 = vunpack.c.h.b16 %v5424
  %v5450 = vunpack.c.l.b16 %v5425
  %v5451 = vunpack.c.h.b16 %v5425
  %v5452 = vunpack.c.l.b16 %v5426
  %v5453 = vunpack.c.h.b16 %v5426
  %v5454 = vunpack.c.l.b16 %v5427
  %v5455 = vunpack.c.h.b16 %v5427
  %v5456 = vunpack.c.l.b16 %v5428
  %v5457 = vunpack.c.h.b16 %v5428
  %v5458 = vunpack.c.l.b16 %v5429
  %v5459 = vunpack.c.h.b16 %v5429
  %v5460 = vpack.c.b16 %v5446, %v5444
  %v5461 = vpack.c.b16 %v5447, %v5445
  %v5462 = vpack.c.b16 %v5450, %v5448
  %v5463 = vpack.c.b16 %v5451, %v5449
  %v5464 = vpack.c.b16 %v5454, %v5452
  %v5465 = vpack.c.b16 %v5455, %v5453
  %v5466 = vpack.c.b16 %v5458, %v5456
  %v5467 = vpack.c.b16 %v5459, %v5457
  %v5477 = vsel %vm1053, %v5434, 0
  %v5480 = vsel %vm1053, %v5435, 0
  %5482 = vmatprep.subr.bf16.mxu0 0
  %5483 = vmatpush1.bf16.msra.mxu0 0
  %5484 = vmatprep.subr.bf16.mxu0 0
  %5485 = vmatpush1.bf16.msra.mxu0 0
  %5486 = vmatprep.subr.bf16.mxu0 0
  %5487 = vmatpush1.bf16.msra.mxu0 0
  %5488 = vmatprep.subr.bf16.mxu0 0
  %5489 = vmatpush1.bf16.msra.mxu0 0
  %5490 = vmatprep.subr.bf16.mxu0 %v5467
  %5491 = vmatpush1.bf16.msra.mxu0 %v5466
  %5492 = vmatprep.subr.bf16.mxu0 %v5465
  %5493 = vmatpush1.bf16.msra.mxu0 %v5464
  %5494 = vmatprep.subr.bf16.mxu0 %v5463
  %5495 = vmatpush1.bf16.msra.mxu0 %v5462
  %5496 = vmatprep.subr.bf16.mxu0 %v5461
  %5497 = vmatpush1.bf16.msra.mxu0 %v5460
  %5498 = vmatprep.subr.bf16.mxu0 0
  %5499 = vmatpush2.bf16.msra.mxu0 0
  %5500 = vmatprep.subr.bf16.mxu0 0
  %5501 = vmatpush2.bf16.msra.mxu0 0
  %5502 = vmatprep.subr.bf16.mxu0 0
  %5503 = vmatpush2.bf16.msra.mxu0 0
  %5504 = vmatprep.subr.bf16.mxu0 0
  %5505 = vmatpush2.bf16.msra.mxu0 0
  %5506 = vmatprep.subr.bf16.mxu0 0
  %5507 = vmatpush2.bf16.msra.mxu0 0
  %5508 = vmatprep.subr.bf16.mxu0 0
  %5509 = vmatpush2.bf16.msra.mxu0 0
  %5510 = vmatprep.subr.bf16.mxu0 0
  %5511 = vmatpush2.bf16.msra.mxu0 0
  %5512 = vmatprep.subr.bf16.mxu0 0
  %5513 = vmatpush2.bf16.msra.mxu0 0
  %5514 = vmatprep.mubr.bf16.mxu0 0
  %5515 = vmatmul.mubr.bf16.gmra.mxu0 %v1061
  %v5516 = vpop.f32.mrf.mxu0
  %v5517 = vadd.f32 0.0, %v5516
  %v5518 = vpop.f32.mrf.mxu0
  %v5519 = vadd.f32 0.0, %v5518
  %v5520 = vpop.f32.mrf.mxu0
  %v5521 = vadd.f32 0.0, %v5520
  %v5522 = vpop.f32.mrf.mxu0
  %v5523 = vadd.f32 0.0, %v5522
  %5524 = vmatprep.mubr.bf16.mxu0 0
  %5525 = vmatmul.mubr.bf16.gmra.mxu0 %v1064
  %v5526 = vpop.f32.mrf.mxu0
  %v5527 = vadd.f32 0.0, %v5526
  %v5528 = vpop.f32.mrf.mxu0
  %v5529 = vadd.f32 0.0, %v5528
  %v5530 = vpop.f32.mrf.mxu0
  %v5531 = vadd.f32 0.0, %v5530
  %v5532 = vpop.f32.mrf.mxu0
  %v5533 = vadd.f32 0.0, %v5532
  %5534 = vmatprep.mubr.bf16.mxu0 0
  %5535 = vmatmul.mubr.bf16.gmra.mxu0 %v1067
  %v5536 = vpop.f32.mrf.mxu0
  %v5537 = vadd.f32 0.0, %v5536
  %v5538 = vpop.f32.mrf.mxu0
  %v5539 = vadd.f32 0.0, %v5538
  %v5540 = vpop.f32.mrf.mxu0
  %v5541 = vadd.f32 0.0, %v5540
  %v5542 = vpop.f32.mrf.mxu0
  %v5543 = vadd.f32 0.0, %v5542
  %5544 = vmatprep.mubr.bf16.mxu0 0
  %5545 = vmatmul.mubr.bf16.gmra.mxu0 %v1070
  %v5546 = vpop.f32.mrf.mxu0
  %v5547 = vadd.f32 0.0, %v5546
  %v5548 = vpop.f32.mrf.mxu0
  %v5549 = vadd.f32 0.0, %v5548
  %v5550 = vpop.f32.mrf.mxu0
  %v5551 = vadd.f32 0.0, %v5550
  %v5552 = vpop.f32.mrf.mxu0
  %v5553 = vadd.f32 0.0, %v5552
  %5554 = vmatprep.mubr.bf16.mxu0 0
  %5555 = vmatmul.mubr.bf16.gmra.mxu0 %v1073
  %v5556 = vpop.f32.mrf.mxu0
  %v5557 = vadd.f32 0.0, %v5556
  %v5558 = vpop.f32.mrf.mxu0
  %v5559 = vadd.f32 0.0, %v5558
  %v5560 = vpop.f32.mrf.mxu0
  %v5561 = vadd.f32 0.0, %v5560
  %v5562 = vpop.f32.mrf.mxu0
  %v5563 = vadd.f32 0.0, %v5562
  %5564 = vmatprep.mubr.bf16.mxu0 0
  %5565 = vmatmul.mubr.bf16.gmra.mxu0 %v1076
  %v5566 = vpop.f32.mrf.mxu0
  %v5567 = vadd.f32 0.0, %v5566
  %v5568 = vpop.f32.mrf.mxu0
  %v5569 = vadd.f32 0.0, %v5568
  %v5570 = vpop.f32.mrf.mxu0
  %v5571 = vadd.f32 0.0, %v5570
  %v5572 = vpop.f32.mrf.mxu0
  %v5573 = vadd.f32 0.0, %v5572
  %5574 = vmatprep.mubr.bf16.mxu0 0
  %5575 = vmatmul.mubr.bf16.gmra.mxu0 %v1079
  %v5576 = vpop.f32.mrf.mxu0
  %v5577 = vadd.f32 0.0, %v5576
  %v5578 = vpop.f32.mrf.mxu0
  %v5579 = vadd.f32 0.0, %v5578
  %v5580 = vpop.f32.mrf.mxu0
  %v5581 = vadd.f32 0.0, %v5580
  %v5582 = vpop.f32.mrf.mxu0
  %v5583 = vadd.f32 0.0, %v5582
  %5584 = vmatprep.mubr.bf16.mxu0 0
  %5585 = vmatmul.mubr.bf16.gmra.mxu0 %v1082
  %v5586 = vpop.f32.mrf.mxu0
  %v5587 = vadd.f32 0.0, %v5586
  %v5588 = vpop.f32.mrf.mxu0
  %v5589 = vadd.f32 0.0, %v5588
  %v5590 = vpop.f32.mrf.mxu0
  %v5591 = vadd.f32 0.0, %v5590
  %v5592 = vpop.f32.mrf.mxu0
  %v5593 = vadd.f32 0.0, %v5592
  %5594 = vmatprep.mubr.bf16.mxu0 0
  %5595 = vmatmul.mubr.bf16.gmra.mxu0 %v1085
  %v5596 = vpop.f32.mrf.mxu0
  %v5597 = vadd.f32 0.0, %v5596
  %v5598 = vpop.f32.mrf.mxu0
  %v5599 = vadd.f32 0.0, %v5598
  %v5600 = vpop.f32.mrf.mxu0
  %v5601 = vadd.f32 0.0, %v5600
  %v5602 = vpop.f32.mrf.mxu0
  %v5603 = vadd.f32 0.0, %v5602
  %5604 = vmatprep.mubr.bf16.mxu0 0
  %5605 = vmatmul.mubr.bf16.gmra.mxu0 %v1088
  %v5606 = vpop.f32.mrf.mxu0
  %v5607 = vadd.f32 0.0, %v5606
  %v5608 = vpop.f32.mrf.mxu0
  %v5609 = vadd.f32 0.0, %v5608
  %v5610 = vpop.f32.mrf.mxu0
  %v5611 = vadd.f32 0.0, %v5610
  %v5612 = vpop.f32.mrf.mxu0
  %v5613 = vadd.f32 0.0, %v5612
  %5614 = vmatprep.mubr.bf16.mxu0 0
  %5615 = vmatmul.mubr.bf16.gmra.mxu0 %v1091
  %v5616 = vpop.f32.mrf.mxu0
  %v5617 = vadd.f32 0.0, %v5616
  %v5618 = vpop.f32.mrf.mxu0
  %v5619 = vadd.f32 0.0, %v5618
  %v5620 = vpop.f32.mrf.mxu0
  %v5621 = vadd.f32 0.0, %v5620
  %v5622 = vpop.f32.mrf.mxu0
  %v5623 = vadd.f32 0.0, %v5622
  %5624 = vmatprep.mubr.bf16.mxu0 0
  %5625 = vmatmul.mubr.bf16.gmra.mxu0 %v1094
  %v5626 = vpop.f32.mrf.mxu0
  %v5627 = vadd.f32 0.0, %v5626
  %v5628 = vpop.f32.mrf.mxu0
  %v5629 = vadd.f32 0.0, %v5628
  %v5630 = vpop.f32.mrf.mxu0
  %v5631 = vadd.f32 0.0, %v5630
  %v5632 = vpop.f32.mrf.mxu0
  %v5633 = vadd.f32 0.0, %v5632
  %5634 = vmatprep.mubr.bf16.mxu0 0
  %5635 = vmatmul.mubr.bf16.gmra.mxu0 %v1097
  %v5636 = vpop.f32.mrf.mxu0
  %v5637 = vadd.f32 0.0, %v5636
  %v5638 = vpop.f32.mrf.mxu0
  %v5639 = vadd.f32 0.0, %v5638
  %v5640 = vpop.f32.mrf.mxu0
  %v5641 = vadd.f32 0.0, %v5640
  %v5642 = vpop.f32.mrf.mxu0
  %v5643 = vadd.f32 0.0, %v5642
  %5644 = vmatprep.mubr.bf16.mxu0 0
  %5645 = vmatmul.mubr.bf16.gmra.mxu0 %v1100
  %v5646 = vpop.f32.mrf.mxu0
  %v5647 = vadd.f32 0.0, %v5646
  %v5648 = vpop.f32.mrf.mxu0
  %v5649 = vadd.f32 0.0, %v5648
  %v5650 = vpop.f32.mrf.mxu0
  %v5651 = vadd.f32 0.0, %v5650
  %v5652 = vpop.f32.mrf.mxu0
  %v5653 = vadd.f32 0.0, %v5652
  %5654 = vmatprep.mubr.bf16.mxu0 0
  %5655 = vmatmul.mubr.bf16.gmra.mxu0 %v3783
  %v5656 = vpop.f32.mrf.mxu0
  %v5657 = vadd.f32 0.0, %v5656
  %v5658 = vpop.f32.mrf.mxu0
  %v5659 = vadd.f32 0.0, %v5658
  %v5660 = vpop.f32.mrf.mxu0
  %v5661 = vadd.f32 0.0, %v5660
  %v5662 = vpop.f32.mrf.mxu0
  %v5663 = vadd.f32 0.0, %v5662
  %5664 = vmatprep.mubr.bf16.mxu0 0
  %5665 = vmatmul.mubr.bf16.gmra.mxu0 %v5477
  %v5666 = vpop.f32.mrf.mxu0
  %v5667 = vadd.f32 0.0, %v5666
  %v5668 = vpop.f32.mrf.mxu0
  %v5669 = vadd.f32 0.0, %v5668
  %v5670 = vpop.f32.mrf.mxu0
  %v5671 = vadd.f32 0.0, %v5670
  %v5672 = vpop.f32.mrf.mxu0
  %v5673 = vadd.f32 0.0, %v5672
  %5674 = vmatprep.mubr.bf16.mxu0 0
  %5675 = vmatmul.mubr.bf16.gmra.mxu0 %v1109
  %v5676 = vpop.f32.mrf.mxu0
  %v5677 = vadd.f32 0.0, %v5676
  %v5678 = vpop.f32.mrf.mxu0
  %v5679 = vadd.f32 0.0, %v5678
  %v5680 = vpop.f32.mrf.mxu0
  %v5681 = vadd.f32 0.0, %v5680
  %v5682 = vpop.f32.mrf.mxu0
  %v5683 = vadd.f32 0.0, %v5682
  %5684 = vmatprep.mubr.bf16.mxu0 0
  %5685 = vmatmul.mubr.bf16.gmra.mxu0 %v1112
  %v5686 = vpop.f32.mrf.mxu0
  %v5687 = vadd.f32 0.0, %v5686
  %v5688 = vpop.f32.mrf.mxu0
  %v5689 = vadd.f32 0.0, %v5688
  %v5690 = vpop.f32.mrf.mxu0
  %v5691 = vadd.f32 0.0, %v5690
  %v5692 = vpop.f32.mrf.mxu0
  %v5693 = vadd.f32 0.0, %v5692
  %5694 = vmatprep.mubr.bf16.mxu0 0
  %5695 = vmatmul.mubr.bf16.gmra.mxu0 %v1115
  %v5696 = vpop.f32.mrf.mxu0
  %v5697 = vadd.f32 0.0, %v5696
  %v5698 = vpop.f32.mrf.mxu0
  %v5699 = vadd.f32 0.0, %v5698
  %v5700 = vpop.f32.mrf.mxu0
  %v5701 = vadd.f32 0.0, %v5700
  %v5702 = vpop.f32.mrf.mxu0
  %v5703 = vadd.f32 0.0, %v5702
  %5704 = vmatprep.mubr.bf16.mxu0 0
  %5705 = vmatmul.mubr.bf16.gmra.mxu0 %v1118
  %v5706 = vpop.f32.mrf.mxu0
  %v5707 = vadd.f32 0.0, %v5706
  %v5708 = vpop.f32.mrf.mxu0
  %v5709 = vadd.f32 0.0, %v5708
  %v5710 = vpop.f32.mrf.mxu0
  %v5711 = vadd.f32 0.0, %v5710
  %v5712 = vpop.f32.mrf.mxu0
  %v5713 = vadd.f32 0.0, %v5712
  %5714 = vmatprep.mubr.bf16.mxu0 0
  %5715 = vmatmul.mubr.bf16.gmra.mxu0 %v1121
  %v5716 = vpop.f32.mrf.mxu0
  %v5717 = vadd.f32 0.0, %v5716
  %v5718 = vpop.f32.mrf.mxu0
  %v5719 = vadd.f32 0.0, %v5718
  %v5720 = vpop.f32.mrf.mxu0
  %v5721 = vadd.f32 0.0, %v5720
  %v5722 = vpop.f32.mrf.mxu0
  %v5723 = vadd.f32 0.0, %v5722
  %5724 = vmatprep.mubr.bf16.mxu0 0
  %5725 = vmatmul.mubr.bf16.gmra.mxu0 %v1124
  %v5726 = vpop.f32.mrf.mxu0
  %v5727 = vadd.f32 0.0, %v5726
  %v5728 = vpop.f32.mrf.mxu0
  %v5729 = vadd.f32 0.0, %v5728
  %v5730 = vpop.f32.mrf.mxu0
  %v5731 = vadd.f32 0.0, %v5730
  %v5732 = vpop.f32.mrf.mxu0
  %v5733 = vadd.f32 0.0, %v5732
  %5734 = vmatprep.mubr.bf16.mxu0 0
  %5735 = vmatmul.mubr.bf16.gmra.mxu0 %v1127
  %v5736 = vpop.f32.mrf.mxu0
  %v5737 = vadd.f32 0.0, %v5736
  %v5738 = vpop.f32.mrf.mxu0
  %v5739 = vadd.f32 0.0, %v5738
  %v5740 = vpop.f32.mrf.mxu0
  %v5741 = vadd.f32 0.0, %v5740
  %v5742 = vpop.f32.mrf.mxu0
  %v5743 = vadd.f32 0.0, %v5742
  %5744 = vmatprep.mubr.bf16.mxu0 0
  %5745 = vmatmul.mubr.bf16.gmra.mxu0 %v1130
  %v5746 = vpop.f32.mrf.mxu0
  %v5747 = vadd.f32 0.0, %v5746
  %v5748 = vpop.f32.mrf.mxu0
  %v5749 = vadd.f32 0.0, %v5748
  %v5750 = vpop.f32.mrf.mxu0
  %v5751 = vadd.f32 0.0, %v5750
  %v5752 = vpop.f32.mrf.mxu0
  %v5753 = vadd.f32 0.0, %v5752
  %5754 = vmatprep.mubr.bf16.mxu0 0
  %5755 = vmatmul.mubr.bf16.gmra.mxu0 %v1133
  %v5756 = vpop.f32.mrf.mxu0
  %v5757 = vadd.f32 0.0, %v5756
  %v5758 = vpop.f32.mrf.mxu0
  %v5759 = vadd.f32 0.0, %v5758
  %v5760 = vpop.f32.mrf.mxu0
  %v5761 = vadd.f32 0.0, %v5760
  %v5762 = vpop.f32.mrf.mxu0
  %v5763 = vadd.f32 0.0, %v5762
  %5764 = vmatprep.mubr.bf16.mxu0 0
  %5765 = vmatmul.mubr.bf16.gmra.mxu0 %v1136
  %v5766 = vpop.f32.mrf.mxu0
  %v5767 = vadd.f32 0.0, %v5766
  %v5768 = vpop.f32.mrf.mxu0
  %v5769 = vadd.f32 0.0, %v5768
  %v5770 = vpop.f32.mrf.mxu0
  %v5771 = vadd.f32 0.0, %v5770
  %v5772 = vpop.f32.mrf.mxu0
  %v5773 = vadd.f32 0.0, %v5772
  %5774 = vmatprep.mubr.bf16.mxu0 0
  %5775 = vmatmul.mubr.bf16.gmra.mxu0 %v1139
  %v5776 = vpop.f32.mrf.mxu0
  %v5777 = vadd.f32 0.0, %v5776
  %v5778 = vpop.f32.mrf.mxu0
  %v5779 = vadd.f32 0.0, %v5778
  %v5780 = vpop.f32.mrf.mxu0
  %v5781 = vadd.f32 0.0, %v5780
  %v5782 = vpop.f32.mrf.mxu0
  %v5783 = vadd.f32 0.0, %v5782
  %5784 = vmatprep.mubr.bf16.mxu0 0
  %5785 = vmatmul.mubr.bf16.gmra.mxu0 %v1142
  %v5786 = vpop.f32.mrf.mxu0
  %v5787 = vadd.f32 0.0, %v5786
  %v5788 = vpop.f32.mrf.mxu0
  %v5789 = vadd.f32 0.0, %v5788
  %v5790 = vpop.f32.mrf.mxu0
  %v5791 = vadd.f32 0.0, %v5790
  %v5792 = vpop.f32.mrf.mxu0
  %v5793 = vadd.f32 0.0, %v5792
  %5794 = vmatprep.mubr.bf16.mxu0 0
  %5795 = vmatmul.mubr.bf16.gmra.mxu0 %v1145
  %v5796 = vpop.f32.mrf.mxu0
  %v5797 = vadd.f32 0.0, %v5796
  %v5798 = vpop.f32.mrf.mxu0
  %v5799 = vadd.f32 0.0, %v5798
  %v5800 = vpop.f32.mrf.mxu0
  %v5801 = vadd.f32 0.0, %v5800
  %v5802 = vpop.f32.mrf.mxu0
  %v5803 = vadd.f32 0.0, %v5802
  %5804 = vmatprep.mubr.bf16.mxu0 0
  %5805 = vmatmul.mubr.bf16.gmra.mxu0 %v1148
  %v5806 = vpop.f32.mrf.mxu0
  %v5807 = vadd.f32 0.0, %v5806
  %v5808 = vpop.f32.mrf.mxu0
  %v5809 = vadd.f32 0.0, %v5808
  %v5810 = vpop.f32.mrf.mxu0
  %v5811 = vadd.f32 0.0, %v5810
  %v5812 = vpop.f32.mrf.mxu0
  %v5813 = vadd.f32 0.0, %v5812
  %5814 = vmatprep.mubr.bf16.mxu0 0
  %5815 = vmatmul.mubr.bf16.gmra.mxu0 %v3786
  %v5816 = vpop.f32.mrf.mxu0
  %v5817 = vadd.f32 0.0, %v5816
  %v5818 = vpop.f32.mrf.mxu0
  %v5819 = vadd.f32 0.0, %v5818
  %v5820 = vpop.f32.mrf.mxu0
  %v5821 = vadd.f32 0.0, %v5820
  %v5822 = vpop.f32.mrf.mxu0
  %v5823 = vadd.f32 0.0, %v5822
  %5824 = vmatprep.mubr.bf16.mxu0 0
  %5825 = vmatmul.mubr.bf16.gmra.mxu0 %v5480
  %v5826 = vpop.f32.mrf.mxu0
  %v5827 = vadd.f32 0.0, %v5826
  %v5828 = vpop.f32.mrf.mxu0
  %v5829 = vadd.f32 0.0, %v5828
  %v5830 = vpop.f32.mrf.mxu0
  %v5831 = vadd.f32 0.0, %v5830
  %v5832 = vpop.f32.mrf.mxu0
  %v5833 = vadd.f32 0.0, %v5832
  %5834 = vdwg.mxu0
  %v5835 = vadd.f32 %v5245, %v5517
  %v5836 = vadd.f32 %v5246, %v5519
  %v5837 = vadd.f32 %v5247, %v5521
  %v5838 = vadd.f32 %v5248, %v5523
  %v5839 = vadd.f32 %v5249, %v5527
  %v5840 = vadd.f32 %v5250, %v5529
  %v5841 = vadd.f32 %v5251, %v5531
  %v5842 = vadd.f32 %v5252, %v5533
  %v5843 = vadd.f32 %v5253, %v5537
  %v5844 = vadd.f32 %v5254, %v5539
  %v5845 = vadd.f32 %v5255, %v5541
  %v5846 = vadd.f32 %v5256, %v5543
  %v5847 = vadd.f32 %v5257, %v5547
  %v5848 = vadd.f32 %v5258, %v5549
  %v5849 = vadd.f32 %v5259, %v5551
  %v5850 = vadd.f32 %v5260, %v5553
  %v5851 = vadd.f32 %v5261, %v5557
  %v5852 = vadd.f32 %v5262, %v5559
  %v5853 = vadd.f32 %v5263, %v5561
  %v5854 = vadd.f32 %v5264, %v5563
  %v5855 = vadd.f32 %v5265, %v5567
  %v5856 = vadd.f32 %v5266, %v5569
  %v5857 = vadd.f32 %v5267, %v5571
  %v5858 = vadd.f32 %v5268, %v5573
  %v5859 = vadd.f32 %v5269, %v5577
  %v5860 = vadd.f32 %v5270, %v5579
  %v5861 = vadd.f32 %v5271, %v5581
  %v5862 = vadd.f32 %v5272, %v5583
  %v5863 = vadd.f32 %v5273, %v5587
  %v5864 = vadd.f32 %v5274, %v5589
  %v5865 = vadd.f32 %v5275, %v5591
  %v5866 = vadd.f32 %v5276, %v5593
  %v5867 = vadd.f32 %v5277, %v5597
  %v5868 = vadd.f32 %v5278, %v5599
  %v5869 = vadd.f32 %v5279, %v5601
  %v5870 = vadd.f32 %v5280, %v5603
  %v5871 = vadd.f32 %v5281, %v5607
  %v5872 = vadd.f32 %v5282, %v5609
  %v5873 = vadd.f32 %v5283, %v5611
  %v5874 = vadd.f32 %v5284, %v5613
  %v5875 = vadd.f32 %v5285, %v5617
  %v5876 = vadd.f32 %v5286, %v5619
  %v5877 = vadd.f32 %v5287, %v5621
  %v5878 = vadd.f32 %v5288, %v5623
  %v5879 = vadd.f32 %v5289, %v5627
  %v5880 = vadd.f32 %v5290, %v5629
  %v5881 = vadd.f32 %v5291, %v5631
  %v5882 = vadd.f32 %v5292, %v5633
  %v5883 = vadd.f32 %v5293, %v5637
  %v5884 = vadd.f32 %v5294, %v5639
  %v5885 = vadd.f32 %v5295, %v5641
  %v5886 = vadd.f32 %v5296, %v5643
  %v5887 = vadd.f32 %v5297, %v5647
  %v5888 = vadd.f32 %v5298, %v5649
  %v5889 = vadd.f32 %v5299, %v5651
  %v5890 = vadd.f32 %v5300, %v5653
  %v5891 = vadd.f32 %v5301, %v5657
  %v5892 = vadd.f32 %v5302, %v5659
  %v5893 = vadd.f32 %v5303, %v5661
  %v5894 = vadd.f32 %v5304, %v5663
  %v5895 = vadd.f32 %v5305, %v5667
  %v5896 = vadd.f32 %v5306, %v5669
  %v5897 = vadd.f32 %v5307, %v5671
  %v5898 = vadd.f32 %v5308, %v5673
  %v5899 = vadd.f32 %v5309, %v5677
  %v5900 = vadd.f32 %v5310, %v5679
  %v5901 = vadd.f32 %v5311, %v5681
  %v5902 = vadd.f32 %v5312, %v5683
  %v5903 = vadd.f32 %v5313, %v5687
  %v5904 = vadd.f32 %v5314, %v5689
  %v5905 = vadd.f32 %v5315, %v5691
  %v5906 = vadd.f32 %v5316, %v5693
  %v5907 = vadd.f32 %v5317, %v5697
  %v5908 = vadd.f32 %v5318, %v5699
  %v5909 = vadd.f32 %v5319, %v5701
  %v5910 = vadd.f32 %v5320, %v5703
  %v5911 = vadd.f32 %v5321, %v5707
  %v5912 = vadd.f32 %v5322, %v5709
  %v5913 = vadd.f32 %v5323, %v5711
  %v5914 = vadd.f32 %v5324, %v5713
  %v5915 = vadd.f32 %v5325, %v5717
  %v5916 = vadd.f32 %v5326, %v5719
  %v5917 = vadd.f32 %v5327, %v5721
  %v5918 = vadd.f32 %v5328, %v5723
  %v5919 = vadd.f32 %v5329, %v5727
  %v5920 = vadd.f32 %v5330, %v5729
  %v5921 = vadd.f32 %v5331, %v5731
  %v5922 = vadd.f32 %v5332, %v5733
  %v5923 = vadd.f32 %v5333, %v5737
  %v5924 = vadd.f32 %v5334, %v5739
  %v5925 = vadd.f32 %v5335, %v5741
  %v5926 = vadd.f32 %v5336, %v5743
  %v5927 = vadd.f32 %v5337, %v5747
  %v5928 = vadd.f32 %v5338, %v5749
  %v5929 = vadd.f32 %v5339, %v5751
  %v5930 = vadd.f32 %v5340, %v5753
  %v5931 = vadd.f32 %v5341, %v5757
  %v5932 = vadd.f32 %v5342, %v5759
  %v5933 = vadd.f32 %v5343, %v5761
  %v5934 = vadd.f32 %v5344, %v5763
  %v5935 = vadd.f32 %v5345, %v5767
  %v5936 = vadd.f32 %v5346, %v5769
  %v5937 = vadd.f32 %v5347, %v5771
  %v5938 = vadd.f32 %v5348, %v5773
  %v5939 = vadd.f32 %v5349, %v5777
  %v5940 = vadd.f32 %v5350, %v5779
  %v5941 = vadd.f32 %v5351, %v5781
  %v5942 = vadd.f32 %v5352, %v5783
  %v5943 = vadd.f32 %v5353, %v5787
  %v5944 = vadd.f32 %v5354, %v5789
  %v5945 = vadd.f32 %v5355, %v5791
  %v5946 = vadd.f32 %v5356, %v5793
  %v5947 = vadd.f32 %v5357, %v5797
  %v5948 = vadd.f32 %v5358, %v5799
  %v5949 = vadd.f32 %v5359, %v5801
  %v5950 = vadd.f32 %v5360, %v5803
  %v5951 = vadd.f32 %v5361, %v5807
  %v5952 = vadd.f32 %v5362, %v5809
  %v5953 = vadd.f32 %v5363, %v5811
  %v5954 = vadd.f32 %v5364, %v5813
  %v5955 = vadd.f32 %v5365, %v5817
  %v5956 = vadd.f32 %v5366, %v5819
  %v5957 = vadd.f32 %v5367, %v5821
  %v5958 = vadd.f32 %v5368, %v5823
  %v5959 = vadd.f32 %v5369, %v5827
  %v5960 = vadd.f32 %v5370, %v5829
  %v5961 = vadd.f32 %v5371, %v5831
  %v5962 = vadd.f32 %v5372, %v5833
  %v5965 = vrot.slane %v72, 5
  %v5966 = vrot.slane %v5965, 4
  %v5967 = vrot.slane %v73, 5
  %v5968 = vsel %vm2186, %v5966, %v5967
  %v5969 = vrot.slane %v5967, 4
  %v5970 = vrot.slane %v74, 5
  %v5971 = vsel %vm2186, %v5969, %v5970
  %v5972 = vrot.slane %v126, 5
  %v5973 = vrot.slane %v5972, 4
  %v5974 = vrot.slane %v127, 5
  %v5975 = vsel %vm2186, %v5973, %v5974
  %v5976 = vrot.slane %v5974, 4
  %v5977 = vrot.slane %v128, 5
  %v5978 = vsel %vm2186, %v5976, %v5977
  %s5979 = scalar_lea.vmem %s1, 512
  %v5980 = vld [vmem:[%s5979] sm:$0xff]
  %v5981 = vld [vmem:[%s5979 + $0x8] sm:$0xff]
  %v5982 = vld [vmem:[%s5979 + $0x10] sm:$0xff]
  %v5983 = vld [vmem:[%s5979 + $0x18] sm:$0xff]
  %v5984 = vld [vmem:[%s5979 + $0x20] sm:$0xff]
  %v5985 = vld [vmem:[%s5979 + $0x28] sm:$0xff]
  %v5986 = vld [vmem:[%s5979 + $0x30] sm:$0xff]
  %v5987 = vld [vmem:[%s5979 + $0x38] sm:$0xff]
  %v5988 = vunpack.c.l.b16 %v5968
  %v5989 = vunpack.c.l.b16 %v5971
  %v5990 = vunpack.c.l.b16 %v5975
  %v5991 = vunpack.c.l.b16 %v5978
  %v5992 = vpack.c.b16 %v5989, %v5988
  %v5993 = vpack.c.b16 %v5991, %v5990
  %v6002 = vunpack.c.l.b16 %v5980
  %v6003 = vunpack.c.h.b16 %v5980
  %v6004 = vunpack.c.l.b16 %v5981
  %v6005 = vunpack.c.h.b16 %v5981
  %v6006 = vunpack.c.l.b16 %v5982
  %v6007 = vunpack.c.h.b16 %v5982
  %v6008 = vunpack.c.l.b16 %v5983
  %v6009 = vunpack.c.h.b16 %v5983
  %v6010 = vunpack.c.l.b16 %v5984
  %v6011 = vunpack.c.h.b16 %v5984
  %v6012 = vunpack.c.l.b16 %v5985
  %v6013 = vunpack.c.h.b16 %v5985
  %v6014 = vunpack.c.l.b16 %v5986
  %v6015 = vunpack.c.h.b16 %v5986
  %v6016 = vunpack.c.l.b16 %v5987
  %v6017 = vunpack.c.h.b16 %v5987
  %v6018 = vpack.c.b16 %v6004, %v6002
  %v6019 = vpack.c.b16 %v6005, %v6003
  %v6020 = vpack.c.b16 %v6008, %v6006
  %v6021 = vpack.c.b16 %v6009, %v6007
  %v6022 = vpack.c.b16 %v6012, %v6010
  %v6023 = vpack.c.b16 %v6013, %v6011
  %v6024 = vpack.c.b16 %v6016, %v6014
  %v6025 = vpack.c.b16 %v6017, %v6015
  %v6035 = vsel %vm1053, %v5992, 0
  %v6038 = vsel %vm1053, %v5993, 0
  %6040 = vmatprep.subr.bf16.mxu0 0
  %6041 = vmatpush1.bf16.msra.mxu0 0
  %6042 = vmatprep.subr.bf16.mxu0 0
  %6043 = vmatpush1.bf16.msra.mxu0 0
  %6044 = vmatprep.subr.bf16.mxu0 0
  %6045 = vmatpush1.bf16.msra.mxu0 0
  %6046 = vmatprep.subr.bf16.mxu0 0
  %6047 = vmatpush1.bf16.msra.mxu0 0
  %6048 = vmatprep.subr.bf16.mxu0 %v6025
  %6049 = vmatpush1.bf16.msra.mxu0 %v6024
  %6050 = vmatprep.subr.bf16.mxu0 %v6023
  %6051 = vmatpush1.bf16.msra.mxu0 %v6022
  %6052 = vmatprep.subr.bf16.mxu0 %v6021
  %6053 = vmatpush1.bf16.msra.mxu0 %v6020
  %6054 = vmatprep.subr.bf16.mxu0 %v6019
  %6055 = vmatpush1.bf16.msra.mxu0 %v6018
  %6056 = vmatprep.subr.bf16.mxu0 0
  %6057 = vmatpush2.bf16.msra.mxu0 0
  %6058 = vmatprep.subr.bf16.mxu0 0
  %6059 = vmatpush2.bf16.msra.mxu0 0
  %6060 = vmatprep.subr.bf16.mxu0 0
  %6061 = vmatpush2.bf16.msra.mxu0 0
  %6062 = vmatprep.subr.bf16.mxu0 0
  %6063 = vmatpush2.bf16.msra.mxu0 0
  %6064 = vmatprep.subr.bf16.mxu0 0
  %6065 = vmatpush2.bf16.msra.mxu0 0
  %6066 = vmatprep.subr.bf16.mxu0 0
  %6067 = vmatpush2.bf16.msra.mxu0 0
  %6068 = vmatprep.subr.bf16.mxu0 0
  %6069 = vmatpush2.bf16.msra.mxu0 0
  %6070 = vmatprep.subr.bf16.mxu0 0
  %6071 = vmatpush2.bf16.msra.mxu0 0
  %6072 = vmatprep.mubr.bf16.mxu0 0
  %6073 = vmatmul.mubr.bf16.gmra.mxu0 %v2563
  %v6074 = vpop.f32.mrf.mxu0
  %v6075 = vadd.f32 0.0, %v6074
  %v6076 = vpop.f32.mrf.mxu0
  %v6077 = vadd.f32 0.0, %v6076
  %v6078 = vpop.f32.mrf.mxu0
  %v6079 = vadd.f32 0.0, %v6078
  %v6080 = vpop.f32.mrf.mxu0
  %v6081 = vadd.f32 0.0, %v6080
  %6082 = vmatprep.mubr.bf16.mxu0 0
  %6083 = vmatmul.mubr.bf16.gmra.mxu0 %v2566
  %v6084 = vpop.f32.mrf.mxu0
  %v6085 = vadd.f32 0.0, %v6084
  %v6086 = vpop.f32.mrf.mxu0
  %v6087 = vadd.f32 0.0, %v6086
  %v6088 = vpop.f32.mrf.mxu0
  %v6089 = vadd.f32 0.0, %v6088
  %v6090 = vpop.f32.mrf.mxu0
  %v6091 = vadd.f32 0.0, %v6090
  %6092 = vmatprep.mubr.bf16.mxu0 0
  %6093 = vmatmul.mubr.bf16.gmra.mxu0 %v2569
  %v6094 = vpop.f32.mrf.mxu0
  %v6095 = vadd.f32 0.0, %v6094
  %v6096 = vpop.f32.mrf.mxu0
  %v6097 = vadd.f32 0.0, %v6096
  %v6098 = vpop.f32.mrf.mxu0
  %v6099 = vadd.f32 0.0, %v6098
  %v6100 = vpop.f32.mrf.mxu0
  %v6101 = vadd.f32 0.0, %v6100
  %6102 = vmatprep.mubr.bf16.mxu0 0
  %6103 = vmatmul.mubr.bf16.gmra.mxu0 %v2572
  %v6104 = vpop.f32.mrf.mxu0
  %v6105 = vadd.f32 0.0, %v6104
  %v6106 = vpop.f32.mrf.mxu0
  %v6107 = vadd.f32 0.0, %v6106
  %v6108 = vpop.f32.mrf.mxu0
  %v6109 = vadd.f32 0.0, %v6108
  %v6110 = vpop.f32.mrf.mxu0
  %v6111 = vadd.f32 0.0, %v6110
  %6112 = vmatprep.mubr.bf16.mxu0 0
  %6113 = vmatmul.mubr.bf16.gmra.mxu0 %v2575
  %v6114 = vpop.f32.mrf.mxu0
  %v6115 = vadd.f32 0.0, %v6114
  %v6116 = vpop.f32.mrf.mxu0
  %v6117 = vadd.f32 0.0, %v6116
  %v6118 = vpop.f32.mrf.mxu0
  %v6119 = vadd.f32 0.0, %v6118
  %v6120 = vpop.f32.mrf.mxu0
  %v6121 = vadd.f32 0.0, %v6120
  %6122 = vmatprep.mubr.bf16.mxu0 0
  %6123 = vmatmul.mubr.bf16.gmra.mxu0 %v2578
  %v6124 = vpop.f32.mrf.mxu0
  %v6125 = vadd.f32 0.0, %v6124
  %v6126 = vpop.f32.mrf.mxu0
  %v6127 = vadd.f32 0.0, %v6126
  %v6128 = vpop.f32.mrf.mxu0
  %v6129 = vadd.f32 0.0, %v6128
  %v6130 = vpop.f32.mrf.mxu0
  %v6131 = vadd.f32 0.0, %v6130
  %6132 = vmatprep.mubr.bf16.mxu0 0
  %6133 = vmatmul.mubr.bf16.gmra.mxu0 %v2581
  %v6134 = vpop.f32.mrf.mxu0
  %v6135 = vadd.f32 0.0, %v6134
  %v6136 = vpop.f32.mrf.mxu0
  %v6137 = vadd.f32 0.0, %v6136
  %v6138 = vpop.f32.mrf.mxu0
  %v6139 = vadd.f32 0.0, %v6138
  %v6140 = vpop.f32.mrf.mxu0
  %v6141 = vadd.f32 0.0, %v6140
  %6142 = vmatprep.mubr.bf16.mxu0 0
  %6143 = vmatmul.mubr.bf16.gmra.mxu0 %v2584
  %v6144 = vpop.f32.mrf.mxu0
  %v6145 = vadd.f32 0.0, %v6144
  %v6146 = vpop.f32.mrf.mxu0
  %v6147 = vadd.f32 0.0, %v6146
  %v6148 = vpop.f32.mrf.mxu0
  %v6149 = vadd.f32 0.0, %v6148
  %v6150 = vpop.f32.mrf.mxu0
  %v6151 = vadd.f32 0.0, %v6150
  %6152 = vmatprep.mubr.bf16.mxu0 0
  %6153 = vmatmul.mubr.bf16.gmra.mxu0 %v2587
  %v6154 = vpop.f32.mrf.mxu0
  %v6155 = vadd.f32 0.0, %v6154
  %v6156 = vpop.f32.mrf.mxu0
  %v6157 = vadd.f32 0.0, %v6156
  %v6158 = vpop.f32.mrf.mxu0
  %v6159 = vadd.f32 0.0, %v6158
  %v6160 = vpop.f32.mrf.mxu0
  %v6161 = vadd.f32 0.0, %v6160
  %6162 = vmatprep.mubr.bf16.mxu0 0
  %6163 = vmatmul.mubr.bf16.gmra.mxu0 %v2590
  %v6164 = vpop.f32.mrf.mxu0
  %v6165 = vadd.f32 0.0, %v6164
  %v6166 = vpop.f32.mrf.mxu0
  %v6167 = vadd.f32 0.0, %v6166
  %v6168 = vpop.f32.mrf.mxu0
  %v6169 = vadd.f32 0.0, %v6168
  %v6170 = vpop.f32.mrf.mxu0
  %v6171 = vadd.f32 0.0, %v6170
  %6172 = vmatprep.mubr.bf16.mxu0 0
  %6173 = vmatmul.mubr.bf16.gmra.mxu0 %v2593
  %v6174 = vpop.f32.mrf.mxu0
  %v6175 = vadd.f32 0.0, %v6174
  %v6176 = vpop.f32.mrf.mxu0
  %v6177 = vadd.f32 0.0, %v6176
  %v6178 = vpop.f32.mrf.mxu0
  %v6179 = vadd.f32 0.0, %v6178
  %v6180 = vpop.f32.mrf.mxu0
  %v6181 = vadd.f32 0.0, %v6180
  %6182 = vmatprep.mubr.bf16.mxu0 0
  %6183 = vmatmul.mubr.bf16.gmra.mxu0 %v2596
  %v6184 = vpop.f32.mrf.mxu0
  %v6185 = vadd.f32 0.0, %v6184
  %v6186 = vpop.f32.mrf.mxu0
  %v6187 = vadd.f32 0.0, %v6186
  %v6188 = vpop.f32.mrf.mxu0
  %v6189 = vadd.f32 0.0, %v6188
  %v6190 = vpop.f32.mrf.mxu0
  %v6191 = vadd.f32 0.0, %v6190
  %6192 = vmatprep.mubr.bf16.mxu0 0
  %6193 = vmatmul.mubr.bf16.gmra.mxu0 %v2599
  %v6194 = vpop.f32.mrf.mxu0
  %v6195 = vadd.f32 0.0, %v6194
  %v6196 = vpop.f32.mrf.mxu0
  %v6197 = vadd.f32 0.0, %v6196
  %v6198 = vpop.f32.mrf.mxu0
  %v6199 = vadd.f32 0.0, %v6198
  %v6200 = vpop.f32.mrf.mxu0
  %v6201 = vadd.f32 0.0, %v6200
  %6202 = vmatprep.mubr.bf16.mxu0 0
  %6203 = vmatmul.mubr.bf16.gmra.mxu0 %v2602
  %v6204 = vpop.f32.mrf.mxu0
  %v6205 = vadd.f32 0.0, %v6204
  %v6206 = vpop.f32.mrf.mxu0
  %v6207 = vadd.f32 0.0, %v6206
  %v6208 = vpop.f32.mrf.mxu0
  %v6209 = vadd.f32 0.0, %v6208
  %v6210 = vpop.f32.mrf.mxu0
  %v6211 = vadd.f32 0.0, %v6210
  %6212 = vmatprep.mubr.bf16.mxu0 0
  %6213 = vmatmul.mubr.bf16.gmra.mxu0 %v4341
  %v6214 = vpop.f32.mrf.mxu0
  %v6215 = vadd.f32 0.0, %v6214
  %v6216 = vpop.f32.mrf.mxu0
  %v6217 = vadd.f32 0.0, %v6216
  %v6218 = vpop.f32.mrf.mxu0
  %v6219 = vadd.f32 0.0, %v6218
  %v6220 = vpop.f32.mrf.mxu0
  %v6221 = vadd.f32 0.0, %v6220
  %6222 = vmatprep.mubr.bf16.mxu0 0
  %6223 = vmatmul.mubr.bf16.gmra.mxu0 %v6035
  %v6224 = vpop.f32.mrf.mxu0
  %v6225 = vadd.f32 0.0, %v6224
  %v6226 = vpop.f32.mrf.mxu0
  %v6227 = vadd.f32 0.0, %v6226
  %v6228 = vpop.f32.mrf.mxu0
  %v6229 = vadd.f32 0.0, %v6228
  %v6230 = vpop.f32.mrf.mxu0
  %v6231 = vadd.f32 0.0, %v6230
  %6232 = vmatprep.mubr.bf16.mxu0 0
  %6233 = vmatmul.mubr.bf16.gmra.mxu0 %v2611
  %v6234 = vpop.f32.mrf.mxu0
  %v6235 = vadd.f32 0.0, %v6234
  %v6236 = vpop.f32.mrf.mxu0
  %v6237 = vadd.f32 0.0, %v6236
  %v6238 = vpop.f32.mrf.mxu0
  %v6239 = vadd.f32 0.0, %v6238
  %v6240 = vpop.f32.mrf.mxu0
  %v6241 = vadd.f32 0.0, %v6240
  %6242 = vmatprep.mubr.bf16.mxu0 0
  %6243 = vmatmul.mubr.bf16.gmra.mxu0 %v2614
  %v6244 = vpop.f32.mrf.mxu0
  %v6245 = vadd.f32 0.0, %v6244
  %v6246 = vpop.f32.mrf.mxu0
  %v6247 = vadd.f32 0.0, %v6246
  %v6248 = vpop.f32.mrf.mxu0
  %v6249 = vadd.f32 0.0, %v6248
  %v6250 = vpop.f32.mrf.mxu0
  %v6251 = vadd.f32 0.0, %v6250
  %6252 = vmatprep.mubr.bf16.mxu0 0
  %6253 = vmatmul.mubr.bf16.gmra.mxu0 %v2617
  %v6254 = vpop.f32.mrf.mxu0
  %v6255 = vadd.f32 0.0, %v6254
  %v6256 = vpop.f32.mrf.mxu0
  %v6257 = vadd.f32 0.0, %v6256
  %v6258 = vpop.f32.mrf.mxu0
  %v6259 = vadd.f32 0.0, %v6258
  %v6260 = vpop.f32.mrf.mxu0
  %v6261 = vadd.f32 0.0, %v6260
  %6262 = vmatprep.mubr.bf16.mxu0 0
  %6263 = vmatmul.mubr.bf16.gmra.mxu0 %v2620
  %v6264 = vpop.f32.mrf.mxu0
  %v6265 = vadd.f32 0.0, %v6264
  %v6266 = vpop.f32.mrf.mxu0
  %v6267 = vadd.f32 0.0, %v6266
  %v6268 = vpop.f32.mrf.mxu0
  %v6269 = vadd.f32 0.0, %v6268
  %v6270 = vpop.f32.mrf.mxu0
  %v6271 = vadd.f32 0.0, %v6270
  %6272 = vmatprep.mubr.bf16.mxu0 0
  %6273 = vmatmul.mubr.bf16.gmra.mxu0 %v2623
  %v6274 = vpop.f32.mrf.mxu0
  %v6275 = vadd.f32 0.0, %v6274
  %v6276 = vpop.f32.mrf.mxu0
  %v6277 = vadd.f32 0.0, %v6276
  %v6278 = vpop.f32.mrf.mxu0
  %v6279 = vadd.f32 0.0, %v6278
  %v6280 = vpop.f32.mrf.mxu0
  %v6281 = vadd.f32 0.0, %v6280
  %6282 = vmatprep.mubr.bf16.mxu0 0
  %6283 = vmatmul.mubr.bf16.gmra.mxu0 %v2626
  %v6284 = vpop.f32.mrf.mxu0
  %v6285 = vadd.f32 0.0, %v6284
  %v6286 = vpop.f32.mrf.mxu0
  %v6287 = vadd.f32 0.0, %v6286
  %v6288 = vpop.f32.mrf.mxu0
  %v6289 = vadd.f32 0.0, %v6288
  %v6290 = vpop.f32.mrf.mxu0
  %v6291 = vadd.f32 0.0, %v6290
  %6292 = vmatprep.mubr.bf16.mxu0 0
  %6293 = vmatmul.mubr.bf16.gmra.mxu0 %v2629
  %v6294 = vpop.f32.mrf.mxu0
  %v6295 = vadd.f32 0.0, %v6294
  %v6296 = vpop.f32.mrf.mxu0
  %v6297 = vadd.f32 0.0, %v6296
  %v6298 = vpop.f32.mrf.mxu0
  %v6299 = vadd.f32 0.0, %v6298
  %v6300 = vpop.f32.mrf.mxu0
  %v6301 = vadd.f32 0.0, %v6300
  %6302 = vmatprep.mubr.bf16.mxu0 0
  %6303 = vmatmul.mubr.bf16.gmra.mxu0 %v2632
  %v6304 = vpop.f32.mrf.mxu0
  %v6305 = vadd.f32 0.0, %v6304
  %v6306 = vpop.f32.mrf.mxu0
  %v6307 = vadd.f32 0.0, %v6306
  %v6308 = vpop.f32.mrf.mxu0
  %v6309 = vadd.f32 0.0, %v6308
  %v6310 = vpop.f32.mrf.mxu0
  %v6311 = vadd.f32 0.0, %v6310
  %6312 = vmatprep.mubr.bf16.mxu0 0
  %6313 = vmatmul.mubr.bf16.gmra.mxu0 %v2635
  %v6314 = vpop.f32.mrf.mxu0
  %v6315 = vadd.f32 0.0, %v6314
  %v6316 = vpop.f32.mrf.mxu0
  %v6317 = vadd.f32 0.0, %v6316
  %v6318 = vpop.f32.mrf.mxu0
  %v6319 = vadd.f32 0.0, %v6318
  %v6320 = vpop.f32.mrf.mxu0
  %v6321 = vadd.f32 0.0, %v6320
  %6322 = vmatprep.mubr.bf16.mxu0 0
  %6323 = vmatmul.mubr.bf16.gmra.mxu0 %v2638
  %v6324 = vpop.f32.mrf.mxu0
  %v6325 = vadd.f32 0.0, %v6324
  %v6326 = vpop.f32.mrf.mxu0
  %v6327 = vadd.f32 0.0, %v6326
  %v6328 = vpop.f32.mrf.mxu0
  %v6329 = vadd.f32 0.0, %v6328
  %v6330 = vpop.f32.mrf.mxu0
  %v6331 = vadd.f32 0.0, %v6330
  %6332 = vmatprep.mubr.bf16.mxu0 0
  %6333 = vmatmul.mubr.bf16.gmra.mxu0 %v2641
  %v6334 = vpop.f32.mrf.mxu0
  %v6335 = vadd.f32 0.0, %v6334
  %v6336 = vpop.f32.mrf.mxu0
  %v6337 = vadd.f32 0.0, %v6336
  %v6338 = vpop.f32.mrf.mxu0
  %v6339 = vadd.f32 0.0, %v6338
  %v6340 = vpop.f32.mrf.mxu0
  %v6341 = vadd.f32 0.0, %v6340
  %6342 = vmatprep.mubr.bf16.mxu0 0
  %6343 = vmatmul.mubr.bf16.gmra.mxu0 %v2644
  %v6344 = vpop.f32.mrf.mxu0
  %v6345 = vadd.f32 0.0, %v6344
  %v6346 = vpop.f32.mrf.mxu0
  %v6347 = vadd.f32 0.0, %v6346
  %v6348 = vpop.f32.mrf.mxu0
  %v6349 = vadd.f32 0.0, %v6348
  %v6350 = vpop.f32.mrf.mxu0
  %v6351 = vadd.f32 0.0, %v6350
  %6352 = vmatprep.mubr.bf16.mxu0 0
  %6353 = vmatmul.mubr.bf16.gmra.mxu0 %v2647
  %v6354 = vpop.f32.mrf.mxu0
  %v6355 = vadd.f32 0.0, %v6354
  %v6356 = vpop.f32.mrf.mxu0
  %v6357 = vadd.f32 0.0, %v6356
  %v6358 = vpop.f32.mrf.mxu0
  %v6359 = vadd.f32 0.0, %v6358
  %v6360 = vpop.f32.mrf.mxu0
  %v6361 = vadd.f32 0.0, %v6360
  %6362 = vmatprep.mubr.bf16.mxu0 0
  %6363 = vmatmul.mubr.bf16.gmra.mxu0 %v2650
  %v6364 = vpop.f32.mrf.mxu0
  %v6365 = vadd.f32 0.0, %v6364
  %v6366 = vpop.f32.mrf.mxu0
  %v6367 = vadd.f32 0.0, %v6366
  %v6368 = vpop.f32.mrf.mxu0
  %v6369 = vadd.f32 0.0, %v6368
  %v6370 = vpop.f32.mrf.mxu0
  %v6371 = vadd.f32 0.0, %v6370
  %6372 = vmatprep.mubr.bf16.mxu0 0
  %6373 = vmatmul.mubr.bf16.gmra.mxu0 %v4344
  %v6374 = vpop.f32.mrf.mxu0
  %v6375 = vadd.f32 0.0, %v6374
  %v6376 = vpop.f32.mrf.mxu0
  %v6377 = vadd.f32 0.0, %v6376
  %v6378 = vpop.f32.mrf.mxu0
  %v6379 = vadd.f32 0.0, %v6378
  %v6380 = vpop.f32.mrf.mxu0
  %v6381 = vadd.f32 0.0, %v6380
  %6382 = vmatprep.mubr.bf16.mxu0 0
  %6383 = vmatmul.mubr.bf16.gmra.mxu0 %v6038
  %v6384 = vpop.f32.mrf.mxu0
  %v6385 = vadd.f32 0.0, %v6384
  %v6386 = vpop.f32.mrf.mxu0
  %v6387 = vadd.f32 0.0, %v6386
  %v6388 = vpop.f32.mrf.mxu0
  %v6389 = vadd.f32 0.0, %v6388
  %v6390 = vpop.f32.mrf.mxu0
  %v6391 = vadd.f32 0.0, %v6390
  %6392 = vdwg.mxu0
  %v6393 = vadd.f32 %v5835, %v6075
  %v6394 = vadd.f32 %v5836, %v6077
  %v6395 = vadd.f32 %v5837, %v6079
  %v6396 = vadd.f32 %v5838, %v6081
  %v6397 = vadd.f32 %v5839, %v6085
  %v6398 = vadd.f32 %v5840, %v6087
  %v6399 = vadd.f32 %v5841, %v6089
  %v6400 = vadd.f32 %v5842, %v6091
  %v6401 = vadd.f32 %v5843, %v6095
  %v6402 = vadd.f32 %v5844, %v6097
  %v6403 = vadd.f32 %v5845, %v6099
  %v6404 = vadd.f32 %v5846, %v6101
  %v6405 = vadd.f32 %v5847, %v6105
  %v6406 = vadd.f32 %v5848, %v6107
  %v6407 = vadd.f32 %v5849, %v6109
  %v6408 = vadd.f32 %v5850, %v6111
  %v6409 = vadd.f32 %v5851, %v6115
  %v6410 = vadd.f32 %v5852, %v6117
  %v6411 = vadd.f32 %v5853, %v6119
  %v6412 = vadd.f32 %v5854, %v6121
  %v6413 = vadd.f32 %v5855, %v6125
  %v6414 = vadd.f32 %v5856, %v6127
  %v6415 = vadd.f32 %v5857, %v6129
  %v6416 = vadd.f32 %v5858, %v6131
  %v6417 = vadd.f32 %v5859, %v6135
  %v6418 = vadd.f32 %v5860, %v6137
  %v6419 = vadd.f32 %v5861, %v6139
  %v6420 = vadd.f32 %v5862, %v6141
  %v6421 = vadd.f32 %v5863, %v6145
  %v6422 = vadd.f32 %v5864, %v6147
  %v6423 = vadd.f32 %v5865, %v6149
  %v6424 = vadd.f32 %v5866, %v6151
  %v6425 = vadd.f32 %v5867, %v6155
  %v6426 = vadd.f32 %v5868, %v6157
  %v6427 = vadd.f32 %v5869, %v6159
  %v6428 = vadd.f32 %v5870, %v6161
  %v6429 = vadd.f32 %v5871, %v6165
  %v6430 = vadd.f32 %v5872, %v6167
  %v6431 = vadd.f32 %v5873, %v6169
  %v6432 = vadd.f32 %v5874, %v6171
  %v6433 = vadd.f32 %v5875, %v6175
  %v6434 = vadd.f32 %v5876, %v6177
  %v6435 = vadd.f32 %v5877, %v6179
  %v6436 = vadd.f32 %v5878, %v6181
  %v6437 = vadd.f32 %v5879, %v6185
  %v6438 = vadd.f32 %v5880, %v6187
  %v6439 = vadd.f32 %v5881, %v6189
  %v6440 = vadd.f32 %v5882, %v6191
  %v6441 = vadd.f32 %v5883, %v6195
  %v6442 = vadd.f32 %v5884, %v6197
  %v6443 = vadd.f32 %v5885, %v6199
  %v6444 = vadd.f32 %v5886, %v6201
  %v6445 = vadd.f32 %v5887, %v6205
  %v6446 = vadd.f32 %v5888, %v6207
  %v6447 = vadd.f32 %v5889, %v6209
  %v6448 = vadd.f32 %v5890, %v6211
  %v6449 = vadd.f32 %v5891, %v6215
  %v6450 = vadd.f32 %v5892, %v6217
  %v6451 = vadd.f32 %v5893, %v6219
  %v6452 = vadd.f32 %v5894, %v6221
  %v6453 = vadd.f32 %v5895, %v6225
  %v6454 = vadd.f32 %v5896, %v6227
  %v6455 = vadd.f32 %v5897, %v6229
  %v6456 = vadd.f32 %v5898, %v6231
  %v6457 = vadd.f32 %v5899, %v6235
  %v6458 = vadd.f32 %v5900, %v6237
  %v6459 = vadd.f32 %v5901, %v6239
  %v6460 = vadd.f32 %v5902, %v6241
  %v6461 = vadd.f32 %v5903, %v6245
  %v6462 = vadd.f32 %v5904, %v6247
  %v6463 = vadd.f32 %v5905, %v6249
  %v6464 = vadd.f32 %v5906, %v6251
  %v6465 = vadd.f32 %v5907, %v6255
  %v6466 = vadd.f32 %v5908, %v6257
  %v6467 = vadd.f32 %v5909, %v6259
  %v6468 = vadd.f32 %v5910, %v6261
  %v6469 = vadd.f32 %v5911, %v6265
  %v6470 = vadd.f32 %v5912, %v6267
  %v6471 = vadd.f32 %v5913, %v6269
  %v6472 = vadd.f32 %v5914, %v6271
  %v6473 = vadd.f32 %v5915, %v6275
  %v6474 = vadd.f32 %v5916, %v6277
  %v6475 = vadd.f32 %v5917, %v6279
  %v6476 = vadd.f32 %v5918, %v6281
  %v6477 = vadd.f32 %v5919, %v6285
  %v6478 = vadd.f32 %v5920, %v6287
  %v6479 = vadd.f32 %v5921, %v6289
  %v6480 = vadd.f32 %v5922, %v6291
  %v6481 = vadd.f32 %v5923, %v6295
  %v6482 = vadd.f32 %v5924, %v6297
  %v6483 = vadd.f32 %v5925, %v6299
  %v6484 = vadd.f32 %v5926, %v6301
  %v6485 = vadd.f32 %v5927, %v6305
  %v6486 = vadd.f32 %v5928, %v6307
  %v6487 = vadd.f32 %v5929, %v6309
  %v6488 = vadd.f32 %v5930, %v6311
  %v6489 = vadd.f32 %v5931, %v6315
  %v6490 = vadd.f32 %v5932, %v6317
  %v6491 = vadd.f32 %v5933, %v6319
  %v6492 = vadd.f32 %v5934, %v6321
  %v6493 = vadd.f32 %v5935, %v6325
  %v6494 = vadd.f32 %v5936, %v6327
  %v6495 = vadd.f32 %v5937, %v6329
  %v6496 = vadd.f32 %v5938, %v6331
  %v6497 = vadd.f32 %v5939, %v6335
  %v6498 = vadd.f32 %v5940, %v6337
  %v6499 = vadd.f32 %v5941, %v6339
  %v6500 = vadd.f32 %v5942, %v6341
  %v6501 = vadd.f32 %v5943, %v6345
  %v6502 = vadd.f32 %v5944, %v6347
  %v6503 = vadd.f32 %v5945, %v6349
  %v6504 = vadd.f32 %v5946, %v6351
  %v6505 = vadd.f32 %v5947, %v6355
  %v6506 = vadd.f32 %v5948, %v6357
  %v6507 = vadd.f32 %v5949, %v6359
  %v6508 = vadd.f32 %v5950, %v6361
  %v6509 = vadd.f32 %v5951, %v6365
  %v6510 = vadd.f32 %v5952, %v6367
  %v6511 = vadd.f32 %v5953, %v6369
  %v6512 = vadd.f32 %v5954, %v6371
  %v6513 = vadd.f32 %v5955, %v6375
  %v6514 = vadd.f32 %v5956, %v6377
  %v6515 = vadd.f32 %v5957, %v6379
  %v6516 = vadd.f32 %v5958, %v6381
  %v6517 = vadd.f32 %v5959, %v6385
  %v6518 = vadd.f32 %v5960, %v6387
  %v6519 = vadd.f32 %v5961, %v6389
  %v6520 = vadd.f32 %v5962, %v6391
  %v6521 = vld [vmem:[%s2] sm:$0x3]
  %v6523 = vlaneseq
  %v6524 = vshrl.u32 %v6523, 7
  %v6525 = vsub.s32 0, %v6524
  %v6526 = vrot.slane %v6521, %v6525
  %v6527 = vlaneseq
  %v6528 = vshrl.u32 %v6527, 7
  %v6529 = vsub.s32 1, %v6528
  %v6530 = vrot.slane %v6521, %v6529
  %v6533 = vadd.f32 %v6393, %v6526
  %v6534 = vadd.f32 %v6394, %v6530
  %v6535 = vadd.f32 %v6395, %v6526
  %v6536 = vadd.f32 %v6396, %v6530
  %v6537 = vadd.f32 %v6397, %v6526
  %v6538 = vadd.f32 %v6398, %v6530
  %v6539 = vadd.f32 %v6399, %v6526
  %v6540 = vadd.f32 %v6400, %v6530
  %v6541 = vadd.f32 %v6401, %v6526
  %v6542 = vadd.f32 %v6402, %v6530
  %v6543 = vadd.f32 %v6403, %v6526
  %v6544 = vadd.f32 %v6404, %v6530
  %v6545 = vadd.f32 %v6405, %v6526
  %v6546 = vadd.f32 %v6406, %v6530
  %v6547 = vadd.f32 %v6407, %v6526
  %v6548 = vadd.f32 %v6408, %v6530
  %v6549 = vadd.f32 %v6409, %v6526
  %v6550 = vadd.f32 %v6410, %v6530
  %v6551 = vadd.f32 %v6411, %v6526
  %v6552 = vadd.f32 %v6412, %v6530
  %v6553 = vadd.f32 %v6413, %v6526
  %v6554 = vadd.f32 %v6414, %v6530
  %v6555 = vadd.f32 %v6415, %v6526
  %v6556 = vadd.f32 %v6416, %v6530
  %v6557 = vadd.f32 %v6417, %v6526
  %v6558 = vadd.f32 %v6418, %v6530
  %v6559 = vadd.f32 %v6419, %v6526
  %v6560 = vadd.f32 %v6420, %v6530
  %v6561 = vadd.f32 %v6421, %v6526
  %v6562 = vadd.f32 %v6422, %v6530
  %v6563 = vadd.f32 %v6423, %v6526
  %v6564 = vadd.f32 %v6424, %v6530
  %v6565 = vadd.f32 %v6425, %v6526
  %v6566 = vadd.f32 %v6426, %v6530
  %v6567 = vadd.f32 %v6427, %v6526
  %v6568 = vadd.f32 %v6428, %v6530
  %v6569 = vadd.f32 %v6429, %v6526
  %v6570 = vadd.f32 %v6430, %v6530
  %v6571 = vadd.f32 %v6431, %v6526
  %v6572 = vadd.f32 %v6432, %v6530
  %v6573 = vadd.f32 %v6433, %v6526
  %v6574 = vadd.f32 %v6434, %v6530
  %v6575 = vadd.f32 %v6435, %v6526
  %v6576 = vadd.f32 %v6436, %v6530
  %v6577 = vadd.f32 %v6437, %v6526
  %v6578 = vadd.f32 %v6438, %v6530
  %v6579 = vadd.f32 %v6439, %v6526
  %v6580 = vadd.f32 %v6440, %v6530
  %v6581 = vadd.f32 %v6441, %v6526
  %v6582 = vadd.f32 %v6442, %v6530
  %v6583 = vadd.f32 %v6443, %v6526
  %v6584 = vadd.f32 %v6444, %v6530
  %v6585 = vadd.f32 %v6445, %v6526
  %v6586 = vadd.f32 %v6446, %v6530
  %v6587 = vadd.f32 %v6447, %v6526
  %v6588 = vadd.f32 %v6448, %v6530
  %v6589 = vadd.f32 %v6449, %v6526
  %v6590 = vadd.f32 %v6450, %v6530
  %v6591 = vadd.f32 %v6451, %v6526
  %v6592 = vadd.f32 %v6452, %v6530
  %v6593 = vadd.f32 %v6453, %v6526
  %v6594 = vadd.f32 %v6454, %v6530
  %v6595 = vadd.f32 %v6455, %v6526
  %v6596 = vadd.f32 %v6456, %v6530
  %v6597 = vadd.f32 %v6457, %v6526
  %v6598 = vadd.f32 %v6458, %v6530
  %v6599 = vadd.f32 %v6459, %v6526
  %v6600 = vadd.f32 %v6460, %v6530
  %v6601 = vadd.f32 %v6461, %v6526
  %v6602 = vadd.f32 %v6462, %v6530
  %v6603 = vadd.f32 %v6463, %v6526
  %v6604 = vadd.f32 %v6464, %v6530
  %v6605 = vadd.f32 %v6465, %v6526
  %v6606 = vadd.f32 %v6466, %v6530
  %v6607 = vadd.f32 %v6467, %v6526
  %v6608 = vadd.f32 %v6468, %v6530
  %v6609 = vadd.f32 %v6469, %v6526
  %v6610 = vadd.f32 %v6470, %v6530
  %v6611 = vadd.f32 %v6471, %v6526
  %v6612 = vadd.f32 %v6472, %v6530
  %v6613 = vadd.f32 %v6473, %v6526
  %v6614 = vadd.f32 %v6474, %v6530
  %v6615 = vadd.f32 %v6475, %v6526
  %v6616 = vadd.f32 %v6476, %v6530
  %v6617 = vadd.f32 %v6477, %v6526
  %v6618 = vadd.f32 %v6478, %v6530
  %v6619 = vadd.f32 %v6479, %v6526
  %v6620 = vadd.f32 %v6480, %v6530
  %v6621 = vadd.f32 %v6481, %v6526
  %v6622 = vadd.f32 %v6482, %v6530
  %v6623 = vadd.f32 %v6483, %v6526
  %v6624 = vadd.f32 %v6484, %v6530
  %v6625 = vadd.f32 %v6485, %v6526
  %v6626 = vadd.f32 %v6486, %v6530
  %v6627 = vadd.f32 %v6487, %v6526
  %v6628 = vadd.f32 %v6488, %v6530
  %v6629 = vadd.f32 %v6489, %v6526
  %v6630 = vadd.f32 %v6490, %v6530
  %v6631 = vadd.f32 %v6491, %v6526
  %v6632 = vadd.f32 %v6492, %v6530
  %v6633 = vadd.f32 %v6493, %v6526
  %v6634 = vadd.f32 %v6494, %v6530
  %v6635 = vadd.f32 %v6495, %v6526
  %v6636 = vadd.f32 %v6496, %v6530
  %v6637 = vadd.f32 %v6497, %v6526
  %v6638 = vadd.f32 %v6498, %v6530
  %v6639 = vadd.f32 %v6499, %v6526
  %v6640 = vadd.f32 %v6500, %v6530
  %v6641 = vadd.f32 %v6501, %v6526
  %v6642 = vadd.f32 %v6502, %v6530
  %v6643 = vadd.f32 %v6503, %v6526
  %v6644 = vadd.f32 %v6504, %v6530
  %v6645 = vadd.f32 %v6505, %v6526
  %v6646 = vadd.f32 %v6506, %v6530
  %v6647 = vadd.f32 %v6507, %v6526
  %v6648 = vadd.f32 %v6508, %v6530
  %v6649 = vadd.f32 %v6509, %v6526
  %v6650 = vadd.f32 %v6510, %v6530
  %v6651 = vadd.f32 %v6511, %v6526
  %v6652 = vadd.f32 %v6512, %v6530
  %v6653 = vadd.f32 %v6513, %v6526
  %v6654 = vadd.f32 %v6514, %v6530
  %v6655 = vadd.f32 %v6515, %v6526
  %v6656 = vadd.f32 %v6516, %v6530
  %v6657 = vadd.f32 %v6517, %v6526
  %v6658 = vadd.f32 %v6518, %v6530
  %v6659 = vadd.f32 %v6519, %v6526
  %v6660 = vadd.f32 %v6520, %v6530
  %v6661 = vmax.f32 %v6533, 0.0
  %v6662 = vmax.f32 %v6534, 0.0
  %v6663 = vmax.f32 %v6535, 0.0
  %v6664 = vmax.f32 %v6536, 0.0
  %v6665 = vmax.f32 %v6537, 0.0
  %v6666 = vmax.f32 %v6538, 0.0
  %v6667 = vmax.f32 %v6539, 0.0
  %v6668 = vmax.f32 %v6540, 0.0
  %v6669 = vmax.f32 %v6541, 0.0
  %v6670 = vmax.f32 %v6542, 0.0
  %v6671 = vmax.f32 %v6543, 0.0
  %v6672 = vmax.f32 %v6544, 0.0
  %v6673 = vmax.f32 %v6545, 0.0
  %v6674 = vmax.f32 %v6546, 0.0
  %v6675 = vmax.f32 %v6547, 0.0
  %v6676 = vmax.f32 %v6548, 0.0
  %v6677 = vmax.f32 %v6549, 0.0
  %v6678 = vmax.f32 %v6550, 0.0
  %v6679 = vmax.f32 %v6551, 0.0
  %v6680 = vmax.f32 %v6552, 0.0
  %v6681 = vmax.f32 %v6553, 0.0
  %v6682 = vmax.f32 %v6554, 0.0
  %v6683 = vmax.f32 %v6555, 0.0
  %v6684 = vmax.f32 %v6556, 0.0
  %v6685 = vmax.f32 %v6557, 0.0
  %v6686 = vmax.f32 %v6558, 0.0
  %v6687 = vmax.f32 %v6559, 0.0
  %v6688 = vmax.f32 %v6560, 0.0
  %v6689 = vmax.f32 %v6561, 0.0
  %v6690 = vmax.f32 %v6562, 0.0
  %v6691 = vmax.f32 %v6563, 0.0
  %v6692 = vmax.f32 %v6564, 0.0
  %v6693 = vmax.f32 %v6565, 0.0
  %v6694 = vmax.f32 %v6566, 0.0
  %v6695 = vmax.f32 %v6567, 0.0
  %v6696 = vmax.f32 %v6568, 0.0
  %v6697 = vmax.f32 %v6569, 0.0
  %v6698 = vmax.f32 %v6570, 0.0
  %v6699 = vmax.f32 %v6571, 0.0
  %v6700 = vmax.f32 %v6572, 0.0
  %v6701 = vmax.f32 %v6573, 0.0
  %v6702 = vmax.f32 %v6574, 0.0
  %v6703 = vmax.f32 %v6575, 0.0
  %v6704 = vmax.f32 %v6576, 0.0
  %v6705 = vmax.f32 %v6577, 0.0
  %v6706 = vmax.f32 %v6578, 0.0
  %v6707 = vmax.f32 %v6579, 0.0
  %v6708 = vmax.f32 %v6580, 0.0
  %v6709 = vmax.f32 %v6581, 0.0
  %v6710 = vmax.f32 %v6582, 0.0
  %v6711 = vmax.f32 %v6583, 0.0
  %v6712 = vmax.f32 %v6584, 0.0
  %v6713 = vmax.f32 %v6585, 0.0
  %v6714 = vmax.f32 %v6586, 0.0
  %v6715 = vmax.f32 %v6587, 0.0
  %v6716 = vmax.f32 %v6588, 0.0
  %v6717 = vmax.f32 %v6589, 0.0
  %v6718 = vmax.f32 %v6590, 0.0
  %v6719 = vmax.f32 %v6591, 0.0
  %v6720 = vmax.f32 %v6592, 0.0
  %v6721 = vmax.f32 %v6593, 0.0
  %v6722 = vmax.f32 %v6594, 0.0
  %v6723 = vmax.f32 %v6595, 0.0
  %v6724 = vmax.f32 %v6596, 0.0
  %v6725 = vmax.f32 %v6597, 0.0
  %v6726 = vmax.f32 %v6598, 0.0
  %v6727 = vmax.f32 %v6599, 0.0
  %v6728 = vmax.f32 %v6600, 0.0
  %v6729 = vmax.f32 %v6601, 0.0
  %v6730 = vmax.f32 %v6602, 0.0
  %v6731 = vmax.f32 %v6603, 0.0
  %v6732 = vmax.f32 %v6604, 0.0
  %v6733 = vmax.f32 %v6605, 0.0
  %v6734 = vmax.f32 %v6606, 0.0
  %v6735 = vmax.f32 %v6607, 0.0
  %v6736 = vmax.f32 %v6608, 0.0
  %v6737 = vmax.f32 %v6609, 0.0
  %v6738 = vmax.f32 %v6610, 0.0
  %v6739 = vmax.f32 %v6611, 0.0
  %v6740 = vmax.f32 %v6612, 0.0
  %v6741 = vmax.f32 %v6613, 0.0
  %v6742 = vmax.f32 %v6614, 0.0
  %v6743 = vmax.f32 %v6615, 0.0
  %v6744 = vmax.f32 %v6616, 0.0
  %v6745 = vmax.f32 %v6617, 0.0
  %v6746 = vmax.f32 %v6618, 0.0
  %v6747 = vmax.f32 %v6619, 0.0
  %v6748 = vmax.f32 %v6620, 0.0
  %v6749 = vmax.f32 %v6621, 0.0
  %v6750 = vmax.f32 %v6622, 0.0
  %v6751 = vmax.f32 %v6623, 0.0
  %v6752 = vmax.f32 %v6624, 0.0
  %v6753 = vmax.f32 %v6625, 0.0
  %v6754 = vmax.f32 %v6626, 0.0
  %v6755 = vmax.f32 %v6627, 0.0
  %v6756 = vmax.f32 %v6628, 0.0
  %v6757 = vmax.f32 %v6629, 0.0
  %v6758 = vmax.f32 %v6630, 0.0
  %v6759 = vmax.f32 %v6631, 0.0
  %v6760 = vmax.f32 %v6632, 0.0
  %v6761 = vmax.f32 %v6633, 0.0
  %v6762 = vmax.f32 %v6634, 0.0
  %v6763 = vmax.f32 %v6635, 0.0
  %v6764 = vmax.f32 %v6636, 0.0
  %v6765 = vmax.f32 %v6637, 0.0
  %v6766 = vmax.f32 %v6638, 0.0
  %v6767 = vmax.f32 %v6639, 0.0
  %v6768 = vmax.f32 %v6640, 0.0
  %v6769 = vmax.f32 %v6641, 0.0
  %v6770 = vmax.f32 %v6642, 0.0
  %v6771 = vmax.f32 %v6643, 0.0
  %v6772 = vmax.f32 %v6644, 0.0
  %v6773 = vmax.f32 %v6645, 0.0
  %v6774 = vmax.f32 %v6646, 0.0
  %v6775 = vmax.f32 %v6647, 0.0
  %v6776 = vmax.f32 %v6648, 0.0
  %v6777 = vmax.f32 %v6649, 0.0
  %v6778 = vmax.f32 %v6650, 0.0
  %v6779 = vmax.f32 %v6651, 0.0
  %v6780 = vmax.f32 %v6652, 0.0
  %v6781 = vmax.f32 %v6653, 0.0
  %v6782 = vmax.f32 %v6654, 0.0
  %v6783 = vmax.f32 %v6655, 0.0
  %v6784 = vmax.f32 %v6656, 0.0
  %v6785 = vmax.f32 %v6657, 0.0
  %v6786 = vmax.f32 %v6658, 0.0
  %v6787 = vmax.f32 %v6659, 0.0
  %v6788 = vmax.f32 %v6660, 0.0
  %v6789 = vpack.c.bf16 %v6663, %v6661
  %v6790 = vpack.c.bf16 %v6664, %v6662
  %v6791 = vpack.c.bf16 %v6667, %v6665
  %v6792 = vpack.c.bf16 %v6668, %v6666
  %v6793 = vpack.c.bf16 %v6671, %v6669
  %v6794 = vpack.c.bf16 %v6672, %v6670
  %v6795 = vpack.c.bf16 %v6675, %v6673
  %v6796 = vpack.c.bf16 %v6676, %v6674
  %v6797 = vpack.c.bf16 %v6679, %v6677
  %v6798 = vpack.c.bf16 %v6680, %v6678
  %v6799 = vpack.c.bf16 %v6683, %v6681
  %v6800 = vpack.c.bf16 %v6684, %v6682
  %v6801 = vpack.c.bf16 %v6687, %v6685
  %v6802 = vpack.c.bf16 %v6688, %v6686
  %v6803 = vpack.c.bf16 %v6691, %v6689
  %v6804 = vpack.c.bf16 %v6692, %v6690
  %v6805 = vpack.c.bf16 %v6695, %v6693
  %v6806 = vpack.c.bf16 %v6696, %v6694
  %v6807 = vpack.c.bf16 %v6699, %v6697
  %v6808 = vpack.c.bf16 %v6700, %v6698
  %v6809 = vpack.c.bf16 %v6703, %v6701
  %v6810 = vpack.c.bf16 %v6704, %v6702
  %v6811 = vpack.c.bf16 %v6707, %v6705
  %v6812 = vpack.c.bf16 %v6708, %v6706
  %v6813 = vpack.c.bf16 %v6711, %v6709
  %v6814 = vpack.c.bf16 %v6712, %v6710
  %v6815 = vpack.c.bf16 %v6715, %v6713
  %v6816 = vpack.c.bf16 %v6716, %v6714
  %v6817 = vpack.c.bf16 %v6719, %v6717
  %v6818 = vpack.c.bf16 %v6720, %v6718
  %v6819 = vpack.c.bf16 %v6723, %v6721
  %v6820 = vpack.c.bf16 %v6724, %v6722
  %v6821 = vpack.c.bf16 %v6727, %v6725
  %v6822 = vpack.c.bf16 %v6728, %v6726
  %v6823 = vpack.c.bf16 %v6731, %v6729
  %v6824 = vpack.c.bf16 %v6732, %v6730
  %v6825 = vpack.c.bf16 %v6735, %v6733
  %v6826 = vpack.c.bf16 %v6736, %v6734
  %v6827 = vpack.c.bf16 %v6739, %v6737
  %v6828 = vpack.c.bf16 %v6740, %v6738
  %v6829 = vpack.c.bf16 %v6743, %v6741
  %v6830 = vpack.c.bf16 %v6744, %v6742
  %v6831 = vpack.c.bf16 %v6747, %v6745
  %v6832 = vpack.c.bf16 %v6748, %v6746
  %v6833 = vpack.c.bf16 %v6751, %v6749
  %v6834 = vpack.c.bf16 %v6752, %v6750
  %v6835 = vpack.c.bf16 %v6755, %v6753
  %v6836 = vpack.c.bf16 %v6756, %v6754
  %v6837 = vpack.c.bf16 %v6759, %v6757
  %v6838 = vpack.c.bf16 %v6760, %v6758
  %v6839 = vpack.c.bf16 %v6763, %v6761
  %v6840 = vpack.c.bf16 %v6764, %v6762
  %v6841 = vpack.c.bf16 %v6767, %v6765
  %v6842 = vpack.c.bf16 %v6768, %v6766
  %v6843 = vpack.c.bf16 %v6771, %v6769
  %v6844 = vpack.c.bf16 %v6772, %v6770
  %v6845 = vpack.c.bf16 %v6775, %v6773
  %v6846 = vpack.c.bf16 %v6776, %v6774
  %v6847 = vpack.c.bf16 %v6779, %v6777
  %v6848 = vpack.c.bf16 %v6780, %v6778
  %v6849 = vpack.c.bf16 %v6783, %v6781
  %v6850 = vpack.c.bf16 %v6784, %v6782
  %v6851 = vpack.c.bf16 %v6787, %v6785
  %v6852 = vpack.c.bf16 %v6788, %v6786
  %v6853 = vld [vmem:[%s3] sm:$0xf]
  %v6854 = vld [vmem:[%s3 + $0x4] sm:$0xf]
  %v6855 = vld [vmem:[%s3 + $0x8] sm:$0xf]
  %v6856 = vld [vmem:[%s3 + $0xc] sm:$0xf]
  %v6857 = vld [vmem:[%s3 + $0x10] sm:$0xf]
  %v6858 = vld [vmem:[%s3 + $0x14] sm:$0xf]
  %v6859 = vld [vmem:[%s3 + $0x18] sm:$0xf]
  %v6860 = vld [vmem:[%s3 + $0x1c] sm:$0xf]
  %v6861 = vld [vmem:[%s3 + $0x20] sm:$0xf]
  %v6862 = vld [vmem:[%s3 + $0x24] sm:$0xf]
  %v6863 = vld [vmem:[%s3 + $0x28] sm:$0xf]
  %v6864 = vld [vmem:[%s3 + $0x2c] sm:$0xf]
  %v6865 = vld [vmem:[%s3 + $0x30] sm:$0xf]
  %v6866 = vld [vmem:[%s3 + $0x34] sm:$0xf]
  %v6867 = vld [vmem:[%s3 + $0x38] sm:$0xf]
  %v6868 = vld [vmem:[%s3 + $0x3c] sm:$0xf]
  %v6869 = vld [vmem:[%s3 + $0x40] sm:$0xf]
  %v6870 = vld [vmem:[%s3 + $0x44] sm:$0xf]
  %v6871 = vld [vmem:[%s3 + $0x48] sm:$0xf]
  %v6872 = vld [vmem:[%s3 + $0x4c] sm:$0xf]
  %v6873 = vld [vmem:[%s3 + $0x50] sm:$0xf]
  %v6874 = vld [vmem:[%s3 + $0x54] sm:$0xf]
  %v6875 = vld [vmem:[%s3 + $0x58] sm:$0xf]
  %v6876 = vld [vmem:[%s3 + $0x5c] sm:$0xf]
  %v6877 = vld [vmem:[%s4] sm:$0x1]
  %v6879 = vlaneseq
  %v6880 = vshrl.u32 %v6879, 7
  %v6881 = vsub.s32 0, %v6880
  %v6882 = vrot.slane %v6877, %v6881
  %v6908 = vunpack.c.l.b16 %v6853
  %v6909 = vunpack.c.l.b16 %v6854
  %v6910 = vunpack.c.l.b16 %v6855
  %v6911 = vunpack.c.l.b16 %v6856
  %v6912 = vunpack.c.l.b16 %v6857
  %v6913 = vunpack.c.l.b16 %v6858
  %v6914 = vunpack.c.l.b16 %v6859
  %v6915 = vunpack.c.l.b16 %v6860
  %v6916 = vunpack.c.l.b16 %v6861
  %v6917 = vunpack.c.l.b16 %v6862
  %v6918 = vunpack.c.l.b16 %v6863
  %v6919 = vunpack.c.l.b16 %v6864
  %v6920 = vunpack.c.l.b16 %v6865
  %v6921 = vunpack.c.l.b16 %v6866
  %v6922 = vunpack.c.l.b16 %v6867
  %v6923 = vunpack.c.l.b16 %v6868
  %v6924 = vunpack.c.l.b16 %v6869
  %v6925 = vunpack.c.l.b16 %v6870
  %v6926 = vunpack.c.l.b16 %v6871
  %v6927 = vunpack.c.l.b16 %v6872
  %v6928 = vunpack.c.l.b16 %v6873
  %v6929 = vunpack.c.l.b16 %v6874
  %v6930 = vunpack.c.l.b16 %v6875
  %v6931 = vunpack.c.l.b16 %v6876
  %v6932 = vpack.c.b16 %v6909, %v6908
  %v6933 = vpack.c.b16 %v6911, %v6910
  %v6934 = vpack.c.b16 %v6913, %v6912
  %v6935 = vpack.c.b16 %v6915, %v6914
  %v6936 = vpack.c.b16 %v6917, %v6916
  %v6937 = vpack.c.b16 %v6919, %v6918
  %v6938 = vpack.c.b16 %v6921, %v6920
  %v6939 = vpack.c.b16 %v6923, %v6922
  %v6940 = vpack.c.b16 %v6925, %v6924
  %v6941 = vpack.c.b16 %v6927, %v6926
  %v6942 = vpack.c.b16 %v6929, %v6928
  %v6943 = vpack.c.b16 %v6931, %v6930
  %v6957 = vsel %vm1053, %v6790, 0
  %v6960 = vsel %vm1053, %v6792, 0
  %v6963 = vsel %vm1053, %v6794, 0
  %v6966 = vsel %vm1053, %v6796, 0
  %v6969 = vsel %vm1053, %v6798, 0
  %v6972 = vsel %vm1053, %v6800, 0
  %v6975 = vsel %vm1053, %v6802, 0
  %v6978 = vsel %vm1053, %v6804, 0
  %v6981 = vsel %vm1053, %v6806, 0
  %v6984 = vsel %vm1053, %v6808, 0
  %v6987 = vsel %vm1053, %v6810, 0
  %v6990 = vsel %vm1053, %v6812, 0
  %v6993 = vsel %vm1053, %v6814, 0
  %v6996 = vsel %vm1053, %v6816, 0
  %v6999 = vsel %vm1053, %v6818, 0
  %v7002 = vsel %vm1053, %v6820, 0
  %v7005 = vsel %vm1053, %v6822, 0
  %v7008 = vsel %vm1053, %v6824, 0
  %v7011 = vsel %vm1053, %v6826, 0
  %v7014 = vsel %vm1053, %v6828, 0
  %v7017 = vsel %vm1053, %v6830, 0
  %v7020 = vsel %vm1053, %v6832, 0
  %v7023 = vsel %vm1053, %v6834, 0
  %v7026 = vsel %vm1053, %v6836, 0
  %v7029 = vsel %vm1053, %v6838, 0
  %v7032 = vsel %vm1053, %v6840, 0
  %v7035 = vsel %vm1053, %v6842, 0
  %v7038 = vsel %vm1053, %v6844, 0
  %v7041 = vsel %vm1053, %v6846, 0
  %v7044 = vsel %vm1053, %v6848, 0
  %v7047 = vsel %vm1053, %v6850, 0
  %v7050 = vsel %vm1053, %v6852, 0
  %7052 = vmatprep.subr.bf16.mxu0 0
  %7053 = vmatpush1.bf16.msra.mxu0 %v6939
  %7054 = vmatprep.subr.bf16.mxu0 0
  %7055 = vmatpush1.bf16.msra.mxu0 %v6938
  %7056 = vmatprep.subr.bf16.mxu0 0
  %7057 = vmatpush1.bf16.msra.mxu0 %v6937
  %7058 = vmatprep.subr.bf16.mxu0 0
  %7059 = vmatpush1.bf16.msra.mxu0 %v6936
  %7060 = vmatprep.subr.bf16.mxu0 0
  %7061 = vmatpush1.bf16.msra.mxu0 %v6935
  %7062 = vmatprep.subr.bf16.mxu0 0
  %7063 = vmatpush1.bf16.msra.mxu0 %v6934
  %7064 = vmatprep.subr.bf16.mxu0 0
  %7065 = vmatpush1.bf16.msra.mxu0 %v6933
  %7066 = vmatprep.subr.bf16.mxu0 0
  %7067 = vmatpush1.bf16.msra.mxu0 %v6932
  %7068 = vmatprep.subr.bf16.mxu0 0
  %7069 = vmatpush2.bf16.msra.mxu0 0
  %7070 = vmatprep.subr.bf16.mxu0 0
  %7071 = vmatpush2.bf16.msra.mxu0 0
  %7072 = vmatprep.subr.bf16.mxu0 0
  %7073 = vmatpush2.bf16.msra.mxu0 0
  %7074 = vmatprep.subr.bf16.mxu0 0
  %7075 = vmatpush2.bf16.msra.mxu0 0
  %7076 = vmatprep.subr.bf16.mxu0 0
  %7077 = vmatpush2.bf16.msra.mxu0 %v6943
  %7078 = vmatprep.subr.bf16.mxu0 0
  %7079 = vmatpush2.bf16.msra.mxu0 %v6942
  %7080 = vmatprep.subr.bf16.mxu0 0
  %7081 = vmatpush2.bf16.msra.mxu0 %v6941
  %7082 = vmatprep.subr.bf16.mxu0 0
  %7083 = vmatpush2.bf16.msra.mxu0 %v6940
  %7084 = vmatprep.mubr.bf16.mxu0 %v6957
  %7085 = vmatmul.mubr.bf16.gmra.mxu0 %v6789
  %v7086 = vpop.f32.mrf.mxu0
  %v7087 = vadd.f32 %v6882, %v7086
  %v7088 = vpop.f32.mrf.mxu0
  %v7089 = vpop.f32.mrf.mxu0
  %v7090 = vadd.f32 %v6882, %v7089
  %v7091 = vpop.f32.mrf.mxu0
  %7092 = vmatprep.mubr.bf16.mxu0 %v6960
  %7093 = vmatmul.mubr.bf16.gmra.mxu0 %v6791
  %v7094 = vpop.f32.mrf.mxu0
  %v7095 = vadd.f32 %v6882, %v7094
  %v7096 = vpop.f32.mrf.mxu0
  %v7097 = vpop.f32.mrf.mxu0
  %v7098 = vadd.f32 %v6882, %v7097
  %v7099 = vpop.f32.mrf.mxu0
  %7100 = vmatprep.mubr.bf16.mxu0 %v6963
  %7101 = vmatmul.mubr.bf16.gmra.mxu0 %v6793
  %v7102 = vpop.f32.mrf.mxu0
  %v7103 = vadd.f32 %v6882, %v7102
  %v7104 = vpop.f32.mrf.mxu0
  %v7105 = vpop.f32.mrf.mxu0
  %v7106 = vadd.f32 %v6882, %v7105
  %v7107 = vpop.f32.mrf.mxu0
  %7108 = vmatprep.mubr.bf16.mxu0 %v6966
  %7109 = vmatmul.mubr.bf16.gmra.mxu0 %v6795
  %v7110 = vpop.f32.mrf.mxu0
  %v7111 = vadd.f32 %v6882, %v7110
  %v7112 = vpop.f32.mrf.mxu0
  %v7113 = vpop.f32.mrf.mxu0
  %v7114 = vadd.f32 %v6882, %v7113
  %v7115 = vpop.f32.mrf.mxu0
  %7116 = vmatprep.mubr.bf16.mxu0 %v6969
  %7117 = vmatmul.mubr.bf16.gmra.mxu0 %v6797
  %v7118 = vpop.f32.mrf.mxu0
  %v7119 = vadd.f32 %v6882, %v7118
  %v7120 = vpop.f32.mrf.mxu0
  %v7121 = vpop.f32.mrf.mxu0
  %v7122 = vadd.f32 %v6882, %v7121
  %v7123 = vpop.f32.mrf.mxu0
  %7124 = vmatprep.mubr.bf16.mxu0 %v6972
  %7125 = vmatmul.mubr.bf16.gmra.mxu0 %v6799
  %v7126 = vpop.f32.mrf.mxu0
  %v7127 = vadd.f32 %v6882, %v7126
  %v7128 = vpop.f32.mrf.mxu0
  %v7129 = vpop.f32.mrf.mxu0
  %v7130 = vadd.f32 %v6882, %v7129
  %v7131 = vpop.f32.mrf.mxu0
  %7132 = vmatprep.mubr.bf16.mxu0 %v6975
  %7133 = vmatmul.mubr.bf16.gmra.mxu0 %v6801
  %v7134 = vpop.f32.mrf.mxu0
  %v7135 = vadd.f32 %v6882, %v7134
  %v7136 = vpop.f32.mrf.mxu0
  %v7137 = vpop.f32.mrf.mxu0
  %v7138 = vadd.f32 %v6882, %v7137
  %v7139 = vpop.f32.mrf.mxu0
  %7140 = vmatprep.mubr.bf16.mxu0 %v6978
  %7141 = vmatmul.mubr.bf16.gmra.mxu0 %v6803
  %v7142 = vpop.f32.mrf.mxu0
  %v7143 = vadd.f32 %v6882, %v7142
  %v7144 = vpop.f32.mrf.mxu0
  %v7145 = vpop.f32.mrf.mxu0
  %v7146 = vadd.f32 %v6882, %v7145
  %v7147 = vpop.f32.mrf.mxu0
  %7148 = vmatprep.mubr.bf16.mxu0 %v6981
  %7149 = vmatmul.mubr.bf16.gmra.mxu0 %v6805
  %v7150 = vpop.f32.mrf.mxu0
  %v7151 = vadd.f32 %v6882, %v7150
  %v7152 = vpop.f32.mrf.mxu0
  %v7153 = vpop.f32.mrf.mxu0
  %v7154 = vadd.f32 %v6882, %v7153
  %v7155 = vpop.f32.mrf.mxu0
  %7156 = vmatprep.mubr.bf16.mxu0 %v6984
  %7157 = vmatmul.mubr.bf16.gmra.mxu0 %v6807
  %v7158 = vpop.f32.mrf.mxu0
  %v7159 = vadd.f32 %v6882, %v7158
  %v7160 = vpop.f32.mrf.mxu0
  %v7161 = vpop.f32.mrf.mxu0
  %v7162 = vadd.f32 %v6882, %v7161
  %v7163 = vpop.f32.mrf.mxu0
  %7164 = vmatprep.mubr.bf16.mxu0 %v6987
  %7165 = vmatmul.mubr.bf16.gmra.mxu0 %v6809
  %v7166 = vpop.f32.mrf.mxu0
  %v7167 = vadd.f32 %v6882, %v7166
  %v7168 = vpop.f32.mrf.mxu0
  %v7169 = vpop.f32.mrf.mxu0
  %v7170 = vadd.f32 %v6882, %v7169
  %v7171 = vpop.f32.mrf.mxu0
  %7172 = vmatprep.mubr.bf16.mxu0 %v6990
  %7173 = vmatmul.mubr.bf16.gmra.mxu0 %v6811
  %v7174 = vpop.f32.mrf.mxu0
  %v7175 = vadd.f32 %v6882, %v7174
  %v7176 = vpop.f32.mrf.mxu0
  %v7177 = vpop.f32.mrf.mxu0
  %v7178 = vadd.f32 %v6882, %v7177
  %v7179 = vpop.f32.mrf.mxu0
  %7180 = vmatprep.mubr.bf16.mxu0 %v6993
  %7181 = vmatmul.mubr.bf16.gmra.mxu0 %v6813
  %v7182 = vpop.f32.mrf.mxu0
  %v7183 = vadd.f32 %v6882, %v7182
  %v7184 = vpop.f32.mrf.mxu0
  %v7185 = vpop.f32.mrf.mxu0
  %v7186 = vadd.f32 %v6882, %v7185
  %v7187 = vpop.f32.mrf.mxu0
  %7188 = vmatprep.mubr.bf16.mxu0 %v6996
  %7189 = vmatmul.mubr.bf16.gmra.mxu0 %v6815
  %v7190 = vpop.f32.mrf.mxu0
  %v7191 = vadd.f32 %v6882, %v7190
  %v7192 = vpop.f32.mrf.mxu0
  %v7193 = vpop.f32.mrf.mxu0
  %v7194 = vadd.f32 %v6882, %v7193
  %v7195 = vpop.f32.mrf.mxu0
  %7196 = vmatprep.mubr.bf16.mxu0 %v6999
  %7197 = vmatmul.mubr.bf16.gmra.mxu0 %v6817
  %v7198 = vpop.f32.mrf.mxu0
  %v7199 = vadd.f32 %v6882, %v7198
  %v7200 = vpop.f32.mrf.mxu0
  %v7201 = vpop.f32.mrf.mxu0
  %v7202 = vadd.f32 %v6882, %v7201
  %v7203 = vpop.f32.mrf.mxu0
  %7204 = vmatprep.mubr.bf16.mxu0 %v7002
  %7205 = vmatmul.mubr.bf16.gmra.mxu0 %v6819
  %v7206 = vpop.f32.mrf.mxu0
  %v7207 = vadd.f32 %v6882, %v7206
  %v7208 = vpop.f32.mrf.mxu0
  %v7209 = vpop.f32.mrf.mxu0
  %v7210 = vadd.f32 %v6882, %v7209
  %v7211 = vpop.f32.mrf.mxu0
  %7212 = vmatprep.mubr.bf16.mxu0 %v7005
  %7213 = vmatmul.mubr.bf16.gmra.mxu0 %v6821
  %v7214 = vpop.f32.mrf.mxu0
  %v7215 = vadd.f32 %v6882, %v7214
  %v7216 = vpop.f32.mrf.mxu0
  %v7217 = vpop.f32.mrf.mxu0
  %v7218 = vadd.f32 %v6882, %v7217
  %v7219 = vpop.f32.mrf.mxu0
  %7220 = vmatprep.mubr.bf16.mxu0 %v7008
  %7221 = vmatmul.mubr.bf16.gmra.mxu0 %v6823
  %v7222 = vpop.f32.mrf.mxu0
  %v7223 = vadd.f32 %v6882, %v7222
  %v7224 = vpop.f32.mrf.mxu0
  %v7225 = vpop.f32.mrf.mxu0
  %v7226 = vadd.f32 %v6882, %v7225
  %v7227 = vpop.f32.mrf.mxu0
  %7228 = vmatprep.mubr.bf16.mxu0 %v7011
  %7229 = vmatmul.mubr.bf16.gmra.mxu0 %v6825
  %v7230 = vpop.f32.mrf.mxu0
  %v7231 = vadd.f32 %v6882, %v7230
  %v7232 = vpop.f32.mrf.mxu0
  %v7233 = vpop.f32.mrf.mxu0
  %v7234 = vadd.f32 %v6882, %v7233
  %v7235 = vpop.f32.mrf.mxu0
  %7236 = vmatprep.mubr.bf16.mxu0 %v7014
  %7237 = vmatmul.mubr.bf16.gmra.mxu0 %v6827
  %v7238 = vpop.f32.mrf.mxu0
  %v7239 = vadd.f32 %v6882, %v7238
  %v7240 = vpop.f32.mrf.mxu0
  %v7241 = vpop.f32.mrf.mxu0
  %v7242 = vadd.f32 %v6882, %v7241
  %v7243 = vpop.f32.mrf.mxu0
  %7244 = vmatprep.mubr.bf16.mxu0 %v7017
  %7245 = vmatmul.mubr.bf16.gmra.mxu0 %v6829
  %v7246 = vpop.f32.mrf.mxu0
  %v7247 = vadd.f32 %v6882, %v7246
  %v7248 = vpop.f32.mrf.mxu0
  %v7249 = vpop.f32.mrf.mxu0
  %v7250 = vadd.f32 %v6882, %v7249
  %v7251 = vpop.f32.mrf.mxu0
  %7252 = vmatprep.mubr.bf16.mxu0 %v7020
  %7253 = vmatmul.mubr.bf16.gmra.mxu0 %v6831
  %v7254 = vpop.f32.mrf.mxu0
  %v7255 = vadd.f32 %v6882, %v7254
  %v7256 = vpop.f32.mrf.mxu0
  %v7257 = vpop.f32.mrf.mxu0
  %v7258 = vadd.f32 %v6882, %v7257
  %v7259 = vpop.f32.mrf.mxu0
  %7260 = vmatprep.mubr.bf16.mxu0 %v7023
  %7261 = vmatmul.mubr.bf16.gmra.mxu0 %v6833
  %v7262 = vpop.f32.mrf.mxu0
  %v7263 = vadd.f32 %v6882, %v7262
  %v7264 = vpop.f32.mrf.mxu0
  %v7265 = vpop.f32.mrf.mxu0
  %v7266 = vadd.f32 %v6882, %v7265
  %v7267 = vpop.f32.mrf.mxu0
  %7268 = vmatprep.mubr.bf16.mxu0 %v7026
  %7269 = vmatmul.mubr.bf16.gmra.mxu0 %v6835
  %v7270 = vpop.f32.mrf.mxu0
  %v7271 = vadd.f32 %v6882, %v7270
  %v7272 = vpop.f32.mrf.mxu0
  %v7273 = vpop.f32.mrf.mxu0
  %v7274 = vadd.f32 %v6882, %v7273
  %v7275 = vpop.f32.mrf.mxu0
  %7276 = vmatprep.mubr.bf16.mxu0 %v7029
  %7277 = vmatmul.mubr.bf16.gmra.mxu0 %v6837
  %v7278 = vpop.f32.mrf.mxu0
  %v7279 = vadd.f32 %v6882, %v7278
  %v7280 = vpop.f32.mrf.mxu0
  %v7281 = vpop.f32.mrf.mxu0
  %v7282 = vadd.f32 %v6882, %v7281
  %v7283 = vpop.f32.mrf.mxu0
  %7284 = vmatprep.mubr.bf16.mxu0 %v7032
  %7285 = vmatmul.mubr.bf16.gmra.mxu0 %v6839
  %v7286 = vpop.f32.mrf.mxu0
  %v7287 = vadd.f32 %v6882, %v7286
  %v7288 = vpop.f32.mrf.mxu0
  %v7289 = vpop.f32.mrf.mxu0
  %v7290 = vadd.f32 %v6882, %v7289
  %v7291 = vpop.f32.mrf.mxu0
  %7292 = vmatprep.mubr.bf16.mxu0 %v7035
  %7293 = vmatmul.mubr.bf16.gmra.mxu0 %v6841
  %v7294 = vpop.f32.mrf.mxu0
  %v7295 = vadd.f32 %v6882, %v7294
  %v7296 = vpop.f32.mrf.mxu0
  %v7297 = vpop.f32.mrf.mxu0
  %v7298 = vadd.f32 %v6882, %v7297
  %v7299 = vpop.f32.mrf.mxu0
  %7300 = vmatprep.mubr.bf16.mxu0 %v7038
  %7301 = vmatmul.mubr.bf16.gmra.mxu0 %v6843
  %v7302 = vpop.f32.mrf.mxu0
  %v7303 = vadd.f32 %v6882, %v7302
  %v7304 = vpop.f32.mrf.mxu0
  %v7305 = vpop.f32.mrf.mxu0
  %v7306 = vadd.f32 %v6882, %v7305
  %v7307 = vpop.f32.mrf.mxu0
  %7308 = vmatprep.mubr.bf16.mxu0 %v7041
  %7309 = vmatmul.mubr.bf16.gmra.mxu0 %v6845
  %v7310 = vpop.f32.mrf.mxu0
  %v7311 = vadd.f32 %v6882, %v7310
  %v7312 = vpop.f32.mrf.mxu0
  %v7313 = vpop.f32.mrf.mxu0
  %v7314 = vadd.f32 %v6882, %v7313
  %v7315 = vpop.f32.mrf.mxu0
  %7316 = vmatprep.mubr.bf16.mxu0 %v7044
  %7317 = vmatmul.mubr.bf16.gmra.mxu0 %v6847
  %v7318 = vpop.f32.mrf.mxu0
  %v7319 = vadd.f32 %v6882, %v7318
  %v7320 = vpop.f32.mrf.mxu0
  %v7321 = vpop.f32.mrf.mxu0
  %v7322 = vadd.f32 %v6882, %v7321
  %v7323 = vpop.f32.mrf.mxu0
  %7324 = vmatprep.mubr.bf16.mxu0 %v7047
  %7325 = vmatmul.mubr.bf16.gmra.mxu0 %v6849
  %v7326 = vpop.f32.mrf.mxu0
  %v7327 = vadd.f32 %v6882, %v7326
  %v7328 = vpop.f32.mrf.mxu0
  %v7329 = vpop.f32.mrf.mxu0
  %v7330 = vadd.f32 %v6882, %v7329
  %v7331 = vpop.f32.mrf.mxu0
  %7332 = vmatprep.mubr.bf16.mxu0 %v7050
  %7333 = vmatmul.mubr.bf16.gmra.mxu0 %v6851
  %v7334 = vpop.f32.mrf.mxu0
  %v7335 = vadd.f32 %v6882, %v7334
  %v7336 = vpop.f32.mrf.mxu0
  %v7337 = vpop.f32.mrf.mxu0
  %v7338 = vadd.f32 %v6882, %v7337
  %v7339 = vpop.f32.mrf.mxu0
  %7340 = vdwg.mxu0
  %7341 = vxpose.xlu0.b32.start [1/16] %v7087, 128
  %7342 = vxpose.xlu0.b32.cont [2/16] %v7090, 128
  %7343 = vxpose.xlu0.b32.cont [3/16] %v7095, 128
  %7344 = vxpose.xlu0.b32.cont [4/16] %v7098, 128
  %7345 = vxpose.xlu0.b32.cont [5/16] %v7103, 128
  %7346 = vxpose.xlu0.b32.cont [6/16] %v7106, 128
  %7347 = vxpose.xlu0.b32.cont [7/16] %v7111, 128
  %7348 = vxpose.xlu0.b32.cont [8/16] %v7114, 128
  %7349 = vxpose.xlu0.b32.cont [9/16] %v7119, 128
  %7350 = vxpose.xlu0.b32.cont [10/16] %v7122, 128
  %7351 = vxpose.xlu0.b32.cont [11/16] %v7127, 128
  %7352 = vxpose.xlu0.b32.cont [12/16] %v7130, 128
  %7353 = vxpose.xlu0.b32.cont [13/16] %v7135, 128
  %7354 = vxpose.xlu0.b32.cont [14/16] %v7138, 128
  %7355 = vxpose.xlu0.b32.cont [15/16] %v7143, 128
  %7356 = vxpose.xlu0.b32.end [16/16] %v7146, 128
  %v7357 = vpop.trf.xlu0
  %v7358 = vpop.trf.xlu0
  %v7359 = vpop.trf.xlu0
  %v7360 = vpop.trf.xlu0
  %v7361 = vpop.trf.xlu0
  %v7362 = vpop.trf.xlu0
  %v7363 = vpop.trf.xlu0
  %v7364 = vpop.trf.xlu0
  %v7365 = vpop.trf.xlu0
  %v7366 = vpop.trf.xlu0
  %v7367 = vpop.trf.xlu0
  %v7368 = vpop.trf.xlu0
  %v7369 = vpop.trf.xlu0
  %v7370 = vpop.trf.xlu0
  %v7371 = vpop.trf.xlu0
  %v7372 = vpop.trf.xlu0
  %7373 = vxpose.xlu0.b32.start [1/16] %v7151, 128
  %7374 = vxpose.xlu0.b32.cont [2/16] %v7154, 128
  %7375 = vxpose.xlu0.b32.cont [3/16] %v7159, 128
  %7376 = vxpose.xlu0.b32.cont [4/16] %v7162, 128
  %7377 = vxpose.xlu0.b32.cont [5/16] %v7167, 128
  %7378 = vxpose.xlu0.b32.cont [6/16] %v7170, 128
  %7379 = vxpose.xlu0.b32.cont [7/16] %v7175, 128
  %7380 = vxpose.xlu0.b32.cont [8/16] %v7178, 128
  %7381 = vxpose.xlu0.b32.cont [9/16] %v7183, 128
  %7382 = vxpose.xlu0.b32.cont [10/16] %v7186, 128
  %7383 = vxpose.xlu0.b32.cont [11/16] %v7191, 128
  %7384 = vxpose.xlu0.b32.cont [12/16] %v7194, 128
  %7385 = vxpose.xlu0.b32.cont [13/16] %v7199, 128
  %7386 = vxpose.xlu0.b32.cont [14/16] %v7202, 128
  %7387 = vxpose.xlu0.b32.cont [15/16] %v7207, 128
  %7388 = vxpose.xlu0.b32.end [16/16] %v7210, 128
  %v7389 = vpop.trf.xlu0
  %v7390 = vpop.trf.xlu0
  %v7391 = vpop.trf.xlu0
  %v7392 = vpop.trf.xlu0
  %v7393 = vpop.trf.xlu0
  %v7394 = vpop.trf.xlu0
  %v7395 = vpop.trf.xlu0
  %v7396 = vpop.trf.xlu0
  %v7397 = vpop.trf.xlu0
  %v7398 = vpop.trf.xlu0
  %v7399 = vpop.trf.xlu0
  %v7400 = vpop.trf.xlu0
  %v7401 = vpop.trf.xlu0
  %v7402 = vpop.trf.xlu0
  %v7403 = vpop.trf.xlu0
  %v7404 = vpop.trf.xlu0
  %v7405 = vxor.u32 %v7357, 2147483648
  %v7406 = vxor.u32 %v7389, 2147483648
  %v7407 = vmul.f32 %v7405, 1.442695
  %v7408 = vpow.pop %v7407
  %v7409 = vmul.f32 %v7406, 1.442695
  %v7410 = vpow.pop %v7409
  %v7411 = vadd.f32 %v7408, 1.0
  %v7412 = vadd.f32 %v7410, 1.0
  %v7413 = vrcp.pop %v7411
  %v7414 = vmul.f32 1.0, %v7413
  %v7415 = vrcp.pop %v7412
  %v7416 = vmul.f32 1.0, %v7415
  %7417 = vst [vmem:[%s5] sm:$0xff] %v7414
  %7418 = vst [vmem:[%s5 + $0x8] sm:$0xff] %v7416
  %7419 = vst [vmem:[%s5 + $0x10] sm:$0xf] %v7358
  %7420 = vst [vmem:[%s5 + $0x18] sm:$0xf] %v7390
  %7421 = vxpose.xlu0.b32.start [1/16] %v7215, 128
  %7422 = vxpose.xlu0.b32.cont [2/16] %v7218, 128
  %7423 = vxpose.xlu0.b32.cont [3/16] %v7223, 128
  %7424 = vxpose.xlu0.b32.cont [4/16] %v7226, 128
  %7425 = vxpose.xlu0.b32.cont [5/16] %v7231, 128
  %7426 = vxpose.xlu0.b32.cont [6/16] %v7234, 128
  %7427 = vxpose.xlu0.b32.cont [7/16] %v7239, 128
  %7428 = vxpose.xlu0.b32.cont [8/16] %v7242, 128
  %7429 = vxpose.xlu0.b32.cont [9/16] %v7247, 128
  %7430 = vxpose.xlu0.b32.cont [10/16] %v7250, 128
  %7431 = vxpose.xlu0.b32.cont [11/16] %v7255, 128
  %7432 = vxpose.xlu0.b32.cont [12/16] %v7258, 128
  %7433 = vxpose.xlu0.b32.cont [13/16] %v7263, 128
  %7434 = vxpose.xlu0.b32.cont [14/16] %v7266, 128
  %7435 = vxpose.xlu0.b32.cont [15/16] %v7271, 128
  %7436 = vxpose.xlu0.b32.end [16/16] %v7274, 128
  %v7437 = vpop.trf.xlu0
  %v7438 = vpop.trf.xlu0
  %v7439 = vpop.trf.xlu0
  %v7440 = vpop.trf.xlu0
  %v7441 = vpop.trf.xlu0
  %v7442 = vpop.trf.xlu0
  %v7443 = vpop.trf.xlu0
  %v7444 = vpop.trf.xlu0
  %v7445 = vpop.trf.xlu0
  %v7446 = vpop.trf.xlu0
  %v7447 = vpop.trf.xlu0
  %v7448 = vpop.trf.xlu0
  %v7449 = vpop.trf.xlu0
  %v7450 = vpop.trf.xlu0
  %v7451 = vpop.trf.xlu0
  %v7452 = vpop.trf.xlu0
  %7453 = vxpose.xlu0.b32.start [1/16] %v7279, 128
  %7454 = vxpose.xlu0.b32.cont [2/16] %v7282, 128
  %7455 = vxpose.xlu0.b32.cont [3/16] %v7287, 128
  %7456 = vxpose.xlu0.b32.cont [4/16] %v7290, 128
  %7457 = vxpose.xlu0.b32.cont [5/16] %v7295, 128
  %7458 = vxpose.xlu0.b32.cont [6/16] %v7298, 128
  %7459 = vxpose.xlu0.b32.cont [7/16] %v7303, 128
  %7460 = vxpose.xlu0.b32.cont [8/16] %v7306, 128
  %7461 = vxpose.xlu0.b32.cont [9/16] %v7311, 128
  %7462 = vxpose.xlu0.b32.cont [10/16] %v7314, 128
  %7463 = vxpose.xlu0.b32.cont [11/16] %v7319, 128
  %7464 = vxpose.xlu0.b32.cont [12/16] %v7322, 128
  %7465 = vxpose.xlu0.b32.cont [13/16] %v7327, 128
  %7466 = vxpose.xlu0.b32.cont [14/16] %v7330, 128
  %7467 = vxpose.xlu0.b32.cont [15/16] %v7335, 128
  %7468 = vxpose.xlu0.b32.end [16/16] %v7338, 128
  %v7469 = vpop.trf.xlu0
  %v7470 = vpop.trf.xlu0
  %v7471 = vpop.trf.xlu0
  %v7472 = vpop.trf.xlu0
  %v7473 = vpop.trf.xlu0
  %v7474 = vpop.trf.xlu0
  %v7475 = vpop.trf.xlu0
  %v7476 = vpop.trf.xlu0
  %v7477 = vpop.trf.xlu0
  %v7478 = vpop.trf.xlu0
  %v7479 = vpop.trf.xlu0
  %v7480 = vpop.trf.xlu0
  %v7481 = vpop.trf.xlu0
  %v7482 = vpop.trf.xlu0
  %v7483 = vpop.trf.xlu0
  %v7484 = vpop.trf.xlu0
  %v7485 = vxor.u32 %v7437, 2147483648
  %v7486 = vxor.u32 %v7469, 2147483648
  %v7487 = vmul.f32 %v7485, 1.442695
  %v7488 = vpow.pop %v7487
  %v7489 = vmul.f32 %v7486, 1.442695
  %v7490 = vpow.pop %v7489
  %v7491 = vadd.f32 %v7488, 1.0
  %v7492 = vadd.f32 %v7490, 1.0
  %v7493 = vrcp.pop %v7491
  %v7494 = vmul.f32 1.0, %v7493
  %v7495 = vrcp.pop %v7492
  %v7496 = vmul.f32 1.0, %v7495
  %s7497 = scalar_lea.vmem %s5, 32
  %7498 = vst [vmem:[%s7497] sm:$0xff] %v7494
  %7499 = vst [vmem:[%s7497 + $0x8] sm:$0xff] %v7496
  %7500 = vst [vmem:[%s7497 + $0x10] sm:$0xf] %v7438
  %7501 = vst [vmem:[%s7497 + $0x18] sm:$0xf] %v7470
  // Predicated region
  $region22: #{tpu_custom_call.1} parent=0 // pred_check
    _
  $region23: #{tpu_custom_call.1} parent=0 // pred_check_branch
    %7503 = sbr.rel (0) target = $region25
  $region24: #{tpu_custom_call.1} parent=0 // pred_region
    _
  $region25: #{tpu_custom_call.1} parent=0 // pred_fallthru
    _
  // Predicated region
  $region26: #{tpu_custom_call.1} parent=0 // pred_check
    _
  $region27: #{tpu_custom_call.1} parent=0 // pred_check_branch
    %7505 = sbr.rel (0) target = $region29
  $region28: #{tpu_custom_call.1} parent=0 // pred_region
    _
  $region29: #{tpu_custom_call.1} parent=0 // pred_fallthru
    _

</llo_original>
